<compile_context>
chip_gen: v7x
topology: tpu7x:2x2x1
jax: 0.10.0
libtpu: 0.0.40
codegen_flags: <defaults>
</compile_context>

<pallas_src>
import math
import numpy as np
import jax
import jax.numpy as jnp
from jax.experimental import pallas as pl
from jax.experimental.pallas import tpu as pltpu


# ----------------------------------------------------------------------------- params
def init_params(key, channel=32, rate_reduct=16):
    c_r = channel // rate_reduct
    ks = jax.random.split(key, 10)

    def u(k, shape, fan_in):
        bound = 1.0 / math.sqrt(fan_in)
        return jax.random.uniform(k, shape, jnp.float32, -bound, bound)

    return dict(
        # conv_down / conv_up are 1x1 convs, bias=False -> plain (O, I) matrices
        w_down=u(ks[0], (c_r, channel), channel),
        w_up=u(ks[1], (channel, c_r), c_r),
        # spatial convs: 2->1 channels, k = 3 / 5 / 7, with bias
        w_l1=u(ks[2], (1, 2, 3, 3), 2 * 9),  b_l1=u(ks[3], (1,), 2 * 9),
        w_l2=u(ks[4], (1, 2, 5, 5), 2 * 25), b_l2=u(ks[5], (1,), 2 * 25),
        w_l3=u(ks[6], (1, 2, 7, 7), 2 * 49), b_l3=u(ks[7], (1,), 2 * 49),
        # conv_rw: 3->1, 1x1, with bias
        w_rw=u(ks[8], (1, 3, 1, 1), 3),      b_rw=u(ks[9], (1,), 3),
    )


# --------------------------------------------------------------------------- forward
def mulfcam_pallas(x, params):
    B, C, H, W = x.shape
    HW = H * W
    P = 3                                  # max padding (7x7 conv)
    K = 2 * P + 1                          # 7 taps per axis
    Hp = H + 2 * P

    # host-side layout plumbing (metadata only)
    x2 = x.reshape(B, C, HW)               # NCHW -> (B, C, H*W), lane-dense
    wdT = params["w_down"].T               # (C, Cr): pre-transposed for the VPU path
    wu = params["w_up"]                    # (C, Cr)
    w_loc = jnp.concatenate([params["w_l1"].reshape(-1),
                             params["w_l2"].reshape(-1),
                             params["w_l3"].reshape(-1)])                 # (166,)
    scal = jnp.concatenate([params["b_l1"], params["b_l2"], params["b_l3"],
                            params["w_rw"].reshape(-1), params["b_rw"]])  # (7,)
    off3, off5, off7 = 0, 2 * 3 * 3, 2 * 3 * 3 + 2 * 5 * 5   # flat-weight offsets

    def kernel(x_ref, wdT_ref, wu_ref, wloc_ref, scal_ref, out_ref, shift_ref):
        # One-time zero fill: per-batch stores below only rewrite the interior rows, so
        # the P-row top/bottom borders stay zero for every (c, k) view.
        shift_ref[...] = jnp.zeros((2, K, Hp, W), jnp.float32)

        def unflatten(v):        # (1, HW) -> (H, W): static lane slices + sublane concat
            return jnp.concatenate([v[:, i * W:(i + 1) * W] for i in range(H)], axis=0)

        def col_shift(m, d):     # out[:, x] = m[:, x + d] if 0 <= x + d < W else 0
            if d > 0:
                return jnp.concatenate([m[:, d:], jnp.zeros((H, d), jnp.float32)], axis=1)
            if d < 0:
                return jnp.concatenate([jnp.zeros((H, -d), jnp.float32), m[:, :W + d]], axis=1)
            return m

        for b in range(B):       # grid collapsed: unrolled batch loop (B is small)
            # ---------------- channel attention (both module pools are avg pools) ------
            xv = x_ref[b]                                      # (C, HW) lane-dense
            avg = jnp.mean(xv, axis=1, keepdims=True)          # global avg pool (C, 1)
            # 1x1-conv MLP on the VPU (no N=1 MXU dots):
            h = jnp.maximum(jnp.sum(wdT_ref[...] * avg, axis=0, keepdims=True), 0.0)  # (1,Cr)
            up = jnp.sum(wu_ref[...] * h, axis=1, keepdims=True)                      # (C,1)
            att = jax.nn.sigmoid(up + up)                      # y_a + y_m (identical)
            xa = xv * att                                      # (C, HW)
            out_ref[b] = xa          # park xa in VMEM; not live across the tap loop

            # ---------------- channel mean / max --------------------------------------
            cm = jnp.mean(xa, axis=0, keepdims=True)           # (1, HW)
            cx = jnp.max(xa, axis=0, keepdims=True)            # (1, HW)
            maps = (unflatten(cm), unflatten(cx))              # two (H, W) maps

            # ---------------- 14 hoisted lane shifts -> VMEM scratch -------------------
            # shift_ref[c, k, P:P+H, :] = map_c shifted by (k - P) columns, zero padded.
            for c in range(2):
                for k in range(K):
                    shift_ref[c, k, P:P + H, :] = col_shift(maps[c], k - P)

            # ---------------- multi-scale conv: sublane-offset loads only --------------
            acc3 = jnp.zeros((H, W), jnp.float32) + scal_ref[0]   # conv biases
            acc5 = jnp.zeros((H, W), jnp.float32) + scal_ref[1]
            acc7 = jnp.zeros((H, W), jnp.float32) + scal_ref[2]
            for c in range(2):
                for k in range(K):                    # column offset (hoisted lane shift)
                    for u in range(K):                # row offset (sublane-offset load)
                        win = shift_ref[c, k, u:u + H, :]
                        acc7 = acc7 + wloc_ref[off7 + c * 49 + u * 7 + k] * win
                        if 1 <= u <= 5 and 1 <= k <= 5:
                            acc5 = acc5 + wloc_ref[off5 + c * 25 + (u - 1) * 5 + (k - 1)] * win
                        if 2 <= u <= 4 and 2 <= k <= 4:
                            acc3 = acc3 + wloc_ref[off3 + c * 9 + (u - 2) * 3 + (k - 2)] * win

            y = jax.nn.sigmoid(scal_ref[3] * jnp.maximum(acc3, 0.0)
                               + scal_ref[4] * jnp.maximum(acc5, 0.0)
                               + scal_ref[5] * jnp.maximum(acc7, 0.0)
                               + scal_ref[6])                   # conv_rw + sigmoid, (H, W)

            # (H, W) -> (1, HW), then multiply the parked xa (lane-dense store)
            y_flat = jnp.concatenate([y[i:i + 1, :] for i in range(H)], axis=1)  # (1, HW)
            out_ref[b] = out_ref[b] * y_flat

    out = pl.pallas_call(
        kernel,
        out_shape=jax.ShapeDtypeStruct((B, C, HW), jnp.float32),
        # No grid: single invocation, whole arrays resident in VMEM/SMEM (<1 MiB total).
        in_specs=[pl.BlockSpec(memory_space=pltpu.MemorySpace.VMEM),   # x2 (B, C, HW)
                  pl.BlockSpec(memory_space=pltpu.MemorySpace.VMEM),   # wdT (C, Cr)
                  pl.BlockSpec(memory_space=pltpu.MemorySpace.VMEM),   # wu  (C, Cr)
                  pl.BlockSpec(memory_space=pltpu.MemorySpace.SMEM),   # w_loc (166,)
                  pl.BlockSpec(memory_space=pltpu.MemorySpace.SMEM)],  # scal  (7,)
        out_specs=pl.BlockSpec(memory_space=pltpu.MemorySpace.VMEM),
        scratch_shapes=[pltpu.VMEM((2, K, Hp, W), jnp.float32)],
        # v7x-only further step: grid=(B,) + dimension_semantics=(pltpu.CORE_PARALLEL,)
        # would shard batches over the two TensorCores; omitted to keep one portable path.
    )(x2, wdT, wu, w_loc, scal)
    return out.reshape(B, C, H, W)


# --------------------------------------------------------------- pure-JAX reference
def mulfcam_ref(x, p):
    ya = jnp.mean(x, axis=(2, 3), keepdims=True)        # both pools are avg pools

    def mlp(v):
        h = jnp.einsum("oc,bcij->boij", p["w_down"], v)
        h = jnp.maximum(h, 0.0)
        return jnp.einsum("oc,bcij->boij", p["w_up"], h)

    y = jax.nn.sigmoid(mlp(ya) + mlp(ya))
    x = x * y
    cm = jnp.mean(x, axis=1, keepdims=True)
    cx = jnp.max(x, axis=1, keepdims=True)
    yc = jnp.concatenate([cm, cx], axis=1)

    def conv(inp, w, b, pad):
        o = jax.lax.conv_general_dilated(inp, w, (1, 1), [(pad, pad), (pad, pad)],
                                         dimension_numbers=("NCHW", "OIHW", "NCHW"))
        return o + b.reshape(1, -1, 1, 1)

    b1 = jnp.maximum(conv(yc, p["w_l1"], p["b_l1"], 1), 0.0)
    b2 = jnp.maximum(conv(yc, p["w_l2"], p["b_l2"], 2), 0.0)
    b3 = jnp.maximum(conv(yc, p["w_l3"], p["b_l3"], 3), 0.0)
    yb = jnp.concatenate([b1, b2, b3], axis=1)
    y2 = jax.nn.sigmoid(conv(yb, p["w_rw"], p["b_rw"], 0))
    return x * y2


if __name__ == "__main__":
    key = jax.random.PRNGKey(0)
    B, C, H, W = 2, 32, 16, 16          # channel must be >= rate_reduct (=16)
    kx, kp = jax.random.split(key)
    x = jax.random.normal(kx, (B, C, H, W), jnp.float32)
    params = init_params(kp, channel=C, rate_reduct=16)

    out = jax.jit(mulfcam_pallas)(x, params)
    out = jax.block_until_ready(out)

    ref = mulfcam_ref(x, params)
    np.testing.assert_allclose(np.asarray(out), np.asarray(ref), rtol=1e-2, atol=1e-4)
    print("KERNEL_OK")
</pallas_src>

<mosaic_0001>
module attributes {stable_mosaic.version = 11 : i64} {
  func.func @kernel(%arg0: memref<2x32x256xf32, #tpu.memory_space<vmem>>, %arg1: memref<32x2xf32, #tpu.memory_space<vmem>>, %arg2: memref<32x2xf32, #tpu.memory_space<vmem>>, %arg3: memref<166xf32, #tpu.memory_space<smem>>, %arg4: memref<7xf32, #tpu.memory_space<smem>>, %arg5: memref<2x32x256xf32, #tpu.memory_space<vmem>>, %arg6: memref<2x7x22x16xf32, #tpu.memory_space<vmem>>) attributes {dimension_semantics = [], scalar_prefetch = 0 : i64, scratch_operands = 1 : i64, tpu.core_type = #tpu.core_type<tc>} {
    %cst = arith.constant 0.000000e+00 : f32
    %0 = vector.broadcast %cst : f32 to vector<2x7x22x16xf32>
    %c0 = arith.constant 0 : index
    %c0_0 = arith.constant 0 : index
    %c0_1 = arith.constant 0 : index
    %c0_2 = arith.constant 0 : index
    %1 = vector.load %arg6[%c0, %c0_0, %c0_1, %c0_2] : memref<2x7x22x16xf32, #tpu.memory_space<vmem>>, vector<2x7x22x16xf32>
    tpu.vector_store %arg6[%c0, %c0_0, %c0_1, %c0_2], %0 {strides = array<i32>} : memref<2x7x22x16xf32, #tpu.memory_space<vmem>>, vector<2x7x22x16xf32>,
    %c0_3 = arith.constant 0 : index
    %c0_4 = arith.constant 0 : index
    %c0_5 = arith.constant 0 : index
    %2 = vector.load %arg0[%c0_3, %c0_4, %c0_5] : memref<2x32x256xf32, #tpu.memory_space<vmem>>, vector<1x32x256xf32>
    %3 = vector.shape_cast %2 : vector<1x32x256xf32> to vector<32x256xf32>
    %cst_6 = arith.constant dense<0.000000e+00> : vector<32xf32>
    %4 = vector.multi_reduction <add>, %3, %cst_6 [1] : vector<32x256xf32> to vector<32xf32>
    %5 = vector.shape_cast %4 : vector<32xf32> to vector<32x1xf32>
    %cst_7 = arith.constant 2.560000e+02 : f32
    %6 = vector.broadcast %cst_7 : f32 to vector<32x1xf32>
    %7 = arith.divf %5, %6 : vector<32x1xf32>
    %c0_8 = arith.constant 0 : index
    %c0_9 = arith.constant 0 : index
    %8 = vector.load %arg1[%c0_8, %c0_9] : memref<32x2xf32, #tpu.memory_space<vmem>>, vector<32x2xf32>
    %9 = vector.broadcast %7 : vector<32x1xf32> to vector<32x2xf32>
    %10 = arith.mulf %8, %9 : vector<32x2xf32>
    %cst_10 = arith.constant dense<0.000000e+00> : vector<2xf32>
    %11 = vector.multi_reduction <add>, %10, %cst_10 [0] : vector<32x2xf32> to vector<2xf32>
    %12 = vector.shape_cast %11 : vector<2xf32> to vector<1x2xf32>
    %cst_11 = arith.constant 0.000000e+00 : f32
    %13 = vector.broadcast %cst_11 : f32 to vector<1x2xf32>
    %14 = arith.maximumf %12, %13 : vector<1x2xf32>
    %c0_12 = arith.constant 0 : index
    %c0_13 = arith.constant 0 : index
    %15 = vector.load %arg2[%c0_12, %c0_13] : memref<32x2xf32, #tpu.memory_space<vmem>>, vector<32x2xf32>
    %16 = vector.broadcast %14 : vector<1x2xf32> to vector<32x2xf32>
    %17 = arith.mulf %15, %16 : vector<32x2xf32>
    %cst_14 = arith.constant dense<0.000000e+00> : vector<32xf32>
    %18 = vector.multi_reduction <add>, %17, %cst_14 [1] : vector<32x2xf32> to vector<32xf32>
    %19 = vector.shape_cast %18 : vector<32xf32> to vector<32x1xf32>
    %20 = arith.addf %19, %19 : vector<32x1xf32>
    %21 = arith.negf %20 : vector<32x1xf32>
    %22 = math.exp %21 : vector<32x1xf32>
    %cst_15 = arith.constant 1.000000e+00 : f32
    %23 = vector.broadcast %cst_15 : f32 to vector<32x1xf32>
    %24 = arith.addf %23, %22 : vector<32x1xf32>
    %25 = arith.divf %23, %24 : vector<32x1xf32>
    %26 = vector.broadcast %25 : vector<32x1xf32> to vector<32x256xf32>
    %27 = arith.mulf %3, %26 : vector<32x256xf32>
    %c0_16 = arith.constant 0 : index
    %c0_17 = arith.constant 0 : index
    %c0_18 = arith.constant 0 : index
    %28 = vector.load %arg5[%c0_16, %c0_17, %c0_18] : memref<2x32x256xf32, #tpu.memory_space<vmem>>, vector<1x32x256xf32>
    %29 = vector.shape_cast %28 : vector<1x32x256xf32> to vector<32x256xf32>
    %30 = vector.shape_cast %27 : vector<32x256xf32> to vector<1x32x256xf32>
    tpu.vector_store %arg5[%c0_16, %c0_17, %c0_18], %30 {strides = array<i32>} : memref<2x32x256xf32, #tpu.memory_space<vmem>>, vector<1x32x256xf32>,
    %cst_19 = arith.constant dense<0.000000e+00> : vector<256xf32>
    %31 = vector.multi_reduction <add>, %27, %cst_19 [0] : vector<32x256xf32> to vector<256xf32>
    %32 = vector.shape_cast %31 : vector<256xf32> to vector<1x256xf32>
    %cst_20 = arith.constant 3.200000e+01 : f32
    %33 = vector.broadcast %cst_20 : f32 to vector<1x256xf32>
    %34 = arith.divf %32, %33 : vector<1x256xf32>
    %cst_21 = arith.constant dense<0xFF800000> : vector<256xf32>
    %35 = vector.multi_reduction <maximumf>, %27, %cst_21 [0] : vector<32x256xf32> to vector<256xf32>
    %36 = vector.shape_cast %35 : vector<256xf32> to vector<1x256xf32>
    %37 = vector.extract_strided_slice %34 {offsets = [0, 0], sizes = [1, 16], strides = [1, 1]} : vector<1x256xf32> to vector<1x16xf32>
    %38 = vector.extract_strided_slice %34 {offsets = [0, 16], sizes = [1, 16], strides = [1, 1]} : vector<1x256xf32> to vector<1x16xf32>
    %39 = vector.extract_strided_slice %34 {offsets = [0, 32], sizes = [1, 16], strides = [1, 1]} : vector<1x256xf32> to vector<1x16xf32>
    %40 = vector.extract_strided_slice %34 {offsets = [0, 48], sizes = [1, 16], strides = [1, 1]} : vector<1x256xf32> to vector<1x16xf32>
    %41 = vector.extract_strided_slice %34 {offsets = [0, 64], sizes = [1, 16], strides = [1, 1]} : vector<1x256xf32> to vector<1x16xf32>
    %42 = vector.extract_strided_slice %34 {offsets = [0, 80], sizes = [1, 16], strides = [1, 1]} : vector<1x256xf32> to vector<1x16xf32>
    %43 = vector.extract_strided_slice %34 {offsets = [0, 96], sizes = [1, 16], strides = [1, 1]} : vector<1x256xf32> to vector<1x16xf32>
    %44 = vector.extract_strided_slice %34 {offsets = [0, 112], sizes = [1, 16], strides = [1, 1]} : vector<1x256xf32> to vector<1x16xf32>
    %45 = vector.extract_strided_slice %34 {offsets = [0, 128], sizes = [1, 16], strides = [1, 1]} : vector<1x256xf32> to vector<1x16xf32>
    %46 = vector.extract_strided_slice %34 {offsets = [0, 144], sizes = [1, 16], strides = [1, 1]} : vector<1x256xf32> to vector<1x16xf32>
    %47 = vector.extract_strided_slice %34 {offsets = [0, 160], sizes = [1, 16], strides = [1, 1]} : vector<1x256xf32> to vector<1x16xf32>
    %48 = vector.extract_strided_slice %34 {offsets = [0, 176], sizes = [1, 16], strides = [1, 1]} : vector<1x256xf32> to vector<1x16xf32>
    %49 = vector.extract_strided_slice %34 {offsets = [0, 192], sizes = [1, 16], strides = [1, 1]} : vector<1x256xf32> to vector<1x16xf32>
    %50 = vector.extract_strided_slice %34 {offsets = [0, 208], sizes = [1, 16], strides = [1, 1]} : vector<1x256xf32> to vector<1x16xf32>
    %51 = vector.extract_strided_slice %34 {offsets = [0, 224], sizes = [1, 16], strides = [1, 1]} : vector<1x256xf32> to vector<1x16xf32>
    %52 = vector.extract_strided_slice %34 {offsets = [0, 240], sizes = [1, 16], strides = [1, 1]} : vector<1x256xf32> to vector<1x16xf32>
    %53 = tpu.concatenate %37, %38, %39, %40, %41, %42, %43, %44, %45, %46, %47, %48, %49, %50, %51, %52 in 0 : vector<1x16xf32>, vector<1x16xf32>, vector<1x16xf32>, vector<1x16xf32>, vector<1x16xf32>, vector<1x16xf32>, vector<1x16xf32>, vector<1x16xf32>, vector<1x16xf32>, vector<1x16xf32>, vector<1x16xf32>, vector<1x16xf32>, vector<1x16xf32>, vector<1x16xf32>, vector<1x16xf32>, vector<1x16xf32> -> vector<16x16xf32>
    %54 = vector.extract_strided_slice %36 {offsets = [0, 0], sizes = [1, 16], strides = [1, 1]} : vector<1x256xf32> to vector<1x16xf32>
    %55 = vector.extract_strided_slice %36 {offsets = [0, 16], sizes = [1, 16], strides = [1, 1]} : vector<1x256xf32> to vector<1x16xf32>
    %56 = vector.extract_strided_slice %36 {offsets = [0, 32], sizes = [1, 16], strides = [1, 1]} : vector<1x256xf32> to vector<1x16xf32>
    %57 = vector.extract_strided_slice %36 {offsets = [0, 48], sizes = [1, 16], strides = [1, 1]} : vector<1x256xf32> to vector<1x16xf32>
    %58 = vector.extract_strided_slice %36 {offsets = [0, 64], sizes = [1, 16], strides = [1, 1]} : vector<1x256xf32> to vector<1x16xf32>
    %59 = vector.extract_strided_slice %36 {offsets = [0, 80], sizes = [1, 16], strides = [1, 1]} : vector<1x256xf32> to vector<1x16xf32>
    %60 = vector.extract_strided_slice %36 {offsets = [0, 96], sizes = [1, 16], strides = [1, 1]} : vector<1x256xf32> to vector<1x16xf32>
    %61 = vector.extract_strided_slice %36 {offsets = [0, 112], sizes = [1, 16], strides = [1, 1]} : vector<1x256xf32> to vector<1x16xf32>
    %62 = vector.extract_strided_slice %36 {offsets = [0, 128], sizes = [1, 16], strides = [1, 1]} : vector<1x256xf32> to vector<1x16xf32>
    %63 = vector.extract_strided_slice %36 {offsets = [0, 144], sizes = [1, 16], strides = [1, 1]} : vector<1x256xf32> to vector<1x16xf32>
    %64 = vector.extract_strided_slice %36 {offsets = [0, 160], sizes = [1, 16], strides = [1, 1]} : vector<1x256xf32> to vector<1x16xf32>
    %65 = vector.extract_strided_slice %36 {offsets = [0, 176], sizes = [1, 16], strides = [1, 1]} : vector<1x256xf32> to vector<1x16xf32>
    %66 = vector.extract_strided_slice %36 {offsets = [0, 192], sizes = [1, 16], strides = [1, 1]} : vector<1x256xf32> to vector<1x16xf32>
    %67 = vector.extract_strided_slice %36 {offsets = [0, 208], sizes = [1, 16], strides = [1, 1]} : vector<1x256xf32> to vector<1x16xf32>
    %68 = vector.extract_strided_slice %36 {offsets = [0, 224], sizes = [1, 16], strides = [1, 1]} : vector<1x256xf32> to vector<1x16xf32>
    %69 = vector.extract_strided_slice %36 {offsets = [0, 240], sizes = [1, 16], strides = [1, 1]} : vector<1x256xf32> to vector<1x16xf32>
    %70 = tpu.concatenate %54, %55, %56, %57, %58, %59, %60, %61, %62, %63, %64, %65, %66, %67, %68, %69 in 0 : vector<1x16xf32>, vector<1x16xf32>, vector<1x16xf32>, vector<1x16xf32>, vector<1x16xf32>, vector<1x16xf32>, vector<1x16xf32>, vector<1x16xf32>, vector<1x16xf32>, vector<1x16xf32>, vector<1x16xf32>, vector<1x16xf32>, vector<1x16xf32>, vector<1x16xf32>, vector<1x16xf32>, vector<1x16xf32> -> vector<16x16xf32>
    %cst_22 = arith.constant 0.000000e+00 : f32
    %71 = vector.broadcast %cst_22 : f32 to vector<16x3xf32>
    %72 = vector.extract_strided_slice %53 {offsets = [0, 0], sizes = [16, 13], strides = [1, 1]} : vector<16x16xf32> to vector<16x13xf32>
    %73 = tpu.concatenate %71, %72 in 1 : vector<16x3xf32>, vector<16x13xf32> -> vector<16x16xf32>
    %c0_23 = arith.constant 0 : index
    %c0_24 = arith.constant 0 : index
    %c3 = arith.constant 3 : index
    %c0_25 = arith.constant 0 : index
    %74 = vector.load %arg6[%c0_23, %c0_24, %c3, %c0_25] : memref<2x7x22x16xf32, #tpu.memory_space<vmem>>, vector<1x1x16x16xf32>
    %75 = vector.shape_cast %74 : vector<1x1x16x16xf32> to vector<16x16xf32>
    %76 = vector.shape_cast %73 : vector<16x16xf32> to vector<1x1x16x16xf32>
    tpu.vector_store %arg6[%c0_23, %c0_24, %c3, %c0_25], %76 {strides = array<i32>} : memref<2x7x22x16xf32, #tpu.memory_space<vmem>>, vector<1x1x16x16xf32>,
    %cst_26 = arith.constant 0.000000e+00 : f32
    %77 = vector.broadcast %cst_26 : f32 to vector<16x2xf32>
    %78 = vector.extract_strided_slice %53 {offsets = [0, 0], sizes = [16, 14], strides = [1, 1]} : vector<16x16xf32> to vector<16x14xf32>
    %79 = tpu.concatenate %77, %78 in 1 : vector<16x2xf32>, vector<16x14xf32> -> vector<16x16xf32>
    %c0_27 = arith.constant 0 : index
    %c1 = arith.constant 1 : index
    %c3_28 = arith.constant 3 : index
    %c0_29 = arith.constant 0 : index
    %80 = vector.load %arg6[%c0_27, %c1, %c3_28, %c0_29] : memref<2x7x22x16xf32, #tpu.memory_space<vmem>>, vector<1x1x16x16xf32>
    %81 = vector.shape_cast %80 : vector<1x1x16x16xf32> to vector<16x16xf32>
    %82 = vector.shape_cast %79 : vector<16x16xf32> to vector<1x1x16x16xf32>
    tpu.vector_store %arg6[%c0_27, %c1, %c3_28, %c0_29], %82 {strides = array<i32>} : memref<2x7x22x16xf32, #tpu.memory_space<vmem>>, vector<1x1x16x16xf32>,
    %cst_30 = arith.constant 0.000000e+00 : f32
    %83 = vector.broadcast %cst_30 : f32 to vector<16x1xf32>
    %84 = vector.extract_strided_slice %53 {offsets = [0, 0], sizes = [16, 15], strides = [1, 1]} : vector<16x16xf32> to vector<16x15xf32>
    %85 = tpu.concatenate %83, %84 in 1 : vector<16x1xf32>, vector<16x15xf32> -> vector<16x16xf32>
    %c0_31 = arith.constant 0 : index
    %c2 = arith.constant 2 : index
    %c3_32 = arith.constant 3 : index
    %c0_33 = arith.constant 0 : index
    %86 = vector.load %arg6[%c0_31, %c2, %c3_32, %c0_33] : memref<2x7x22x16xf32, #tpu.memory_space<vmem>>, vector<1x1x16x16xf32>
    %87 = vector.shape_cast %86 : vector<1x1x16x16xf32> to vector<16x16xf32>
    %88 = vector.shape_cast %85 : vector<16x16xf32> to vector<1x1x16x16xf32>
    tpu.vector_store %arg6[%c0_31, %c2, %c3_32, %c0_33], %88 {strides = array<i32>} : memref<2x7x22x16xf32, #tpu.memory_space<vmem>>, vector<1x1x16x16xf32>,
    %c0_34 = arith.constant 0 : index
    %c3_35 = arith.constant 3 : index
    %c3_36 = arith.constant 3 : index
    %c0_37 = arith.constant 0 : index
    %89 = vector.load %arg6[%c0_34, %c3_35, %c3_36, %c0_37] : memref<2x7x22x16xf32, #tpu.memory_space<vmem>>, vector<1x1x16x16xf32>
    %90 = vector.shape_cast %89 : vector<1x1x16x16xf32> to vector<16x16xf32>
    %91 = vector.shape_cast %53 : vector<16x16xf32> to vector<1x1x16x16xf32>
    tpu.vector_store %arg6[%c0_34, %c3_35, %c3_36, %c0_37], %91 {strides = array<i32>} : memref<2x7x22x16xf32, #tpu.memory_space<vmem>>, vector<1x1x16x16xf32>,
    %92 = vector.extract_strided_slice %53 {offsets = [0, 1], sizes = [16, 15], strides = [1, 1]} : vector<16x16xf32> to vector<16x15xf32>
    %cst_38 = arith.constant 0.000000e+00 : f32
    %93 = vector.broadcast %cst_38 : f32 to vector<16x1xf32>
    %94 = tpu.concatenate %92, %93 in 1 : vector<16x15xf32>, vector<16x1xf32> -> vector<16x16xf32>
    %c0_39 = arith.constant 0 : index
    %c4 = arith.constant 4 : index
    %c3_40 = arith.constant 3 : index
    %c0_41 = arith.constant 0 : index
    %95 = vector.load %arg6[%c0_39, %c4, %c3_40, %c0_41] : memref<2x7x22x16xf32, #tpu.memory_space<vmem>>, vector<1x1x16x16xf32>
    %96 = vector.shape_cast %95 : vector<1x1x16x16xf32> to vector<16x16xf32>
    %97 = vector.shape_cast %94 : vector<16x16xf32> to vector<1x1x16x16xf32>
    tpu.vector_store %arg6[%c0_39, %c4, %c3_40, %c0_41], %97 {strides = array<i32>} : memref<2x7x22x16xf32, #tpu.memory_space<vmem>>, vector<1x1x16x16xf32>,
    %98 = vector.extract_strided_slice %53 {offsets = [0, 2], sizes = [16, 14], strides = [1, 1]} : vector<16x16xf32> to vector<16x14xf32>
    %cst_42 = arith.constant 0.000000e+00 : f32
    %99 = vector.broadcast %cst_42 : f32 to vector<16x2xf32>
    %100 = tpu.concatenate %98, %99 in 1 : vector<16x14xf32>, vector<16x2xf32> -> vector<16x16xf32>
    %c0_43 = arith.constant 0 : index
    %c5 = arith.constant 5 : index
    %c3_44 = arith.constant 3 : index
    %c0_45 = arith.constant 0 : index
    %101 = vector.load %arg6[%c0_43, %c5, %c3_44, %c0_45] : memref<2x7x22x16xf32, #tpu.memory_space<vmem>>, vector<1x1x16x16xf32>
    %102 = vector.shape_cast %101 : vector<1x1x16x16xf32> to vector<16x16xf32>
    %103 = vector.shape_cast %100 : vector<16x16xf32> to vector<1x1x16x16xf32>
    tpu.vector_store %arg6[%c0_43, %c5, %c3_44, %c0_45], %103 {strides = array<i32>} : memref<2x7x22x16xf32, #tpu.memory_space<vmem>>, vector<1x1x16x16xf32>,
    %104 = vector.extract_strided_slice %53 {offsets = [0, 3], sizes = [16, 13], strides = [1, 1]} : vector<16x16xf32> to vector<16x13xf32>
    %cst_46 = arith.constant 0.000000e+00 : f32
    %105 = vector.broadcast %cst_46 : f32 to vector<16x3xf32>
    %106 = tpu.concatenate %104, %105 in 1 : vector<16x13xf32>, vector<16x3xf32> -> vector<16x16xf32>
    %c0_47 = arith.constant 0 : index
    %c6 = arith.constant 6 : index
    %c3_48 = arith.constant 3 : index
    %c0_49 = arith.constant 0 : index
    %107 = vector.load %arg6[%c0_47, %c6, %c3_48, %c0_49] : memref<2x7x22x16xf32, #tpu.memory_space<vmem>>, vector<1x1x16x16xf32>
    %108 = vector.shape_cast %107 : vector<1x1x16x16xf32> to vector<16x16xf32>
    %109 = vector.shape_cast %106 : vector<16x16xf32> to vector<1x1x16x16xf32>
    tpu.vector_store %arg6[%c0_47, %c6, %c3_48, %c0_49], %109 {strides = array<i32>} : memref<2x7x22x16xf32, #tpu.memory_space<vmem>>, vector<1x1x16x16xf32>,
    %cst_50 = arith.constant 0.000000e+00 : f32
    %110 = vector.broadcast %cst_50 : f32 to vector<16x3xf32>
    %111 = vector.extract_strided_slice %70 {offsets = [0, 0], sizes = [16, 13], strides = [1, 1]} : vector<16x16xf32> to vector<16x13xf32>
    %112 = tpu.concatenate %110, %111 in 1 : vector<16x3xf32>, vector<16x13xf32> -> vector<16x16xf32>
    %c1_51 = arith.constant 1 : index
    %c0_52 = arith.constant 0 : index
    %c3_53 = arith.constant 3 : index
    %c0_54 = arith.constant 0 : index
    %113 = vector.load %arg6[%c1_51, %c0_52, %c3_53, %c0_54] : memref<2x7x22x16xf32, #tpu.memory_space<vmem>>, vector<1x1x16x16xf32>
    %114 = vector.shape_cast %113 : vector<1x1x16x16xf32> to vector<16x16xf32>
    %115 = vector.shape_cast %112 : vector<16x16xf32> to vector<1x1x16x16xf32>
    tpu.vector_store %arg6[%c1_51, %c0_52, %c3_53, %c0_54], %115 {strides = array<i32>} : memref<2x7x22x16xf32, #tpu.memory_space<vmem>>, vector<1x1x16x16xf32>,
    %cst_55 = arith.constant 0.000000e+00 : f32
    %116 = vector.broadcast %cst_55 : f32 to vector<16x2xf32>
    %117 = vector.extract_strided_slice %70 {offsets = [0, 0], sizes = [16, 14], strides = [1, 1]} : vector<16x16xf32> to vector<16x14xf32>
    %118 = tpu.concatenate %116, %117 in 1 : vector<16x2xf32>, vector<16x14xf32> -> vector<16x16xf32>
    %c1_56 = arith.constant 1 : index
    %c1_57 = arith.constant 1 : index
    %c3_58 = arith.constant 3 : index
    %c0_59 = arith.constant 0 : index
    %119 = vector.load %arg6[%c1_56, %c1_57, %c3_58, %c0_59] : memref<2x7x22x16xf32, #tpu.memory_space<vmem>>, vector<1x1x16x16xf32>
    %120 = vector.shape_cast %119 : vector<1x1x16x16xf32> to vector<16x16xf32>
    %121 = vector.shape_cast %118 : vector<16x16xf32> to vector<1x1x16x16xf32>
    tpu.vector_store %arg6[%c1_56, %c1_57, %c3_58, %c0_59], %121 {strides = array<i32>} : memref<2x7x22x16xf32, #tpu.memory_space<vmem>>, vector<1x1x16x16xf32>,
    %cst_60 = arith.constant 0.000000e+00 : f32
    %122 = vector.broadcast %cst_60 : f32 to vector<16x1xf32>
    %123 = vector.extract_strided_slice %70 {offsets = [0, 0], sizes = [16, 15], strides = [1, 1]} : vector<16x16xf32> to vector<16x15xf32>
    %124 = tpu.concatenate %122, %123 in 1 : vector<16x1xf32>, vector<16x15xf32> -> vector<16x16xf32>
    %c1_61 = arith.constant 1 : index
    %c2_62 = arith.constant 2 : index
    %c3_63 = arith.constant 3 : index
    %c0_64 = arith.constant 0 : index
    %125 = vector.load %arg6[%c1_61, %c2_62, %c3_63, %c0_64] : memref<2x7x22x16xf32, #tpu.memory_space<vmem>>, vector<1x1x16x16xf32>
    %126 = vector.shape_cast %125 : vector<1x1x16x16xf32> to vector<16x16xf32>
    %127 = vector.shape_cast %124 : vector<16x16xf32> to vector<1x1x16x16xf32>
    tpu.vector_store %arg6[%c1_61, %c2_62, %c3_63, %c0_64], %127 {strides = array<i32>} : memref<2x7x22x16xf32, #tpu.memory_space<vmem>>, vector<1x1x16x16xf32>,
    %c1_65 = arith.constant 1 : index
    %c3_66 = arith.constant 3 : index
    %c3_67 = arith.constant 3 : index
    %c0_68 = arith.constant 0 : index
    %128 = vector.load %arg6[%c1_65, %c3_66, %c3_67, %c0_68] : memref<2x7x22x16xf32, #tpu.memory_space<vmem>>, vector<1x1x16x16xf32>
    %129 = vector.shape_cast %128 : vector<1x1x16x16xf32> to vector<16x16xf32>
    %130 = vector.shape_cast %70 : vector<16x16xf32> to vector<1x1x16x16xf32>
    tpu.vector_store %arg6[%c1_65, %c3_66, %c3_67, %c0_68], %130 {strides = array<i32>} : memref<2x7x22x16xf32, #tpu.memory_space<vmem>>, vector<1x1x16x16xf32>,
    %131 = vector.extract_strided_slice %70 {offsets = [0, 1], sizes = [16, 15], strides = [1, 1]} : vector<16x16xf32> to vector<16x15xf32>
    %cst_69 = arith.constant 0.000000e+00 : f32
    %132 = vector.broadcast %cst_69 : f32 to vector<16x1xf32>
    %133 = tpu.concatenate %131, %132 in 1 : vector<16x15xf32>, vector<16x1xf32> -> vector<16x16xf32>
    %c1_70 = arith.constant 1 : index
    %c4_71 = arith.constant 4 : index
    %c3_72 = arith.constant 3 : index
    %c0_73 = arith.constant 0 : index
    %134 = vector.load %arg6[%c1_70, %c4_71, %c3_72, %c0_73] : memref<2x7x22x16xf32, #tpu.memory_space<vmem>>, vector<1x1x16x16xf32>
    %135 = vector.shape_cast %134 : vector<1x1x16x16xf32> to vector<16x16xf32>
    %136 = vector.shape_cast %133 : vector<16x16xf32> to vector<1x1x16x16xf32>
    tpu.vector_store %arg6[%c1_70, %c4_71, %c3_72, %c0_73], %136 {strides = array<i32>} : memref<2x7x22x16xf32, #tpu.memory_space<vmem>>, vector<1x1x16x16xf32>,
    %137 = vector.extract_strided_slice %70 {offsets = [0, 2], sizes = [16, 14], strides = [1, 1]} : vector<16x16xf32> to vector<16x14xf32>
    %cst_74 = arith.constant 0.000000e+00 : f32
    %138 = vector.broadcast %cst_74 : f32 to vector<16x2xf32>
    %139 = tpu.concatenate %137, %138 in 1 : vector<16x14xf32>, vector<16x2xf32> -> vector<16x16xf32>
    %c1_75 = arith.constant 1 : index
    %c5_76 = arith.constant 5 : index
    %c3_77 = arith.constant 3 : index
    %c0_78 = arith.constant 0 : index
    %140 = vector.load %arg6[%c1_75, %c5_76, %c3_77, %c0_78] : memref<2x7x22x16xf32, #tpu.memory_space<vmem>>, vector<1x1x16x16xf32>
    %141 = vector.shape_cast %140 : vector<1x1x16x16xf32> to vector<16x16xf32>
    %142 = vector.shape_cast %139 : vector<16x16xf32> to vector<1x1x16x16xf32>
    tpu.vector_store %arg6[%c1_75, %c5_76, %c3_77, %c0_78], %142 {strides = array<i32>} : memref<2x7x22x16xf32, #tpu.memory_space<vmem>>, vector<1x1x16x16xf32>,
    %143 = vector.extract_strided_slice %70 {offsets = [0, 3], sizes = [16, 13], strides = [1, 1]} : vector<16x16xf32> to vector<16x13xf32>
    %cst_79 = arith.constant 0.000000e+00 : f32
    %144 = vector.broadcast %cst_79 : f32 to vector<16x3xf32>
    %145 = tpu.concatenate %143, %144 in 1 : vector<16x13xf32>, vector<16x3xf32> -> vector<16x16xf32>
    %c1_80 = arith.constant 1 : index
    %c6_81 = arith.constant 6 : index
    %c3_82 = arith.constant 3 : index
    %c0_83 = arith.constant 0 : index
    %146 = vector.load %arg6[%c1_80, %c6_81, %c3_82, %c0_83] : memref<2x7x22x16xf32, #tpu.memory_space<vmem>>, vector<1x1x16x16xf32>
    %147 = vector.shape_cast %146 : vector<1x1x16x16xf32> to vector<16x16xf32>
    %148 = vector.shape_cast %145 : vector<16x16xf32> to vector<1x1x16x16xf32>
    tpu.vector_store %arg6[%c1_80, %c6_81, %c3_82, %c0_83], %148 {strides = array<i32>} : memref<2x7x22x16xf32, #tpu.memory_space<vmem>>, vector<1x1x16x16xf32>,
    %cst_84 = arith.constant 0.000000e+00 : f32
    %149 = vector.broadcast %cst_84 : f32 to vector<16x16xf32>
    %c0_85 = arith.constant 0 : index
    %150 = memref.load %arg4[%c0_85] : memref<7xf32, #tpu.memory_space<smem>>
    %151 = vector.broadcast %150 : f32 to vector<16x16xf32>
    %152 = arith.addf %149, %151 : vector<16x16xf32>
    %cst_86 = arith.constant 0.000000e+00 : f32
    %153 = vector.broadcast %cst_86 : f32 to vector<16x16xf32>
    %c1_87 = arith.constant 1 : index
    %154 = memref.load %arg4[%c1_87] : memref<7xf32, #tpu.memory_space<smem>>
    %155 = vector.broadcast %154 : f32 to vector<16x16xf32>
    %156 = arith.addf %153, %155 : vector<16x16xf32>
    %cst_88 = arith.constant 0.000000e+00 : f32
    %157 = vector.broadcast %cst_88 : f32 to vector<16x16xf32>
    %c2_89 = arith.constant 2 : index
    %158 = memref.load %arg4[%c2_89] : memref<7xf32, #tpu.memory_space<smem>>
    %159 = vector.broadcast %158 : f32 to vector<16x16xf32>
    %160 = arith.addf %157, %159 : vector<16x16xf32>
    %c0_90 = arith.constant 0 : index
    %c0_91 = arith.constant 0 : index
    %c0_92 = arith.constant 0 : index
    %c0_93 = arith.constant 0 : index
    %161 = vector.load %arg6[%c0_90, %c0_91, %c0_92, %c0_93] : memref<2x7x22x16xf32, #tpu.memory_space<vmem>>, vector<1x1x16x16xf32>
    %162 = vector.shape_cast %161 : vector<1x1x16x16xf32> to vector<16x16xf32>
    %c68 = arith.constant 68 : index
    %163 = memref.load %arg3[%c68] : memref<166xf32, #tpu.memory_space<smem>>
    %164 = vector.broadcast %163 : f32 to vector<16x16xf32>
    %165 = arith.mulf %164, %162 : vector<16x16xf32>
    %166 = arith.addf %160, %165 : vector<16x16xf32>
    %c0_94 = arith.constant 0 : index
    %c0_95 = arith.constant 0 : index
    %c1_96 = arith.constant 1 : index
    %c0_97 = arith.constant 0 : index
    %167 = vector.load %arg6[%c0_94, %c0_95, %c1_96, %c0_97] : memref<2x7x22x16xf32, #tpu.memory_space<vmem>>, vector<1x1x16x16xf32>
    %168 = vector.shape_cast %167 : vector<1x1x16x16xf32> to vector<16x16xf32>
    %c75 = arith.constant 75 : index
    %169 = memref.load %arg3[%c75] : memref<166xf32, #tpu.memory_space<smem>>
    %170 = vector.broadcast %169 : f32 to vector<16x16xf32>
    %171 = arith.mulf %170, %168 : vector<16x16xf32>
    %172 = arith.addf %166, %171 : vector<16x16xf32>
    %c0_98 = arith.constant 0 : index
    %c0_99 = arith.constant 0 : index
    %c2_100 = arith.constant 2 : index
    %c0_101 = arith.constant 0 : index
    %173 = vector.load %arg6[%c0_98, %c0_99, %c2_100, %c0_101] : memref<2x7x22x16xf32, #tpu.memory_space<vmem>>, vector<1x1x16x16xf32>
    %174 = vector.shape_cast %173 : vector<1x1x16x16xf32> to vector<16x16xf32>
    %c82 = arith.constant 82 : index
    %175 = memref.load %arg3[%c82] : memref<166xf32, #tpu.memory_space<smem>>
    %176 = vector.broadcast %175 : f32 to vector<16x16xf32>
    %177 = arith.mulf %176, %174 : vector<16x16xf32>
    %178 = arith.addf %172, %177 : vector<16x16xf32>
    %c0_102 = arith.constant 0 : index
    %c0_103 = arith.constant 0 : index
    %c3_104 = arith.constant 3 : index
    %c0_105 = arith.constant 0 : index
    %179 = vector.load %arg6[%c0_102, %c0_103, %c3_104, %c0_105] : memref<2x7x22x16xf32, #tpu.memory_space<vmem>>, vector<1x1x16x16xf32>
    %180 = vector.shape_cast %179 : vector<1x1x16x16xf32> to vector<16x16xf32>
    %c89 = arith.constant 89 : index
    %181 = memref.load %arg3[%c89] : memref<166xf32, #tpu.memory_space<smem>>
    %182 = vector.broadcast %181 : f32 to vector<16x16xf32>
    %183 = arith.mulf %182, %180 : vector<16x16xf32>
    %184 = arith.addf %178, %183 : vector<16x16xf32>
    %c0_106 = arith.constant 0 : index
    %c0_107 = arith.constant 0 : index
    %c4_108 = arith.constant 4 : index
    %c0_109 = arith.constant 0 : index
    %185 = vector.load %arg6[%c0_106, %c0_107, %c4_108, %c0_109] : memref<2x7x22x16xf32, #tpu.memory_space<vmem>>, vector<1x1x16x16xf32>
    %186 = vector.shape_cast %185 : vector<1x1x16x16xf32> to vector<16x16xf32>
    %c96 = arith.constant 96 : index
    %187 = memref.load %arg3[%c96] : memref<166xf32, #tpu.memory_space<smem>>
    %188 = vector.broadcast %187 : f32 to vector<16x16xf32>
    %189 = arith.mulf %188, %186 : vector<16x16xf32>
    %190 = arith.addf %184, %189 : vector<16x16xf32>
    %c0_110 = arith.constant 0 : index
    %c0_111 = arith.constant 0 : index
    %c5_112 = arith.constant 5 : index
    %c0_113 = arith.constant 0 : index
    %191 = vector.load %arg6[%c0_110, %c0_111, %c5_112, %c0_113] : memref<2x7x22x16xf32, #tpu.memory_space<vmem>>, vector<1x1x16x16xf32>
    %192 = vector.shape_cast %191 : vector<1x1x16x16xf32> to vector<16x16xf32>
    %c103 = arith.constant 103 : index
    %193 = memref.load %arg3[%c103] : memref<166xf32, #tpu.memory_space<smem>>
    %194 = vector.broadcast %193 : f32 to vector<16x16xf32>
    %195 = arith.mulf %194, %192 : vector<16x16xf32>
    %196 = arith.addf %190, %195 : vector<16x16xf32>
    %c0_114 = arith.constant 0 : index
    %c0_115 = arith.constant 0 : index
    %c6_116 = arith.constant 6 : index
    %c0_117 = arith.constant 0 : index
    %197 = vector.load %arg6[%c0_114, %c0_115, %c6_116, %c0_117] : memref<2x7x22x16xf32, #tpu.memory_space<vmem>>, vector<1x1x16x16xf32>
    %198 = vector.shape_cast %197 : vector<1x1x16x16xf32> to vector<16x16xf32>
    %c110 = arith.constant 110 : index
    %199 = memref.load %arg3[%c110] : memref<166xf32, #tpu.memory_space<smem>>
    %200 = vector.broadcast %199 : f32 to vector<16x16xf32>
    %201 = arith.mulf %200, %198 : vector<16x16xf32>
    %202 = arith.addf %196, %201 : vector<16x16xf32>
    %c0_118 = arith.constant 0 : index
    %c1_119 = arith.constant 1 : index
    %c0_120 = arith.constant 0 : index
    %c0_121 = arith.constant 0 : index
    %203 = vector.load %arg6[%c0_118, %c1_119, %c0_120, %c0_121] : memref<2x7x22x16xf32, #tpu.memory_space<vmem>>, vector<1x1x16x16xf32>
    %204 = vector.shape_cast %203 : vector<1x1x16x16xf32> to vector<16x16xf32>
    %c69 = arith.constant 69 : index
    %205 = memref.load %arg3[%c69] : memref<166xf32, #tpu.memory_space<smem>>
    %206 = vector.broadcast %205 : f32 to vector<16x16xf32>
    %207 = arith.mulf %206, %204 : vector<16x16xf32>
    %208 = arith.addf %202, %207 : vector<16x16xf32>
    %c0_122 = arith.constant 0 : index
    %c1_123 = arith.constant 1 : index
    %c1_124 = arith.constant 1 : index
    %c0_125 = arith.constant 0 : index
    %209 = vector.load %arg6[%c0_122, %c1_123, %c1_124, %c0_125] : memref<2x7x22x16xf32, #tpu.memory_space<vmem>>, vector<1x1x16x16xf32>
    %210 = vector.shape_cast %209 : vector<1x1x16x16xf32> to vector<16x16xf32>
    %c76 = arith.constant 76 : index
    %211 = memref.load %arg3[%c76] : memref<166xf32, #tpu.memory_space<smem>>
    %212 = vector.broadcast %211 : f32 to vector<16x16xf32>
    %213 = arith.mulf %212, %210 : vector<16x16xf32>
    %214 = arith.addf %208, %213 : vector<16x16xf32>
    %c18 = arith.constant 18 : index
    %215 = memref.load %arg3[%c18] : memref<166xf32, #tpu.memory_space<smem>>
    %216 = vector.broadcast %215 : f32 to vector<16x16xf32>
    %217 = arith.mulf %216, %210 : vector<16x16xf32>
    %218 = arith.addf %156, %217 : vector<16x16xf32>
    %c0_126 = arith.constant 0 : index
    %c1_127 = arith.constant 1 : index
    %c2_128 = arith.constant 2 : index
    %c0_129 = arith.constant 0 : index
    %219 = vector.load %arg6[%c0_126, %c1_127, %c2_128, %c0_129] : memref<2x7x22x16xf32, #tpu.memory_space<vmem>>, vector<1x1x16x16xf32>
    %220 = vector.shape_cast %219 : vector<1x1x16x16xf32> to vector<16x16xf32>
    %c83 = arith.constant 83 : index
    %221 = memref.load %arg3[%c83] : memref<166xf32, #tpu.memory_space<smem>>
    %222 = vector.broadcast %221 : f32 to vector<16x16xf32>
    %223 = arith.mulf %222, %220 : vector<16x16xf32>
    %224 = arith.addf %214, %223 : vector<16x16xf32>
    %c23 = arith.constant 23 : index
    %225 = memref.load %arg3[%c23] : memref<166xf32, #tpu.memory_space<smem>>
    %226 = vector.broadcast %225 : f32 to vector<16x16xf32>
    %227 = arith.mulf %226, %220 : vector<16x16xf32>
    %228 = arith.addf %218, %227 : vector<16x16xf32>
    %c0_130 = arith.constant 0 : index
    %c1_131 = arith.constant 1 : index
    %c3_132 = arith.constant 3 : index
    %c0_133 = arith.constant 0 : index
    %229 = vector.load %arg6[%c0_130, %c1_131, %c3_132, %c0_133] : memref<2x7x22x16xf32, #tpu.memory_space<vmem>>, vector<1x1x16x16xf32>
    %230 = vector.shape_cast %229 : vector<1x1x16x16xf32> to vector<16x16xf32>
    %c90 = arith.constant 90 : index
    %231 = memref.load %arg3[%c90] : memref<166xf32, #tpu.memory_space<smem>>
    %232 = vector.broadcast %231 : f32 to vector<16x16xf32>
    %233 = arith.mulf %232, %230 : vector<16x16xf32>
    %234 = arith.addf %224, %233 : vector<16x16xf32>
    %c28 = arith.constant 28 : index
    %235 = memref.load %arg3[%c28] : memref<166xf32, #tpu.memory_space<smem>>
    %236 = vector.broadcast %235 : f32 to vector<16x16xf32>
    %237 = arith.mulf %236, %230 : vector<16x16xf32>
    %238 = arith.addf %228, %237 : vector<16x16xf32>
    %c0_134 = arith.constant 0 : index
    %c1_135 = arith.constant 1 : index
    %c4_136 = arith.constant 4 : index
    %c0_137 = arith.constant 0 : index
    %239 = vector.load %arg6[%c0_134, %c1_135, %c4_136, %c0_137] : memref<2x7x22x16xf32, #tpu.memory_space<vmem>>, vector<1x1x16x16xf32>
    %240 = vector.shape_cast %239 : vector<1x1x16x16xf32> to vector<16x16xf32>
    %c97 = arith.constant 97 : index
    %241 = memref.load %arg3[%c97] : memref<166xf32, #tpu.memory_space<smem>>
    %242 = vector.broadcast %241 : f32 to vector<16x16xf32>
    %243 = arith.mulf %242, %240 : vector<16x16xf32>
    %244 = arith.addf %234, %243 : vector<16x16xf32>
    %c33 = arith.constant 33 : index
    %245 = memref.load %arg3[%c33] : memref<166xf32, #tpu.memory_space<smem>>
    %246 = vector.broadcast %245 : f32 to vector<16x16xf32>
    %247 = arith.mulf %246, %240 : vector<16x16xf32>
    %248 = arith.addf %238, %247 : vector<16x16xf32>
    %c0_138 = arith.constant 0 : index
    %c1_139 = arith.constant 1 : index
    %c5_140 = arith.constant 5 : index
    %c0_141 = arith.constant 0 : index
    %249 = vector.load %arg6[%c0_138, %c1_139, %c5_140, %c0_141] : memref<2x7x22x16xf32, #tpu.memory_space<vmem>>, vector<1x1x16x16xf32>
    %250 = vector.shape_cast %249 : vector<1x1x16x16xf32> to vector<16x16xf32>
    %c104 = arith.constant 104 : index
    %251 = memref.load %arg3[%c104] : memref<166xf32, #tpu.memory_space<smem>>
    %252 = vector.broadcast %251 : f32 to vector<16x16xf32>
    %253 = arith.mulf %252, %250 : vector<16x16xf32>
    %254 = arith.addf %244, %253 : vector<16x16xf32>
    %c38 = arith.constant 38 : index
    %255 = memref.load %arg3[%c38] : memref<166xf32, #tpu.memory_space<smem>>
    %256 = vector.broadcast %255 : f32 to vector<16x16xf32>
    %257 = arith.mulf %256, %250 : vector<16x16xf32>
    %258 = arith.addf %248, %257 : vector<16x16xf32>
    %c0_142 = arith.constant 0 : index
    %c1_143 = arith.constant 1 : index
    %c6_144 = arith.constant 6 : index
    %c0_145 = arith.constant 0 : index
    %259 = vector.load %arg6[%c0_142, %c1_143, %c6_144, %c0_145] : memref<2x7x22x16xf32, #tpu.memory_space<vmem>>, vector<1x1x16x16xf32>
    %260 = vector.shape_cast %259 : vector<1x1x16x16xf32> to vector<16x16xf32>
    %c111 = arith.constant 111 : index
    %261 = memref.load %arg3[%c111] : memref<166xf32, #tpu.memory_space<smem>>
    %262 = vector.broadcast %261 : f32 to vector<16x16xf32>
    %263 = arith.mulf %262, %260 : vector<16x16xf32>
    %264 = arith.addf %254, %263 : vector<16x16xf32>
    %c0_146 = arith.constant 0 : index
    %c2_147 = arith.constant 2 : index
    %c0_148 = arith.constant 0 : index
    %c0_149 = arith.constant 0 : index
    %265 = vector.load %arg6[%c0_146, %c2_147, %c0_148, %c0_149] : memref<2x7x22x16xf32, #tpu.memory_space<vmem>>, vector<1x1x16x16xf32>
    %266 = vector.shape_cast %265 : vector<1x1x16x16xf32> to vector<16x16xf32>
    %c70 = arith.constant 70 : index
    %267 = memref.load %arg3[%c70] : memref<166xf32, #tpu.memory_space<smem>>
    %268 = vector.broadcast %267 : f32 to vector<16x16xf32>
    %269 = arith.mulf %268, %266 : vector<16x16xf32>
    %270 = arith.addf %264, %269 : vector<16x16xf32>
    %c0_150 = arith.constant 0 : index
    %c2_151 = arith.constant 2 : index
    %c1_152 = arith.constant 1 : index
    %c0_153 = arith.constant 0 : index
    %271 = vector.load %arg6[%c0_150, %c2_151, %c1_152, %c0_153] : memref<2x7x22x16xf32, #tpu.memory_space<vmem>>, vector<1x1x16x16xf32>
    %272 = vector.shape_cast %271 : vector<1x1x16x16xf32> to vector<16x16xf32>
    %c77 = arith.constant 77 : index
    %273 = memref.load %arg3[%c77] : memref<166xf32, #tpu.memory_space<smem>>
    %274 = vector.broadcast %273 : f32 to vector<16x16xf32>
    %275 = arith.mulf %274, %272 : vector<16x16xf32>
    %276 = arith.addf %270, %275 : vector<16x16xf32>
    %c19 = arith.constant 19 : index
    %277 = memref.load %arg3[%c19] : memref<166xf32, #tpu.memory_space<smem>>
    %278 = vector.broadcast %277 : f32 to vector<16x16xf32>
    %279 = arith.mulf %278, %272 : vector<16x16xf32>
    %280 = arith.addf %258, %279 : vector<16x16xf32>
    %c0_154 = arith.constant 0 : index
    %c2_155 = arith.constant 2 : index
    %c2_156 = arith.constant 2 : index
    %c0_157 = arith.constant 0 : index
    %281 = vector.load %arg6[%c0_154, %c2_155, %c2_156, %c0_157] : memref<2x7x22x16xf32, #tpu.memory_space<vmem>>, vector<1x1x16x16xf32>
    %282 = vector.shape_cast %281 : vector<1x1x16x16xf32> to vector<16x16xf32>
    %c84 = arith.constant 84 : index
    %283 = memref.load %arg3[%c84] : memref<166xf32, #tpu.memory_space<smem>>
    %284 = vector.broadcast %283 : f32 to vector<16x16xf32>
    %285 = arith.mulf %284, %282 : vector<16x16xf32>
    %286 = arith.addf %276, %285 : vector<16x16xf32>
    %c24 = arith.constant 24 : index
    %287 = memref.load %arg3[%c24] : memref<166xf32, #tpu.memory_space<smem>>
    %288 = vector.broadcast %287 : f32 to vector<16x16xf32>
    %289 = arith.mulf %288, %282 : vector<16x16xf32>
    %290 = arith.addf %280, %289 : vector<16x16xf32>
    %c0_158 = arith.constant 0 : index
    %291 = memref.load %arg3[%c0_158] : memref<166xf32, #tpu.memory_space<smem>>
    %292 = vector.broadcast %291 : f32 to vector<16x16xf32>
    %293 = arith.mulf %292, %282 : vector<16x16xf32>
    %294 = arith.addf %152, %293 : vector<16x16xf32>
    %c0_159 = arith.constant 0 : index
    %c2_160 = arith.constant 2 : index
    %c3_161 = arith.constant 3 : index
    %c0_162 = arith.constant 0 : index
    %295 = vector.load %arg6[%c0_159, %c2_160, %c3_161, %c0_162] : memref<2x7x22x16xf32, #tpu.memory_space<vmem>>, vector<1x1x16x16xf32>
    %296 = vector.shape_cast %295 : vector<1x1x16x16xf32> to vector<16x16xf32>
    %c91 = arith.constant 91 : index
    %297 = memref.load %arg3[%c91] : memref<166xf32, #tpu.memory_space<smem>>
    %298 = vector.broadcast %297 : f32 to vector<16x16xf32>
    %299 = arith.mulf %298, %296 : vector<16x16xf32>
    %300 = arith.addf %286, %299 : vector<16x16xf32>
    %c29 = arith.constant 29 : index
    %301 = memref.load %arg3[%c29] : memref<166xf32, #tpu.memory_space<smem>>
    %302 = vector.broadcast %301 : f32 to vector<16x16xf32>
    %303 = arith.mulf %302, %296 : vector<16x16xf32>
    %304 = arith.addf %290, %303 : vector<16x16xf32>
    %c3_163 = arith.constant 3 : index
    %305 = memref.load %arg3[%c3_163] : memref<166xf32, #tpu.memory_space<smem>>
    %306 = vector.broadcast %305 : f32 to vector<16x16xf32>
    %307 = arith.mulf %306, %296 : vector<16x16xf32>
    %308 = arith.addf %294, %307 : vector<16x16xf32>
    %c0_164 = arith.constant 0 : index
    %c2_165 = arith.constant 2 : index
    %c4_166 = arith.constant 4 : index
    %c0_167 = arith.constant 0 : index
    %309 = vector.load %arg6[%c0_164, %c2_165, %c4_166, %c0_167] : memref<2x7x22x16xf32, #tpu.memory_space<vmem>>, vector<1x1x16x16xf32>
    %310 = vector.shape_cast %309 : vector<1x1x16x16xf32> to vector<16x16xf32>
    %c98 = arith.constant 98 : index
    %311 = memref.load %arg3[%c98] : memref<166xf32, #tpu.memory_space<smem>>
    %312 = vector.broadcast %311 : f32 to vector<16x16xf32>
    %313 = arith.mulf %312, %310 : vector<16x16xf32>
    %314 = arith.addf %300, %313 : vector<16x16xf32>
    %c34 = arith.constant 34 : index
    %315 = memref.load %arg3[%c34] : memref<166xf32, #tpu.memory_space<smem>>
    %316 = vector.broadcast %315 : f32 to vector<16x16xf32>
    %317 = arith.mulf %316, %310 : vector<16x16xf32>
    %318 = arith.addf %304, %317 : vector<16x16xf32>
    %c6_168 = arith.constant 6 : index
    %319 = memref.load %arg3[%c6_168] : memref<166xf32, #tpu.memory_space<smem>>
    %320 = vector.broadcast %319 : f32 to vector<16x16xf32>
    %321 = arith.mulf %320, %310 : vector<16x16xf32>
    %322 = arith.addf %308, %321 : vector<16x16xf32>
    %c0_169 = arith.constant 0 : index
    %c2_170 = arith.constant 2 : index
    %c5_171 = arith.constant 5 : index
    %c0_172 = arith.constant 0 : index
    %323 = vector.load %arg6[%c0_169, %c2_170, %c5_171, %c0_172] : memref<2x7x22x16xf32, #tpu.memory_space<vmem>>, vector<1x1x16x16xf32>
    %324 = vector.shape_cast %323 : vector<1x1x16x16xf32> to vector<16x16xf32>
    %c105 = arith.constant 105 : index
    %325 = memref.load %arg3[%c105] : memref<166xf32, #tpu.memory_space<smem>>
    %326 = vector.broadcast %325 : f32 to vector<16x16xf32>
    %327 = arith.mulf %326, %324 : vector<16x16xf32>
    %328 = arith.addf %314, %327 : vector<16x16xf32>
    %c39 = arith.constant 39 : index
    %329 = memref.load %arg3[%c39] : memref<166xf32, #tpu.memory_space<smem>>
    %330 = vector.broadcast %329 : f32 to vector<16x16xf32>
    %331 = arith.mulf %330, %324 : vector<16x16xf32>
    %332 = arith.addf %318, %331 : vector<16x16xf32>
    %c0_173 = arith.constant 0 : index
    %c2_174 = arith.constant 2 : index
    %c6_175 = arith.constant 6 : index
    %c0_176 = arith.constant 0 : index
    %333 = vector.load %arg6[%c0_173, %c2_174, %c6_175, %c0_176] : memref<2x7x22x16xf32, #tpu.memory_space<vmem>>, vector<1x1x16x16xf32>
    %334 = vector.shape_cast %333 : vector<1x1x16x16xf32> to vector<16x16xf32>
    %c112 = arith.constant 112 : index
    %335 = memref.load %arg3[%c112] : memref<166xf32, #tpu.memory_space<smem>>
    %336 = vector.broadcast %335 : f32 to vector<16x16xf32>
    %337 = arith.mulf %336, %334 : vector<16x16xf32>
    %338 = arith.addf %328, %337 : vector<16x16xf32>
    %c0_177 = arith.constant 0 : index
    %c3_178 = arith.constant 3 : index
    %c0_179 = arith.constant 0 : index
    %c0_180 = arith.constant 0 : index
    %339 = vector.load %arg6[%c0_177, %c3_178, %c0_179, %c0_180] : memref<2x7x22x16xf32, #tpu.memory_space<vmem>>, vector<1x1x16x16xf32>
    %340 = vector.shape_cast %339 : vector<1x1x16x16xf32> to vector<16x16xf32>
    %c71 = arith.constant 71 : index
    %341 = memref.load %arg3[%c71] : memref<166xf32, #tpu.memory_space<smem>>
    %342 = vector.broadcast %341 : f32 to vector<16x16xf32>
    %343 = arith.mulf %342, %340 : vector<16x16xf32>
    %344 = arith.addf %338, %343 : vector<16x16xf32>
    %c0_181 = arith.constant 0 : index
    %c3_182 = arith.constant 3 : index
    %c1_183 = arith.constant 1 : index
    %c0_184 = arith.constant 0 : index
    %345 = vector.load %arg6[%c0_181, %c3_182, %c1_183, %c0_184] : memref<2x7x22x16xf32, #tpu.memory_space<vmem>>, vector<1x1x16x16xf32>
    %346 = vector.shape_cast %345 : vector<1x1x16x16xf32> to vector<16x16xf32>
    %c78 = arith.constant 78 : index
    %347 = memref.load %arg3[%c78] : memref<166xf32, #tpu.memory_space<smem>>
    %348 = vector.broadcast %347 : f32 to vector<16x16xf32>
    %349 = arith.mulf %348, %346 : vector<16x16xf32>
    %350 = arith.addf %344, %349 : vector<16x16xf32>
    %c20 = arith.constant 20 : index
    %351 = memref.load %arg3[%c20] : memref<166xf32, #tpu.memory_space<smem>>
    %352 = vector.broadcast %351 : f32 to vector<16x16xf32>
    %353 = arith.mulf %352, %346 : vector<16x16xf32>
    %354 = arith.addf %332, %353 : vector<16x16xf32>
    %c0_185 = arith.constant 0 : index
    %c3_186 = arith.constant 3 : index
    %c2_187 = arith.constant 2 : index
    %c0_188 = arith.constant 0 : index
    %355 = vector.load %arg6[%c0_185, %c3_186, %c2_187, %c0_188] : memref<2x7x22x16xf32, #tpu.memory_space<vmem>>, vector<1x1x16x16xf32>
    %356 = vector.shape_cast %355 : vector<1x1x16x16xf32> to vector<16x16xf32>
    %c85 = arith.constant 85 : index
    %357 = memref.load %arg3[%c85] : memref<166xf32, #tpu.memory_space<smem>>
    %358 = vector.broadcast %357 : f32 to vector<16x16xf32>
    %359 = arith.mulf %358, %356 : vector<16x16xf32>
    %360 = arith.addf %350, %359 : vector<16x16xf32>
    %c25 = arith.constant 25 : index
    %361 = memref.load %arg3[%c25] : memref<166xf32, #tpu.memory_space<smem>>
    %362 = vector.broadcast %361 : f32 to vector<16x16xf32>
    %363 = arith.mulf %362, %356 : vector<16x16xf32>
    %364 = arith.addf %354, %363 : vector<16x16xf32>
    %c1_189 = arith.constant 1 : index
    %365 = memref.load %arg3[%c1_189] : memref<166xf32, #tpu.memory_space<smem>>
    %366 = vector.broadcast %365 : f32 to vector<16x16xf32>
    %367 = arith.mulf %366, %356 : vector<16x16xf32>
    %368 = arith.addf %322, %367 : vector<16x16xf32>
    %c0_190 = arith.constant 0 : index
    %c3_191 = arith.constant 3 : index
    %c3_192 = arith.constant 3 : index
    %c0_193 = arith.constant 0 : index
    %369 = vector.load %arg6[%c0_190, %c3_191, %c3_192, %c0_193] : memref<2x7x22x16xf32, #tpu.memory_space<vmem>>, vector<1x1x16x16xf32>
    %370 = vector.shape_cast %369 : vector<1x1x16x16xf32> to vector<16x16xf32>
    %c92 = arith.constant 92 : index
    %371 = memref.load %arg3[%c92] : memref<166xf32, #tpu.memory_space<smem>>
    %372 = vector.broadcast %371 : f32 to vector<16x16xf32>
    %373 = arith.mulf %372, %370 : vector<16x16xf32>
    %374 = arith.addf %360, %373 : vector<16x16xf32>
    %c30 = arith.constant 30 : index
    %375 = memref.load %arg3[%c30] : memref<166xf32, #tpu.memory_space<smem>>
    %376 = vector.broadcast %375 : f32 to vector<16x16xf32>
    %377 = arith.mulf %376, %370 : vector<16x16xf32>
    %378 = arith.addf %364, %377 : vector<16x16xf32>
    %c4_194 = arith.constant 4 : index
    %379 = memref.load %arg3[%c4_194] : memref<166xf32, #tpu.memory_space<smem>>
    %380 = vector.broadcast %379 : f32 to vector<16x16xf32>
    %381 = arith.mulf %380, %370 : vector<16x16xf32>
    %382 = arith.addf %368, %381 : vector<16x16xf32>
    %c0_195 = arith.constant 0 : index
    %c3_196 = arith.constant 3 : index
    %c4_197 = arith.constant 4 : index
    %c0_198 = arith.constant 0 : index
    %383 = vector.load %arg6[%c0_195, %c3_196, %c4_197, %c0_198] : memref<2x7x22x16xf32, #tpu.memory_space<vmem>>, vector<1x1x16x16xf32>
    %384 = vector.shape_cast %383 : vector<1x1x16x16xf32> to vector<16x16xf32>
    %c99 = arith.constant 99 : index
    %385 = memref.load %arg3[%c99] : memref<166xf32, #tpu.memory_space<smem>>
    %386 = vector.broadcast %385 : f32 to vector<16x16xf32>
    %387 = arith.mulf %386, %384 : vector<16x16xf32>
    %388 = arith.addf %374, %387 : vector<16x16xf32>
    %c35 = arith.constant 35 : index
    %389 = memref.load %arg3[%c35] : memref<166xf32, #tpu.memory_space<smem>>
    %390 = vector.broadcast %389 : f32 to vector<16x16xf32>
    %391 = arith.mulf %390, %384 : vector<16x16xf32>
    %392 = arith.addf %378, %391 : vector<16x16xf32>
    %c7 = arith.constant 7 : index
    %393 = memref.load %arg3[%c7] : memref<166xf32, #tpu.memory_space<smem>>
    %394 = vector.broadcast %393 : f32 to vector<16x16xf32>
    %395 = arith.mulf %394, %384 : vector<16x16xf32>
    %396 = arith.addf %382, %395 : vector<16x16xf32>
    %c0_199 = arith.constant 0 : index
    %c3_200 = arith.constant 3 : index
    %c5_201 = arith.constant 5 : index
    %c0_202 = arith.constant 0 : index
    %397 = vector.load %arg6[%c0_199, %c3_200, %c5_201, %c0_202] : memref<2x7x22x16xf32, #tpu.memory_space<vmem>>, vector<1x1x16x16xf32>
    %398 = vector.shape_cast %397 : vector<1x1x16x16xf32> to vector<16x16xf32>
    %c106 = arith.constant 106 : index
    %399 = memref.load %arg3[%c106] : memref<166xf32, #tpu.memory_space<smem>>
    %400 = vector.broadcast %399 : f32 to vector<16x16xf32>
    %401 = arith.mulf %400, %398 : vector<16x16xf32>
    %402 = arith.addf %388, %401 : vector<16x16xf32>
    %c40 = arith.constant 40 : index
    %403 = memref.load %arg3[%c40] : memref<166xf32, #tpu.memory_space<smem>>
    %404 = vector.broadcast %403 : f32 to vector<16x16xf32>
    %405 = arith.mulf %404, %398 : vector<16x16xf32>
    %406 = arith.addf %392, %405 : vector<16x16xf32>
    %c0_203 = arith.constant 0 : index
    %c3_204 = arith.constant 3 : index
    %c6_205 = arith.constant 6 : index
    %c0_206 = arith.constant 0 : index
    %407 = vector.load %arg6[%c0_203, %c3_204, %c6_205, %c0_206] : memref<2x7x22x16xf32, #tpu.memory_space<vmem>>, vector<1x1x16x16xf32>
    %408 = vector.shape_cast %407 : vector<1x1x16x16xf32> to vector<16x16xf32>
    %c113 = arith.constant 113 : index
    %409 = memref.load %arg3[%c113] : memref<166xf32, #tpu.memory_space<smem>>
    %410 = vector.broadcast %409 : f32 to vector<16x16xf32>
    %411 = arith.mulf %410, %408 : vector<16x16xf32>
    %412 = arith.addf %402, %411 : vector<16x16xf32>
    %c0_207 = arith.constant 0 : index
    %c4_208 = arith.constant 4 : index
    %c0_209 = arith.constant 0 : index
    %c0_210 = arith.constant 0 : index
    %413 = vector.load %arg6[%c0_207, %c4_208, %c0_209, %c0_210] : memref<2x7x22x16xf32, #tpu.memory_space<vmem>>, vector<1x1x16x16xf32>
    %414 = vector.shape_cast %413 : vector<1x1x16x16xf32> to vector<16x16xf32>
    %c72 = arith.constant 72 : index
    %415 = memref.load %arg3[%c72] : memref<166xf32, #tpu.memory_space<smem>>
    %416 = vector.broadcast %415 : f32 to vector<16x16xf32>
    %417 = arith.mulf %416, %414 : vector<16x16xf32>
    %418 = arith.addf %412, %417 : vector<16x16xf32>
    %c0_211 = arith.constant 0 : index
    %c4_212 = arith.constant 4 : index
    %c1_213 = arith.constant 1 : index
    %c0_214 = arith.constant 0 : index
    %419 = vector.load %arg6[%c0_211, %c4_212, %c1_213, %c0_214] : memref<2x7x22x16xf32, #tpu.memory_space<vmem>>, vector<1x1x16x16xf32>
    %420 = vector.shape_cast %419 : vector<1x1x16x16xf32> to vector<16x16xf32>
    %c79 = arith.constant 79 : index
    %421 = memref.load %arg3[%c79] : memref<166xf32, #tpu.memory_space<smem>>
    %422 = vector.broadcast %421 : f32 to vector<16x16xf32>
    %423 = arith.mulf %422, %420 : vector<16x16xf32>
    %424 = arith.addf %418, %423 : vector<16x16xf32>
    %c21 = arith.constant 21 : index
    %425 = memref.load %arg3[%c21] : memref<166xf32, #tpu.memory_space<smem>>
    %426 = vector.broadcast %425 : f32 to vector<16x16xf32>
    %427 = arith.mulf %426, %420 : vector<16x16xf32>
    %428 = arith.addf %406, %427 : vector<16x16xf32>
    %c0_215 = arith.constant 0 : index
    %c4_216 = arith.constant 4 : index
    %c2_217 = arith.constant 2 : index
    %c0_218 = arith.constant 0 : index
    %429 = vector.load %arg6[%c0_215, %c4_216, %c2_217, %c0_218] : memref<2x7x22x16xf32, #tpu.memory_space<vmem>>, vector<1x1x16x16xf32>
    %430 = vector.shape_cast %429 : vector<1x1x16x16xf32> to vector<16x16xf32>
    %c86 = arith.constant 86 : index
    %431 = memref.load %arg3[%c86] : memref<166xf32, #tpu.memory_space<smem>>
    %432 = vector.broadcast %431 : f32 to vector<16x16xf32>
    %433 = arith.mulf %432, %430 : vector<16x16xf32>
    %434 = arith.addf %424, %433 : vector<16x16xf32>
    %c26 = arith.constant 26 : index
    %435 = memref.load %arg3[%c26] : memref<166xf32, #tpu.memory_space<smem>>
    %436 = vector.broadcast %435 : f32 to vector<16x16xf32>
    %437 = arith.mulf %436, %430 : vector<16x16xf32>
    %438 = arith.addf %428, %437 : vector<16x16xf32>
    %c2_219 = arith.constant 2 : index
    %439 = memref.load %arg3[%c2_219] : memref<166xf32, #tpu.memory_space<smem>>
    %440 = vector.broadcast %439 : f32 to vector<16x16xf32>
    %441 = arith.mulf %440, %430 : vector<16x16xf32>
    %442 = arith.addf %396, %441 : vector<16x16xf32>
    %c0_220 = arith.constant 0 : index
    %c4_221 = arith.constant 4 : index
    %c3_222 = arith.constant 3 : index
    %c0_223 = arith.constant 0 : index
    %443 = vector.load %arg6[%c0_220, %c4_221, %c3_222, %c0_223] : memref<2x7x22x16xf32, #tpu.memory_space<vmem>>, vector<1x1x16x16xf32>
    %444 = vector.shape_cast %443 : vector<1x1x16x16xf32> to vector<16x16xf32>
    %c93 = arith.constant 93 : index
    %445 = memref.load %arg3[%c93] : memref<166xf32, #tpu.memory_space<smem>>
    %446 = vector.broadcast %445 : f32 to vector<16x16xf32>
    %447 = arith.mulf %446, %444 : vector<16x16xf32>
    %448 = arith.addf %434, %447 : vector<16x16xf32>
    %c31 = arith.constant 31 : index
    %449 = memref.load %arg3[%c31] : memref<166xf32, #tpu.memory_space<smem>>
    %450 = vector.broadcast %449 : f32 to vector<16x16xf32>
    %451 = arith.mulf %450, %444 : vector<16x16xf32>
    %452 = arith.addf %438, %451 : vector<16x16xf32>
    %c5_224 = arith.constant 5 : index
    %453 = memref.load %arg3[%c5_224] : memref<166xf32, #tpu.memory_space<smem>>
    %454 = vector.broadcast %453 : f32 to vector<16x16xf32>
    %455 = arith.mulf %454, %444 : vector<16x16xf32>
    %456 = arith.addf %442, %455 : vector<16x16xf32>
    %c0_225 = arith.constant 0 : index
    %c4_226 = arith.constant 4 : index
    %c4_227 = arith.constant 4 : index
    %c0_228 = arith.constant 0 : index
    %457 = vector.load %arg6[%c0_225, %c4_226, %c4_227, %c0_228] : memref<2x7x22x16xf32, #tpu.memory_space<vmem>>, vector<1x1x16x16xf32>
    %458 = vector.shape_cast %457 : vector<1x1x16x16xf32> to vector<16x16xf32>
    %c100 = arith.constant 100 : index
    %459 = memref.load %arg3[%c100] : memref<166xf32, #tpu.memory_space<smem>>
    %460 = vector.broadcast %459 : f32 to vector<16x16xf32>
    %461 = arith.mulf %460, %458 : vector<16x16xf32>
    %462 = arith.addf %448, %461 : vector<16x16xf32>
    %c36 = arith.constant 36 : index
    %463 = memref.load %arg3[%c36] : memref<166xf32, #tpu.memory_space<smem>>
    %464 = vector.broadcast %463 : f32 to vector<16x16xf32>
    %465 = arith.mulf %464, %458 : vector<16x16xf32>
    %466 = arith.addf %452, %465 : vector<16x16xf32>
    %c8 = arith.constant 8 : index
    %467 = memref.load %arg3[%c8] : memref<166xf32, #tpu.memory_space<smem>>
    %468 = vector.broadcast %467 : f32 to vector<16x16xf32>
    %469 = arith.mulf %468, %458 : vector<16x16xf32>
    %470 = arith.addf %456, %469 : vector<16x16xf32>
    %c0_229 = arith.constant 0 : index
    %c4_230 = arith.constant 4 : index
    %c5_231 = arith.constant 5 : index
    %c0_232 = arith.constant 0 : index
    %471 = vector.load %arg6[%c0_229, %c4_230, %c5_231, %c0_232] : memref<2x7x22x16xf32, #tpu.memory_space<vmem>>, vector<1x1x16x16xf32>
    %472 = vector.shape_cast %471 : vector<1x1x16x16xf32> to vector<16x16xf32>
    %c107 = arith.constant 107 : index
    %473 = memref.load %arg3[%c107] : memref<166xf32, #tpu.memory_space<smem>>
    %474 = vector.broadcast %473 : f32 to vector<16x16xf32>
    %475 = arith.mulf %474, %472 : vector<16x16xf32>
    %476 = arith.addf %462, %475 : vector<16x16xf32>
    %c41 = arith.constant 41 : index
    %477 = memref.load %arg3[%c41] : memref<166xf32, #tpu.memory_space<smem>>
    %478 = vector.broadcast %477 : f32 to vector<16x16xf32>
    %479 = arith.mulf %478, %472 : vector<16x16xf32>
    %480 = arith.addf %466, %479 : vector<16x16xf32>
    %c0_233 = arith.constant 0 : index
    %c4_234 = arith.constant 4 : index
    %c6_235 = arith.constant 6 : index
    %c0_236 = arith.constant 0 : index
    %481 = vector.load %arg6[%c0_233, %c4_234, %c6_235, %c0_236] : memref<2x7x22x16xf32, #tpu.memory_space<vmem>>, vector<1x1x16x16xf32>
    %482 = vector.shape_cast %481 : vector<1x1x16x16xf32> to vector<16x16xf32>
    %c114 = arith.constant 114 : index
    %483 = memref.load %arg3[%c114] : memref<166xf32, #tpu.memory_space<smem>>
    %484 = vector.broadcast %483 : f32 to vector<16x16xf32>
    %485 = arith.mulf %484, %482 : vector<16x16xf32>
    %486 = arith.addf %476, %485 : vector<16x16xf32>
    %c0_237 = arith.constant 0 : index
    %c5_238 = arith.constant 5 : index
    %c0_239 = arith.constant 0 : index
    %c0_240 = arith.constant 0 : index
    %487 = vector.load %arg6[%c0_237, %c5_238, %c0_239, %c0_240] : memref<2x7x22x16xf32, #tpu.memory_space<vmem>>, vector<1x1x16x16xf32>
    %488 = vector.shape_cast %487 : vector<1x1x16x16xf32> to vector<16x16xf32>
    %c73 = arith.constant 73 : index
    %489 = memref.load %arg3[%c73] : memref<166xf32, #tpu.memory_space<smem>>
    %490 = vector.broadcast %489 : f32 to vector<16x16xf32>
    %491 = arith.mulf %490, %488 : vector<16x16xf32>
    %492 = arith.addf %486, %491 : vector<16x16xf32>
    %c0_241 = arith.constant 0 : index
    %c5_242 = arith.constant 5 : index
    %c1_243 = arith.constant 1 : index
    %c0_244 = arith.constant 0 : index
    %493 = vector.load %arg6[%c0_241, %c5_242, %c1_243, %c0_244] : memref<2x7x22x16xf32, #tpu.memory_space<vmem>>, vector<1x1x16x16xf32>
    %494 = vector.shape_cast %493 : vector<1x1x16x16xf32> to vector<16x16xf32>
    %c80 = arith.constant 80 : index
    %495 = memref.load %arg3[%c80] : memref<166xf32, #tpu.memory_space<smem>>
    %496 = vector.broadcast %495 : f32 to vector<16x16xf32>
    %497 = arith.mulf %496, %494 : vector<16x16xf32>
    %498 = arith.addf %492, %497 : vector<16x16xf32>
    %c22 = arith.constant 22 : index
    %499 = memref.load %arg3[%c22] : memref<166xf32, #tpu.memory_space<smem>>
    %500 = vector.broadcast %499 : f32 to vector<16x16xf32>
    %501 = arith.mulf %500, %494 : vector<16x16xf32>
    %502 = arith.addf %480, %501 : vector<16x16xf32>
    %c0_245 = arith.constant 0 : index
    %c5_246 = arith.constant 5 : index
    %c2_247 = arith.constant 2 : index
    %c0_248 = arith.constant 0 : index
    %503 = vector.load %arg6[%c0_245, %c5_246, %c2_247, %c0_248] : memref<2x7x22x16xf32, #tpu.memory_space<vmem>>, vector<1x1x16x16xf32>
    %504 = vector.shape_cast %503 : vector<1x1x16x16xf32> to vector<16x16xf32>
    %c87 = arith.constant 87 : index
    %505 = memref.load %arg3[%c87] : memref<166xf32, #tpu.memory_space<smem>>
    %506 = vector.broadcast %505 : f32 to vector<16x16xf32>
    %507 = arith.mulf %506, %504 : vector<16x16xf32>
    %508 = arith.addf %498, %507 : vector<16x16xf32>
    %c27 = arith.constant 27 : index
    %509 = memref.load %arg3[%c27] : memref<166xf32, #tpu.memory_space<smem>>
    %510 = vector.broadcast %509 : f32 to vector<16x16xf32>
    %511 = arith.mulf %510, %504 : vector<16x16xf32>
    %512 = arith.addf %502, %511 : vector<16x16xf32>
    %c0_249 = arith.constant 0 : index
    %c5_250 = arith.constant 5 : index
    %c3_251 = arith.constant 3 : index
    %c0_252 = arith.constant 0 : index
    %513 = vector.load %arg6[%c0_249, %c5_250, %c3_251, %c0_252] : memref<2x7x22x16xf32, #tpu.memory_space<vmem>>, vector<1x1x16x16xf32>
    %514 = vector.shape_cast %513 : vector<1x1x16x16xf32> to vector<16x16xf32>
    %c94 = arith.constant 94 : index
    %515 = memref.load %arg3[%c94] : memref<166xf32, #tpu.memory_space<smem>>
    %516 = vector.broadcast %515 : f32 to vector<16x16xf32>
    %517 = arith.mulf %516, %514 : vector<16x16xf32>
    %518 = arith.addf %508, %517 : vector<16x16xf32>
    %c32 = arith.constant 32 : index
    %519 = memref.load %arg3[%c32] : memref<166xf32, #tpu.memory_space<smem>>
    %520 = vector.broadcast %519 : f32 to vector<16x16xf32>
    %521 = arith.mulf %520, %514 : vector<16x16xf32>
    %522 = arith.addf %512, %521 : vector<16x16xf32>
    %c0_253 = arith.constant 0 : index
    %c5_254 = arith.constant 5 : index
    %c4_255 = arith.constant 4 : index
    %c0_256 = arith.constant 0 : index
    %523 = vector.load %arg6[%c0_253, %c5_254, %c4_255, %c0_256] : memref<2x7x22x16xf32, #tpu.memory_space<vmem>>, vector<1x1x16x16xf32>
    %524 = vector.shape_cast %523 : vector<1x1x16x16xf32> to vector<16x16xf32>
    %c101 = arith.constant 101 : index
    %525 = memref.load %arg3[%c101] : memref<166xf32, #tpu.memory_space<smem>>
    %526 = vector.broadcast %525 : f32 to vector<16x16xf32>
    %527 = arith.mulf %526, %524 : vector<16x16xf32>
    %528 = arith.addf %518, %527 : vector<16x16xf32>
    %c37 = arith.constant 37 : index
    %529 = memref.load %arg3[%c37] : memref<166xf32, #tpu.memory_space<smem>>
    %530 = vector.broadcast %529 : f32 to vector<16x16xf32>
    %531 = arith.mulf %530, %524 : vector<16x16xf32>
    %532 = arith.addf %522, %531 : vector<16x16xf32>
    %c0_257 = arith.constant 0 : index
    %c5_258 = arith.constant 5 : index
    %c5_259 = arith.constant 5 : index
    %c0_260 = arith.constant 0 : index
    %533 = vector.load %arg6[%c0_257, %c5_258, %c5_259, %c0_260] : memref<2x7x22x16xf32, #tpu.memory_space<vmem>>, vector<1x1x16x16xf32>
    %534 = vector.shape_cast %533 : vector<1x1x16x16xf32> to vector<16x16xf32>
    %c108 = arith.constant 108 : index
    %535 = memref.load %arg3[%c108] : memref<166xf32, #tpu.memory_space<smem>>
    %536 = vector.broadcast %535 : f32 to vector<16x16xf32>
    %537 = arith.mulf %536, %534 : vector<16x16xf32>
    %538 = arith.addf %528, %537 : vector<16x16xf32>
    %c42 = arith.constant 42 : index
    %539 = memref.load %arg3[%c42] : memref<166xf32, #tpu.memory_space<smem>>
    %540 = vector.broadcast %539 : f32 to vector<16x16xf32>
    %541 = arith.mulf %540, %534 : vector<16x16xf32>
    %542 = arith.addf %532, %541 : vector<16x16xf32>
    %c0_261 = arith.constant 0 : index
    %c5_262 = arith.constant 5 : index
    %c6_263 = arith.constant 6 : index
    %c0_264 = arith.constant 0 : index
    %543 = vector.load %arg6[%c0_261, %c5_262, %c6_263, %c0_264] : memref<2x7x22x16xf32, #tpu.memory_space<vmem>>, vector<1x1x16x16xf32>
    %544 = vector.shape_cast %543 : vector<1x1x16x16xf32> to vector<16x16xf32>
    %c115 = arith.constant 115 : index
    %545 = memref.load %arg3[%c115] : memref<166xf32, #tpu.memory_space<smem>>
    %546 = vector.broadcast %545 : f32 to vector<16x16xf32>
    %547 = arith.mulf %546, %544 : vector<16x16xf32>
    %548 = arith.addf %538, %547 : vector<16x16xf32>
    %c0_265 = arith.constant 0 : index
    %c6_266 = arith.constant 6 : index
    %c0_267 = arith.constant 0 : index
    %c0_268 = arith.constant 0 : index
    %549 = vector.load %arg6[%c0_265, %c6_266, %c0_267, %c0_268] : memref<2x7x22x16xf32, #tpu.memory_space<vmem>>, vector<1x1x16x16xf32>
    %550 = vector.shape_cast %549 : vector<1x1x16x16xf32> to vector<16x16xf32>
    %c74 = arith.constant 74 : index
    %551 = memref.load %arg3[%c74] : memref<166xf32, #tpu.memory_space<smem>>
    %552 = vector.broadcast %551 : f32 to vector<16x16xf32>
    %553 = arith.mulf %552, %550 : vector<16x16xf32>
    %554 = arith.addf %548, %553 : vector<16x16xf32>
    %c0_269 = arith.constant 0 : index
    %c6_270 = arith.constant 6 : index
    %c1_271 = arith.constant 1 : index
    %c0_272 = arith.constant 0 : index
    %555 = vector.load %arg6[%c0_269, %c6_270, %c1_271, %c0_272] : memref<2x7x22x16xf32, #tpu.memory_space<vmem>>, vector<1x1x16x16xf32>
    %556 = vector.shape_cast %555 : vector<1x1x16x16xf32> to vector<16x16xf32>
    %c81 = arith.constant 81 : index
    %557 = memref.load %arg3[%c81] : memref<166xf32, #tpu.memory_space<smem>>
    %558 = vector.broadcast %557 : f32 to vector<16x16xf32>
    %559 = arith.mulf %558, %556 : vector<16x16xf32>
    %560 = arith.addf %554, %559 : vector<16x16xf32>
    %c0_273 = arith.constant 0 : index
    %c6_274 = arith.constant 6 : index
    %c2_275 = arith.constant 2 : index
    %c0_276 = arith.constant 0 : index
    %561 = vector.load %arg6[%c0_273, %c6_274, %c2_275, %c0_276] : memref<2x7x22x16xf32, #tpu.memory_space<vmem>>, vector<1x1x16x16xf32>
    %562 = vector.shape_cast %561 : vector<1x1x16x16xf32> to vector<16x16xf32>
    %c88 = arith.constant 88 : index
    %563 = memref.load %arg3[%c88] : memref<166xf32, #tpu.memory_space<smem>>
    %564 = vector.broadcast %563 : f32 to vector<16x16xf32>
    %565 = arith.mulf %564, %562 : vector<16x16xf32>
    %566 = arith.addf %560, %565 : vector<16x16xf32>
    %c0_277 = arith.constant 0 : index
    %c6_278 = arith.constant 6 : index
    %c3_279 = arith.constant 3 : index
    %c0_280 = arith.constant 0 : index
    %567 = vector.load %arg6[%c0_277, %c6_278, %c3_279, %c0_280] : memref<2x7x22x16xf32, #tpu.memory_space<vmem>>, vector<1x1x16x16xf32>
    %568 = vector.shape_cast %567 : vector<1x1x16x16xf32> to vector<16x16xf32>
    %c95 = arith.constant 95 : index
    %569 = memref.load %arg3[%c95] : memref<166xf32, #tpu.memory_space<smem>>
    %570 = vector.broadcast %569 : f32 to vector<16x16xf32>
    %571 = arith.mulf %570, %568 : vector<16x16xf32>
    %572 = arith.addf %566, %571 : vector<16x16xf32>
    %c0_281 = arith.constant 0 : index
    %c6_282 = arith.constant 6 : index
    %c4_283 = arith.constant 4 : index
    %c0_284 = arith.constant 0 : index
    %573 = vector.load %arg6[%c0_281, %c6_282, %c4_283, %c0_284] : memref<2x7x22x16xf32, #tpu.memory_space<vmem>>, vector<1x1x16x16xf32>
    %574 = vector.shape_cast %573 : vector<1x1x16x16xf32> to vector<16x16xf32>
    %c102 = arith.constant 102 : index
    %575 = memref.load %arg3[%c102] : memref<166xf32, #tpu.memory_space<smem>>
    %576 = vector.broadcast %575 : f32 to vector<16x16xf32>
    %577 = arith.mulf %576, %574 : vector<16x16xf32>
    %578 = arith.addf %572, %577 : vector<16x16xf32>
    %c0_285 = arith.constant 0 : index
    %c6_286 = arith.constant 6 : index
    %c5_287 = arith.constant 5 : index
    %c0_288 = arith.constant 0 : index
    %579 = vector.load %arg6[%c0_285, %c6_286, %c5_287, %c0_288] : memref<2x7x22x16xf32, #tpu.memory_space<vmem>>, vector<1x1x16x16xf32>
    %580 = vector.shape_cast %579 : vector<1x1x16x16xf32> to vector<16x16xf32>
    %c109 = arith.constant 109 : index
    %581 = memref.load %arg3[%c109] : memref<166xf32, #tpu.memory_space<smem>>
    %582 = vector.broadcast %581 : f32 to vector<16x16xf32>
    %583 = arith.mulf %582, %580 : vector<16x16xf32>
    %584 = arith.addf %578, %583 : vector<16x16xf32>
    %c0_289 = arith.constant 0 : index
    %c6_290 = arith.constant 6 : index
    %c6_291 = arith.constant 6 : index
    %c0_292 = arith.constant 0 : index
    %585 = vector.load %arg6[%c0_289, %c6_290, %c6_291, %c0_292] : memref<2x7x22x16xf32, #tpu.memory_space<vmem>>, vector<1x1x16x16xf32>
    %586 = vector.shape_cast %585 : vector<1x1x16x16xf32> to vector<16x16xf32>
    %c116 = arith.constant 116 : index
    %587 = memref.load %arg3[%c116] : memref<166xf32, #tpu.memory_space<smem>>
    %588 = vector.broadcast %587 : f32 to vector<16x16xf32>
    %589 = arith.mulf %588, %586 : vector<16x16xf32>
    %590 = arith.addf %584, %589 : vector<16x16xf32>
    %c1_293 = arith.constant 1 : index
    %c0_294 = arith.constant 0 : index
    %c0_295 = arith.constant 0 : index
    %c0_296 = arith.constant 0 : index
    %591 = vector.load %arg6[%c1_293, %c0_294, %c0_295, %c0_296] : memref<2x7x22x16xf32, #tpu.memory_space<vmem>>, vector<1x1x16x16xf32>
    %592 = vector.shape_cast %591 : vector<1x1x16x16xf32> to vector<16x16xf32>
    %c117 = arith.constant 117 : index
    %593 = memref.load %arg3[%c117] : memref<166xf32, #tpu.memory_space<smem>>
    %594 = vector.broadcast %593 : f32 to vector<16x16xf32>
    %595 = arith.mulf %594, %592 : vector<16x16xf32>
    %596 = arith.addf %590, %595 : vector<16x16xf32>
    %c1_297 = arith.constant 1 : index
    %c0_298 = arith.constant 0 : index
    %c1_299 = arith.constant 1 : index
    %c0_300 = arith.constant 0 : index
    %597 = vector.load %arg6[%c1_297, %c0_298, %c1_299, %c0_300] : memref<2x7x22x16xf32, #tpu.memory_space<vmem>>, vector<1x1x16x16xf32>
    %598 = vector.shape_cast %597 : vector<1x1x16x16xf32> to vector<16x16xf32>
    %c124 = arith.constant 124 : index
    %599 = memref.load %arg3[%c124] : memref<166xf32, #tpu.memory_space<smem>>
    %600 = vector.broadcast %599 : f32 to vector<16x16xf32>
    %601 = arith.mulf %600, %598 : vector<16x16xf32>
    %602 = arith.addf %596, %601 : vector<16x16xf32>
    %c1_301 = arith.constant 1 : index
    %c0_302 = arith.constant 0 : index
    %c2_303 = arith.constant 2 : index
    %c0_304 = arith.constant 0 : index
    %603 = vector.load %arg6[%c1_301, %c0_302, %c2_303, %c0_304] : memref<2x7x22x16xf32, #tpu.memory_space<vmem>>, vector<1x1x16x16xf32>
    %604 = vector.shape_cast %603 : vector<1x1x16x16xf32> to vector<16x16xf32>
    %c131 = arith.constant 131 : index
    %605 = memref.load %arg3[%c131] : memref<166xf32, #tpu.memory_space<smem>>
    %606 = vector.broadcast %605 : f32 to vector<16x16xf32>
    %607 = arith.mulf %606, %604 : vector<16x16xf32>
    %608 = arith.addf %602, %607 : vector<16x16xf32>
    %c1_305 = arith.constant 1 : index
    %c0_306 = arith.constant 0 : index
    %c3_307 = arith.constant 3 : index
    %c0_308 = arith.constant 0 : index
    %609 = vector.load %arg6[%c1_305, %c0_306, %c3_307, %c0_308] : memref<2x7x22x16xf32, #tpu.memory_space<vmem>>, vector<1x1x16x16xf32>
    %610 = vector.shape_cast %609 : vector<1x1x16x16xf32> to vector<16x16xf32>
    %c138 = arith.constant 138 : index
    %611 = memref.load %arg3[%c138] : memref<166xf32, #tpu.memory_space<smem>>
    %612 = vector.broadcast %611 : f32 to vector<16x16xf32>
    %613 = arith.mulf %612, %610 : vector<16x16xf32>
    %614 = arith.addf %608, %613 : vector<16x16xf32>
    %c1_309 = arith.constant 1 : index
    %c0_310 = arith.constant 0 : index
    %c4_311 = arith.constant 4 : index
    %c0_312 = arith.constant 0 : index
    %615 = vector.load %arg6[%c1_309, %c0_310, %c4_311, %c0_312] : memref<2x7x22x16xf32, #tpu.memory_space<vmem>>, vector<1x1x16x16xf32>
    %616 = vector.shape_cast %615 : vector<1x1x16x16xf32> to vector<16x16xf32>
    %c145 = arith.constant 145 : index
    %617 = memref.load %arg3[%c145] : memref<166xf32, #tpu.memory_space<smem>>
    %618 = vector.broadcast %617 : f32 to vector<16x16xf32>
    %619 = arith.mulf %618, %616 : vector<16x16xf32>
    %620 = arith.addf %614, %619 : vector<16x16xf32>
    %c1_313 = arith.constant 1 : index
    %c0_314 = arith.constant 0 : index
    %c5_315 = arith.constant 5 : index
    %c0_316 = arith.constant 0 : index
    %621 = vector.load %arg6[%c1_313, %c0_314, %c5_315, %c0_316] : memref<2x7x22x16xf32, #tpu.memory_space<vmem>>, vector<1x1x16x16xf32>
    %622 = vector.shape_cast %621 : vector<1x1x16x16xf32> to vector<16x16xf32>
    %c152 = arith.constant 152 : index
    %623 = memref.load %arg3[%c152] : memref<166xf32, #tpu.memory_space<smem>>
    %624 = vector.broadcast %623 : f32 to vector<16x16xf32>
    %625 = arith.mulf %624, %622 : vector<16x16xf32>
    %626 = arith.addf %620, %625 : vector<16x16xf32>
    %c1_317 = arith.constant 1 : index
    %c0_318 = arith.constant 0 : index
    %c6_319 = arith.constant 6 : index
    %c0_320 = arith.constant 0 : index
    %627 = vector.load %arg6[%c1_317, %c0_318, %c6_319, %c0_320] : memref<2x7x22x16xf32, #tpu.memory_space<vmem>>, vector<1x1x16x16xf32>
    %628 = vector.shape_cast %627 : vector<1x1x16x16xf32> to vector<16x16xf32>
    %c159 = arith.constant 159 : index
    %629 = memref.load %arg3[%c159] : memref<166xf32, #tpu.memory_space<smem>>
    %630 = vector.broadcast %629 : f32 to vector<16x16xf32>
    %631 = arith.mulf %630, %628 : vector<16x16xf32>
    %632 = arith.addf %626, %631 : vector<16x16xf32>
    %c1_321 = arith.constant 1 : index
    %c1_322 = arith.constant 1 : index
    %c0_323 = arith.constant 0 : index
    %c0_324 = arith.constant 0 : index
    %633 = vector.load %arg6[%c1_321, %c1_322, %c0_323, %c0_324] : memref<2x7x22x16xf32, #tpu.memory_space<vmem>>, vector<1x1x16x16xf32>
    %634 = vector.shape_cast %633 : vector<1x1x16x16xf32> to vector<16x16xf32>
    %c118 = arith.constant 118 : index
    %635 = memref.load %arg3[%c118] : memref<166xf32, #tpu.memory_space<smem>>
    %636 = vector.broadcast %635 : f32 to vector<16x16xf32>
    %637 = arith.mulf %636, %634 : vector<16x16xf32>
    %638 = arith.addf %632, %637 : vector<16x16xf32>
    %c1_325 = arith.constant 1 : index
    %c1_326 = arith.constant 1 : index
    %c1_327 = arith.constant 1 : index
    %c0_328 = arith.constant 0 : index
    %639 = vector.load %arg6[%c1_325, %c1_326, %c1_327, %c0_328] : memref<2x7x22x16xf32, #tpu.memory_space<vmem>>, vector<1x1x16x16xf32>
    %640 = vector.shape_cast %639 : vector<1x1x16x16xf32> to vector<16x16xf32>
    %c125 = arith.constant 125 : index
    %641 = memref.load %arg3[%c125] : memref<166xf32, #tpu.memory_space<smem>>
    %642 = vector.broadcast %641 : f32 to vector<16x16xf32>
    %643 = arith.mulf %642, %640 : vector<16x16xf32>
    %644 = arith.addf %638, %643 : vector<16x16xf32>
    %c43 = arith.constant 43 : index
    %645 = memref.load %arg3[%c43] : memref<166xf32, #tpu.memory_space<smem>>
    %646 = vector.broadcast %645 : f32 to vector<16x16xf32>
    %647 = arith.mulf %646, %640 : vector<16x16xf32>
    %648 = arith.addf %542, %647 : vector<16x16xf32>
    %c1_329 = arith.constant 1 : index
    %c1_330 = arith.constant 1 : index
    %c2_331 = arith.constant 2 : index
    %c0_332 = arith.constant 0 : index
    %649 = vector.load %arg6[%c1_329, %c1_330, %c2_331, %c0_332] : memref<2x7x22x16xf32, #tpu.memory_space<vmem>>, vector<1x1x16x16xf32>
    %650 = vector.shape_cast %649 : vector<1x1x16x16xf32> to vector<16x16xf32>
    %c132 = arith.constant 132 : index
    %651 = memref.load %arg3[%c132] : memref<166xf32, #tpu.memory_space<smem>>
    %652 = vector.broadcast %651 : f32 to vector<16x16xf32>
    %653 = arith.mulf %652, %650 : vector<16x16xf32>
    %654 = arith.addf %644, %653 : vector<16x16xf32>
    %c48 = arith.constant 48 : index
    %655 = memref.load %arg3[%c48] : memref<166xf32, #tpu.memory_space<smem>>
    %656 = vector.broadcast %655 : f32 to vector<16x16xf32>
    %657 = arith.mulf %656, %650 : vector<16x16xf32>
    %658 = arith.addf %648, %657 : vector<16x16xf32>
    %c1_333 = arith.constant 1 : index
    %c1_334 = arith.constant 1 : index
    %c3_335 = arith.constant 3 : index
    %c0_336 = arith.constant 0 : index
    %659 = vector.load %arg6[%c1_333, %c1_334, %c3_335, %c0_336] : memref<2x7x22x16xf32, #tpu.memory_space<vmem>>, vector<1x1x16x16xf32>
    %660 = vector.shape_cast %659 : vector<1x1x16x16xf32> to vector<16x16xf32>
    %c139 = arith.constant 139 : index
    %661 = memref.load %arg3[%c139] : memref<166xf32, #tpu.memory_space<smem>>
    %662 = vector.broadcast %661 : f32 to vector<16x16xf32>
    %663 = arith.mulf %662, %660 : vector<16x16xf32>
    %664 = arith.addf %654, %663 : vector<16x16xf32>
    %c53 = arith.constant 53 : index
    %665 = memref.load %arg3[%c53] : memref<166xf32, #tpu.memory_space<smem>>
    %666 = vector.broadcast %665 : f32 to vector<16x16xf32>
    %667 = arith.mulf %666, %660 : vector<16x16xf32>
    %668 = arith.addf %658, %667 : vector<16x16xf32>
    %c1_337 = arith.constant 1 : index
    %c1_338 = arith.constant 1 : index
    %c4_339 = arith.constant 4 : index
    %c0_340 = arith.constant 0 : index
    %669 = vector.load %arg6[%c1_337, %c1_338, %c4_339, %c0_340] : memref<2x7x22x16xf32, #tpu.memory_space<vmem>>, vector<1x1x16x16xf32>
    %670 = vector.shape_cast %669 : vector<1x1x16x16xf32> to vector<16x16xf32>
    %c146 = arith.constant 146 : index
    %671 = memref.load %arg3[%c146] : memref<166xf32, #tpu.memory_space<smem>>
    %672 = vector.broadcast %671 : f32 to vector<16x16xf32>
    %673 = arith.mulf %672, %670 : vector<16x16xf32>
    %674 = arith.addf %664, %673 : vector<16x16xf32>
    %c58 = arith.constant 58 : index
    %675 = memref.load %arg3[%c58] : memref<166xf32, #tpu.memory_space<smem>>
    %676 = vector.broadcast %675 : f32 to vector<16x16xf32>
    %677 = arith.mulf %676, %670 : vector<16x16xf32>
    %678 = arith.addf %668, %677 : vector<16x16xf32>
    %c1_341 = arith.constant 1 : index
    %c1_342 = arith.constant 1 : index
    %c5_343 = arith.constant 5 : index
    %c0_344 = arith.constant 0 : index
    %679 = vector.load %arg6[%c1_341, %c1_342, %c5_343, %c0_344] : memref<2x7x22x16xf32, #tpu.memory_space<vmem>>, vector<1x1x16x16xf32>
    %680 = vector.shape_cast %679 : vector<1x1x16x16xf32> to vector<16x16xf32>
    %c153 = arith.constant 153 : index
    %681 = memref.load %arg3[%c153] : memref<166xf32, #tpu.memory_space<smem>>
    %682 = vector.broadcast %681 : f32 to vector<16x16xf32>
    %683 = arith.mulf %682, %680 : vector<16x16xf32>
    %684 = arith.addf %674, %683 : vector<16x16xf32>
    %c63 = arith.constant 63 : index
    %685 = memref.load %arg3[%c63] : memref<166xf32, #tpu.memory_space<smem>>
    %686 = vector.broadcast %685 : f32 to vector<16x16xf32>
    %687 = arith.mulf %686, %680 : vector<16x16xf32>
    %688 = arith.addf %678, %687 : vector<16x16xf32>
    %c1_345 = arith.constant 1 : index
    %c1_346 = arith.constant 1 : index
    %c6_347 = arith.constant 6 : index
    %c0_348 = arith.constant 0 : index
    %689 = vector.load %arg6[%c1_345, %c1_346, %c6_347, %c0_348] : memref<2x7x22x16xf32, #tpu.memory_space<vmem>>, vector<1x1x16x16xf32>
    %690 = vector.shape_cast %689 : vector<1x1x16x16xf32> to vector<16x16xf32>
    %c160 = arith.constant 160 : index
    %691 = memref.load %arg3[%c160] : memref<166xf32, #tpu.memory_space<smem>>
    %692 = vector.broadcast %691 : f32 to vector<16x16xf32>
    %693 = arith.mulf %692, %690 : vector<16x16xf32>
    %694 = arith.addf %684, %693 : vector<16x16xf32>
    %c1_349 = arith.constant 1 : index
    %c2_350 = arith.constant 2 : index
    %c0_351 = arith.constant 0 : index
    %c0_352 = arith.constant 0 : index
    %695 = vector.load %arg6[%c1_349, %c2_350, %c0_351, %c0_352] : memref<2x7x22x16xf32, #tpu.memory_space<vmem>>, vector<1x1x16x16xf32>
    %696 = vector.shape_cast %695 : vector<1x1x16x16xf32> to vector<16x16xf32>
    %c119 = arith.constant 119 : index
    %697 = memref.load %arg3[%c119] : memref<166xf32, #tpu.memory_space<smem>>
    %698 = vector.broadcast %697 : f32 to vector<16x16xf32>
    %699 = arith.mulf %698, %696 : vector<16x16xf32>
    %700 = arith.addf %694, %699 : vector<16x16xf32>
    %c1_353 = arith.constant 1 : index
    %c2_354 = arith.constant 2 : index
    %c1_355 = arith.constant 1 : index
    %c0_356 = arith.constant 0 : index
    %701 = vector.load %arg6[%c1_353, %c2_354, %c1_355, %c0_356] : memref<2x7x22x16xf32, #tpu.memory_space<vmem>>, vector<1x1x16x16xf32>
    %702 = vector.shape_cast %701 : vector<1x1x16x16xf32> to vector<16x16xf32>
    %c126 = arith.constant 126 : index
    %703 = memref.load %arg3[%c126] : memref<166xf32, #tpu.memory_space<smem>>
    %704 = vector.broadcast %703 : f32 to vector<16x16xf32>
    %705 = arith.mulf %704, %702 : vector<16x16xf32>
    %706 = arith.addf %700, %705 : vector<16x16xf32>
    %c44 = arith.constant 44 : index
    %707 = memref.load %arg3[%c44] : memref<166xf32, #tpu.memory_space<smem>>
    %708 = vector.broadcast %707 : f32 to vector<16x16xf32>
    %709 = arith.mulf %708, %702 : vector<16x16xf32>
    %710 = arith.addf %688, %709 : vector<16x16xf32>
    %c1_357 = arith.constant 1 : index
    %c2_358 = arith.constant 2 : index
    %c2_359 = arith.constant 2 : index
    %c0_360 = arith.constant 0 : index
    %711 = vector.load %arg6[%c1_357, %c2_358, %c2_359, %c0_360] : memref<2x7x22x16xf32, #tpu.memory_space<vmem>>, vector<1x1x16x16xf32>
    %712 = vector.shape_cast %711 : vector<1x1x16x16xf32> to vector<16x16xf32>
    %c133 = arith.constant 133 : index
    %713 = memref.load %arg3[%c133] : memref<166xf32, #tpu.memory_space<smem>>
    %714 = vector.broadcast %713 : f32 to vector<16x16xf32>
    %715 = arith.mulf %714, %712 : vector<16x16xf32>
    %716 = arith.addf %706, %715 : vector<16x16xf32>
    %c49 = arith.constant 49 : index
    %717 = memref.load %arg3[%c49] : memref<166xf32, #tpu.memory_space<smem>>
    %718 = vector.broadcast %717 : f32 to vector<16x16xf32>
    %719 = arith.mulf %718, %712 : vector<16x16xf32>
    %720 = arith.addf %710, %719 : vector<16x16xf32>
    %c9 = arith.constant 9 : index
    %721 = memref.load %arg3[%c9] : memref<166xf32, #tpu.memory_space<smem>>
    %722 = vector.broadcast %721 : f32 to vector<16x16xf32>
    %723 = arith.mulf %722, %712 : vector<16x16xf32>
    %724 = arith.addf %470, %723 : vector<16x16xf32>
    %c1_361 = arith.constant 1 : index
    %c2_362 = arith.constant 2 : index
    %c3_363 = arith.constant 3 : index
    %c0_364 = arith.constant 0 : index
    %725 = vector.load %arg6[%c1_361, %c2_362, %c3_363, %c0_364] : memref<2x7x22x16xf32, #tpu.memory_space<vmem>>, vector<1x1x16x16xf32>
    %726 = vector.shape_cast %725 : vector<1x1x16x16xf32> to vector<16x16xf32>
    %c140 = arith.constant 140 : index
    %727 = memref.load %arg3[%c140] : memref<166xf32, #tpu.memory_space<smem>>
    %728 = vector.broadcast %727 : f32 to vector<16x16xf32>
    %729 = arith.mulf %728, %726 : vector<16x16xf32>
    %730 = arith.addf %716, %729 : vector<16x16xf32>
    %c54 = arith.constant 54 : index
    %731 = memref.load %arg3[%c54] : memref<166xf32, #tpu.memory_space<smem>>
    %732 = vector.broadcast %731 : f32 to vector<16x16xf32>
    %733 = arith.mulf %732, %726 : vector<16x16xf32>
    %734 = arith.addf %720, %733 : vector<16x16xf32>
    %c12 = arith.constant 12 : index
    %735 = memref.load %arg3[%c12] : memref<166xf32, #tpu.memory_space<smem>>
    %736 = vector.broadcast %735 : f32 to vector<16x16xf32>
    %737 = arith.mulf %736, %726 : vector<16x16xf32>
    %738 = arith.addf %724, %737 : vector<16x16xf32>
    %c1_365 = arith.constant 1 : index
    %c2_366 = arith.constant 2 : index
    %c4_367 = arith.constant 4 : index
    %c0_368 = arith.constant 0 : index
    %739 = vector.load %arg6[%c1_365, %c2_366, %c4_367, %c0_368] : memref<2x7x22x16xf32, #tpu.memory_space<vmem>>, vector<1x1x16x16xf32>
    %740 = vector.shape_cast %739 : vector<1x1x16x16xf32> to vector<16x16xf32>
    %c147 = arith.constant 147 : index
    %741 = memref.load %arg3[%c147] : memref<166xf32, #tpu.memory_space<smem>>
    %742 = vector.broadcast %741 : f32 to vector<16x16xf32>
    %743 = arith.mulf %742, %740 : vector<16x16xf32>
    %744 = arith.addf %730, %743 : vector<16x16xf32>
    %c59 = arith.constant 59 : index
    %745 = memref.load %arg3[%c59] : memref<166xf32, #tpu.memory_space<smem>>
    %746 = vector.broadcast %745 : f32 to vector<16x16xf32>
    %747 = arith.mulf %746, %740 : vector<16x16xf32>
    %748 = arith.addf %734, %747 : vector<16x16xf32>
    %c15 = arith.constant 15 : index
    %749 = memref.load %arg3[%c15] : memref<166xf32, #tpu.memory_space<smem>>
    %750 = vector.broadcast %749 : f32 to vector<16x16xf32>
    %751 = arith.mulf %750, %740 : vector<16x16xf32>
    %752 = arith.addf %738, %751 : vector<16x16xf32>
    %c1_369 = arith.constant 1 : index
    %c2_370 = arith.constant 2 : index
    %c5_371 = arith.constant 5 : index
    %c0_372 = arith.constant 0 : index
    %753 = vector.load %arg6[%c1_369, %c2_370, %c5_371, %c0_372] : memref<2x7x22x16xf32, #tpu.memory_space<vmem>>, vector<1x1x16x16xf32>
    %754 = vector.shape_cast %753 : vector<1x1x16x16xf32> to vector<16x16xf32>
    %c154 = arith.constant 154 : index
    %755 = memref.load %arg3[%c154] : memref<166xf32, #tpu.memory_space<smem>>
    %756 = vector.broadcast %755 : f32 to vector<16x16xf32>
    %757 = arith.mulf %756, %754 : vector<16x16xf32>
    %758 = arith.addf %744, %757 : vector<16x16xf32>
    %c64 = arith.constant 64 : index
    %759 = memref.load %arg3[%c64] : memref<166xf32, #tpu.memory_space<smem>>
    %760 = vector.broadcast %759 : f32 to vector<16x16xf32>
    %761 = arith.mulf %760, %754 : vector<16x16xf32>
    %762 = arith.addf %748, %761 : vector<16x16xf32>
    %c1_373 = arith.constant 1 : index
    %c2_374 = arith.constant 2 : index
    %c6_375 = arith.constant 6 : index
    %c0_376 = arith.constant 0 : index
    %763 = vector.load %arg6[%c1_373, %c2_374, %c6_375, %c0_376] : memref<2x7x22x16xf32, #tpu.memory_space<vmem>>, vector<1x1x16x16xf32>
    %764 = vector.shape_cast %763 : vector<1x1x16x16xf32> to vector<16x16xf32>
    %c161 = arith.constant 161 : index
    %765 = memref.load %arg3[%c161] : memref<166xf32, #tpu.memory_space<smem>>
    %766 = vector.broadcast %765 : f32 to vector<16x16xf32>
    %767 = arith.mulf %766, %764 : vector<16x16xf32>
    %768 = arith.addf %758, %767 : vector<16x16xf32>
    %c1_377 = arith.constant 1 : index
    %c3_378 = arith.constant 3 : index
    %c0_379 = arith.constant 0 : index
    %c0_380 = arith.constant 0 : index
    %769 = vector.load %arg6[%c1_377, %c3_378, %c0_379, %c0_380] : memref<2x7x22x16xf32, #tpu.memory_space<vmem>>, vector<1x1x16x16xf32>
    %770 = vector.shape_cast %769 : vector<1x1x16x16xf32> to vector<16x16xf32>
    %c120 = arith.constant 120 : index
    %771 = memref.load %arg3[%c120] : memref<166xf32, #tpu.memory_space<smem>>
    %772 = vector.broadcast %771 : f32 to vector<16x16xf32>
    %773 = arith.mulf %772, %770 : vector<16x16xf32>
    %774 = arith.addf %768, %773 : vector<16x16xf32>
    %c1_381 = arith.constant 1 : index
    %c3_382 = arith.constant 3 : index
    %c1_383 = arith.constant 1 : index
    %c0_384 = arith.constant 0 : index
    %775 = vector.load %arg6[%c1_381, %c3_382, %c1_383, %c0_384] : memref<2x7x22x16xf32, #tpu.memory_space<vmem>>, vector<1x1x16x16xf32>
    %776 = vector.shape_cast %775 : vector<1x1x16x16xf32> to vector<16x16xf32>
    %c127 = arith.constant 127 : index
    %777 = memref.load %arg3[%c127] : memref<166xf32, #tpu.memory_space<smem>>
    %778 = vector.broadcast %777 : f32 to vector<16x16xf32>
    %779 = arith.mulf %778, %776 : vector<16x16xf32>
    %780 = arith.addf %774, %779 : vector<16x16xf32>
    %c45 = arith.constant 45 : index
    %781 = memref.load %arg3[%c45] : memref<166xf32, #tpu.memory_space<smem>>
    %782 = vector.broadcast %781 : f32 to vector<16x16xf32>
    %783 = arith.mulf %782, %776 : vector<16x16xf32>
    %784 = arith.addf %762, %783 : vector<16x16xf32>
    %c1_385 = arith.constant 1 : index
    %c3_386 = arith.constant 3 : index
    %c2_387 = arith.constant 2 : index
    %c0_388 = arith.constant 0 : index
    %785 = vector.load %arg6[%c1_385, %c3_386, %c2_387, %c0_388] : memref<2x7x22x16xf32, #tpu.memory_space<vmem>>, vector<1x1x16x16xf32>
    %786 = vector.shape_cast %785 : vector<1x1x16x16xf32> to vector<16x16xf32>
    %c134 = arith.constant 134 : index
    %787 = memref.load %arg3[%c134] : memref<166xf32, #tpu.memory_space<smem>>
    %788 = vector.broadcast %787 : f32 to vector<16x16xf32>
    %789 = arith.mulf %788, %786 : vector<16x16xf32>
    %790 = arith.addf %780, %789 : vector<16x16xf32>
    %c50 = arith.constant 50 : index
    %791 = memref.load %arg3[%c50] : memref<166xf32, #tpu.memory_space<smem>>
    %792 = vector.broadcast %791 : f32 to vector<16x16xf32>
    %793 = arith.mulf %792, %786 : vector<16x16xf32>
    %794 = arith.addf %784, %793 : vector<16x16xf32>
    %c10 = arith.constant 10 : index
    %795 = memref.load %arg3[%c10] : memref<166xf32, #tpu.memory_space<smem>>
    %796 = vector.broadcast %795 : f32 to vector<16x16xf32>
    %797 = arith.mulf %796, %786 : vector<16x16xf32>
    %798 = arith.addf %752, %797 : vector<16x16xf32>
    %c1_389 = arith.constant 1 : index
    %c3_390 = arith.constant 3 : index
    %c3_391 = arith.constant 3 : index
    %c0_392 = arith.constant 0 : index
    %799 = vector.load %arg6[%c1_389, %c3_390, %c3_391, %c0_392] : memref<2x7x22x16xf32, #tpu.memory_space<vmem>>, vector<1x1x16x16xf32>
    %800 = vector.shape_cast %799 : vector<1x1x16x16xf32> to vector<16x16xf32>
    %c141 = arith.constant 141 : index
    %801 = memref.load %arg3[%c141] : memref<166xf32, #tpu.memory_space<smem>>
    %802 = vector.broadcast %801 : f32 to vector<16x16xf32>
    %803 = arith.mulf %802, %800 : vector<16x16xf32>
    %804 = arith.addf %790, %803 : vector<16x16xf32>
    %c55 = arith.constant 55 : index
    %805 = memref.load %arg3[%c55] : memref<166xf32, #tpu.memory_space<smem>>
    %806 = vector.broadcast %805 : f32 to vector<16x16xf32>
    %807 = arith.mulf %806, %800 : vector<16x16xf32>
    %808 = arith.addf %794, %807 : vector<16x16xf32>
    %c13 = arith.constant 13 : index
    %809 = memref.load %arg3[%c13] : memref<166xf32, #tpu.memory_space<smem>>
    %810 = vector.broadcast %809 : f32 to vector<16x16xf32>
    %811 = arith.mulf %810, %800 : vector<16x16xf32>
    %812 = arith.addf %798, %811 : vector<16x16xf32>
    %c1_393 = arith.constant 1 : index
    %c3_394 = arith.constant 3 : index
    %c4_395 = arith.constant 4 : index
    %c0_396 = arith.constant 0 : index
    %813 = vector.load %arg6[%c1_393, %c3_394, %c4_395, %c0_396] : memref<2x7x22x16xf32, #tpu.memory_space<vmem>>, vector<1x1x16x16xf32>
    %814 = vector.shape_cast %813 : vector<1x1x16x16xf32> to vector<16x16xf32>
    %c148 = arith.constant 148 : index
    %815 = memref.load %arg3[%c148] : memref<166xf32, #tpu.memory_space<smem>>
    %816 = vector.broadcast %815 : f32 to vector<16x16xf32>
    %817 = arith.mulf %816, %814 : vector<16x16xf32>
    %818 = arith.addf %804, %817 : vector<16x16xf32>
    %c60 = arith.constant 60 : index
    %819 = memref.load %arg3[%c60] : memref<166xf32, #tpu.memory_space<smem>>
    %820 = vector.broadcast %819 : f32 to vector<16x16xf32>
    %821 = arith.mulf %820, %814 : vector<16x16xf32>
    %822 = arith.addf %808, %821 : vector<16x16xf32>
    %c16 = arith.constant 16 : index
    %823 = memref.load %arg3[%c16] : memref<166xf32, #tpu.memory_space<smem>>
    %824 = vector.broadcast %823 : f32 to vector<16x16xf32>
    %825 = arith.mulf %824, %814 : vector<16x16xf32>
    %826 = arith.addf %812, %825 : vector<16x16xf32>
    %c1_397 = arith.constant 1 : index
    %c3_398 = arith.constant 3 : index
    %c5_399 = arith.constant 5 : index
    %c0_400 = arith.constant 0 : index
    %827 = vector.load %arg6[%c1_397, %c3_398, %c5_399, %c0_400] : memref<2x7x22x16xf32, #tpu.memory_space<vmem>>, vector<1x1x16x16xf32>
    %828 = vector.shape_cast %827 : vector<1x1x16x16xf32> to vector<16x16xf32>
    %c155 = arith.constant 155 : index
    %829 = memref.load %arg3[%c155] : memref<166xf32, #tpu.memory_space<smem>>
    %830 = vector.broadcast %829 : f32 to vector<16x16xf32>
    %831 = arith.mulf %830, %828 : vector<16x16xf32>
    %832 = arith.addf %818, %831 : vector<16x16xf32>
    %c65 = arith.constant 65 : index
    %833 = memref.load %arg3[%c65] : memref<166xf32, #tpu.memory_space<smem>>
    %834 = vector.broadcast %833 : f32 to vector<16x16xf32>
    %835 = arith.mulf %834, %828 : vector<16x16xf32>
    %836 = arith.addf %822, %835 : vector<16x16xf32>
    %c1_401 = arith.constant 1 : index
    %c3_402 = arith.constant 3 : index
    %c6_403 = arith.constant 6 : index
    %c0_404 = arith.constant 0 : index
    %837 = vector.load %arg6[%c1_401, %c3_402, %c6_403, %c0_404] : memref<2x7x22x16xf32, #tpu.memory_space<vmem>>, vector<1x1x16x16xf32>
    %838 = vector.shape_cast %837 : vector<1x1x16x16xf32> to vector<16x16xf32>
    %c162 = arith.constant 162 : index
    %839 = memref.load %arg3[%c162] : memref<166xf32, #tpu.memory_space<smem>>
    %840 = vector.broadcast %839 : f32 to vector<16x16xf32>
    %841 = arith.mulf %840, %838 : vector<16x16xf32>
    %842 = arith.addf %832, %841 : vector<16x16xf32>
    %c1_405 = arith.constant 1 : index
    %c4_406 = arith.constant 4 : index
    %c0_407 = arith.constant 0 : index
    %c0_408 = arith.constant 0 : index
    %843 = vector.load %arg6[%c1_405, %c4_406, %c0_407, %c0_408] : memref<2x7x22x16xf32, #tpu.memory_space<vmem>>, vector<1x1x16x16xf32>
    %844 = vector.shape_cast %843 : vector<1x1x16x16xf32> to vector<16x16xf32>
    %c121 = arith.constant 121 : index
    %845 = memref.load %arg3[%c121] : memref<166xf32, #tpu.memory_space<smem>>
    %846 = vector.broadcast %845 : f32 to vector<16x16xf32>
    %847 = arith.mulf %846, %844 : vector<16x16xf32>
    %848 = arith.addf %842, %847 : vector<16x16xf32>
    %c1_409 = arith.constant 1 : index
    %c4_410 = arith.constant 4 : index
    %c1_411 = arith.constant 1 : index
    %c0_412 = arith.constant 0 : index
    %849 = vector.load %arg6[%c1_409, %c4_410, %c1_411, %c0_412] : memref<2x7x22x16xf32, #tpu.memory_space<vmem>>, vector<1x1x16x16xf32>
    %850 = vector.shape_cast %849 : vector<1x1x16x16xf32> to vector<16x16xf32>
    %c128 = arith.constant 128 : index
    %851 = memref.load %arg3[%c128] : memref<166xf32, #tpu.memory_space<smem>>
    %852 = vector.broadcast %851 : f32 to vector<16x16xf32>
    %853 = arith.mulf %852, %850 : vector<16x16xf32>
    %854 = arith.addf %848, %853 : vector<16x16xf32>
    %c46 = arith.constant 46 : index
    %855 = memref.load %arg3[%c46] : memref<166xf32, #tpu.memory_space<smem>>
    %856 = vector.broadcast %855 : f32 to vector<16x16xf32>
    %857 = arith.mulf %856, %850 : vector<16x16xf32>
    %858 = arith.addf %836, %857 : vector<16x16xf32>
    %c1_413 = arith.constant 1 : index
    %c4_414 = arith.constant 4 : index
    %c2_415 = arith.constant 2 : index
    %c0_416 = arith.constant 0 : index
    %859 = vector.load %arg6[%c1_413, %c4_414, %c2_415, %c0_416] : memref<2x7x22x16xf32, #tpu.memory_space<vmem>>, vector<1x1x16x16xf32>
    %860 = vector.shape_cast %859 : vector<1x1x16x16xf32> to vector<16x16xf32>
    %c135 = arith.constant 135 : index
    %861 = memref.load %arg3[%c135] : memref<166xf32, #tpu.memory_space<smem>>
    %862 = vector.broadcast %861 : f32 to vector<16x16xf32>
    %863 = arith.mulf %862, %860 : vector<16x16xf32>
    %864 = arith.addf %854, %863 : vector<16x16xf32>
    %c51 = arith.constant 51 : index
    %865 = memref.load %arg3[%c51] : memref<166xf32, #tpu.memory_space<smem>>
    %866 = vector.broadcast %865 : f32 to vector<16x16xf32>
    %867 = arith.mulf %866, %860 : vector<16x16xf32>
    %868 = arith.addf %858, %867 : vector<16x16xf32>
    %c11 = arith.constant 11 : index
    %869 = memref.load %arg3[%c11] : memref<166xf32, #tpu.memory_space<smem>>
    %870 = vector.broadcast %869 : f32 to vector<16x16xf32>
    %871 = arith.mulf %870, %860 : vector<16x16xf32>
    %872 = arith.addf %826, %871 : vector<16x16xf32>
    %c1_417 = arith.constant 1 : index
    %c4_418 = arith.constant 4 : index
    %c3_419 = arith.constant 3 : index
    %c0_420 = arith.constant 0 : index
    %873 = vector.load %arg6[%c1_417, %c4_418, %c3_419, %c0_420] : memref<2x7x22x16xf32, #tpu.memory_space<vmem>>, vector<1x1x16x16xf32>
    %874 = vector.shape_cast %873 : vector<1x1x16x16xf32> to vector<16x16xf32>
    %c142 = arith.constant 142 : index
    %875 = memref.load %arg3[%c142] : memref<166xf32, #tpu.memory_space<smem>>
    %876 = vector.broadcast %875 : f32 to vector<16x16xf32>
    %877 = arith.mulf %876, %874 : vector<16x16xf32>
    %878 = arith.addf %864, %877 : vector<16x16xf32>
    %c56 = arith.constant 56 : index
    %879 = memref.load %arg3[%c56] : memref<166xf32, #tpu.memory_space<smem>>
    %880 = vector.broadcast %879 : f32 to vector<16x16xf32>
    %881 = arith.mulf %880, %874 : vector<16x16xf32>
    %882 = arith.addf %868, %881 : vector<16x16xf32>
    %c14 = arith.constant 14 : index
    %883 = memref.load %arg3[%c14] : memref<166xf32, #tpu.memory_space<smem>>
    %884 = vector.broadcast %883 : f32 to vector<16x16xf32>
    %885 = arith.mulf %884, %874 : vector<16x16xf32>
    %886 = arith.addf %872, %885 : vector<16x16xf32>
    %c1_421 = arith.constant 1 : index
    %c4_422 = arith.constant 4 : index
    %c4_423 = arith.constant 4 : index
    %c0_424 = arith.constant 0 : index
    %887 = vector.load %arg6[%c1_421, %c4_422, %c4_423, %c0_424] : memref<2x7x22x16xf32, #tpu.memory_space<vmem>>, vector<1x1x16x16xf32>
    %888 = vector.shape_cast %887 : vector<1x1x16x16xf32> to vector<16x16xf32>
    %c149 = arith.constant 149 : index
    %889 = memref.load %arg3[%c149] : memref<166xf32, #tpu.memory_space<smem>>
    %890 = vector.broadcast %889 : f32 to vector<16x16xf32>
    %891 = arith.mulf %890, %888 : vector<16x16xf32>
    %892 = arith.addf %878, %891 : vector<16x16xf32>
    %c61 = arith.constant 61 : index
    %893 = memref.load %arg3[%c61] : memref<166xf32, #tpu.memory_space<smem>>
    %894 = vector.broadcast %893 : f32 to vector<16x16xf32>
    %895 = arith.mulf %894, %888 : vector<16x16xf32>
    %896 = arith.addf %882, %895 : vector<16x16xf32>
    %c17 = arith.constant 17 : index
    %897 = memref.load %arg3[%c17] : memref<166xf32, #tpu.memory_space<smem>>
    %898 = vector.broadcast %897 : f32 to vector<16x16xf32>
    %899 = arith.mulf %898, %888 : vector<16x16xf32>
    %900 = arith.addf %886, %899 : vector<16x16xf32>
    %c1_425 = arith.constant 1 : index
    %c4_426 = arith.constant 4 : index
    %c5_427 = arith.constant 5 : index
    %c0_428 = arith.constant 0 : index
    %901 = vector.load %arg6[%c1_425, %c4_426, %c5_427, %c0_428] : memref<2x7x22x16xf32, #tpu.memory_space<vmem>>, vector<1x1x16x16xf32>
    %902 = vector.shape_cast %901 : vector<1x1x16x16xf32> to vector<16x16xf32>
    %c156 = arith.constant 156 : index
    %903 = memref.load %arg3[%c156] : memref<166xf32, #tpu.memory_space<smem>>
    %904 = vector.broadcast %903 : f32 to vector<16x16xf32>
    %905 = arith.mulf %904, %902 : vector<16x16xf32>
    %906 = arith.addf %892, %905 : vector<16x16xf32>
    %c66 = arith.constant 66 : index
    %907 = memref.load %arg3[%c66] : memref<166xf32, #tpu.memory_space<smem>>
    %908 = vector.broadcast %907 : f32 to vector<16x16xf32>
    %909 = arith.mulf %908, %902 : vector<16x16xf32>
    %910 = arith.addf %896, %909 : vector<16x16xf32>
    %c1_429 = arith.constant 1 : index
    %c4_430 = arith.constant 4 : index
    %c6_431 = arith.constant 6 : index
    %c0_432 = arith.constant 0 : index
    %911 = vector.load %arg6[%c1_429, %c4_430, %c6_431, %c0_432] : memref<2x7x22x16xf32, #tpu.memory_space<vmem>>, vector<1x1x16x16xf32>
    %912 = vector.shape_cast %911 : vector<1x1x16x16xf32> to vector<16x16xf32>
    %c163 = arith.constant 163 : index
    %913 = memref.load %arg3[%c163] : memref<166xf32, #tpu.memory_space<smem>>
    %914 = vector.broadcast %913 : f32 to vector<16x16xf32>
    %915 = arith.mulf %914, %912 : vector<16x16xf32>
    %916 = arith.addf %906, %915 : vector<16x16xf32>
    %c1_433 = arith.constant 1 : index
    %c5_434 = arith.constant 5 : index
    %c0_435 = arith.constant 0 : index
    %c0_436 = arith.constant 0 : index
    %917 = vector.load %arg6[%c1_433, %c5_434, %c0_435, %c0_436] : memref<2x7x22x16xf32, #tpu.memory_space<vmem>>, vector<1x1x16x16xf32>
    %918 = vector.shape_cast %917 : vector<1x1x16x16xf32> to vector<16x16xf32>
    %c122 = arith.constant 122 : index
    %919 = memref.load %arg3[%c122] : memref<166xf32, #tpu.memory_space<smem>>
    %920 = vector.broadcast %919 : f32 to vector<16x16xf32>
    %921 = arith.mulf %920, %918 : vector<16x16xf32>
    %922 = arith.addf %916, %921 : vector<16x16xf32>
    %c1_437 = arith.constant 1 : index
    %c5_438 = arith.constant 5 : index
    %c1_439 = arith.constant 1 : index
    %c0_440 = arith.constant 0 : index
    %923 = vector.load %arg6[%c1_437, %c5_438, %c1_439, %c0_440] : memref<2x7x22x16xf32, #tpu.memory_space<vmem>>, vector<1x1x16x16xf32>
    %924 = vector.shape_cast %923 : vector<1x1x16x16xf32> to vector<16x16xf32>
    %c129 = arith.constant 129 : index
    %925 = memref.load %arg3[%c129] : memref<166xf32, #tpu.memory_space<smem>>
    %926 = vector.broadcast %925 : f32 to vector<16x16xf32>
    %927 = arith.mulf %926, %924 : vector<16x16xf32>
    %928 = arith.addf %922, %927 : vector<16x16xf32>
    %c47 = arith.constant 47 : index
    %929 = memref.load %arg3[%c47] : memref<166xf32, #tpu.memory_space<smem>>
    %930 = vector.broadcast %929 : f32 to vector<16x16xf32>
    %931 = arith.mulf %930, %924 : vector<16x16xf32>
    %932 = arith.addf %910, %931 : vector<16x16xf32>
    %c1_441 = arith.constant 1 : index
    %c5_442 = arith.constant 5 : index
    %c2_443 = arith.constant 2 : index
    %c0_444 = arith.constant 0 : index
    %933 = vector.load %arg6[%c1_441, %c5_442, %c2_443, %c0_444] : memref<2x7x22x16xf32, #tpu.memory_space<vmem>>, vector<1x1x16x16xf32>
    %934 = vector.shape_cast %933 : vector<1x1x16x16xf32> to vector<16x16xf32>
    %c136 = arith.constant 136 : index
    %935 = memref.load %arg3[%c136] : memref<166xf32, #tpu.memory_space<smem>>
    %936 = vector.broadcast %935 : f32 to vector<16x16xf32>
    %937 = arith.mulf %936, %934 : vector<16x16xf32>
    %938 = arith.addf %928, %937 : vector<16x16xf32>
    %c52 = arith.constant 52 : index
    %939 = memref.load %arg3[%c52] : memref<166xf32, #tpu.memory_space<smem>>
    %940 = vector.broadcast %939 : f32 to vector<16x16xf32>
    %941 = arith.mulf %940, %934 : vector<16x16xf32>
    %942 = arith.addf %932, %941 : vector<16x16xf32>
    %c1_445 = arith.constant 1 : index
    %c5_446 = arith.constant 5 : index
    %c3_447 = arith.constant 3 : index
    %c0_448 = arith.constant 0 : index
    %943 = vector.load %arg6[%c1_445, %c5_446, %c3_447, %c0_448] : memref<2x7x22x16xf32, #tpu.memory_space<vmem>>, vector<1x1x16x16xf32>
    %944 = vector.shape_cast %943 : vector<1x1x16x16xf32> to vector<16x16xf32>
    %c143 = arith.constant 143 : index
    %945 = memref.load %arg3[%c143] : memref<166xf32, #tpu.memory_space<smem>>
    %946 = vector.broadcast %945 : f32 to vector<16x16xf32>
    %947 = arith.mulf %946, %944 : vector<16x16xf32>
    %948 = arith.addf %938, %947 : vector<16x16xf32>
    %c57 = arith.constant 57 : index
    %949 = memref.load %arg3[%c57] : memref<166xf32, #tpu.memory_space<smem>>
    %950 = vector.broadcast %949 : f32 to vector<16x16xf32>
    %951 = arith.mulf %950, %944 : vector<16x16xf32>
    %952 = arith.addf %942, %951 : vector<16x16xf32>
    %c1_449 = arith.constant 1 : index
    %c5_450 = arith.constant 5 : index
    %c4_451 = arith.constant 4 : index
    %c0_452 = arith.constant 0 : index
    %953 = vector.load %arg6[%c1_449, %c5_450, %c4_451, %c0_452] : memref<2x7x22x16xf32, #tpu.memory_space<vmem>>, vector<1x1x16x16xf32>
    %954 = vector.shape_cast %953 : vector<1x1x16x16xf32> to vector<16x16xf32>
    %c150 = arith.constant 150 : index
    %955 = memref.load %arg3[%c150] : memref<166xf32, #tpu.memory_space<smem>>
    %956 = vector.broadcast %955 : f32 to vector<16x16xf32>
    %957 = arith.mulf %956, %954 : vector<16x16xf32>
    %958 = arith.addf %948, %957 : vector<16x16xf32>
    %c62 = arith.constant 62 : index
    %959 = memref.load %arg3[%c62] : memref<166xf32, #tpu.memory_space<smem>>
    %960 = vector.broadcast %959 : f32 to vector<16x16xf32>
    %961 = arith.mulf %960, %954 : vector<16x16xf32>
    %962 = arith.addf %952, %961 : vector<16x16xf32>
    %c1_453 = arith.constant 1 : index
    %c5_454 = arith.constant 5 : index
    %c5_455 = arith.constant 5 : index
    %c0_456 = arith.constant 0 : index
    %963 = vector.load %arg6[%c1_453, %c5_454, %c5_455, %c0_456] : memref<2x7x22x16xf32, #tpu.memory_space<vmem>>, vector<1x1x16x16xf32>
    %964 = vector.shape_cast %963 : vector<1x1x16x16xf32> to vector<16x16xf32>
    %c157 = arith.constant 157 : index
    %965 = memref.load %arg3[%c157] : memref<166xf32, #tpu.memory_space<smem>>
    %966 = vector.broadcast %965 : f32 to vector<16x16xf32>
    %967 = arith.mulf %966, %964 : vector<16x16xf32>
    %968 = arith.addf %958, %967 : vector<16x16xf32>
    %c67 = arith.constant 67 : index
    %969 = memref.load %arg3[%c67] : memref<166xf32, #tpu.memory_space<smem>>
    %970 = vector.broadcast %969 : f32 to vector<16x16xf32>
    %971 = arith.mulf %970, %964 : vector<16x16xf32>
    %972 = arith.addf %962, %971 : vector<16x16xf32>
    %c1_457 = arith.constant 1 : index
    %c5_458 = arith.constant 5 : index
    %c6_459 = arith.constant 6 : index
    %c0_460 = arith.constant 0 : index
    %973 = vector.load %arg6[%c1_457, %c5_458, %c6_459, %c0_460] : memref<2x7x22x16xf32, #tpu.memory_space<vmem>>, vector<1x1x16x16xf32>
    %974 = vector.shape_cast %973 : vector<1x1x16x16xf32> to vector<16x16xf32>
    %c164 = arith.constant 164 : index
    %975 = memref.load %arg3[%c164] : memref<166xf32, #tpu.memory_space<smem>>
    %976 = vector.broadcast %975 : f32 to vector<16x16xf32>
    %977 = arith.mulf %976, %974 : vector<16x16xf32>
    %978 = arith.addf %968, %977 : vector<16x16xf32>
    %c1_461 = arith.constant 1 : index
    %c6_462 = arith.constant 6 : index
    %c0_463 = arith.constant 0 : index
    %c0_464 = arith.constant 0 : index
    %979 = vector.load %arg6[%c1_461, %c6_462, %c0_463, %c0_464] : memref<2x7x22x16xf32, #tpu.memory_space<vmem>>, vector<1x1x16x16xf32>
    %980 = vector.shape_cast %979 : vector<1x1x16x16xf32> to vector<16x16xf32>
    %c123 = arith.constant 123 : index
    %981 = memref.load %arg3[%c123] : memref<166xf32, #tpu.memory_space<smem>>
    %982 = vector.broadcast %981 : f32 to vector<16x16xf32>
    %983 = arith.mulf %982, %980 : vector<16x16xf32>
    %984 = arith.addf %978, %983 : vector<16x16xf32>
    %c1_465 = arith.constant 1 : index
    %c6_466 = arith.constant 6 : index
    %c1_467 = arith.constant 1 : index
    %c0_468 = arith.constant 0 : index
    %985 = vector.load %arg6[%c1_465, %c6_466, %c1_467, %c0_468] : memref<2x7x22x16xf32, #tpu.memory_space<vmem>>, vector<1x1x16x16xf32>
    %986 = vector.shape_cast %985 : vector<1x1x16x16xf32> to vector<16x16xf32>
    %c130 = arith.constant 130 : index
    %987 = memref.load %arg3[%c130] : memref<166xf32, #tpu.memory_space<smem>>
    %988 = vector.broadcast %987 : f32 to vector<16x16xf32>
    %989 = arith.mulf %988, %986 : vector<16x16xf32>
    %990 = arith.addf %984, %989 : vector<16x16xf32>
    %c1_469 = arith.constant 1 : index
    %c6_470 = arith.constant 6 : index
    %c2_471 = arith.constant 2 : index
    %c0_472 = arith.constant 0 : index
    %991 = vector.load %arg6[%c1_469, %c6_470, %c2_471, %c0_472] : memref<2x7x22x16xf32, #tpu.memory_space<vmem>>, vector<1x1x16x16xf32>
    %992 = vector.shape_cast %991 : vector<1x1x16x16xf32> to vector<16x16xf32>
    %c137 = arith.constant 137 : index
    %993 = memref.load %arg3[%c137] : memref<166xf32, #tpu.memory_space<smem>>
    %994 = vector.broadcast %993 : f32 to vector<16x16xf32>
    %995 = arith.mulf %994, %992 : vector<16x16xf32>
    %996 = arith.addf %990, %995 : vector<16x16xf32>
    %c1_473 = arith.constant 1 : index
    %c6_474 = arith.constant 6 : index
    %c3_475 = arith.constant 3 : index
    %c0_476 = arith.constant 0 : index
    %997 = vector.load %arg6[%c1_473, %c6_474, %c3_475, %c0_476] : memref<2x7x22x16xf32, #tpu.memory_space<vmem>>, vector<1x1x16x16xf32>
    %998 = vector.shape_cast %997 : vector<1x1x16x16xf32> to vector<16x16xf32>
    %c144 = arith.constant 144 : index
    %999 = memref.load %arg3[%c144] : memref<166xf32, #tpu.memory_space<smem>>
    %1000 = vector.broadcast %999 : f32 to vector<16x16xf32>
    %1001 = arith.mulf %1000, %998 : vector<16x16xf32>
    %1002 = arith.addf %996, %1001 : vector<16x16xf32>
    %c1_477 = arith.constant 1 : index
    %c6_478 = arith.constant 6 : index
    %c4_479 = arith.constant 4 : index
    %c0_480 = arith.constant 0 : index
    %1003 = vector.load %arg6[%c1_477, %c6_478, %c4_479, %c0_480] : memref<2x7x22x16xf32, #tpu.memory_space<vmem>>, vector<1x1x16x16xf32>
    %1004 = vector.shape_cast %1003 : vector<1x1x16x16xf32> to vector<16x16xf32>
    %c151 = arith.constant 151 : index
    %1005 = memref.load %arg3[%c151] : memref<166xf32, #tpu.memory_space<smem>>
    %1006 = vector.broadcast %1005 : f32 to vector<16x16xf32>
    %1007 = arith.mulf %1006, %1004 : vector<16x16xf32>
    %1008 = arith.addf %1002, %1007 : vector<16x16xf32>
    %c1_481 = arith.constant 1 : index
    %c6_482 = arith.constant 6 : index
    %c5_483 = arith.constant 5 : index
    %c0_484 = arith.constant 0 : index
    %1009 = vector.load %arg6[%c1_481, %c6_482, %c5_483, %c0_484] : memref<2x7x22x16xf32, #tpu.memory_space<vmem>>, vector<1x1x16x16xf32>
    %1010 = vector.shape_cast %1009 : vector<1x1x16x16xf32> to vector<16x16xf32>
    %c158 = arith.constant 158 : index
    %1011 = memref.load %arg3[%c158] : memref<166xf32, #tpu.memory_space<smem>>
    %1012 = vector.broadcast %1011 : f32 to vector<16x16xf32>
    %1013 = arith.mulf %1012, %1010 : vector<16x16xf32>
    %1014 = arith.addf %1008, %1013 : vector<16x16xf32>
    %c1_485 = arith.constant 1 : index
    %c6_486 = arith.constant 6 : index
    %c6_487 = arith.constant 6 : index
    %c0_488 = arith.constant 0 : index
    %1015 = vector.load %arg6[%c1_485, %c6_486, %c6_487, %c0_488] : memref<2x7x22x16xf32, #tpu.memory_space<vmem>>, vector<1x1x16x16xf32>
    %1016 = vector.shape_cast %1015 : vector<1x1x16x16xf32> to vector<16x16xf32>
    %c165 = arith.constant 165 : index
    %1017 = memref.load %arg3[%c165] : memref<166xf32, #tpu.memory_space<smem>>
    %1018 = vector.broadcast %1017 : f32 to vector<16x16xf32>
    %1019 = arith.mulf %1018, %1016 : vector<16x16xf32>
    %1020 = arith.addf %1014, %1019 : vector<16x16xf32>
    %c3_489 = arith.constant 3 : index
    %1021 = memref.load %arg4[%c3_489] : memref<7xf32, #tpu.memory_space<smem>>
    %cst_490 = arith.constant 0.000000e+00 : f32
    %1022 = vector.broadcast %cst_490 : f32 to vector<16x16xf32>
    %1023 = arith.maximumf %900, %1022 : vector<16x16xf32>
    %1024 = vector.broadcast %1021 : f32 to vector<16x16xf32>
    %1025 = arith.mulf %1024, %1023 : vector<16x16xf32>
    %c4_491 = arith.constant 4 : index
    %1026 = memref.load %arg4[%c4_491] : memref<7xf32, #tpu.memory_space<smem>>
    %cst_492 = arith.constant 0.000000e+00 : f32
    %1027 = vector.broadcast %cst_492 : f32 to vector<16x16xf32>
    %1028 = arith.maximumf %972, %1027 : vector<16x16xf32>
    %1029 = vector.broadcast %1026 : f32 to vector<16x16xf32>
    %1030 = arith.mulf %1029, %1028 : vector<16x16xf32>
    %1031 = arith.addf %1025, %1030 : vector<16x16xf32>
    %c5_493 = arith.constant 5 : index
    %1032 = memref.load %arg4[%c5_493] : memref<7xf32, #tpu.memory_space<smem>>
    %cst_494 = arith.constant 0.000000e+00 : f32
    %1033 = vector.broadcast %cst_494 : f32 to vector<16x16xf32>
    %1034 = arith.maximumf %1020, %1033 : vector<16x16xf32>
    %1035 = vector.broadcast %1032 : f32 to vector<16x16xf32>
    %1036 = arith.mulf %1035, %1034 : vector<16x16xf32>
    %1037 = arith.addf %1031, %1036 : vector<16x16xf32>
    %c6_495 = arith.constant 6 : index
    %1038 = memref.load %arg4[%c6_495] : memref<7xf32, #tpu.memory_space<smem>>
    %1039 = vector.broadcast %1038 : f32 to vector<16x16xf32>
    %1040 = arith.addf %1037, %1039 : vector<16x16xf32>
    %1041 = arith.negf %1040 : vector<16x16xf32>
    %1042 = math.exp %1041 : vector<16x16xf32>
    %cst_496 = arith.constant 1.000000e+00 : f32
    %1043 = vector.broadcast %cst_496 : f32 to vector<16x16xf32>
    %1044 = arith.addf %1043, %1042 : vector<16x16xf32>
    %1045 = arith.divf %1043, %1044 : vector<16x16xf32>
    %1046 = vector.extract_strided_slice %1045 {offsets = [0, 0], sizes = [1, 16], strides = [1, 1]} : vector<16x16xf32> to vector<1x16xf32>
    %1047 = vector.extract_strided_slice %1045 {offsets = [1, 0], sizes = [1, 16], strides = [1, 1]} : vector<16x16xf32> to vector<1x16xf32>
    %1048 = vector.extract_strided_slice %1045 {offsets = [2, 0], sizes = [1, 16], strides = [1, 1]} : vector<16x16xf32> to vector<1x16xf32>
    %1049 = vector.extract_strided_slice %1045 {offsets = [3, 0], sizes = [1, 16], strides = [1, 1]} : vector<16x16xf32> to vector<1x16xf32>
    %1050 = vector.extract_strided_slice %1045 {offsets = [4, 0], sizes = [1, 16], strides = [1, 1]} : vector<16x16xf32> to vector<1x16xf32>
    %1051 = vector.extract_strided_slice %1045 {offsets = [5, 0], sizes = [1, 16], strides = [1, 1]} : vector<16x16xf32> to vector<1x16xf32>
    %1052 = vector.extract_strided_slice %1045 {offsets = [6, 0], sizes = [1, 16], strides = [1, 1]} : vector<16x16xf32> to vector<1x16xf32>
    %1053 = vector.extract_strided_slice %1045 {offsets = [7, 0], sizes = [1, 16], strides = [1, 1]} : vector<16x16xf32> to vector<1x16xf32>
    %1054 = vector.extract_strided_slice %1045 {offsets = [8, 0], sizes = [1, 16], strides = [1, 1]} : vector<16x16xf32> to vector<1x16xf32>
    %1055 = vector.extract_strided_slice %1045 {offsets = [9, 0], sizes = [1, 16], strides = [1, 1]} : vector<16x16xf32> to vector<1x16xf32>
    %1056 = vector.extract_strided_slice %1045 {offsets = [10, 0], sizes = [1, 16], strides = [1, 1]} : vector<16x16xf32> to vector<1x16xf32>
    %1057 = vector.extract_strided_slice %1045 {offsets = [11, 0], sizes = [1, 16], strides = [1, 1]} : vector<16x16xf32> to vector<1x16xf32>
    %1058 = vector.extract_strided_slice %1045 {offsets = [12, 0], sizes = [1, 16], strides = [1, 1]} : vector<16x16xf32> to vector<1x16xf32>
    %1059 = vector.extract_strided_slice %1045 {offsets = [13, 0], sizes = [1, 16], strides = [1, 1]} : vector<16x16xf32> to vector<1x16xf32>
    %1060 = vector.extract_strided_slice %1045 {offsets = [14, 0], sizes = [1, 16], strides = [1, 1]} : vector<16x16xf32> to vector<1x16xf32>
    %1061 = vector.extract_strided_slice %1045 {offsets = [15, 0], sizes = [1, 16], strides = [1, 1]} : vector<16x16xf32> to vector<1x16xf32>
    %1062 = tpu.concatenate %1046, %1047, %1048, %1049, %1050, %1051, %1052, %1053, %1054, %1055, %1056, %1057, %1058, %1059, %1060, %1061 in 1 : vector<1x16xf32>, vector<1x16xf32>, vector<1x16xf32>, vector<1x16xf32>, vector<1x16xf32>, vector<1x16xf32>, vector<1x16xf32>, vector<1x16xf32>, vector<1x16xf32>, vector<1x16xf32>, vector<1x16xf32>, vector<1x16xf32>, vector<1x16xf32>, vector<1x16xf32>, vector<1x16xf32>, vector<1x16xf32> -> vector<1x256xf32>
    %c0_497 = arith.constant 0 : index
    %c0_498 = arith.constant 0 : index
    %c0_499 = arith.constant 0 : index
    %1063 = vector.load %arg5[%c0_497, %c0_498, %c0_499] : memref<2x32x256xf32, #tpu.memory_space<vmem>>, vector<1x32x256xf32>
    %1064 = vector.shape_cast %1063 : vector<1x32x256xf32> to vector<32x256xf32>
    %1065 = vector.broadcast %1062 : vector<1x256xf32> to vector<32x256xf32>
    %1066 = arith.mulf %1064, %1065 : vector<32x256xf32>
    %c0_500 = arith.constant 0 : index
    %c0_501 = arith.constant 0 : index
    %c0_502 = arith.constant 0 : index
    %1067 = vector.load %arg5[%c0_500, %c0_501, %c0_502] : memref<2x32x256xf32, #tpu.memory_space<vmem>>, vector<1x32x256xf32>
    %1068 = vector.shape_cast %1067 : vector<1x32x256xf32> to vector<32x256xf32>
    %1069 = vector.shape_cast %1066 : vector<32x256xf32> to vector<1x32x256xf32>
    tpu.vector_store %arg5[%c0_500, %c0_501, %c0_502], %1069 {strides = array<i32>} : memref<2x32x256xf32, #tpu.memory_space<vmem>>, vector<1x32x256xf32>,
    %c1_503 = arith.constant 1 : index
    %c0_504 = arith.constant 0 : index
    %c0_505 = arith.constant 0 : index
    %1070 = vector.load %arg0[%c1_503, %c0_504, %c0_505] : memref<2x32x256xf32, #tpu.memory_space<vmem>>, vector<1x32x256xf32>
    %1071 = vector.shape_cast %1070 : vector<1x32x256xf32> to vector<32x256xf32>
    %cst_506 = arith.constant dense<0.000000e+00> : vector<32xf32>
    %1072 = vector.multi_reduction <add>, %1071, %cst_506 [1] : vector<32x256xf32> to vector<32xf32>
    %1073 = vector.shape_cast %1072 : vector<32xf32> to vector<32x1xf32>
    %cst_507 = arith.constant 2.560000e+02 : f32
    %1074 = vector.broadcast %cst_507 : f32 to vector<32x1xf32>
    %1075 = arith.divf %1073, %1074 : vector<32x1xf32>
    %c0_508 = arith.constant 0 : index
    %c0_509 = arith.constant 0 : index
    %1076 = vector.load %arg1[%c0_508, %c0_509] : memref<32x2xf32, #tpu.memory_space<vmem>>, vector<32x2xf32>
    %1077 = vector.broadcast %1075 : vector<32x1xf32> to vector<32x2xf32>
    %1078 = arith.mulf %1076, %1077 : vector<32x2xf32>
    %cst_510 = arith.constant dense<0.000000e+00> : vector<2xf32>
    %1079 = vector.multi_reduction <add>, %1078, %cst_510 [0] : vector<32x2xf32> to vector<2xf32>
    %1080 = vector.shape_cast %1079 : vector<2xf32> to vector<1x2xf32>
    %cst_511 = arith.constant 0.000000e+00 : f32
    %1081 = vector.broadcast %cst_511 : f32 to vector<1x2xf32>
    %1082 = arith.maximumf %1080, %1081 : vector<1x2xf32>
    %c0_512 = arith.constant 0 : index
    %c0_513 = arith.constant 0 : index
    %1083 = vector.load %arg2[%c0_512, %c0_513] : memref<32x2xf32, #tpu.memory_space<vmem>>, vector<32x2xf32>
    %1084 = vector.broadcast %1082 : vector<1x2xf32> to vector<32x2xf32>
    %1085 = arith.mulf %1083, %1084 : vector<32x2xf32>
    %cst_514 = arith.constant dense<0.000000e+00> : vector<32xf32>
    %1086 = vector.multi_reduction <add>, %1085, %cst_514 [1] : vector<32x2xf32> to vector<32xf32>
    %1087 = vector.shape_cast %1086 : vector<32xf32> to vector<32x1xf32>
    %1088 = arith.addf %1087, %1087 : vector<32x1xf32>
    %1089 = arith.negf %1088 : vector<32x1xf32>
    %1090 = math.exp %1089 : vector<32x1xf32>
    %cst_515 = arith.constant 1.000000e+00 : f32
    %1091 = vector.broadcast %cst_515 : f32 to vector<32x1xf32>
    %1092 = arith.addf %1091, %1090 : vector<32x1xf32>
    %1093 = arith.divf %1091, %1092 : vector<32x1xf32>
    %1094 = vector.broadcast %1093 : vector<32x1xf32> to vector<32x256xf32>
    %1095 = arith.mulf %1071, %1094 : vector<32x256xf32>
    %c1_516 = arith.constant 1 : index
    %c0_517 = arith.constant 0 : index
    %c0_518 = arith.constant 0 : index
    %1096 = vector.load %arg5[%c1_516, %c0_517, %c0_518] : memref<2x32x256xf32, #tpu.memory_space<vmem>>, vector<1x32x256xf32>
    %1097 = vector.shape_cast %1096 : vector<1x32x256xf32> to vector<32x256xf32>
    %1098 = vector.shape_cast %1095 : vector<32x256xf32> to vector<1x32x256xf32>
    tpu.vector_store %arg5[%c1_516, %c0_517, %c0_518], %1098 {strides = array<i32>} : memref<2x32x256xf32, #tpu.memory_space<vmem>>, vector<1x32x256xf32>,
    %cst_519 = arith.constant dense<0.000000e+00> : vector<256xf32>
    %1099 = vector.multi_reduction <add>, %1095, %cst_519 [0] : vector<32x256xf32> to vector<256xf32>
    %1100 = vector.shape_cast %1099 : vector<256xf32> to vector<1x256xf32>
    %cst_520 = arith.constant 3.200000e+01 : f32
    %1101 = vector.broadcast %cst_520 : f32 to vector<1x256xf32>
    %1102 = arith.divf %1100, %1101 : vector<1x256xf32>
    %cst_521 = arith.constant dense<0xFF800000> : vector<256xf32>
    %1103 = vector.multi_reduction <maximumf>, %1095, %cst_521 [0] : vector<32x256xf32> to vector<256xf32>
    %1104 = vector.shape_cast %1103 : vector<256xf32> to vector<1x256xf32>
    %1105 = vector.extract_strided_slice %1102 {offsets = [0, 0], sizes = [1, 16], strides = [1, 1]} : vector<1x256xf32> to vector<1x16xf32>
    %1106 = vector.extract_strided_slice %1102 {offsets = [0, 16], sizes = [1, 16], strides = [1, 1]} : vector<1x256xf32> to vector<1x16xf32>
    %1107 = vector.extract_strided_slice %1102 {offsets = [0, 32], sizes = [1, 16], strides = [1, 1]} : vector<1x256xf32> to vector<1x16xf32>
    %1108 = vector.extract_strided_slice %1102 {offsets = [0, 48], sizes = [1, 16], strides = [1, 1]} : vector<1x256xf32> to vector<1x16xf32>
    %1109 = vector.extract_strided_slice %1102 {offsets = [0, 64], sizes = [1, 16], strides = [1, 1]} : vector<1x256xf32> to vector<1x16xf32>
    %1110 = vector.extract_strided_slice %1102 {offsets = [0, 80], sizes = [1, 16], strides = [1, 1]} : vector<1x256xf32> to vector<1x16xf32>
    %1111 = vector.extract_strided_slice %1102 {offsets = [0, 96], sizes = [1, 16], strides = [1, 1]} : vector<1x256xf32> to vector<1x16xf32>
    %1112 = vector.extract_strided_slice %1102 {offsets = [0, 112], sizes = [1, 16], strides = [1, 1]} : vector<1x256xf32> to vector<1x16xf32>
    %1113 = vector.extract_strided_slice %1102 {offsets = [0, 128], sizes = [1, 16], strides = [1, 1]} : vector<1x256xf32> to vector<1x16xf32>
    %1114 = vector.extract_strided_slice %1102 {offsets = [0, 144], sizes = [1, 16], strides = [1, 1]} : vector<1x256xf32> to vector<1x16xf32>
    %1115 = vector.extract_strided_slice %1102 {offsets = [0, 160], sizes = [1, 16], strides = [1, 1]} : vector<1x256xf32> to vector<1x16xf32>
    %1116 = vector.extract_strided_slice %1102 {offsets = [0, 176], sizes = [1, 16], strides = [1, 1]} : vector<1x256xf32> to vector<1x16xf32>
    %1117 = vector.extract_strided_slice %1102 {offsets = [0, 192], sizes = [1, 16], strides = [1, 1]} : vector<1x256xf32> to vector<1x16xf32>
    %1118 = vector.extract_strided_slice %1102 {offsets = [0, 208], sizes = [1, 16], strides = [1, 1]} : vector<1x256xf32> to vector<1x16xf32>
    %1119 = vector.extract_strided_slice %1102 {offsets = [0, 224], sizes = [1, 16], strides = [1, 1]} : vector<1x256xf32> to vector<1x16xf32>
    %1120 = vector.extract_strided_slice %1102 {offsets = [0, 240], sizes = [1, 16], strides = [1, 1]} : vector<1x256xf32> to vector<1x16xf32>
    %1121 = tpu.concatenate %1105, %1106, %1107, %1108, %1109, %1110, %1111, %1112, %1113, %1114, %1115, %1116, %1117, %1118, %1119, %1120 in 0 : vector<1x16xf32>, vector<1x16xf32>, vector<1x16xf32>, vector<1x16xf32>, vector<1x16xf32>, vector<1x16xf32>, vector<1x16xf32>, vector<1x16xf32>, vector<1x16xf32>, vector<1x16xf32>, vector<1x16xf32>, vector<1x16xf32>, vector<1x16xf32>, vector<1x16xf32>, vector<1x16xf32>, vector<1x16xf32> -> vector<16x16xf32>
    %1122 = vector.extract_strided_slice %1104 {offsets = [0, 0], sizes = [1, 16], strides = [1, 1]} : vector<1x256xf32> to vector<1x16xf32>
    %1123 = vector.extract_strided_slice %1104 {offsets = [0, 16], sizes = [1, 16], strides = [1, 1]} : vector<1x256xf32> to vector<1x16xf32>
    %1124 = vector.extract_strided_slice %1104 {offsets = [0, 32], sizes = [1, 16], strides = [1, 1]} : vector<1x256xf32> to vector<1x16xf32>
    %1125 = vector.extract_strided_slice %1104 {offsets = [0, 48], sizes = [1, 16], strides = [1, 1]} : vector<1x256xf32> to vector<1x16xf32>
    %1126 = vector.extract_strided_slice %1104 {offsets = [0, 64], sizes = [1, 16], strides = [1, 1]} : vector<1x256xf32> to vector<1x16xf32>
    %1127 = vector.extract_strided_slice %1104 {offsets = [0, 80], sizes = [1, 16], strides = [1, 1]} : vector<1x256xf32> to vector<1x16xf32>
    %1128 = vector.extract_strided_slice %1104 {offsets = [0, 96], sizes = [1, 16], strides = [1, 1]} : vector<1x256xf32> to vector<1x16xf32>
    %1129 = vector.extract_strided_slice %1104 {offsets = [0, 112], sizes = [1, 16], strides = [1, 1]} : vector<1x256xf32> to vector<1x16xf32>
    %1130 = vector.extract_strided_slice %1104 {offsets = [0, 128], sizes = [1, 16], strides = [1, 1]} : vector<1x256xf32> to vector<1x16xf32>
    %1131 = vector.extract_strided_slice %1104 {offsets = [0, 144], sizes = [1, 16], strides = [1, 1]} : vector<1x256xf32> to vector<1x16xf32>
    %1132 = vector.extract_strided_slice %1104 {offsets = [0, 160], sizes = [1, 16], strides = [1, 1]} : vector<1x256xf32> to vector<1x16xf32>
    %1133 = vector.extract_strided_slice %1104 {offsets = [0, 176], sizes = [1, 16], strides = [1, 1]} : vector<1x256xf32> to vector<1x16xf32>
    %1134 = vector.extract_strided_slice %1104 {offsets = [0, 192], sizes = [1, 16], strides = [1, 1]} : vector<1x256xf32> to vector<1x16xf32>
    %1135 = vector.extract_strided_slice %1104 {offsets = [0, 208], sizes = [1, 16], strides = [1, 1]} : vector<1x256xf32> to vector<1x16xf32>
    %1136 = vector.extract_strided_slice %1104 {offsets = [0, 224], sizes = [1, 16], strides = [1, 1]} : vector<1x256xf32> to vector<1x16xf32>
    %1137 = vector.extract_strided_slice %1104 {offsets = [0, 240], sizes = [1, 16], strides = [1, 1]} : vector<1x256xf32> to vector<1x16xf32>
    %1138 = tpu.concatenate %1122, %1123, %1124, %1125, %1126, %1127, %1128, %1129, %1130, %1131, %1132, %1133, %1134, %1135, %1136, %1137 in 0 : vector<1x16xf32>, vector<1x16xf32>, vector<1x16xf32>, vector<1x16xf32>, vector<1x16xf32>, vector<1x16xf32>, vector<1x16xf32>, vector<1x16xf32>, vector<1x16xf32>, vector<1x16xf32>, vector<1x16xf32>, vector<1x16xf32>, vector<1x16xf32>, vector<1x16xf32>, vector<1x16xf32>, vector<1x16xf32> -> vector<16x16xf32>
    %cst_522 = arith.constant 0.000000e+00 : f32
    %1139 = vector.broadcast %cst_522 : f32 to vector<16x3xf32>
    %1140 = vector.extract_strided_slice %1121 {offsets = [0, 0], sizes = [16, 13], strides = [1, 1]} : vector<16x16xf32> to vector<16x13xf32>
    %1141 = tpu.concatenate %1139, %1140 in 1 : vector<16x3xf32>, vector<16x13xf32> -> vector<16x16xf32>
    %c0_523 = arith.constant 0 : index
    %c0_524 = arith.constant 0 : index
    %c3_525 = arith.constant 3 : index
    %c0_526 = arith.constant 0 : index
    %1142 = vector.load %arg6[%c0_523, %c0_524, %c3_525, %c0_526] : memref<2x7x22x16xf32, #tpu.memory_space<vmem>>, vector<1x1x16x16xf32>
    %1143 = vector.shape_cast %1142 : vector<1x1x16x16xf32> to vector<16x16xf32>
    %1144 = vector.shape_cast %1141 : vector<16x16xf32> to vector<1x1x16x16xf32>
    tpu.vector_store %arg6[%c0_523, %c0_524, %c3_525, %c0_526], %1144 {strides = array<i32>} : memref<2x7x22x16xf32, #tpu.memory_space<vmem>>, vector<1x1x16x16xf32>,
    %cst_527 = arith.constant 0.000000e+00 : f32
    %1145 = vector.broadcast %cst_527 : f32 to vector<16x2xf32>
    %1146 = vector.extract_strided_slice %1121 {offsets = [0, 0], sizes = [16, 14], strides = [1, 1]} : vector<16x16xf32> to vector<16x14xf32>
    %1147 = tpu.concatenate %1145, %1146 in 1 : vector<16x2xf32>, vector<16x14xf32> -> vector<16x16xf32>
    %c0_528 = arith.constant 0 : index
    %c1_529 = arith.constant 1 : index
    %c3_530 = arith.constant 3 : index
    %c0_531 = arith.constant 0 : index
    %1148 = vector.load %arg6[%c0_528, %c1_529, %c3_530, %c0_531] : memref<2x7x22x16xf32, #tpu.memory_space<vmem>>, vector<1x1x16x16xf32>
    %1149 = vector.shape_cast %1148 : vector<1x1x16x16xf32> to vector<16x16xf32>
    %1150 = vector.shape_cast %1147 : vector<16x16xf32> to vector<1x1x16x16xf32>
    tpu.vector_store %arg6[%c0_528, %c1_529, %c3_530, %c0_531], %1150 {strides = array<i32>} : memref<2x7x22x16xf32, #tpu.memory_space<vmem>>, vector<1x1x16x16xf32>,
    %cst_532 = arith.constant 0.000000e+00 : f32
    %1151 = vector.broadcast %cst_532 : f32 to vector<16x1xf32>
    %1152 = vector.extract_strided_slice %1121 {offsets = [0, 0], sizes = [16, 15], strides = [1, 1]} : vector<16x16xf32> to vector<16x15xf32>
    %1153 = tpu.concatenate %1151, %1152 in 1 : vector<16x1xf32>, vector<16x15xf32> -> vector<16x16xf32>
    %c0_533 = arith.constant 0 : index
    %c2_534 = arith.constant 2 : index
    %c3_535 = arith.constant 3 : index
    %c0_536 = arith.constant 0 : index
    %1154 = vector.load %arg6[%c0_533, %c2_534, %c3_535, %c0_536] : memref<2x7x22x16xf32, #tpu.memory_space<vmem>>, vector<1x1x16x16xf32>
    %1155 = vector.shape_cast %1154 : vector<1x1x16x16xf32> to vector<16x16xf32>
    %1156 = vector.shape_cast %1153 : vector<16x16xf32> to vector<1x1x16x16xf32>
    tpu.vector_store %arg6[%c0_533, %c2_534, %c3_535, %c0_536], %1156 {strides = array<i32>} : memref<2x7x22x16xf32, #tpu.memory_space<vmem>>, vector<1x1x16x16xf32>,
    %c0_537 = arith.constant 0 : index
    %c3_538 = arith.constant 3 : index
    %c3_539 = arith.constant 3 : index
    %c0_540 = arith.constant 0 : index
    %1157 = vector.load %arg6[%c0_537, %c3_538, %c3_539, %c0_540] : memref<2x7x22x16xf32, #tpu.memory_space<vmem>>, vector<1x1x16x16xf32>
    %1158 = vector.shape_cast %1157 : vector<1x1x16x16xf32> to vector<16x16xf32>
    %1159 = vector.shape_cast %1121 : vector<16x16xf32> to vector<1x1x16x16xf32>
    tpu.vector_store %arg6[%c0_537, %c3_538, %c3_539, %c0_540], %1159 {strides = array<i32>} : memref<2x7x22x16xf32, #tpu.memory_space<vmem>>, vector<1x1x16x16xf32>,
    %1160 = vector.extract_strided_slice %1121 {offsets = [0, 1], sizes = [16, 15], strides = [1, 1]} : vector<16x16xf32> to vector<16x15xf32>
    %cst_541 = arith.constant 0.000000e+00 : f32
    %1161 = vector.broadcast %cst_541 : f32 to vector<16x1xf32>
    %1162 = tpu.concatenate %1160, %1161 in 1 : vector<16x15xf32>, vector<16x1xf32> -> vector<16x16xf32>
    %c0_542 = arith.constant 0 : index
    %c4_543 = arith.constant 4 : index
    %c3_544 = arith.constant 3 : index
    %c0_545 = arith.constant 0 : index
    %1163 = vector.load %arg6[%c0_542, %c4_543, %c3_544, %c0_545] : memref<2x7x22x16xf32, #tpu.memory_space<vmem>>, vector<1x1x16x16xf32>
    %1164 = vector.shape_cast %1163 : vector<1x1x16x16xf32> to vector<16x16xf32>
    %1165 = vector.shape_cast %1162 : vector<16x16xf32> to vector<1x1x16x16xf32>
    tpu.vector_store %arg6[%c0_542, %c4_543, %c3_544, %c0_545], %1165 {strides = array<i32>} : memref<2x7x22x16xf32, #tpu.memory_space<vmem>>, vector<1x1x16x16xf32>,
    %1166 = vector.extract_strided_slice %1121 {offsets = [0, 2], sizes = [16, 14], strides = [1, 1]} : vector<16x16xf32> to vector<16x14xf32>
    %cst_546 = arith.constant 0.000000e+00 : f32
    %1167 = vector.broadcast %cst_546 : f32 to vector<16x2xf32>
    %1168 = tpu.concatenate %1166, %1167 in 1 : vector<16x14xf32>, vector<16x2xf32> -> vector<16x16xf32>
    %c0_547 = arith.constant 0 : index
    %c5_548 = arith.constant 5 : index
    %c3_549 = arith.constant 3 : index
    %c0_550 = arith.constant 0 : index
    %1169 = vector.load %arg6[%c0_547, %c5_548, %c3_549, %c0_550] : memref<2x7x22x16xf32, #tpu.memory_space<vmem>>, vector<1x1x16x16xf32>
    %1170 = vector.shape_cast %1169 : vector<1x1x16x16xf32> to vector<16x16xf32>
    %1171 = vector.shape_cast %1168 : vector<16x16xf32> to vector<1x1x16x16xf32>
    tpu.vector_store %arg6[%c0_547, %c5_548, %c3_549, %c0_550], %1171 {strides = array<i32>} : memref<2x7x22x16xf32, #tpu.memory_space<vmem>>, vector<1x1x16x16xf32>,
    %1172 = vector.extract_strided_slice %1121 {offsets = [0, 3], sizes = [16, 13], strides = [1, 1]} : vector<16x16xf32> to vector<16x13xf32>
    %cst_551 = arith.constant 0.000000e+00 : f32
    %1173 = vector.broadcast %cst_551 : f32 to vector<16x3xf32>
    %1174 = tpu.concatenate %1172, %1173 in 1 : vector<16x13xf32>, vector<16x3xf32> -> vector<16x16xf32>
    %c0_552 = arith.constant 0 : index
    %c6_553 = arith.constant 6 : index
    %c3_554 = arith.constant 3 : index
    %c0_555 = arith.constant 0 : index
    %1175 = vector.load %arg6[%c0_552, %c6_553, %c3_554, %c0_555] : memref<2x7x22x16xf32, #tpu.memory_space<vmem>>, vector<1x1x16x16xf32>
    %1176 = vector.shape_cast %1175 : vector<1x1x16x16xf32> to vector<16x16xf32>
    %1177 = vector.shape_cast %1174 : vector<16x16xf32> to vector<1x1x16x16xf32>
    tpu.vector_store %arg6[%c0_552, %c6_553, %c3_554, %c0_555], %1177 {strides = array<i32>} : memref<2x7x22x16xf32, #tpu.memory_space<vmem>>, vector<1x1x16x16xf32>,
    %cst_556 = arith.constant 0.000000e+00 : f32
    %1178 = vector.broadcast %cst_556 : f32 to vector<16x3xf32>
    %1179 = vector.extract_strided_slice %1138 {offsets = [0, 0], sizes = [16, 13], strides = [1, 1]} : vector<16x16xf32> to vector<16x13xf32>
    %1180 = tpu.concatenate %1178, %1179 in 1 : vector<16x3xf32>, vector<16x13xf32> -> vector<16x16xf32>
    %c1_557 = arith.constant 1 : index
    %c0_558 = arith.constant 0 : index
    %c3_559 = arith.constant 3 : index
    %c0_560 = arith.constant 0 : index
    %1181 = vector.load %arg6[%c1_557, %c0_558, %c3_559, %c0_560] : memref<2x7x22x16xf32, #tpu.memory_space<vmem>>, vector<1x1x16x16xf32>
    %1182 = vector.shape_cast %1181 : vector<1x1x16x16xf32> to vector<16x16xf32>
    %1183 = vector.shape_cast %1180 : vector<16x16xf32> to vector<1x1x16x16xf32>
    tpu.vector_store %arg6[%c1_557, %c0_558, %c3_559, %c0_560], %1183 {strides = array<i32>} : memref<2x7x22x16xf32, #tpu.memory_space<vmem>>, vector<1x1x16x16xf32>,
    %cst_561 = arith.constant 0.000000e+00 : f32
    %1184 = vector.broadcast %cst_561 : f32 to vector<16x2xf32>
    %1185 = vector.extract_strided_slice %1138 {offsets = [0, 0], sizes = [16, 14], strides = [1, 1]} : vector<16x16xf32> to vector<16x14xf32>
    %1186 = tpu.concatenate %1184, %1185 in 1 : vector<16x2xf32>, vector<16x14xf32> -> vector<16x16xf32>
    %c1_562 = arith.constant 1 : index
    %c1_563 = arith.constant 1 : index
    %c3_564 = arith.constant 3 : index
    %c0_565 = arith.constant 0 : index
    %1187 = vector.load %arg6[%c1_562, %c1_563, %c3_564, %c0_565] : memref<2x7x22x16xf32, #tpu.memory_space<vmem>>, vector<1x1x16x16xf32>
    %1188 = vector.shape_cast %1187 : vector<1x1x16x16xf32> to vector<16x16xf32>
    %1189 = vector.shape_cast %1186 : vector<16x16xf32> to vector<1x1x16x16xf32>
    tpu.vector_store %arg6[%c1_562, %c1_563, %c3_564, %c0_565], %1189 {strides = array<i32>} : memref<2x7x22x16xf32, #tpu.memory_space<vmem>>, vector<1x1x16x16xf32>,
    %cst_566 = arith.constant 0.000000e+00 : f32
    %1190 = vector.broadcast %cst_566 : f32 to vector<16x1xf32>
    %1191 = vector.extract_strided_slice %1138 {offsets = [0, 0], sizes = [16, 15], strides = [1, 1]} : vector<16x16xf32> to vector<16x15xf32>
    %1192 = tpu.concatenate %1190, %1191 in 1 : vector<16x1xf32>, vector<16x15xf32> -> vector<16x16xf32>
    %c1_567 = arith.constant 1 : index
    %c2_568 = arith.constant 2 : index
    %c3_569 = arith.constant 3 : index
    %c0_570 = arith.constant 0 : index
    %1193 = vector.load %arg6[%c1_567, %c2_568, %c3_569, %c0_570] : memref<2x7x22x16xf32, #tpu.memory_space<vmem>>, vector<1x1x16x16xf32>
    %1194 = vector.shape_cast %1193 : vector<1x1x16x16xf32> to vector<16x16xf32>
    %1195 = vector.shape_cast %1192 : vector<16x16xf32> to vector<1x1x16x16xf32>
    tpu.vector_store %arg6[%c1_567, %c2_568, %c3_569, %c0_570], %1195 {strides = array<i32>} : memref<2x7x22x16xf32, #tpu.memory_space<vmem>>, vector<1x1x16x16xf32>,
    %c1_571 = arith.constant 1 : index
    %c3_572 = arith.constant 3 : index
    %c3_573 = arith.constant 3 : index
    %c0_574 = arith.constant 0 : index
    %1196 = vector.load %arg6[%c1_571, %c3_572, %c3_573, %c0_574] : memref<2x7x22x16xf32, #tpu.memory_space<vmem>>, vector<1x1x16x16xf32>
    %1197 = vector.shape_cast %1196 : vector<1x1x16x16xf32> to vector<16x16xf32>
    %1198 = vector.shape_cast %1138 : vector<16x16xf32> to vector<1x1x16x16xf32>
    tpu.vector_store %arg6[%c1_571, %c3_572, %c3_573, %c0_574], %1198 {strides = array<i32>} : memref<2x7x22x16xf32, #tpu.memory_space<vmem>>, vector<1x1x16x16xf32>,
    %1199 = vector.extract_strided_slice %1138 {offsets = [0, 1], sizes = [16, 15], strides = [1, 1]} : vector<16x16xf32> to vector<16x15xf32>
    %cst_575 = arith.constant 0.000000e+00 : f32
    %1200 = vector.broadcast %cst_575 : f32 to vector<16x1xf32>
    %1201 = tpu.concatenate %1199, %1200 in 1 : vector<16x15xf32>, vector<16x1xf32> -> vector<16x16xf32>
    %c1_576 = arith.constant 1 : index
    %c4_577 = arith.constant 4 : index
    %c3_578 = arith.constant 3 : index
    %c0_579 = arith.constant 0 : index
    %1202 = vector.load %arg6[%c1_576, %c4_577, %c3_578, %c0_579] : memref<2x7x22x16xf32, #tpu.memory_space<vmem>>, vector<1x1x16x16xf32>
    %1203 = vector.shape_cast %1202 : vector<1x1x16x16xf32> to vector<16x16xf32>
    %1204 = vector.shape_cast %1201 : vector<16x16xf32> to vector<1x1x16x16xf32>
    tpu.vector_store %arg6[%c1_576, %c4_577, %c3_578, %c0_579], %1204 {strides = array<i32>} : memref<2x7x22x16xf32, #tpu.memory_space<vmem>>, vector<1x1x16x16xf32>,
    %1205 = vector.extract_strided_slice %1138 {offsets = [0, 2], sizes = [16, 14], strides = [1, 1]} : vector<16x16xf32> to vector<16x14xf32>
    %cst_580 = arith.constant 0.000000e+00 : f32
    %1206 = vector.broadcast %cst_580 : f32 to vector<16x2xf32>
    %1207 = tpu.concatenate %1205, %1206 in 1 : vector<16x14xf32>, vector<16x2xf32> -> vector<16x16xf32>
    %c1_581 = arith.constant 1 : index
    %c5_582 = arith.constant 5 : index
    %c3_583 = arith.constant 3 : index
    %c0_584 = arith.constant 0 : index
    %1208 = vector.load %arg6[%c1_581, %c5_582, %c3_583, %c0_584] : memref<2x7x22x16xf32, #tpu.memory_space<vmem>>, vector<1x1x16x16xf32>
    %1209 = vector.shape_cast %1208 : vector<1x1x16x16xf32> to vector<16x16xf32>
    %1210 = vector.shape_cast %1207 : vector<16x16xf32> to vector<1x1x16x16xf32>
    tpu.vector_store %arg6[%c1_581, %c5_582, %c3_583, %c0_584], %1210 {strides = array<i32>} : memref<2x7x22x16xf32, #tpu.memory_space<vmem>>, vector<1x1x16x16xf32>,
    %1211 = vector.extract_strided_slice %1138 {offsets = [0, 3], sizes = [16, 13], strides = [1, 1]} : vector<16x16xf32> to vector<16x13xf32>
    %cst_585 = arith.constant 0.000000e+00 : f32
    %1212 = vector.broadcast %cst_585 : f32 to vector<16x3xf32>
    %1213 = tpu.concatenate %1211, %1212 in 1 : vector<16x13xf32>, vector<16x3xf32> -> vector<16x16xf32>
    %c1_586 = arith.constant 1 : index
    %c6_587 = arith.constant 6 : index
    %c3_588 = arith.constant 3 : index
    %c0_589 = arith.constant 0 : index
    %1214 = vector.load %arg6[%c1_586, %c6_587, %c3_588, %c0_589] : memref<2x7x22x16xf32, #tpu.memory_space<vmem>>, vector<1x1x16x16xf32>
    %1215 = vector.shape_cast %1214 : vector<1x1x16x16xf32> to vector<16x16xf32>
    %1216 = vector.shape_cast %1213 : vector<16x16xf32> to vector<1x1x16x16xf32>
    tpu.vector_store %arg6[%c1_586, %c6_587, %c3_588, %c0_589], %1216 {strides = array<i32>} : memref<2x7x22x16xf32, #tpu.memory_space<vmem>>, vector<1x1x16x16xf32>,
    %cst_590 = arith.constant 0.000000e+00 : f32
    %1217 = vector.broadcast %cst_590 : f32 to vector<16x16xf32>
    %c0_591 = arith.constant 0 : index
    %1218 = memref.load %arg4[%c0_591] : memref<7xf32, #tpu.memory_space<smem>>
    %1219 = vector.broadcast %1218 : f32 to vector<16x16xf32>
    %1220 = arith.addf %1217, %1219 : vector<16x16xf32>
    %cst_592 = arith.constant 0.000000e+00 : f32
    %1221 = vector.broadcast %cst_592 : f32 to vector<16x16xf32>
    %c1_593 = arith.constant 1 : index
    %1222 = memref.load %arg4[%c1_593] : memref<7xf32, #tpu.memory_space<smem>>
    %1223 = vector.broadcast %1222 : f32 to vector<16x16xf32>
    %1224 = arith.addf %1221, %1223 : vector<16x16xf32>
    %cst_594 = arith.constant 0.000000e+00 : f32
    %1225 = vector.broadcast %cst_594 : f32 to vector<16x16xf32>
    %c2_595 = arith.constant 2 : index
    %1226 = memref.load %arg4[%c2_595] : memref<7xf32, #tpu.memory_space<smem>>
    %1227 = vector.broadcast %1226 : f32 to vector<16x16xf32>
    %1228 = arith.addf %1225, %1227 : vector<16x16xf32>
    %c0_596 = arith.constant 0 : index
    %c0_597 = arith.constant 0 : index
    %c0_598 = arith.constant 0 : index
    %c0_599 = arith.constant 0 : index
    %1229 = vector.load %arg6[%c0_596, %c0_597, %c0_598, %c0_599] : memref<2x7x22x16xf32, #tpu.memory_space<vmem>>, vector<1x1x16x16xf32>
    %1230 = vector.shape_cast %1229 : vector<1x1x16x16xf32> to vector<16x16xf32>
    %c68_600 = arith.constant 68 : index
    %1231 = memref.load %arg3[%c68_600] : memref<166xf32, #tpu.memory_space<smem>>
    %1232 = vector.broadcast %1231 : f32 to vector<16x16xf32>
    %1233 = arith.mulf %1232, %1230 : vector<16x16xf32>
    %1234 = arith.addf %1228, %1233 : vector<16x16xf32>
    %c0_601 = arith.constant 0 : index
    %c0_602 = arith.constant 0 : index
    %c1_603 = arith.constant 1 : index
    %c0_604 = arith.constant 0 : index
    %1235 = vector.load %arg6[%c0_601, %c0_602, %c1_603, %c0_604] : memref<2x7x22x16xf32, #tpu.memory_space<vmem>>, vector<1x1x16x16xf32>
    %1236 = vector.shape_cast %1235 : vector<1x1x16x16xf32> to vector<16x16xf32>
    %c75_605 = arith.constant 75 : index
    %1237 = memref.load %arg3[%c75_605] : memref<166xf32, #tpu.memory_space<smem>>
    %1238 = vector.broadcast %1237 : f32 to vector<16x16xf32>
    %1239 = arith.mulf %1238, %1236 : vector<16x16xf32>
    %1240 = arith.addf %1234, %1239 : vector<16x16xf32>
    %c0_606 = arith.constant 0 : index
    %c0_607 = arith.constant 0 : index
    %c2_608 = arith.constant 2 : index
    %c0_609 = arith.constant 0 : index
    %1241 = vector.load %arg6[%c0_606, %c0_607, %c2_608, %c0_609] : memref<2x7x22x16xf32, #tpu.memory_space<vmem>>, vector<1x1x16x16xf32>
    %1242 = vector.shape_cast %1241 : vector<1x1x16x16xf32> to vector<16x16xf32>
    %c82_610 = arith.constant 82 : index
    %1243 = memref.load %arg3[%c82_610] : memref<166xf32, #tpu.memory_space<smem>>
    %1244 = vector.broadcast %1243 : f32 to vector<16x16xf32>
    %1245 = arith.mulf %1244, %1242 : vector<16x16xf32>
    %1246 = arith.addf %1240, %1245 : vector<16x16xf32>
    %c0_611 = arith.constant 0 : index
    %c0_612 = arith.constant 0 : index
    %c3_613 = arith.constant 3 : index
    %c0_614 = arith.constant 0 : index
    %1247 = vector.load %arg6[%c0_611, %c0_612, %c3_613, %c0_614] : memref<2x7x22x16xf32, #tpu.memory_space<vmem>>, vector<1x1x16x16xf32>
    %1248 = vector.shape_cast %1247 : vector<1x1x16x16xf32> to vector<16x16xf32>
    %c89_615 = arith.constant 89 : index
    %1249 = memref.load %arg3[%c89_615] : memref<166xf32, #tpu.memory_space<smem>>
    %1250 = vector.broadcast %1249 : f32 to vector<16x16xf32>
    %1251 = arith.mulf %1250, %1248 : vector<16x16xf32>
    %1252 = arith.addf %1246, %1251 : vector<16x16xf32>
    %c0_616 = arith.constant 0 : index
    %c0_617 = arith.constant 0 : index
    %c4_618 = arith.constant 4 : index
    %c0_619 = arith.constant 0 : index
    %1253 = vector.load %arg6[%c0_616, %c0_617, %c4_618, %c0_619] : memref<2x7x22x16xf32, #tpu.memory_space<vmem>>, vector<1x1x16x16xf32>
    %1254 = vector.shape_cast %1253 : vector<1x1x16x16xf32> to vector<16x16xf32>
    %c96_620 = arith.constant 96 : index
    %1255 = memref.load %arg3[%c96_620] : memref<166xf32, #tpu.memory_space<smem>>
    %1256 = vector.broadcast %1255 : f32 to vector<16x16xf32>
    %1257 = arith.mulf %1256, %1254 : vector<16x16xf32>
    %1258 = arith.addf %1252, %1257 : vector<16x16xf32>
    %c0_621 = arith.constant 0 : index
    %c0_622 = arith.constant 0 : index
    %c5_623 = arith.constant 5 : index
    %c0_624 = arith.constant 0 : index
    %1259 = vector.load %arg6[%c0_621, %c0_622, %c5_623, %c0_624] : memref<2x7x22x16xf32, #tpu.memory_space<vmem>>, vector<1x1x16x16xf32>
    %1260 = vector.shape_cast %1259 : vector<1x1x16x16xf32> to vector<16x16xf32>
    %c103_625 = arith.constant 103 : index
    %1261 = memref.load %arg3[%c103_625] : memref<166xf32, #tpu.memory_space<smem>>
    %1262 = vector.broadcast %1261 : f32 to vector<16x16xf32>
    %1263 = arith.mulf %1262, %1260 : vector<16x16xf32>
    %1264 = arith.addf %1258, %1263 : vector<16x16xf32>
    %c0_626 = arith.constant 0 : index
    %c0_627 = arith.constant 0 : index
    %c6_628 = arith.constant 6 : index
    %c0_629 = arith.constant 0 : index
    %1265 = vector.load %arg6[%c0_626, %c0_627, %c6_628, %c0_629] : memref<2x7x22x16xf32, #tpu.memory_space<vmem>>, vector<1x1x16x16xf32>
    %1266 = vector.shape_cast %1265 : vector<1x1x16x16xf32> to vector<16x16xf32>
    %c110_630 = arith.constant 110 : index
    %1267 = memref.load %arg3[%c110_630] : memref<166xf32, #tpu.memory_space<smem>>
    %1268 = vector.broadcast %1267 : f32 to vector<16x16xf32>
    %1269 = arith.mulf %1268, %1266 : vector<16x16xf32>
    %1270 = arith.addf %1264, %1269 : vector<16x16xf32>
    %c0_631 = arith.constant 0 : index
    %c1_632 = arith.constant 1 : index
    %c0_633 = arith.constant 0 : index
    %c0_634 = arith.constant 0 : index
    %1271 = vector.load %arg6[%c0_631, %c1_632, %c0_633, %c0_634] : memref<2x7x22x16xf32, #tpu.memory_space<vmem>>, vector<1x1x16x16xf32>
    %1272 = vector.shape_cast %1271 : vector<1x1x16x16xf32> to vector<16x16xf32>
    %c69_635 = arith.constant 69 : index
    %1273 = memref.load %arg3[%c69_635] : memref<166xf32, #tpu.memory_space<smem>>
    %1274 = vector.broadcast %1273 : f32 to vector<16x16xf32>
    %1275 = arith.mulf %1274, %1272 : vector<16x16xf32>
    %1276 = arith.addf %1270, %1275 : vector<16x16xf32>
    %c0_636 = arith.constant 0 : index
    %c1_637 = arith.constant 1 : index
    %c1_638 = arith.constant 1 : index
    %c0_639 = arith.constant 0 : index
    %1277 = vector.load %arg6[%c0_636, %c1_637, %c1_638, %c0_639] : memref<2x7x22x16xf32, #tpu.memory_space<vmem>>, vector<1x1x16x16xf32>
    %1278 = vector.shape_cast %1277 : vector<1x1x16x16xf32> to vector<16x16xf32>
    %c76_640 = arith.constant 76 : index
    %1279 = memref.load %arg3[%c76_640] : memref<166xf32, #tpu.memory_space<smem>>
    %1280 = vector.broadcast %1279 : f32 to vector<16x16xf32>
    %1281 = arith.mulf %1280, %1278 : vector<16x16xf32>
    %1282 = arith.addf %1276, %1281 : vector<16x16xf32>
    %c18_641 = arith.constant 18 : index
    %1283 = memref.load %arg3[%c18_641] : memref<166xf32, #tpu.memory_space<smem>>
    %1284 = vector.broadcast %1283 : f32 to vector<16x16xf32>
    %1285 = arith.mulf %1284, %1278 : vector<16x16xf32>
    %1286 = arith.addf %1224, %1285 : vector<16x16xf32>
    %c0_642 = arith.constant 0 : index
    %c1_643 = arith.constant 1 : index
    %c2_644 = arith.constant 2 : index
    %c0_645 = arith.constant 0 : index
    %1287 = vector.load %arg6[%c0_642, %c1_643, %c2_644, %c0_645] : memref<2x7x22x16xf32, #tpu.memory_space<vmem>>, vector<1x1x16x16xf32>
    %1288 = vector.shape_cast %1287 : vector<1x1x16x16xf32> to vector<16x16xf32>
    %c83_646 = arith.constant 83 : index
    %1289 = memref.load %arg3[%c83_646] : memref<166xf32, #tpu.memory_space<smem>>
    %1290 = vector.broadcast %1289 : f32 to vector<16x16xf32>
    %1291 = arith.mulf %1290, %1288 : vector<16x16xf32>
    %1292 = arith.addf %1282, %1291 : vector<16x16xf32>
    %c23_647 = arith.constant 23 : index
    %1293 = memref.load %arg3[%c23_647] : memref<166xf32, #tpu.memory_space<smem>>
    %1294 = vector.broadcast %1293 : f32 to vector<16x16xf32>
    %1295 = arith.mulf %1294, %1288 : vector<16x16xf32>
    %1296 = arith.addf %1286, %1295 : vector<16x16xf32>
    %c0_648 = arith.constant 0 : index
    %c1_649 = arith.constant 1 : index
    %c3_650 = arith.constant 3 : index
    %c0_651 = arith.constant 0 : index
    %1297 = vector.load %arg6[%c0_648, %c1_649, %c3_650, %c0_651] : memref<2x7x22x16xf32, #tpu.memory_space<vmem>>, vector<1x1x16x16xf32>
    %1298 = vector.shape_cast %1297 : vector<1x1x16x16xf32> to vector<16x16xf32>
    %c90_652 = arith.constant 90 : index
    %1299 = memref.load %arg3[%c90_652] : memref<166xf32, #tpu.memory_space<smem>>
    %1300 = vector.broadcast %1299 : f32 to vector<16x16xf32>
    %1301 = arith.mulf %1300, %1298 : vector<16x16xf32>
    %1302 = arith.addf %1292, %1301 : vector<16x16xf32>
    %c28_653 = arith.constant 28 : index
    %1303 = memref.load %arg3[%c28_653] : memref<166xf32, #tpu.memory_space<smem>>
    %1304 = vector.broadcast %1303 : f32 to vector<16x16xf32>
    %1305 = arith.mulf %1304, %1298 : vector<16x16xf32>
    %1306 = arith.addf %1296, %1305 : vector<16x16xf32>
    %c0_654 = arith.constant 0 : index
    %c1_655 = arith.constant 1 : index
    %c4_656 = arith.constant 4 : index
    %c0_657 = arith.constant 0 : index
    %1307 = vector.load %arg6[%c0_654, %c1_655, %c4_656, %c0_657] : memref<2x7x22x16xf32, #tpu.memory_space<vmem>>, vector<1x1x16x16xf32>
    %1308 = vector.shape_cast %1307 : vector<1x1x16x16xf32> to vector<16x16xf32>
    %c97_658 = arith.constant 97 : index
    %1309 = memref.load %arg3[%c97_658] : memref<166xf32, #tpu.memory_space<smem>>
    %1310 = vector.broadcast %1309 : f32 to vector<16x16xf32>
    %1311 = arith.mulf %1310, %1308 : vector<16x16xf32>
    %1312 = arith.addf %1302, %1311 : vector<16x16xf32>
    %c33_659 = arith.constant 33 : index
    %1313 = memref.load %arg3[%c33_659] : memref<166xf32, #tpu.memory_space<smem>>
    %1314 = vector.broadcast %1313 : f32 to vector<16x16xf32>
    %1315 = arith.mulf %1314, %1308 : vector<16x16xf32>
    %1316 = arith.addf %1306, %1315 : vector<16x16xf32>
    %c0_660 = arith.constant 0 : index
    %c1_661 = arith.constant 1 : index
    %c5_662 = arith.constant 5 : index
    %c0_663 = arith.constant 0 : index
    %1317 = vector.load %arg6[%c0_660, %c1_661, %c5_662, %c0_663] : memref<2x7x22x16xf32, #tpu.memory_space<vmem>>, vector<1x1x16x16xf32>
    %1318 = vector.shape_cast %1317 : vector<1x1x16x16xf32> to vector<16x16xf32>
    %c104_664 = arith.constant 104 : index
    %1319 = memref.load %arg3[%c104_664] : memref<166xf32, #tpu.memory_space<smem>>
    %1320 = vector.broadcast %1319 : f32 to vector<16x16xf32>
    %1321 = arith.mulf %1320, %1318 : vector<16x16xf32>
    %1322 = arith.addf %1312, %1321 : vector<16x16xf32>
    %c38_665 = arith.constant 38 : index
    %1323 = memref.load %arg3[%c38_665] : memref<166xf32, #tpu.memory_space<smem>>
    %1324 = vector.broadcast %1323 : f32 to vector<16x16xf32>
    %1325 = arith.mulf %1324, %1318 : vector<16x16xf32>
    %1326 = arith.addf %1316, %1325 : vector<16x16xf32>
    %c0_666 = arith.constant 0 : index
    %c1_667 = arith.constant 1 : index
    %c6_668 = arith.constant 6 : index
    %c0_669 = arith.constant 0 : index
    %1327 = vector.load %arg6[%c0_666, %c1_667, %c6_668, %c0_669] : memref<2x7x22x16xf32, #tpu.memory_space<vmem>>, vector<1x1x16x16xf32>
    %1328 = vector.shape_cast %1327 : vector<1x1x16x16xf32> to vector<16x16xf32>
    %c111_670 = arith.constant 111 : index
    %1329 = memref.load %arg3[%c111_670] : memref<166xf32, #tpu.memory_space<smem>>
    %1330 = vector.broadcast %1329 : f32 to vector<16x16xf32>
    %1331 = arith.mulf %1330, %1328 : vector<16x16xf32>
    %1332 = arith.addf %1322, %1331 : vector<16x16xf32>
    %c0_671 = arith.constant 0 : index
    %c2_672 = arith.constant 2 : index
    %c0_673 = arith.constant 0 : index
    %c0_674 = arith.constant 0 : index
    %1333 = vector.load %arg6[%c0_671, %c2_672, %c0_673, %c0_674] : memref<2x7x22x16xf32, #tpu.memory_space<vmem>>, vector<1x1x16x16xf32>
    %1334 = vector.shape_cast %1333 : vector<1x1x16x16xf32> to vector<16x16xf32>
    %c70_675 = arith.constant 70 : index
    %1335 = memref.load %arg3[%c70_675] : memref<166xf32, #tpu.memory_space<smem>>
    %1336 = vector.broadcast %1335 : f32 to vector<16x16xf32>
    %1337 = arith.mulf %1336, %1334 : vector<16x16xf32>
    %1338 = arith.addf %1332, %1337 : vector<16x16xf32>
    %c0_676 = arith.constant 0 : index
    %c2_677 = arith.constant 2 : index
    %c1_678 = arith.constant 1 : index
    %c0_679 = arith.constant 0 : index
    %1339 = vector.load %arg6[%c0_676, %c2_677, %c1_678, %c0_679] : memref<2x7x22x16xf32, #tpu.memory_space<vmem>>, vector<1x1x16x16xf32>
    %1340 = vector.shape_cast %1339 : vector<1x1x16x16xf32> to vector<16x16xf32>
    %c77_680 = arith.constant 77 : index
    %1341 = memref.load %arg3[%c77_680] : memref<166xf32, #tpu.memory_space<smem>>
    %1342 = vector.broadcast %1341 : f32 to vector<16x16xf32>
    %1343 = arith.mulf %1342, %1340 : vector<16x16xf32>
    %1344 = arith.addf %1338, %1343 : vector<16x16xf32>
    %c19_681 = arith.constant 19 : index
    %1345 = memref.load %arg3[%c19_681] : memref<166xf32, #tpu.memory_space<smem>>
    %1346 = vector.broadcast %1345 : f32 to vector<16x16xf32>
    %1347 = arith.mulf %1346, %1340 : vector<16x16xf32>
    %1348 = arith.addf %1326, %1347 : vector<16x16xf32>
    %c0_682 = arith.constant 0 : index
    %c2_683 = arith.constant 2 : index
    %c2_684 = arith.constant 2 : index
    %c0_685 = arith.constant 0 : index
    %1349 = vector.load %arg6[%c0_682, %c2_683, %c2_684, %c0_685] : memref<2x7x22x16xf32, #tpu.memory_space<vmem>>, vector<1x1x16x16xf32>
    %1350 = vector.shape_cast %1349 : vector<1x1x16x16xf32> to vector<16x16xf32>
    %c84_686 = arith.constant 84 : index
    %1351 = memref.load %arg3[%c84_686] : memref<166xf32, #tpu.memory_space<smem>>
    %1352 = vector.broadcast %1351 : f32 to vector<16x16xf32>
    %1353 = arith.mulf %1352, %1350 : vector<16x16xf32>
    %1354 = arith.addf %1344, %1353 : vector<16x16xf32>
    %c24_687 = arith.constant 24 : index
    %1355 = memref.load %arg3[%c24_687] : memref<166xf32, #tpu.memory_space<smem>>
    %1356 = vector.broadcast %1355 : f32 to vector<16x16xf32>
    %1357 = arith.mulf %1356, %1350 : vector<16x16xf32>
    %1358 = arith.addf %1348, %1357 : vector<16x16xf32>
    %c0_688 = arith.constant 0 : index
    %1359 = memref.load %arg3[%c0_688] : memref<166xf32, #tpu.memory_space<smem>>
    %1360 = vector.broadcast %1359 : f32 to vector<16x16xf32>
    %1361 = arith.mulf %1360, %1350 : vector<16x16xf32>
    %1362 = arith.addf %1220, %1361 : vector<16x16xf32>
    %c0_689 = arith.constant 0 : index
    %c2_690 = arith.constant 2 : index
    %c3_691 = arith.constant 3 : index
    %c0_692 = arith.constant 0 : index
    %1363 = vector.load %arg6[%c0_689, %c2_690, %c3_691, %c0_692] : memref<2x7x22x16xf32, #tpu.memory_space<vmem>>, vector<1x1x16x16xf32>
    %1364 = vector.shape_cast %1363 : vector<1x1x16x16xf32> to vector<16x16xf32>
    %c91_693 = arith.constant 91 : index
    %1365 = memref.load %arg3[%c91_693] : memref<166xf32, #tpu.memory_space<smem>>
    %1366 = vector.broadcast %1365 : f32 to vector<16x16xf32>
    %1367 = arith.mulf %1366, %1364 : vector<16x16xf32>
    %1368 = arith.addf %1354, %1367 : vector<16x16xf32>
    %c29_694 = arith.constant 29 : index
    %1369 = memref.load %arg3[%c29_694] : memref<166xf32, #tpu.memory_space<smem>>
    %1370 = vector.broadcast %1369 : f32 to vector<16x16xf32>
    %1371 = arith.mulf %1370, %1364 : vector<16x16xf32>
    %1372 = arith.addf %1358, %1371 : vector<16x16xf32>
    %c3_695 = arith.constant 3 : index
    %1373 = memref.load %arg3[%c3_695] : memref<166xf32, #tpu.memory_space<smem>>
    %1374 = vector.broadcast %1373 : f32 to vector<16x16xf32>
    %1375 = arith.mulf %1374, %1364 : vector<16x16xf32>
    %1376 = arith.addf %1362, %1375 : vector<16x16xf32>
    %c0_696 = arith.constant 0 : index
    %c2_697 = arith.constant 2 : index
    %c4_698 = arith.constant 4 : index
    %c0_699 = arith.constant 0 : index
    %1377 = vector.load %arg6[%c0_696, %c2_697, %c4_698, %c0_699] : memref<2x7x22x16xf32, #tpu.memory_space<vmem>>, vector<1x1x16x16xf32>
    %1378 = vector.shape_cast %1377 : vector<1x1x16x16xf32> to vector<16x16xf32>
    %c98_700 = arith.constant 98 : index
    %1379 = memref.load %arg3[%c98_700] : memref<166xf32, #tpu.memory_space<smem>>
    %1380 = vector.broadcast %1379 : f32 to vector<16x16xf32>
    %1381 = arith.mulf %1380, %1378 : vector<16x16xf32>
    %1382 = arith.addf %1368, %1381 : vector<16x16xf32>
    %c34_701 = arith.constant 34 : index
    %1383 = memref.load %arg3[%c34_701] : memref<166xf32, #tpu.memory_space<smem>>
    %1384 = vector.broadcast %1383 : f32 to vector<16x16xf32>
    %1385 = arith.mulf %1384, %1378 : vector<16x16xf32>
    %1386 = arith.addf %1372, %1385 : vector<16x16xf32>
    %c6_702 = arith.constant 6 : index
    %1387 = memref.load %arg3[%c6_702] : memref<166xf32, #tpu.memory_space<smem>>
    %1388 = vector.broadcast %1387 : f32 to vector<16x16xf32>
    %1389 = arith.mulf %1388, %1378 : vector<16x16xf32>
    %1390 = arith.addf %1376, %1389 : vector<16x16xf32>
    %c0_703 = arith.constant 0 : index
    %c2_704 = arith.constant 2 : index
    %c5_705 = arith.constant 5 : index
    %c0_706 = arith.constant 0 : index
    %1391 = vector.load %arg6[%c0_703, %c2_704, %c5_705, %c0_706] : memref<2x7x22x16xf32, #tpu.memory_space<vmem>>, vector<1x1x16x16xf32>
    %1392 = vector.shape_cast %1391 : vector<1x1x16x16xf32> to vector<16x16xf32>
    %c105_707 = arith.constant 105 : index
    %1393 = memref.load %arg3[%c105_707] : memref<166xf32, #tpu.memory_space<smem>>
    %1394 = vector.broadcast %1393 : f32 to vector<16x16xf32>
    %1395 = arith.mulf %1394, %1392 : vector<16x16xf32>
    %1396 = arith.addf %1382, %1395 : vector<16x16xf32>
    %c39_708 = arith.constant 39 : index
    %1397 = memref.load %arg3[%c39_708] : memref<166xf32, #tpu.memory_space<smem>>
    %1398 = vector.broadcast %1397 : f32 to vector<16x16xf32>
    %1399 = arith.mulf %1398, %1392 : vector<16x16xf32>
    %1400 = arith.addf %1386, %1399 : vector<16x16xf32>
    %c0_709 = arith.constant 0 : index
    %c2_710 = arith.constant 2 : index
    %c6_711 = arith.constant 6 : index
    %c0_712 = arith.constant 0 : index
    %1401 = vector.load %arg6[%c0_709, %c2_710, %c6_711, %c0_712] : memref<2x7x22x16xf32, #tpu.memory_space<vmem>>, vector<1x1x16x16xf32>
    %1402 = vector.shape_cast %1401 : vector<1x1x16x16xf32> to vector<16x16xf32>
    %c112_713 = arith.constant 112 : index
    %1403 = memref.load %arg3[%c112_713] : memref<166xf32, #tpu.memory_space<smem>>
    %1404 = vector.broadcast %1403 : f32 to vector<16x16xf32>
    %1405 = arith.mulf %1404, %1402 : vector<16x16xf32>
    %1406 = arith.addf %1396, %1405 : vector<16x16xf32>
    %c0_714 = arith.constant 0 : index
    %c3_715 = arith.constant 3 : index
    %c0_716 = arith.constant 0 : index
    %c0_717 = arith.constant 0 : index
    %1407 = vector.load %arg6[%c0_714, %c3_715, %c0_716, %c0_717] : memref<2x7x22x16xf32, #tpu.memory_space<vmem>>, vector<1x1x16x16xf32>
    %1408 = vector.shape_cast %1407 : vector<1x1x16x16xf32> to vector<16x16xf32>
    %c71_718 = arith.constant 71 : index
    %1409 = memref.load %arg3[%c71_718] : memref<166xf32, #tpu.memory_space<smem>>
    %1410 = vector.broadcast %1409 : f32 to vector<16x16xf32>
    %1411 = arith.mulf %1410, %1408 : vector<16x16xf32>
    %1412 = arith.addf %1406, %1411 : vector<16x16xf32>
    %c0_719 = arith.constant 0 : index
    %c3_720 = arith.constant 3 : index
    %c1_721 = arith.constant 1 : index
    %c0_722 = arith.constant 0 : index
    %1413 = vector.load %arg6[%c0_719, %c3_720, %c1_721, %c0_722] : memref<2x7x22x16xf32, #tpu.memory_space<vmem>>, vector<1x1x16x16xf32>
    %1414 = vector.shape_cast %1413 : vector<1x1x16x16xf32> to vector<16x16xf32>
    %c78_723 = arith.constant 78 : index
    %1415 = memref.load %arg3[%c78_723] : memref<166xf32, #tpu.memory_space<smem>>
    %1416 = vector.broadcast %1415 : f32 to vector<16x16xf32>
    %1417 = arith.mulf %1416, %1414 : vector<16x16xf32>
    %1418 = arith.addf %1412, %1417 : vector<16x16xf32>
    %c20_724 = arith.constant 20 : index
    %1419 = memref.load %arg3[%c20_724] : memref<166xf32, #tpu.memory_space<smem>>
    %1420 = vector.broadcast %1419 : f32 to vector<16x16xf32>
    %1421 = arith.mulf %1420, %1414 : vector<16x16xf32>
    %1422 = arith.addf %1400, %1421 : vector<16x16xf32>
    %c0_725 = arith.constant 0 : index
    %c3_726 = arith.constant 3 : index
    %c2_727 = arith.constant 2 : index
    %c0_728 = arith.constant 0 : index
    %1423 = vector.load %arg6[%c0_725, %c3_726, %c2_727, %c0_728] : memref<2x7x22x16xf32, #tpu.memory_space<vmem>>, vector<1x1x16x16xf32>
    %1424 = vector.shape_cast %1423 : vector<1x1x16x16xf32> to vector<16x16xf32>
    %c85_729 = arith.constant 85 : index
    %1425 = memref.load %arg3[%c85_729] : memref<166xf32, #tpu.memory_space<smem>>
    %1426 = vector.broadcast %1425 : f32 to vector<16x16xf32>
    %1427 = arith.mulf %1426, %1424 : vector<16x16xf32>
    %1428 = arith.addf %1418, %1427 : vector<16x16xf32>
    %c25_730 = arith.constant 25 : index
    %1429 = memref.load %arg3[%c25_730] : memref<166xf32, #tpu.memory_space<smem>>
    %1430 = vector.broadcast %1429 : f32 to vector<16x16xf32>
    %1431 = arith.mulf %1430, %1424 : vector<16x16xf32>
    %1432 = arith.addf %1422, %1431 : vector<16x16xf32>
    %c1_731 = arith.constant 1 : index
    %1433 = memref.load %arg3[%c1_731] : memref<166xf32, #tpu.memory_space<smem>>
    %1434 = vector.broadcast %1433 : f32 to vector<16x16xf32>
    %1435 = arith.mulf %1434, %1424 : vector<16x16xf32>
    %1436 = arith.addf %1390, %1435 : vector<16x16xf32>
    %c0_732 = arith.constant 0 : index
    %c3_733 = arith.constant 3 : index
    %c3_734 = arith.constant 3 : index
    %c0_735 = arith.constant 0 : index
    %1437 = vector.load %arg6[%c0_732, %c3_733, %c3_734, %c0_735] : memref<2x7x22x16xf32, #tpu.memory_space<vmem>>, vector<1x1x16x16xf32>
    %1438 = vector.shape_cast %1437 : vector<1x1x16x16xf32> to vector<16x16xf32>
    %c92_736 = arith.constant 92 : index
    %1439 = memref.load %arg3[%c92_736] : memref<166xf32, #tpu.memory_space<smem>>
    %1440 = vector.broadcast %1439 : f32 to vector<16x16xf32>
    %1441 = arith.mulf %1440, %1438 : vector<16x16xf32>
    %1442 = arith.addf %1428, %1441 : vector<16x16xf32>
    %c30_737 = arith.constant 30 : index
    %1443 = memref.load %arg3[%c30_737] : memref<166xf32, #tpu.memory_space<smem>>
    %1444 = vector.broadcast %1443 : f32 to vector<16x16xf32>
    %1445 = arith.mulf %1444, %1438 : vector<16x16xf32>
    %1446 = arith.addf %1432, %1445 : vector<16x16xf32>
    %c4_738 = arith.constant 4 : index
    %1447 = memref.load %arg3[%c4_738] : memref<166xf32, #tpu.memory_space<smem>>
    %1448 = vector.broadcast %1447 : f32 to vector<16x16xf32>
    %1449 = arith.mulf %1448, %1438 : vector<16x16xf32>
    %1450 = arith.addf %1436, %1449 : vector<16x16xf32>
    %c0_739 = arith.constant 0 : index
    %c3_740 = arith.constant 3 : index
    %c4_741 = arith.constant 4 : index
    %c0_742 = arith.constant 0 : index
    %1451 = vector.load %arg6[%c0_739, %c3_740, %c4_741, %c0_742] : memref<2x7x22x16xf32, #tpu.memory_space<vmem>>, vector<1x1x16x16xf32>
    %1452 = vector.shape_cast %1451 : vector<1x1x16x16xf32> to vector<16x16xf32>
    %c99_743 = arith.constant 99 : index
    %1453 = memref.load %arg3[%c99_743] : memref<166xf32, #tpu.memory_space<smem>>
    %1454 = vector.broadcast %1453 : f32 to vector<16x16xf32>
    %1455 = arith.mulf %1454, %1452 : vector<16x16xf32>
    %1456 = arith.addf %1442, %1455 : vector<16x16xf32>
    %c35_744 = arith.constant 35 : index
    %1457 = memref.load %arg3[%c35_744] : memref<166xf32, #tpu.memory_space<smem>>
    %1458 = vector.broadcast %1457 : f32 to vector<16x16xf32>
    %1459 = arith.mulf %1458, %1452 : vector<16x16xf32>
    %1460 = arith.addf %1446, %1459 : vector<16x16xf32>
    %c7_745 = arith.constant 7 : index
    %1461 = memref.load %arg3[%c7_745] : memref<166xf32, #tpu.memory_space<smem>>
    %1462 = vector.broadcast %1461 : f32 to vector<16x16xf32>
    %1463 = arith.mulf %1462, %1452 : vector<16x16xf32>
    %1464 = arith.addf %1450, %1463 : vector<16x16xf32>
    %c0_746 = arith.constant 0 : index
    %c3_747 = arith.constant 3 : index
    %c5_748 = arith.constant 5 : index
    %c0_749 = arith.constant 0 : index
    %1465 = vector.load %arg6[%c0_746, %c3_747, %c5_748, %c0_749] : memref<2x7x22x16xf32, #tpu.memory_space<vmem>>, vector<1x1x16x16xf32>
    %1466 = vector.shape_cast %1465 : vector<1x1x16x16xf32> to vector<16x16xf32>
    %c106_750 = arith.constant 106 : index
    %1467 = memref.load %arg3[%c106_750] : memref<166xf32, #tpu.memory_space<smem>>
    %1468 = vector.broadcast %1467 : f32 to vector<16x16xf32>
    %1469 = arith.mulf %1468, %1466 : vector<16x16xf32>
    %1470 = arith.addf %1456, %1469 : vector<16x16xf32>
    %c40_751 = arith.constant 40 : index
    %1471 = memref.load %arg3[%c40_751] : memref<166xf32, #tpu.memory_space<smem>>
    %1472 = vector.broadcast %1471 : f32 to vector<16x16xf32>
    %1473 = arith.mulf %1472, %1466 : vector<16x16xf32>
    %1474 = arith.addf %1460, %1473 : vector<16x16xf32>
    %c0_752 = arith.constant 0 : index
    %c3_753 = arith.constant 3 : index
    %c6_754 = arith.constant 6 : index
    %c0_755 = arith.constant 0 : index
    %1475 = vector.load %arg6[%c0_752, %c3_753, %c6_754, %c0_755] : memref<2x7x22x16xf32, #tpu.memory_space<vmem>>, vector<1x1x16x16xf32>
    %1476 = vector.shape_cast %1475 : vector<1x1x16x16xf32> to vector<16x16xf32>
    %c113_756 = arith.constant 113 : index
    %1477 = memref.load %arg3[%c113_756] : memref<166xf32, #tpu.memory_space<smem>>
    %1478 = vector.broadcast %1477 : f32 to vector<16x16xf32>
    %1479 = arith.mulf %1478, %1476 : vector<16x16xf32>
    %1480 = arith.addf %1470, %1479 : vector<16x16xf32>
    %c0_757 = arith.constant 0 : index
    %c4_758 = arith.constant 4 : index
    %c0_759 = arith.constant 0 : index
    %c0_760 = arith.constant 0 : index
    %1481 = vector.load %arg6[%c0_757, %c4_758, %c0_759, %c0_760] : memref<2x7x22x16xf32, #tpu.memory_space<vmem>>, vector<1x1x16x16xf32>
    %1482 = vector.shape_cast %1481 : vector<1x1x16x16xf32> to vector<16x16xf32>
    %c72_761 = arith.constant 72 : index
    %1483 = memref.load %arg3[%c72_761] : memref<166xf32, #tpu.memory_space<smem>>
    %1484 = vector.broadcast %1483 : f32 to vector<16x16xf32>
    %1485 = arith.mulf %1484, %1482 : vector<16x16xf32>
    %1486 = arith.addf %1480, %1485 : vector<16x16xf32>
    %c0_762 = arith.constant 0 : index
    %c4_763 = arith.constant 4 : index
    %c1_764 = arith.constant 1 : index
    %c0_765 = arith.constant 0 : index
    %1487 = vector.load %arg6[%c0_762, %c4_763, %c1_764, %c0_765] : memref<2x7x22x16xf32, #tpu.memory_space<vmem>>, vector<1x1x16x16xf32>
    %1488 = vector.shape_cast %1487 : vector<1x1x16x16xf32> to vector<16x16xf32>
    %c79_766 = arith.constant 79 : index
    %1489 = memref.load %arg3[%c79_766] : memref<166xf32, #tpu.memory_space<smem>>
    %1490 = vector.broadcast %1489 : f32 to vector<16x16xf32>
    %1491 = arith.mulf %1490, %1488 : vector<16x16xf32>
    %1492 = arith.addf %1486, %1491 : vector<16x16xf32>
    %c21_767 = arith.constant 21 : index
    %1493 = memref.load %arg3[%c21_767] : memref<166xf32, #tpu.memory_space<smem>>
    %1494 = vector.broadcast %1493 : f32 to vector<16x16xf32>
    %1495 = arith.mulf %1494, %1488 : vector<16x16xf32>
    %1496 = arith.addf %1474, %1495 : vector<16x16xf32>
    %c0_768 = arith.constant 0 : index
    %c4_769 = arith.constant 4 : index
    %c2_770 = arith.constant 2 : index
    %c0_771 = arith.constant 0 : index
    %1497 = vector.load %arg6[%c0_768, %c4_769, %c2_770, %c0_771] : memref<2x7x22x16xf32, #tpu.memory_space<vmem>>, vector<1x1x16x16xf32>
    %1498 = vector.shape_cast %1497 : vector<1x1x16x16xf32> to vector<16x16xf32>
    %c86_772 = arith.constant 86 : index
    %1499 = memref.load %arg3[%c86_772] : memref<166xf32, #tpu.memory_space<smem>>
    %1500 = vector.broadcast %1499 : f32 to vector<16x16xf32>
    %1501 = arith.mulf %1500, %1498 : vector<16x16xf32>
    %1502 = arith.addf %1492, %1501 : vector<16x16xf32>
    %c26_773 = arith.constant 26 : index
    %1503 = memref.load %arg3[%c26_773] : memref<166xf32, #tpu.memory_space<smem>>
    %1504 = vector.broadcast %1503 : f32 to vector<16x16xf32>
    %1505 = arith.mulf %1504, %1498 : vector<16x16xf32>
    %1506 = arith.addf %1496, %1505 : vector<16x16xf32>
    %c2_774 = arith.constant 2 : index
    %1507 = memref.load %arg3[%c2_774] : memref<166xf32, #tpu.memory_space<smem>>
    %1508 = vector.broadcast %1507 : f32 to vector<16x16xf32>
    %1509 = arith.mulf %1508, %1498 : vector<16x16xf32>
    %1510 = arith.addf %1464, %1509 : vector<16x16xf32>
    %c0_775 = arith.constant 0 : index
    %c4_776 = arith.constant 4 : index
    %c3_777 = arith.constant 3 : index
    %c0_778 = arith.constant 0 : index
    %1511 = vector.load %arg6[%c0_775, %c4_776, %c3_777, %c0_778] : memref<2x7x22x16xf32, #tpu.memory_space<vmem>>, vector<1x1x16x16xf32>
    %1512 = vector.shape_cast %1511 : vector<1x1x16x16xf32> to vector<16x16xf32>
    %c93_779 = arith.constant 93 : index
    %1513 = memref.load %arg3[%c93_779] : memref<166xf32, #tpu.memory_space<smem>>
    %1514 = vector.broadcast %1513 : f32 to vector<16x16xf32>
    %1515 = arith.mulf %1514, %1512 : vector<16x16xf32>
    %1516 = arith.addf %1502, %1515 : vector<16x16xf32>
    %c31_780 = arith.constant 31 : index
    %1517 = memref.load %arg3[%c31_780] : memref<166xf32, #tpu.memory_space<smem>>
    %1518 = vector.broadcast %1517 : f32 to vector<16x16xf32>
    %1519 = arith.mulf %1518, %1512 : vector<16x16xf32>
    %1520 = arith.addf %1506, %1519 : vector<16x16xf32>
    %c5_781 = arith.constant 5 : index
    %1521 = memref.load %arg3[%c5_781] : memref<166xf32, #tpu.memory_space<smem>>
    %1522 = vector.broadcast %1521 : f32 to vector<16x16xf32>
    %1523 = arith.mulf %1522, %1512 : vector<16x16xf32>
    %1524 = arith.addf %1510, %1523 : vector<16x16xf32>
    %c0_782 = arith.constant 0 : index
    %c4_783 = arith.constant 4 : index
    %c4_784 = arith.constant 4 : index
    %c0_785 = arith.constant 0 : index
    %1525 = vector.load %arg6[%c0_782, %c4_783, %c4_784, %c0_785] : memref<2x7x22x16xf32, #tpu.memory_space<vmem>>, vector<1x1x16x16xf32>
    %1526 = vector.shape_cast %1525 : vector<1x1x16x16xf32> to vector<16x16xf32>
    %c100_786 = arith.constant 100 : index
    %1527 = memref.load %arg3[%c100_786] : memref<166xf32, #tpu.memory_space<smem>>
    %1528 = vector.broadcast %1527 : f32 to vector<16x16xf32>
    %1529 = arith.mulf %1528, %1526 : vector<16x16xf32>
    %1530 = arith.addf %1516, %1529 : vector<16x16xf32>
    %c36_787 = arith.constant 36 : index
    %1531 = memref.load %arg3[%c36_787] : memref<166xf32, #tpu.memory_space<smem>>
    %1532 = vector.broadcast %1531 : f32 to vector<16x16xf32>
    %1533 = arith.mulf %1532, %1526 : vector<16x16xf32>
    %1534 = arith.addf %1520, %1533 : vector<16x16xf32>
    %c8_788 = arith.constant 8 : index
    %1535 = memref.load %arg3[%c8_788] : memref<166xf32, #tpu.memory_space<smem>>
    %1536 = vector.broadcast %1535 : f32 to vector<16x16xf32>
    %1537 = arith.mulf %1536, %1526 : vector<16x16xf32>
    %1538 = arith.addf %1524, %1537 : vector<16x16xf32>
    %c0_789 = arith.constant 0 : index
    %c4_790 = arith.constant 4 : index
    %c5_791 = arith.constant 5 : index
    %c0_792 = arith.constant 0 : index
    %1539 = vector.load %arg6[%c0_789, %c4_790, %c5_791, %c0_792] : memref<2x7x22x16xf32, #tpu.memory_space<vmem>>, vector<1x1x16x16xf32>
    %1540 = vector.shape_cast %1539 : vector<1x1x16x16xf32> to vector<16x16xf32>
    %c107_793 = arith.constant 107 : index
    %1541 = memref.load %arg3[%c107_793] : memref<166xf32, #tpu.memory_space<smem>>
    %1542 = vector.broadcast %1541 : f32 to vector<16x16xf32>
    %1543 = arith.mulf %1542, %1540 : vector<16x16xf32>
    %1544 = arith.addf %1530, %1543 : vector<16x16xf32>
    %c41_794 = arith.constant 41 : index
    %1545 = memref.load %arg3[%c41_794] : memref<166xf32, #tpu.memory_space<smem>>
    %1546 = vector.broadcast %1545 : f32 to vector<16x16xf32>
    %1547 = arith.mulf %1546, %1540 : vector<16x16xf32>
    %1548 = arith.addf %1534, %1547 : vector<16x16xf32>
    %c0_795 = arith.constant 0 : index
    %c4_796 = arith.constant 4 : index
    %c6_797 = arith.constant 6 : index
    %c0_798 = arith.constant 0 : index
    %1549 = vector.load %arg6[%c0_795, %c4_796, %c6_797, %c0_798] : memref<2x7x22x16xf32, #tpu.memory_space<vmem>>, vector<1x1x16x16xf32>
    %1550 = vector.shape_cast %1549 : vector<1x1x16x16xf32> to vector<16x16xf32>
    %c114_799 = arith.constant 114 : index
    %1551 = memref.load %arg3[%c114_799] : memref<166xf32, #tpu.memory_space<smem>>
    %1552 = vector.broadcast %1551 : f32 to vector<16x16xf32>
    %1553 = arith.mulf %1552, %1550 : vector<16x16xf32>
    %1554 = arith.addf %1544, %1553 : vector<16x16xf32>
    %c0_800 = arith.constant 0 : index
    %c5_801 = arith.constant 5 : index
    %c0_802 = arith.constant 0 : index
    %c0_803 = arith.constant 0 : index
    %1555 = vector.load %arg6[%c0_800, %c5_801, %c0_802, %c0_803] : memref<2x7x22x16xf32, #tpu.memory_space<vmem>>, vector<1x1x16x16xf32>
    %1556 = vector.shape_cast %1555 : vector<1x1x16x16xf32> to vector<16x16xf32>
    %c73_804 = arith.constant 73 : index
    %1557 = memref.load %arg3[%c73_804] : memref<166xf32, #tpu.memory_space<smem>>
    %1558 = vector.broadcast %1557 : f32 to vector<16x16xf32>
    %1559 = arith.mulf %1558, %1556 : vector<16x16xf32>
    %1560 = arith.addf %1554, %1559 : vector<16x16xf32>
    %c0_805 = arith.constant 0 : index
    %c5_806 = arith.constant 5 : index
    %c1_807 = arith.constant 1 : index
    %c0_808 = arith.constant 0 : index
    %1561 = vector.load %arg6[%c0_805, %c5_806, %c1_807, %c0_808] : memref<2x7x22x16xf32, #tpu.memory_space<vmem>>, vector<1x1x16x16xf32>
    %1562 = vector.shape_cast %1561 : vector<1x1x16x16xf32> to vector<16x16xf32>
    %c80_809 = arith.constant 80 : index
    %1563 = memref.load %arg3[%c80_809] : memref<166xf32, #tpu.memory_space<smem>>
    %1564 = vector.broadcast %1563 : f32 to vector<16x16xf32>
    %1565 = arith.mulf %1564, %1562 : vector<16x16xf32>
    %1566 = arith.addf %1560, %1565 : vector<16x16xf32>
    %c22_810 = arith.constant 22 : index
    %1567 = memref.load %arg3[%c22_810] : memref<166xf32, #tpu.memory_space<smem>>
    %1568 = vector.broadcast %1567 : f32 to vector<16x16xf32>
    %1569 = arith.mulf %1568, %1562 : vector<16x16xf32>
    %1570 = arith.addf %1548, %1569 : vector<16x16xf32>
    %c0_811 = arith.constant 0 : index
    %c5_812 = arith.constant 5 : index
    %c2_813 = arith.constant 2 : index
    %c0_814 = arith.constant 0 : index
    %1571 = vector.load %arg6[%c0_811, %c5_812, %c2_813, %c0_814] : memref<2x7x22x16xf32, #tpu.memory_space<vmem>>, vector<1x1x16x16xf32>
    %1572 = vector.shape_cast %1571 : vector<1x1x16x16xf32> to vector<16x16xf32>
    %c87_815 = arith.constant 87 : index
    %1573 = memref.load %arg3[%c87_815] : memref<166xf32, #tpu.memory_space<smem>>
    %1574 = vector.broadcast %1573 : f32 to vector<16x16xf32>
    %1575 = arith.mulf %1574, %1572 : vector<16x16xf32>
    %1576 = arith.addf %1566, %1575 : vector<16x16xf32>
    %c27_816 = arith.constant 27 : index
    %1577 = memref.load %arg3[%c27_816] : memref<166xf32, #tpu.memory_space<smem>>
    %1578 = vector.broadcast %1577 : f32 to vector<16x16xf32>
    %1579 = arith.mulf %1578, %1572 : vector<16x16xf32>
    %1580 = arith.addf %1570, %1579 : vector<16x16xf32>
    %c0_817 = arith.constant 0 : index
    %c5_818 = arith.constant 5 : index
    %c3_819 = arith.constant 3 : index
    %c0_820 = arith.constant 0 : index
    %1581 = vector.load %arg6[%c0_817, %c5_818, %c3_819, %c0_820] : memref<2x7x22x16xf32, #tpu.memory_space<vmem>>, vector<1x1x16x16xf32>
    %1582 = vector.shape_cast %1581 : vector<1x1x16x16xf32> to vector<16x16xf32>
    %c94_821 = arith.constant 94 : index
    %1583 = memref.load %arg3[%c94_821] : memref<166xf32, #tpu.memory_space<smem>>
    %1584 = vector.broadcast %1583 : f32 to vector<16x16xf32>
    %1585 = arith.mulf %1584, %1582 : vector<16x16xf32>
    %1586 = arith.addf %1576, %1585 : vector<16x16xf32>
    %c32_822 = arith.constant 32 : index
    %1587 = memref.load %arg3[%c32_822] : memref<166xf32, #tpu.memory_space<smem>>
    %1588 = vector.broadcast %1587 : f32 to vector<16x16xf32>
    %1589 = arith.mulf %1588, %1582 : vector<16x16xf32>
    %1590 = arith.addf %1580, %1589 : vector<16x16xf32>
    %c0_823 = arith.constant 0 : index
    %c5_824 = arith.constant 5 : index
    %c4_825 = arith.constant 4 : index
    %c0_826 = arith.constant 0 : index
    %1591 = vector.load %arg6[%c0_823, %c5_824, %c4_825, %c0_826] : memref<2x7x22x16xf32, #tpu.memory_space<vmem>>, vector<1x1x16x16xf32>
    %1592 = vector.shape_cast %1591 : vector<1x1x16x16xf32> to vector<16x16xf32>
    %c101_827 = arith.constant 101 : index
    %1593 = memref.load %arg3[%c101_827] : memref<166xf32, #tpu.memory_space<smem>>
    %1594 = vector.broadcast %1593 : f32 to vector<16x16xf32>
    %1595 = arith.mulf %1594, %1592 : vector<16x16xf32>
    %1596 = arith.addf %1586, %1595 : vector<16x16xf32>
    %c37_828 = arith.constant 37 : index
    %1597 = memref.load %arg3[%c37_828] : memref<166xf32, #tpu.memory_space<smem>>
    %1598 = vector.broadcast %1597 : f32 to vector<16x16xf32>
    %1599 = arith.mulf %1598, %1592 : vector<16x16xf32>
    %1600 = arith.addf %1590, %1599 : vector<16x16xf32>
    %c0_829 = arith.constant 0 : index
    %c5_830 = arith.constant 5 : index
    %c5_831 = arith.constant 5 : index
    %c0_832 = arith.constant 0 : index
    %1601 = vector.load %arg6[%c0_829, %c5_830, %c5_831, %c0_832] : memref<2x7x22x16xf32, #tpu.memory_space<vmem>>, vector<1x1x16x16xf32>
    %1602 = vector.shape_cast %1601 : vector<1x1x16x16xf32> to vector<16x16xf32>
    %c108_833 = arith.constant 108 : index
    %1603 = memref.load %arg3[%c108_833] : memref<166xf32, #tpu.memory_space<smem>>
    %1604 = vector.broadcast %1603 : f32 to vector<16x16xf32>
    %1605 = arith.mulf %1604, %1602 : vector<16x16xf32>
    %1606 = arith.addf %1596, %1605 : vector<16x16xf32>
    %c42_834 = arith.constant 42 : index
    %1607 = memref.load %arg3[%c42_834] : memref<166xf32, #tpu.memory_space<smem>>
    %1608 = vector.broadcast %1607 : f32 to vector<16x16xf32>
    %1609 = arith.mulf %1608, %1602 : vector<16x16xf32>
    %1610 = arith.addf %1600, %1609 : vector<16x16xf32>
    %c0_835 = arith.constant 0 : index
    %c5_836 = arith.constant 5 : index
    %c6_837 = arith.constant 6 : index
    %c0_838 = arith.constant 0 : index
    %1611 = vector.load %arg6[%c0_835, %c5_836, %c6_837, %c0_838] : memref<2x7x22x16xf32, #tpu.memory_space<vmem>>, vector<1x1x16x16xf32>
    %1612 = vector.shape_cast %1611 : vector<1x1x16x16xf32> to vector<16x16xf32>
    %c115_839 = arith.constant 115 : index
    %1613 = memref.load %arg3[%c115_839] : memref<166xf32, #tpu.memory_space<smem>>
    %1614 = vector.broadcast %1613 : f32 to vector<16x16xf32>
    %1615 = arith.mulf %1614, %1612 : vector<16x16xf32>
    %1616 = arith.addf %1606, %1615 : vector<16x16xf32>
    %c0_840 = arith.constant 0 : index
    %c6_841 = arith.constant 6 : index
    %c0_842 = arith.constant 0 : index
    %c0_843 = arith.constant 0 : index
    %1617 = vector.load %arg6[%c0_840, %c6_841, %c0_842, %c0_843] : memref<2x7x22x16xf32, #tpu.memory_space<vmem>>, vector<1x1x16x16xf32>
    %1618 = vector.shape_cast %1617 : vector<1x1x16x16xf32> to vector<16x16xf32>
    %c74_844 = arith.constant 74 : index
    %1619 = memref.load %arg3[%c74_844] : memref<166xf32, #tpu.memory_space<smem>>
    %1620 = vector.broadcast %1619 : f32 to vector<16x16xf32>
    %1621 = arith.mulf %1620, %1618 : vector<16x16xf32>
    %1622 = arith.addf %1616, %1621 : vector<16x16xf32>
    %c0_845 = arith.constant 0 : index
    %c6_846 = arith.constant 6 : index
    %c1_847 = arith.constant 1 : index
    %c0_848 = arith.constant 0 : index
    %1623 = vector.load %arg6[%c0_845, %c6_846, %c1_847, %c0_848] : memref<2x7x22x16xf32, #tpu.memory_space<vmem>>, vector<1x1x16x16xf32>
    %1624 = vector.shape_cast %1623 : vector<1x1x16x16xf32> to vector<16x16xf32>
    %c81_849 = arith.constant 81 : index
    %1625 = memref.load %arg3[%c81_849] : memref<166xf32, #tpu.memory_space<smem>>
    %1626 = vector.broadcast %1625 : f32 to vector<16x16xf32>
    %1627 = arith.mulf %1626, %1624 : vector<16x16xf32>
    %1628 = arith.addf %1622, %1627 : vector<16x16xf32>
    %c0_850 = arith.constant 0 : index
    %c6_851 = arith.constant 6 : index
    %c2_852 = arith.constant 2 : index
    %c0_853 = arith.constant 0 : index
    %1629 = vector.load %arg6[%c0_850, %c6_851, %c2_852, %c0_853] : memref<2x7x22x16xf32, #tpu.memory_space<vmem>>, vector<1x1x16x16xf32>
    %1630 = vector.shape_cast %1629 : vector<1x1x16x16xf32> to vector<16x16xf32>
    %c88_854 = arith.constant 88 : index
    %1631 = memref.load %arg3[%c88_854] : memref<166xf32, #tpu.memory_space<smem>>
    %1632 = vector.broadcast %1631 : f32 to vector<16x16xf32>
    %1633 = arith.mulf %1632, %1630 : vector<16x16xf32>
    %1634 = arith.addf %1628, %1633 : vector<16x16xf32>
    %c0_855 = arith.constant 0 : index
    %c6_856 = arith.constant 6 : index
    %c3_857 = arith.constant 3 : index
    %c0_858 = arith.constant 0 : index
    %1635 = vector.load %arg6[%c0_855, %c6_856, %c3_857, %c0_858] : memref<2x7x22x16xf32, #tpu.memory_space<vmem>>, vector<1x1x16x16xf32>
    %1636 = vector.shape_cast %1635 : vector<1x1x16x16xf32> to vector<16x16xf32>
    %c95_859 = arith.constant 95 : index
    %1637 = memref.load %arg3[%c95_859] : memref<166xf32, #tpu.memory_space<smem>>
    %1638 = vector.broadcast %1637 : f32 to vector<16x16xf32>
    %1639 = arith.mulf %1638, %1636 : vector<16x16xf32>
    %1640 = arith.addf %1634, %1639 : vector<16x16xf32>
    %c0_860 = arith.constant 0 : index
    %c6_861 = arith.constant 6 : index
    %c4_862 = arith.constant 4 : index
    %c0_863 = arith.constant 0 : index
    %1641 = vector.load %arg6[%c0_860, %c6_861, %c4_862, %c0_863] : memref<2x7x22x16xf32, #tpu.memory_space<vmem>>, vector<1x1x16x16xf32>
    %1642 = vector.shape_cast %1641 : vector<1x1x16x16xf32> to vector<16x16xf32>
    %c102_864 = arith.constant 102 : index
    %1643 = memref.load %arg3[%c102_864] : memref<166xf32, #tpu.memory_space<smem>>
    %1644 = vector.broadcast %1643 : f32 to vector<16x16xf32>
    %1645 = arith.mulf %1644, %1642 : vector<16x16xf32>
    %1646 = arith.addf %1640, %1645 : vector<16x16xf32>
    %c0_865 = arith.constant 0 : index
    %c6_866 = arith.constant 6 : index
    %c5_867 = arith.constant 5 : index
    %c0_868 = arith.constant 0 : index
    %1647 = vector.load %arg6[%c0_865, %c6_866, %c5_867, %c0_868] : memref<2x7x22x16xf32, #tpu.memory_space<vmem>>, vector<1x1x16x16xf32>
    %1648 = vector.shape_cast %1647 : vector<1x1x16x16xf32> to vector<16x16xf32>
    %c109_869 = arith.constant 109 : index
    %1649 = memref.load %arg3[%c109_869] : memref<166xf32, #tpu.memory_space<smem>>
    %1650 = vector.broadcast %1649 : f32 to vector<16x16xf32>
    %1651 = arith.mulf %1650, %1648 : vector<16x16xf32>
    %1652 = arith.addf %1646, %1651 : vector<16x16xf32>
    %c0_870 = arith.constant 0 : index
    %c6_871 = arith.constant 6 : index
    %c6_872 = arith.constant 6 : index
    %c0_873 = arith.constant 0 : index
    %1653 = vector.load %arg6[%c0_870, %c6_871, %c6_872, %c0_873] : memref<2x7x22x16xf32, #tpu.memory_space<vmem>>, vector<1x1x16x16xf32>
    %1654 = vector.shape_cast %1653 : vector<1x1x16x16xf32> to vector<16x16xf32>
    %c116_874 = arith.constant 116 : index
    %1655 = memref.load %arg3[%c116_874] : memref<166xf32, #tpu.memory_space<smem>>
    %1656 = vector.broadcast %1655 : f32 to vector<16x16xf32>
    %1657 = arith.mulf %1656, %1654 : vector<16x16xf32>
    %1658 = arith.addf %1652, %1657 : vector<16x16xf32>
    %c1_875 = arith.constant 1 : index
    %c0_876 = arith.constant 0 : index
    %c0_877 = arith.constant 0 : index
    %c0_878 = arith.constant 0 : index
    %1659 = vector.load %arg6[%c1_875, %c0_876, %c0_877, %c0_878] : memref<2x7x22x16xf32, #tpu.memory_space<vmem>>, vector<1x1x16x16xf32>
    %1660 = vector.shape_cast %1659 : vector<1x1x16x16xf32> to vector<16x16xf32>
    %c117_879 = arith.constant 117 : index
    %1661 = memref.load %arg3[%c117_879] : memref<166xf32, #tpu.memory_space<smem>>
    %1662 = vector.broadcast %1661 : f32 to vector<16x16xf32>
    %1663 = arith.mulf %1662, %1660 : vector<16x16xf32>
    %1664 = arith.addf %1658, %1663 : vector<16x16xf32>
    %c1_880 = arith.constant 1 : index
    %c0_881 = arith.constant 0 : index
    %c1_882 = arith.constant 1 : index
    %c0_883 = arith.constant 0 : index
    %1665 = vector.load %arg6[%c1_880, %c0_881, %c1_882, %c0_883] : memref<2x7x22x16xf32, #tpu.memory_space<vmem>>, vector<1x1x16x16xf32>
    %1666 = vector.shape_cast %1665 : vector<1x1x16x16xf32> to vector<16x16xf32>
    %c124_884 = arith.constant 124 : index
    %1667 = memref.load %arg3[%c124_884] : memref<166xf32, #tpu.memory_space<smem>>
    %1668 = vector.broadcast %1667 : f32 to vector<16x16xf32>
    %1669 = arith.mulf %1668, %1666 : vector<16x16xf32>
    %1670 = arith.addf %1664, %1669 : vector<16x16xf32>
    %c1_885 = arith.constant 1 : index
    %c0_886 = arith.constant 0 : index
    %c2_887 = arith.constant 2 : index
    %c0_888 = arith.constant 0 : index
    %1671 = vector.load %arg6[%c1_885, %c0_886, %c2_887, %c0_888] : memref<2x7x22x16xf32, #tpu.memory_space<vmem>>, vector<1x1x16x16xf32>
    %1672 = vector.shape_cast %1671 : vector<1x1x16x16xf32> to vector<16x16xf32>
    %c131_889 = arith.constant 131 : index
    %1673 = memref.load %arg3[%c131_889] : memref<166xf32, #tpu.memory_space<smem>>
    %1674 = vector.broadcast %1673 : f32 to vector<16x16xf32>
    %1675 = arith.mulf %1674, %1672 : vector<16x16xf32>
    %1676 = arith.addf %1670, %1675 : vector<16x16xf32>
    %c1_890 = arith.constant 1 : index
    %c0_891 = arith.constant 0 : index
    %c3_892 = arith.constant 3 : index
    %c0_893 = arith.constant 0 : index
    %1677 = vector.load %arg6[%c1_890, %c0_891, %c3_892, %c0_893] : memref<2x7x22x16xf32, #tpu.memory_space<vmem>>, vector<1x1x16x16xf32>
    %1678 = vector.shape_cast %1677 : vector<1x1x16x16xf32> to vector<16x16xf32>
    %c138_894 = arith.constant 138 : index
    %1679 = memref.load %arg3[%c138_894] : memref<166xf32, #tpu.memory_space<smem>>
    %1680 = vector.broadcast %1679 : f32 to vector<16x16xf32>
    %1681 = arith.mulf %1680, %1678 : vector<16x16xf32>
    %1682 = arith.addf %1676, %1681 : vector<16x16xf32>
    %c1_895 = arith.constant 1 : index
    %c0_896 = arith.constant 0 : index
    %c4_897 = arith.constant 4 : index
    %c0_898 = arith.constant 0 : index
    %1683 = vector.load %arg6[%c1_895, %c0_896, %c4_897, %c0_898] : memref<2x7x22x16xf32, #tpu.memory_space<vmem>>, vector<1x1x16x16xf32>
    %1684 = vector.shape_cast %1683 : vector<1x1x16x16xf32> to vector<16x16xf32>
    %c145_899 = arith.constant 145 : index
    %1685 = memref.load %arg3[%c145_899] : memref<166xf32, #tpu.memory_space<smem>>
    %1686 = vector.broadcast %1685 : f32 to vector<16x16xf32>
    %1687 = arith.mulf %1686, %1684 : vector<16x16xf32>
    %1688 = arith.addf %1682, %1687 : vector<16x16xf32>
    %c1_900 = arith.constant 1 : index
    %c0_901 = arith.constant 0 : index
    %c5_902 = arith.constant 5 : index
    %c0_903 = arith.constant 0 : index
    %1689 = vector.load %arg6[%c1_900, %c0_901, %c5_902, %c0_903] : memref<2x7x22x16xf32, #tpu.memory_space<vmem>>, vector<1x1x16x16xf32>
    %1690 = vector.shape_cast %1689 : vector<1x1x16x16xf32> to vector<16x16xf32>
    %c152_904 = arith.constant 152 : index
    %1691 = memref.load %arg3[%c152_904] : memref<166xf32, #tpu.memory_space<smem>>
    %1692 = vector.broadcast %1691 : f32 to vector<16x16xf32>
    %1693 = arith.mulf %1692, %1690 : vector<16x16xf32>
    %1694 = arith.addf %1688, %1693 : vector<16x16xf32>
    %c1_905 = arith.constant 1 : index
    %c0_906 = arith.constant 0 : index
    %c6_907 = arith.constant 6 : index
    %c0_908 = arith.constant 0 : index
    %1695 = vector.load %arg6[%c1_905, %c0_906, %c6_907, %c0_908] : memref<2x7x22x16xf32, #tpu.memory_space<vmem>>, vector<1x1x16x16xf32>
    %1696 = vector.shape_cast %1695 : vector<1x1x16x16xf32> to vector<16x16xf32>
    %c159_909 = arith.constant 159 : index
    %1697 = memref.load %arg3[%c159_909] : memref<166xf32, #tpu.memory_space<smem>>
    %1698 = vector.broadcast %1697 : f32 to vector<16x16xf32>
    %1699 = arith.mulf %1698, %1696 : vector<16x16xf32>
    %1700 = arith.addf %1694, %1699 : vector<16x16xf32>
    %c1_910 = arith.constant 1 : index
    %c1_911 = arith.constant 1 : index
    %c0_912 = arith.constant 0 : index
    %c0_913 = arith.constant 0 : index
    %1701 = vector.load %arg6[%c1_910, %c1_911, %c0_912, %c0_913] : memref<2x7x22x16xf32, #tpu.memory_space<vmem>>, vector<1x1x16x16xf32>
    %1702 = vector.shape_cast %1701 : vector<1x1x16x16xf32> to vector<16x16xf32>
    %c118_914 = arith.constant 118 : index
    %1703 = memref.load %arg3[%c118_914] : memref<166xf32, #tpu.memory_space<smem>>
    %1704 = vector.broadcast %1703 : f32 to vector<16x16xf32>
    %1705 = arith.mulf %1704, %1702 : vector<16x16xf32>
    %1706 = arith.addf %1700, %1705 : vector<16x16xf32>
    %c1_915 = arith.constant 1 : index
    %c1_916 = arith.constant 1 : index
    %c1_917 = arith.constant 1 : index
    %c0_918 = arith.constant 0 : index
    %1707 = vector.load %arg6[%c1_915, %c1_916, %c1_917, %c0_918] : memref<2x7x22x16xf32, #tpu.memory_space<vmem>>, vector<1x1x16x16xf32>
    %1708 = vector.shape_cast %1707 : vector<1x1x16x16xf32> to vector<16x16xf32>
    %c125_919 = arith.constant 125 : index
    %1709 = memref.load %arg3[%c125_919] : memref<166xf32, #tpu.memory_space<smem>>
    %1710 = vector.broadcast %1709 : f32 to vector<16x16xf32>
    %1711 = arith.mulf %1710, %1708 : vector<16x16xf32>
    %1712 = arith.addf %1706, %1711 : vector<16x16xf32>
    %c43_920 = arith.constant 43 : index
    %1713 = memref.load %arg3[%c43_920] : memref<166xf32, #tpu.memory_space<smem>>
    %1714 = vector.broadcast %1713 : f32 to vector<16x16xf32>
    %1715 = arith.mulf %1714, %1708 : vector<16x16xf32>
    %1716 = arith.addf %1610, %1715 : vector<16x16xf32>
    %c1_921 = arith.constant 1 : index
    %c1_922 = arith.constant 1 : index
    %c2_923 = arith.constant 2 : index
    %c0_924 = arith.constant 0 : index
    %1717 = vector.load %arg6[%c1_921, %c1_922, %c2_923, %c0_924] : memref<2x7x22x16xf32, #tpu.memory_space<vmem>>, vector<1x1x16x16xf32>
    %1718 = vector.shape_cast %1717 : vector<1x1x16x16xf32> to vector<16x16xf32>
    %c132_925 = arith.constant 132 : index
    %1719 = memref.load %arg3[%c132_925] : memref<166xf32, #tpu.memory_space<smem>>
    %1720 = vector.broadcast %1719 : f32 to vector<16x16xf32>
    %1721 = arith.mulf %1720, %1718 : vector<16x16xf32>
    %1722 = arith.addf %1712, %1721 : vector<16x16xf32>
    %c48_926 = arith.constant 48 : index
    %1723 = memref.load %arg3[%c48_926] : memref<166xf32, #tpu.memory_space<smem>>
    %1724 = vector.broadcast %1723 : f32 to vector<16x16xf32>
    %1725 = arith.mulf %1724, %1718 : vector<16x16xf32>
    %1726 = arith.addf %1716, %1725 : vector<16x16xf32>
    %c1_927 = arith.constant 1 : index
    %c1_928 = arith.constant 1 : index
    %c3_929 = arith.constant 3 : index
    %c0_930 = arith.constant 0 : index
    %1727 = vector.load %arg6[%c1_927, %c1_928, %c3_929, %c0_930] : memref<2x7x22x16xf32, #tpu.memory_space<vmem>>, vector<1x1x16x16xf32>
    %1728 = vector.shape_cast %1727 : vector<1x1x16x16xf32> to vector<16x16xf32>
    %c139_931 = arith.constant 139 : index
    %1729 = memref.load %arg3[%c139_931] : memref<166xf32, #tpu.memory_space<smem>>
    %1730 = vector.broadcast %1729 : f32 to vector<16x16xf32>
    %1731 = arith.mulf %1730, %1728 : vector<16x16xf32>
    %1732 = arith.addf %1722, %1731 : vector<16x16xf32>
    %c53_932 = arith.constant 53 : index
    %1733 = memref.load %arg3[%c53_932] : memref<166xf32, #tpu.memory_space<smem>>
    %1734 = vector.broadcast %1733 : f32 to vector<16x16xf32>
    %1735 = arith.mulf %1734, %1728 : vector<16x16xf32>
    %1736 = arith.addf %1726, %1735 : vector<16x16xf32>
    %c1_933 = arith.constant 1 : index
    %c1_934 = arith.constant 1 : index
    %c4_935 = arith.constant 4 : index
    %c0_936 = arith.constant 0 : index
    %1737 = vector.load %arg6[%c1_933, %c1_934, %c4_935, %c0_936] : memref<2x7x22x16xf32, #tpu.memory_space<vmem>>, vector<1x1x16x16xf32>
    %1738 = vector.shape_cast %1737 : vector<1x1x16x16xf32> to vector<16x16xf32>
    %c146_937 = arith.constant 146 : index
    %1739 = memref.load %arg3[%c146_937] : memref<166xf32, #tpu.memory_space<smem>>
    %1740 = vector.broadcast %1739 : f32 to vector<16x16xf32>
    %1741 = arith.mulf %1740, %1738 : vector<16x16xf32>
    %1742 = arith.addf %1732, %1741 : vector<16x16xf32>
    %c58_938 = arith.constant 58 : index
    %1743 = memref.load %arg3[%c58_938] : memref<166xf32, #tpu.memory_space<smem>>
    %1744 = vector.broadcast %1743 : f32 to vector<16x16xf32>
    %1745 = arith.mulf %1744, %1738 : vector<16x16xf32>
    %1746 = arith.addf %1736, %1745 : vector<16x16xf32>
    %c1_939 = arith.constant 1 : index
    %c1_940 = arith.constant 1 : index
    %c5_941 = arith.constant 5 : index
    %c0_942 = arith.constant 0 : index
    %1747 = vector.load %arg6[%c1_939, %c1_940, %c5_941, %c0_942] : memref<2x7x22x16xf32, #tpu.memory_space<vmem>>, vector<1x1x16x16xf32>
    %1748 = vector.shape_cast %1747 : vector<1x1x16x16xf32> to vector<16x16xf32>
    %c153_943 = arith.constant 153 : index
    %1749 = memref.load %arg3[%c153_943] : memref<166xf32, #tpu.memory_space<smem>>
    %1750 = vector.broadcast %1749 : f32 to vector<16x16xf32>
    %1751 = arith.mulf %1750, %1748 : vector<16x16xf32>
    %1752 = arith.addf %1742, %1751 : vector<16x16xf32>
    %c63_944 = arith.constant 63 : index
    %1753 = memref.load %arg3[%c63_944] : memref<166xf32, #tpu.memory_space<smem>>
    %1754 = vector.broadcast %1753 : f32 to vector<16x16xf32>
    %1755 = arith.mulf %1754, %1748 : vector<16x16xf32>
    %1756 = arith.addf %1746, %1755 : vector<16x16xf32>
    %c1_945 = arith.constant 1 : index
    %c1_946 = arith.constant 1 : index
    %c6_947 = arith.constant 6 : index
    %c0_948 = arith.constant 0 : index
    %1757 = vector.load %arg6[%c1_945, %c1_946, %c6_947, %c0_948] : memref<2x7x22x16xf32, #tpu.memory_space<vmem>>, vector<1x1x16x16xf32>
    %1758 = vector.shape_cast %1757 : vector<1x1x16x16xf32> to vector<16x16xf32>
    %c160_949 = arith.constant 160 : index
    %1759 = memref.load %arg3[%c160_949] : memref<166xf32, #tpu.memory_space<smem>>
    %1760 = vector.broadcast %1759 : f32 to vector<16x16xf32>
    %1761 = arith.mulf %1760, %1758 : vector<16x16xf32>
    %1762 = arith.addf %1752, %1761 : vector<16x16xf32>
    %c1_950 = arith.constant 1 : index
    %c2_951 = arith.constant 2 : index
    %c0_952 = arith.constant 0 : index
    %c0_953 = arith.constant 0 : index
    %1763 = vector.load %arg6[%c1_950, %c2_951, %c0_952, %c0_953] : memref<2x7x22x16xf32, #tpu.memory_space<vmem>>, vector<1x1x16x16xf32>
    %1764 = vector.shape_cast %1763 : vector<1x1x16x16xf32> to vector<16x16xf32>
    %c119_954 = arith.constant 119 : index
    %1765 = memref.load %arg3[%c119_954] : memref<166xf32, #tpu.memory_space<smem>>
    %1766 = vector.broadcast %1765 : f32 to vector<16x16xf32>
    %1767 = arith.mulf %1766, %1764 : vector<16x16xf32>
    %1768 = arith.addf %1762, %1767 : vector<16x16xf32>
    %c1_955 = arith.constant 1 : index
    %c2_956 = arith.constant 2 : index
    %c1_957 = arith.constant 1 : index
    %c0_958 = arith.constant 0 : index
    %1769 = vector.load %arg6[%c1_955, %c2_956, %c1_957, %c0_958] : memref<2x7x22x16xf32, #tpu.memory_space<vmem>>, vector<1x1x16x16xf32>
    %1770 = vector.shape_cast %1769 : vector<1x1x16x16xf32> to vector<16x16xf32>
    %c126_959 = arith.constant 126 : index
    %1771 = memref.load %arg3[%c126_959] : memref<166xf32, #tpu.memory_space<smem>>
    %1772 = vector.broadcast %1771 : f32 to vector<16x16xf32>
    %1773 = arith.mulf %1772, %1770 : vector<16x16xf32>
    %1774 = arith.addf %1768, %1773 : vector<16x16xf32>
    %c44_960 = arith.constant 44 : index
    %1775 = memref.load %arg3[%c44_960] : memref<166xf32, #tpu.memory_space<smem>>
    %1776 = vector.broadcast %1775 : f32 to vector<16x16xf32>
    %1777 = arith.mulf %1776, %1770 : vector<16x16xf32>
    %1778 = arith.addf %1756, %1777 : vector<16x16xf32>
    %c1_961 = arith.constant 1 : index
    %c2_962 = arith.constant 2 : index
    %c2_963 = arith.constant 2 : index
    %c0_964 = arith.constant 0 : index
    %1779 = vector.load %arg6[%c1_961, %c2_962, %c2_963, %c0_964] : memref<2x7x22x16xf32, #tpu.memory_space<vmem>>, vector<1x1x16x16xf32>
    %1780 = vector.shape_cast %1779 : vector<1x1x16x16xf32> to vector<16x16xf32>
    %c133_965 = arith.constant 133 : index
    %1781 = memref.load %arg3[%c133_965] : memref<166xf32, #tpu.memory_space<smem>>
    %1782 = vector.broadcast %1781 : f32 to vector<16x16xf32>
    %1783 = arith.mulf %1782, %1780 : vector<16x16xf32>
    %1784 = arith.addf %1774, %1783 : vector<16x16xf32>
    %c49_966 = arith.constant 49 : index
    %1785 = memref.load %arg3[%c49_966] : memref<166xf32, #tpu.memory_space<smem>>
    %1786 = vector.broadcast %1785 : f32 to vector<16x16xf32>
    %1787 = arith.mulf %1786, %1780 : vector<16x16xf32>
    %1788 = arith.addf %1778, %1787 : vector<16x16xf32>
    %c9_967 = arith.constant 9 : index
    %1789 = memref.load %arg3[%c9_967] : memref<166xf32, #tpu.memory_space<smem>>
    %1790 = vector.broadcast %1789 : f32 to vector<16x16xf32>
    %1791 = arith.mulf %1790, %1780 : vector<16x16xf32>
    %1792 = arith.addf %1538, %1791 : vector<16x16xf32>
    %c1_968 = arith.constant 1 : index
    %c2_969 = arith.constant 2 : index
    %c3_970 = arith.constant 3 : index
    %c0_971 = arith.constant 0 : index
    %1793 = vector.load %arg6[%c1_968, %c2_969, %c3_970, %c0_971] : memref<2x7x22x16xf32, #tpu.memory_space<vmem>>, vector<1x1x16x16xf32>
    %1794 = vector.shape_cast %1793 : vector<1x1x16x16xf32> to vector<16x16xf32>
    %c140_972 = arith.constant 140 : index
    %1795 = memref.load %arg3[%c140_972] : memref<166xf32, #tpu.memory_space<smem>>
    %1796 = vector.broadcast %1795 : f32 to vector<16x16xf32>
    %1797 = arith.mulf %1796, %1794 : vector<16x16xf32>
    %1798 = arith.addf %1784, %1797 : vector<16x16xf32>
    %c54_973 = arith.constant 54 : index
    %1799 = memref.load %arg3[%c54_973] : memref<166xf32, #tpu.memory_space<smem>>
    %1800 = vector.broadcast %1799 : f32 to vector<16x16xf32>
    %1801 = arith.mulf %1800, %1794 : vector<16x16xf32>
    %1802 = arith.addf %1788, %1801 : vector<16x16xf32>
    %c12_974 = arith.constant 12 : index
    %1803 = memref.load %arg3[%c12_974] : memref<166xf32, #tpu.memory_space<smem>>
    %1804 = vector.broadcast %1803 : f32 to vector<16x16xf32>
    %1805 = arith.mulf %1804, %1794 : vector<16x16xf32>
    %1806 = arith.addf %1792, %1805 : vector<16x16xf32>
    %c1_975 = arith.constant 1 : index
    %c2_976 = arith.constant 2 : index
    %c4_977 = arith.constant 4 : index
    %c0_978 = arith.constant 0 : index
    %1807 = vector.load %arg6[%c1_975, %c2_976, %c4_977, %c0_978] : memref<2x7x22x16xf32, #tpu.memory_space<vmem>>, vector<1x1x16x16xf32>
    %1808 = vector.shape_cast %1807 : vector<1x1x16x16xf32> to vector<16x16xf32>
    %c147_979 = arith.constant 147 : index
    %1809 = memref.load %arg3[%c147_979] : memref<166xf32, #tpu.memory_space<smem>>
    %1810 = vector.broadcast %1809 : f32 to vector<16x16xf32>
    %1811 = arith.mulf %1810, %1808 : vector<16x16xf32>
    %1812 = arith.addf %1798, %1811 : vector<16x16xf32>
    %c59_980 = arith.constant 59 : index
    %1813 = memref.load %arg3[%c59_980] : memref<166xf32, #tpu.memory_space<smem>>
    %1814 = vector.broadcast %1813 : f32 to vector<16x16xf32>
    %1815 = arith.mulf %1814, %1808 : vector<16x16xf32>
    %1816 = arith.addf %1802, %1815 : vector<16x16xf32>
    %c15_981 = arith.constant 15 : index
    %1817 = memref.load %arg3[%c15_981] : memref<166xf32, #tpu.memory_space<smem>>
    %1818 = vector.broadcast %1817 : f32 to vector<16x16xf32>
    %1819 = arith.mulf %1818, %1808 : vector<16x16xf32>
    %1820 = arith.addf %1806, %1819 : vector<16x16xf32>
    %c1_982 = arith.constant 1 : index
    %c2_983 = arith.constant 2 : index
    %c5_984 = arith.constant 5 : index
    %c0_985 = arith.constant 0 : index
    %1821 = vector.load %arg6[%c1_982, %c2_983, %c5_984, %c0_985] : memref<2x7x22x16xf32, #tpu.memory_space<vmem>>, vector<1x1x16x16xf32>
    %1822 = vector.shape_cast %1821 : vector<1x1x16x16xf32> to vector<16x16xf32>
    %c154_986 = arith.constant 154 : index
    %1823 = memref.load %arg3[%c154_986] : memref<166xf32, #tpu.memory_space<smem>>
    %1824 = vector.broadcast %1823 : f32 to vector<16x16xf32>
    %1825 = arith.mulf %1824, %1822 : vector<16x16xf32>
    %1826 = arith.addf %1812, %1825 : vector<16x16xf32>
    %c64_987 = arith.constant 64 : index
    %1827 = memref.load %arg3[%c64_987] : memref<166xf32, #tpu.memory_space<smem>>
    %1828 = vector.broadcast %1827 : f32 to vector<16x16xf32>
    %1829 = arith.mulf %1828, %1822 : vector<16x16xf32>
    %1830 = arith.addf %1816, %1829 : vector<16x16xf32>
    %c1_988 = arith.constant 1 : index
    %c2_989 = arith.constant 2 : index
    %c6_990 = arith.constant 6 : index
    %c0_991 = arith.constant 0 : index
    %1831 = vector.load %arg6[%c1_988, %c2_989, %c6_990, %c0_991] : memref<2x7x22x16xf32, #tpu.memory_space<vmem>>, vector<1x1x16x16xf32>
    %1832 = vector.shape_cast %1831 : vector<1x1x16x16xf32> to vector<16x16xf32>
    %c161_992 = arith.constant 161 : index
    %1833 = memref.load %arg3[%c161_992] : memref<166xf32, #tpu.memory_space<smem>>
    %1834 = vector.broadcast %1833 : f32 to vector<16x16xf32>
    %1835 = arith.mulf %1834, %1832 : vector<16x16xf32>
    %1836 = arith.addf %1826, %1835 : vector<16x16xf32>
    %c1_993 = arith.constant 1 : index
    %c3_994 = arith.constant 3 : index
    %c0_995 = arith.constant 0 : index
    %c0_996 = arith.constant 0 : index
    %1837 = vector.load %arg6[%c1_993, %c3_994, %c0_995, %c0_996] : memref<2x7x22x16xf32, #tpu.memory_space<vmem>>, vector<1x1x16x16xf32>
    %1838 = vector.shape_cast %1837 : vector<1x1x16x16xf32> to vector<16x16xf32>
    %c120_997 = arith.constant 120 : index
    %1839 = memref.load %arg3[%c120_997] : memref<166xf32, #tpu.memory_space<smem>>
    %1840 = vector.broadcast %1839 : f32 to vector<16x16xf32>
    %1841 = arith.mulf %1840, %1838 : vector<16x16xf32>
    %1842 = arith.addf %1836, %1841 : vector<16x16xf32>
    %c1_998 = arith.constant 1 : index
    %c3_999 = arith.constant 3 : index
    %c1_1000 = arith.constant 1 : index
    %c0_1001 = arith.constant 0 : index
    %1843 = vector.load %arg6[%c1_998, %c3_999, %c1_1000, %c0_1001] : memref<2x7x22x16xf32, #tpu.memory_space<vmem>>, vector<1x1x16x16xf32>
    %1844 = vector.shape_cast %1843 : vector<1x1x16x16xf32> to vector<16x16xf32>
    %c127_1002 = arith.constant 127 : index
    %1845 = memref.load %arg3[%c127_1002] : memref<166xf32, #tpu.memory_space<smem>>
    %1846 = vector.broadcast %1845 : f32 to vector<16x16xf32>
    %1847 = arith.mulf %1846, %1844 : vector<16x16xf32>
    %1848 = arith.addf %1842, %1847 : vector<16x16xf32>
    %c45_1003 = arith.constant 45 : index
    %1849 = memref.load %arg3[%c45_1003] : memref<166xf32, #tpu.memory_space<smem>>
    %1850 = vector.broadcast %1849 : f32 to vector<16x16xf32>
    %1851 = arith.mulf %1850, %1844 : vector<16x16xf32>
    %1852 = arith.addf %1830, %1851 : vector<16x16xf32>
    %c1_1004 = arith.constant 1 : index
    %c3_1005 = arith.constant 3 : index
    %c2_1006 = arith.constant 2 : index
    %c0_1007 = arith.constant 0 : index
    %1853 = vector.load %arg6[%c1_1004, %c3_1005, %c2_1006, %c0_1007] : memref<2x7x22x16xf32, #tpu.memory_space<vmem>>, vector<1x1x16x16xf32>
    %1854 = vector.shape_cast %1853 : vector<1x1x16x16xf32> to vector<16x16xf32>
    %c134_1008 = arith.constant 134 : index
    %1855 = memref.load %arg3[%c134_1008] : memref<166xf32, #tpu.memory_space<smem>>
    %1856 = vector.broadcast %1855 : f32 to vector<16x16xf32>
    %1857 = arith.mulf %1856, %1854 : vector<16x16xf32>
    %1858 = arith.addf %1848, %1857 : vector<16x16xf32>
    %c50_1009 = arith.constant 50 : index
    %1859 = memref.load %arg3[%c50_1009] : memref<166xf32, #tpu.memory_space<smem>>
    %1860 = vector.broadcast %1859 : f32 to vector<16x16xf32>
    %1861 = arith.mulf %1860, %1854 : vector<16x16xf32>
    %1862 = arith.addf %1852, %1861 : vector<16x16xf32>
    %c10_1010 = arith.constant 10 : index
    %1863 = memref.load %arg3[%c10_1010] : memref<166xf32, #tpu.memory_space<smem>>
    %1864 = vector.broadcast %1863 : f32 to vector<16x16xf32>
    %1865 = arith.mulf %1864, %1854 : vector<16x16xf32>
    %1866 = arith.addf %1820, %1865 : vector<16x16xf32>
    %c1_1011 = arith.constant 1 : index
    %c3_1012 = arith.constant 3 : index
    %c3_1013 = arith.constant 3 : index
    %c0_1014 = arith.constant 0 : index
    %1867 = vector.load %arg6[%c1_1011, %c3_1012, %c3_1013, %c0_1014] : memref<2x7x22x16xf32, #tpu.memory_space<vmem>>, vector<1x1x16x16xf32>
    %1868 = vector.shape_cast %1867 : vector<1x1x16x16xf32> to vector<16x16xf32>
    %c141_1015 = arith.constant 141 : index
    %1869 = memref.load %arg3[%c141_1015] : memref<166xf32, #tpu.memory_space<smem>>
    %1870 = vector.broadcast %1869 : f32 to vector<16x16xf32>
    %1871 = arith.mulf %1870, %1868 : vector<16x16xf32>
    %1872 = arith.addf %1858, %1871 : vector<16x16xf32>
    %c55_1016 = arith.constant 55 : index
    %1873 = memref.load %arg3[%c55_1016] : memref<166xf32, #tpu.memory_space<smem>>
    %1874 = vector.broadcast %1873 : f32 to vector<16x16xf32>
    %1875 = arith.mulf %1874, %1868 : vector<16x16xf32>
    %1876 = arith.addf %1862, %1875 : vector<16x16xf32>
    %c13_1017 = arith.constant 13 : index
    %1877 = memref.load %arg3[%c13_1017] : memref<166xf32, #tpu.memory_space<smem>>
    %1878 = vector.broadcast %1877 : f32 to vector<16x16xf32>
    %1879 = arith.mulf %1878, %1868 : vector<16x16xf32>
    %1880 = arith.addf %1866, %1879 : vector<16x16xf32>
    %c1_1018 = arith.constant 1 : index
    %c3_1019 = arith.constant 3 : index
    %c4_1020 = arith.constant 4 : index
    %c0_1021 = arith.constant 0 : index
    %1881 = vector.load %arg6[%c1_1018, %c3_1019, %c4_1020, %c0_1021] : memref<2x7x22x16xf32, #tpu.memory_space<vmem>>, vector<1x1x16x16xf32>
    %1882 = vector.shape_cast %1881 : vector<1x1x16x16xf32> to vector<16x16xf32>
    %c148_1022 = arith.constant 148 : index
    %1883 = memref.load %arg3[%c148_1022] : memref<166xf32, #tpu.memory_space<smem>>
    %1884 = vector.broadcast %1883 : f32 to vector<16x16xf32>
    %1885 = arith.mulf %1884, %1882 : vector<16x16xf32>
    %1886 = arith.addf %1872, %1885 : vector<16x16xf32>
    %c60_1023 = arith.constant 60 : index
    %1887 = memref.load %arg3[%c60_1023] : memref<166xf32, #tpu.memory_space<smem>>
    %1888 = vector.broadcast %1887 : f32 to vector<16x16xf32>
    %1889 = arith.mulf %1888, %1882 : vector<16x16xf32>
    %1890 = arith.addf %1876, %1889 : vector<16x16xf32>
    %c16_1024 = arith.constant 16 : index
    %1891 = memref.load %arg3[%c16_1024] : memref<166xf32, #tpu.memory_space<smem>>
    %1892 = vector.broadcast %1891 : f32 to vector<16x16xf32>
    %1893 = arith.mulf %1892, %1882 : vector<16x16xf32>
    %1894 = arith.addf %1880, %1893 : vector<16x16xf32>
    %c1_1025 = arith.constant 1 : index
    %c3_1026 = arith.constant 3 : index
    %c5_1027 = arith.constant 5 : index
    %c0_1028 = arith.constant 0 : index
    %1895 = vector.load %arg6[%c1_1025, %c3_1026, %c5_1027, %c0_1028] : memref<2x7x22x16xf32, #tpu.memory_space<vmem>>, vector<1x1x16x16xf32>
    %1896 = vector.shape_cast %1895 : vector<1x1x16x16xf32> to vector<16x16xf32>
    %c155_1029 = arith.constant 155 : index
    %1897 = memref.load %arg3[%c155_1029] : memref<166xf32, #tpu.memory_space<smem>>
    %1898 = vector.broadcast %1897 : f32 to vector<16x16xf32>
    %1899 = arith.mulf %1898, %1896 : vector<16x16xf32>
    %1900 = arith.addf %1886, %1899 : vector<16x16xf32>
    %c65_1030 = arith.constant 65 : index
    %1901 = memref.load %arg3[%c65_1030] : memref<166xf32, #tpu.memory_space<smem>>
    %1902 = vector.broadcast %1901 : f32 to vector<16x16xf32>
    %1903 = arith.mulf %1902, %1896 : vector<16x16xf32>
    %1904 = arith.addf %1890, %1903 : vector<16x16xf32>
    %c1_1031 = arith.constant 1 : index
    %c3_1032 = arith.constant 3 : index
    %c6_1033 = arith.constant 6 : index
    %c0_1034 = arith.constant 0 : index
    %1905 = vector.load %arg6[%c1_1031, %c3_1032, %c6_1033, %c0_1034] : memref<2x7x22x16xf32, #tpu.memory_space<vmem>>, vector<1x1x16x16xf32>
    %1906 = vector.shape_cast %1905 : vector<1x1x16x16xf32> to vector<16x16xf32>
    %c162_1035 = arith.constant 162 : index
    %1907 = memref.load %arg3[%c162_1035] : memref<166xf32, #tpu.memory_space<smem>>
    %1908 = vector.broadcast %1907 : f32 to vector<16x16xf32>
    %1909 = arith.mulf %1908, %1906 : vector<16x16xf32>
    %1910 = arith.addf %1900, %1909 : vector<16x16xf32>
    %c1_1036 = arith.constant 1 : index
    %c4_1037 = arith.constant 4 : index
    %c0_1038 = arith.constant 0 : index
    %c0_1039 = arith.constant 0 : index
    %1911 = vector.load %arg6[%c1_1036, %c4_1037, %c0_1038, %c0_1039] : memref<2x7x22x16xf32, #tpu.memory_space<vmem>>, vector<1x1x16x16xf32>
    %1912 = vector.shape_cast %1911 : vector<1x1x16x16xf32> to vector<16x16xf32>
    %c121_1040 = arith.constant 121 : index
    %1913 = memref.load %arg3[%c121_1040] : memref<166xf32, #tpu.memory_space<smem>>
    %1914 = vector.broadcast %1913 : f32 to vector<16x16xf32>
    %1915 = arith.mulf %1914, %1912 : vector<16x16xf32>
    %1916 = arith.addf %1910, %1915 : vector<16x16xf32>
    %c1_1041 = arith.constant 1 : index
    %c4_1042 = arith.constant 4 : index
    %c1_1043 = arith.constant 1 : index
    %c0_1044 = arith.constant 0 : index
    %1917 = vector.load %arg6[%c1_1041, %c4_1042, %c1_1043, %c0_1044] : memref<2x7x22x16xf32, #tpu.memory_space<vmem>>, vector<1x1x16x16xf32>
    %1918 = vector.shape_cast %1917 : vector<1x1x16x16xf32> to vector<16x16xf32>
    %c128_1045 = arith.constant 128 : index
    %1919 = memref.load %arg3[%c128_1045] : memref<166xf32, #tpu.memory_space<smem>>
    %1920 = vector.broadcast %1919 : f32 to vector<16x16xf32>
    %1921 = arith.mulf %1920, %1918 : vector<16x16xf32>
    %1922 = arith.addf %1916, %1921 : vector<16x16xf32>
    %c46_1046 = arith.constant 46 : index
    %1923 = memref.load %arg3[%c46_1046] : memref<166xf32, #tpu.memory_space<smem>>
    %1924 = vector.broadcast %1923 : f32 to vector<16x16xf32>
    %1925 = arith.mulf %1924, %1918 : vector<16x16xf32>
    %1926 = arith.addf %1904, %1925 : vector<16x16xf32>
    %c1_1047 = arith.constant 1 : index
    %c4_1048 = arith.constant 4 : index
    %c2_1049 = arith.constant 2 : index
    %c0_1050 = arith.constant 0 : index
    %1927 = vector.load %arg6[%c1_1047, %c4_1048, %c2_1049, %c0_1050] : memref<2x7x22x16xf32, #tpu.memory_space<vmem>>, vector<1x1x16x16xf32>
    %1928 = vector.shape_cast %1927 : vector<1x1x16x16xf32> to vector<16x16xf32>
    %c135_1051 = arith.constant 135 : index
    %1929 = memref.load %arg3[%c135_1051] : memref<166xf32, #tpu.memory_space<smem>>
    %1930 = vector.broadcast %1929 : f32 to vector<16x16xf32>
    %1931 = arith.mulf %1930, %1928 : vector<16x16xf32>
    %1932 = arith.addf %1922, %1931 : vector<16x16xf32>
    %c51_1052 = arith.constant 51 : index
    %1933 = memref.load %arg3[%c51_1052] : memref<166xf32, #tpu.memory_space<smem>>
    %1934 = vector.broadcast %1933 : f32 to vector<16x16xf32>
    %1935 = arith.mulf %1934, %1928 : vector<16x16xf32>
    %1936 = arith.addf %1926, %1935 : vector<16x16xf32>
    %c11_1053 = arith.constant 11 : index
    %1937 = memref.load %arg3[%c11_1053] : memref<166xf32, #tpu.memory_space<smem>>
    %1938 = vector.broadcast %1937 : f32 to vector<16x16xf32>
    %1939 = arith.mulf %1938, %1928 : vector<16x16xf32>
    %1940 = arith.addf %1894, %1939 : vector<16x16xf32>
    %c1_1054 = arith.constant 1 : index
    %c4_1055 = arith.constant 4 : index
    %c3_1056 = arith.constant 3 : index
    %c0_1057 = arith.constant 0 : index
    %1941 = vector.load %arg6[%c1_1054, %c4_1055, %c3_1056, %c0_1057] : memref<2x7x22x16xf32, #tpu.memory_space<vmem>>, vector<1x1x16x16xf32>
    %1942 = vector.shape_cast %1941 : vector<1x1x16x16xf32> to vector<16x16xf32>
    %c142_1058 = arith.constant 142 : index
    %1943 = memref.load %arg3[%c142_1058] : memref<166xf32, #tpu.memory_space<smem>>
    %1944 = vector.broadcast %1943 : f32 to vector<16x16xf32>
    %1945 = arith.mulf %1944, %1942 : vector<16x16xf32>
    %1946 = arith.addf %1932, %1945 : vector<16x16xf32>
    %c56_1059 = arith.constant 56 : index
    %1947 = memref.load %arg3[%c56_1059] : memref<166xf32, #tpu.memory_space<smem>>
    %1948 = vector.broadcast %1947 : f32 to vector<16x16xf32>
    %1949 = arith.mulf %1948, %1942 : vector<16x16xf32>
    %1950 = arith.addf %1936, %1949 : vector<16x16xf32>
    %c14_1060 = arith.constant 14 : index
    %1951 = memref.load %arg3[%c14_1060] : memref<166xf32, #tpu.memory_space<smem>>
    %1952 = vector.broadcast %1951 : f32 to vector<16x16xf32>
    %1953 = arith.mulf %1952, %1942 : vector<16x16xf32>
    %1954 = arith.addf %1940, %1953 : vector<16x16xf32>
    %c1_1061 = arith.constant 1 : index
    %c4_1062 = arith.constant 4 : index
    %c4_1063 = arith.constant 4 : index
    %c0_1064 = arith.constant 0 : index
    %1955 = vector.load %arg6[%c1_1061, %c4_1062, %c4_1063, %c0_1064] : memref<2x7x22x16xf32, #tpu.memory_space<vmem>>, vector<1x1x16x16xf32>
    %1956 = vector.shape_cast %1955 : vector<1x1x16x16xf32> to vector<16x16xf32>
    %c149_1065 = arith.constant 149 : index
    %1957 = memref.load %arg3[%c149_1065] : memref<166xf32, #tpu.memory_space<smem>>
    %1958 = vector.broadcast %1957 : f32 to vector<16x16xf32>
    %1959 = arith.mulf %1958, %1956 : vector<16x16xf32>
    %1960 = arith.addf %1946, %1959 : vector<16x16xf32>
    %c61_1066 = arith.constant 61 : index
    %1961 = memref.load %arg3[%c61_1066] : memref<166xf32, #tpu.memory_space<smem>>
    %1962 = vector.broadcast %1961 : f32 to vector<16x16xf32>
    %1963 = arith.mulf %1962, %1956 : vector<16x16xf32>
    %1964 = arith.addf %1950, %1963 : vector<16x16xf32>
    %c17_1067 = arith.constant 17 : index
    %1965 = memref.load %arg3[%c17_1067] : memref<166xf32, #tpu.memory_space<smem>>
    %1966 = vector.broadcast %1965 : f32 to vector<16x16xf32>
    %1967 = arith.mulf %1966, %1956 : vector<16x16xf32>
    %1968 = arith.addf %1954, %1967 : vector<16x16xf32>
    %c1_1068 = arith.constant 1 : index
    %c4_1069 = arith.constant 4 : index
    %c5_1070 = arith.constant 5 : index
    %c0_1071 = arith.constant 0 : index
    %1969 = vector.load %arg6[%c1_1068, %c4_1069, %c5_1070, %c0_1071] : memref<2x7x22x16xf32, #tpu.memory_space<vmem>>, vector<1x1x16x16xf32>
    %1970 = vector.shape_cast %1969 : vector<1x1x16x16xf32> to vector<16x16xf32>
    %c156_1072 = arith.constant 156 : index
    %1971 = memref.load %arg3[%c156_1072] : memref<166xf32, #tpu.memory_space<smem>>
    %1972 = vector.broadcast %1971 : f32 to vector<16x16xf32>
    %1973 = arith.mulf %1972, %1970 : vector<16x16xf32>
    %1974 = arith.addf %1960, %1973 : vector<16x16xf32>
    %c66_1073 = arith.constant 66 : index
    %1975 = memref.load %arg3[%c66_1073] : memref<166xf32, #tpu.memory_space<smem>>
    %1976 = vector.broadcast %1975 : f32 to vector<16x16xf32>
    %1977 = arith.mulf %1976, %1970 : vector<16x16xf32>
    %1978 = arith.addf %1964, %1977 : vector<16x16xf32>
    %c1_1074 = arith.constant 1 : index
    %c4_1075 = arith.constant 4 : index
    %c6_1076 = arith.constant 6 : index
    %c0_1077 = arith.constant 0 : index
    %1979 = vector.load %arg6[%c1_1074, %c4_1075, %c6_1076, %c0_1077] : memref<2x7x22x16xf32, #tpu.memory_space<vmem>>, vector<1x1x16x16xf32>
    %1980 = vector.shape_cast %1979 : vector<1x1x16x16xf32> to vector<16x16xf32>
    %c163_1078 = arith.constant 163 : index
    %1981 = memref.load %arg3[%c163_1078] : memref<166xf32, #tpu.memory_space<smem>>
    %1982 = vector.broadcast %1981 : f32 to vector<16x16xf32>
    %1983 = arith.mulf %1982, %1980 : vector<16x16xf32>
    %1984 = arith.addf %1974, %1983 : vector<16x16xf32>
    %c1_1079 = arith.constant 1 : index
    %c5_1080 = arith.constant 5 : index
    %c0_1081 = arith.constant 0 : index
    %c0_1082 = arith.constant 0 : index
    %1985 = vector.load %arg6[%c1_1079, %c5_1080, %c0_1081, %c0_1082] : memref<2x7x22x16xf32, #tpu.memory_space<vmem>>, vector<1x1x16x16xf32>
    %1986 = vector.shape_cast %1985 : vector<1x1x16x16xf32> to vector<16x16xf32>
    %c122_1083 = arith.constant 122 : index
    %1987 = memref.load %arg3[%c122_1083] : memref<166xf32, #tpu.memory_space<smem>>
    %1988 = vector.broadcast %1987 : f32 to vector<16x16xf32>
    %1989 = arith.mulf %1988, %1986 : vector<16x16xf32>
    %1990 = arith.addf %1984, %1989 : vector<16x16xf32>
    %c1_1084 = arith.constant 1 : index
    %c5_1085 = arith.constant 5 : index
    %c1_1086 = arith.constant 1 : index
    %c0_1087 = arith.constant 0 : index
    %1991 = vector.load %arg6[%c1_1084, %c5_1085, %c1_1086, %c0_1087] : memref<2x7x22x16xf32, #tpu.memory_space<vmem>>, vector<1x1x16x16xf32>
    %1992 = vector.shape_cast %1991 : vector<1x1x16x16xf32> to vector<16x16xf32>
    %c129_1088 = arith.constant 129 : index
    %1993 = memref.load %arg3[%c129_1088] : memref<166xf32, #tpu.memory_space<smem>>
    %1994 = vector.broadcast %1993 : f32 to vector<16x16xf32>
    %1995 = arith.mulf %1994, %1992 : vector<16x16xf32>
    %1996 = arith.addf %1990, %1995 : vector<16x16xf32>
    %c47_1089 = arith.constant 47 : index
    %1997 = memref.load %arg3[%c47_1089] : memref<166xf32, #tpu.memory_space<smem>>
    %1998 = vector.broadcast %1997 : f32 to vector<16x16xf32>
    %1999 = arith.mulf %1998, %1992 : vector<16x16xf32>
    %2000 = arith.addf %1978, %1999 : vector<16x16xf32>
    %c1_1090 = arith.constant 1 : index
    %c5_1091 = arith.constant 5 : index
    %c2_1092 = arith.constant 2 : index
    %c0_1093 = arith.constant 0 : index
    %2001 = vector.load %arg6[%c1_1090, %c5_1091, %c2_1092, %c0_1093] : memref<2x7x22x16xf32, #tpu.memory_space<vmem>>, vector<1x1x16x16xf32>
    %2002 = vector.shape_cast %2001 : vector<1x1x16x16xf32> to vector<16x16xf32>
    %c136_1094 = arith.constant 136 : index
    %2003 = memref.load %arg3[%c136_1094] : memref<166xf32, #tpu.memory_space<smem>>
    %2004 = vector.broadcast %2003 : f32 to vector<16x16xf32>
    %2005 = arith.mulf %2004, %2002 : vector<16x16xf32>
    %2006 = arith.addf %1996, %2005 : vector<16x16xf32>
    %c52_1095 = arith.constant 52 : index
    %2007 = memref.load %arg3[%c52_1095] : memref<166xf32, #tpu.memory_space<smem>>
    %2008 = vector.broadcast %2007 : f32 to vector<16x16xf32>
    %2009 = arith.mulf %2008, %2002 : vector<16x16xf32>
    %2010 = arith.addf %2000, %2009 : vector<16x16xf32>
    %c1_1096 = arith.constant 1 : index
    %c5_1097 = arith.constant 5 : index
    %c3_1098 = arith.constant 3 : index
    %c0_1099 = arith.constant 0 : index
    %2011 = vector.load %arg6[%c1_1096, %c5_1097, %c3_1098, %c0_1099] : memref<2x7x22x16xf32, #tpu.memory_space<vmem>>, vector<1x1x16x16xf32>
    %2012 = vector.shape_cast %2011 : vector<1x1x16x16xf32> to vector<16x16xf32>
    %c143_1100 = arith.constant 143 : index
    %2013 = memref.load %arg3[%c143_1100] : memref<166xf32, #tpu.memory_space<smem>>
    %2014 = vector.broadcast %2013 : f32 to vector<16x16xf32>
    %2015 = arith.mulf %2014, %2012 : vector<16x16xf32>
    %2016 = arith.addf %2006, %2015 : vector<16x16xf32>
    %c57_1101 = arith.constant 57 : index
    %2017 = memref.load %arg3[%c57_1101] : memref<166xf32, #tpu.memory_space<smem>>
    %2018 = vector.broadcast %2017 : f32 to vector<16x16xf32>
    %2019 = arith.mulf %2018, %2012 : vector<16x16xf32>
    %2020 = arith.addf %2010, %2019 : vector<16x16xf32>
    %c1_1102 = arith.constant 1 : index
    %c5_1103 = arith.constant 5 : index
    %c4_1104 = arith.constant 4 : index
    %c0_1105 = arith.constant 0 : index
    %2021 = vector.load %arg6[%c1_1102, %c5_1103, %c4_1104, %c0_1105] : memref<2x7x22x16xf32, #tpu.memory_space<vmem>>, vector<1x1x16x16xf32>
    %2022 = vector.shape_cast %2021 : vector<1x1x16x16xf32> to vector<16x16xf32>
    %c150_1106 = arith.constant 150 : index
    %2023 = memref.load %arg3[%c150_1106] : memref<166xf32, #tpu.memory_space<smem>>
    %2024 = vector.broadcast %2023 : f32 to vector<16x16xf32>
    %2025 = arith.mulf %2024, %2022 : vector<16x16xf32>
    %2026 = arith.addf %2016, %2025 : vector<16x16xf32>
    %c62_1107 = arith.constant 62 : index
    %2027 = memref.load %arg3[%c62_1107] : memref<166xf32, #tpu.memory_space<smem>>
    %2028 = vector.broadcast %2027 : f32 to vector<16x16xf32>
    %2029 = arith.mulf %2028, %2022 : vector<16x16xf32>
    %2030 = arith.addf %2020, %2029 : vector<16x16xf32>
    %c1_1108 = arith.constant 1 : index
    %c5_1109 = arith.constant 5 : index
    %c5_1110 = arith.constant 5 : index
    %c0_1111 = arith.constant 0 : index
    %2031 = vector.load %arg6[%c1_1108, %c5_1109, %c5_1110, %c0_1111] : memref<2x7x22x16xf32, #tpu.memory_space<vmem>>, vector<1x1x16x16xf32>
    %2032 = vector.shape_cast %2031 : vector<1x1x16x16xf32> to vector<16x16xf32>
    %c157_1112 = arith.constant 157 : index
    %2033 = memref.load %arg3[%c157_1112] : memref<166xf32, #tpu.memory_space<smem>>
    %2034 = vector.broadcast %2033 : f32 to vector<16x16xf32>
    %2035 = arith.mulf %2034, %2032 : vector<16x16xf32>
    %2036 = arith.addf %2026, %2035 : vector<16x16xf32>
    %c67_1113 = arith.constant 67 : index
    %2037 = memref.load %arg3[%c67_1113] : memref<166xf32, #tpu.memory_space<smem>>
    %2038 = vector.broadcast %2037 : f32 to vector<16x16xf32>
    %2039 = arith.mulf %2038, %2032 : vector<16x16xf32>
    %2040 = arith.addf %2030, %2039 : vector<16x16xf32>
    %c1_1114 = arith.constant 1 : index
    %c5_1115 = arith.constant 5 : index
    %c6_1116 = arith.constant 6 : index
    %c0_1117 = arith.constant 0 : index
    %2041 = vector.load %arg6[%c1_1114, %c5_1115, %c6_1116, %c0_1117] : memref<2x7x22x16xf32, #tpu.memory_space<vmem>>, vector<1x1x16x16xf32>
    %2042 = vector.shape_cast %2041 : vector<1x1x16x16xf32> to vector<16x16xf32>
    %c164_1118 = arith.constant 164 : index
    %2043 = memref.load %arg3[%c164_1118] : memref<166xf32, #tpu.memory_space<smem>>
    %2044 = vector.broadcast %2043 : f32 to vector<16x16xf32>
    %2045 = arith.mulf %2044, %2042 : vector<16x16xf32>
    %2046 = arith.addf %2036, %2045 : vector<16x16xf32>
    %c1_1119 = arith.constant 1 : index
    %c6_1120 = arith.constant 6 : index
    %c0_1121 = arith.constant 0 : index
    %c0_1122 = arith.constant 0 : index
    %2047 = vector.load %arg6[%c1_1119, %c6_1120, %c0_1121, %c0_1122] : memref<2x7x22x16xf32, #tpu.memory_space<vmem>>, vector<1x1x16x16xf32>
    %2048 = vector.shape_cast %2047 : vector<1x1x16x16xf32> to vector<16x16xf32>
    %c123_1123 = arith.constant 123 : index
    %2049 = memref.load %arg3[%c123_1123] : memref<166xf32, #tpu.memory_space<smem>>
    %2050 = vector.broadcast %2049 : f32 to vector<16x16xf32>
    %2051 = arith.mulf %2050, %2048 : vector<16x16xf32>
    %2052 = arith.addf %2046, %2051 : vector<16x16xf32>
    %c1_1124 = arith.constant 1 : index
    %c6_1125 = arith.constant 6 : index
    %c1_1126 = arith.constant 1 : index
    %c0_1127 = arith.constant 0 : index
    %2053 = vector.load %arg6[%c1_1124, %c6_1125, %c1_1126, %c0_1127] : memref<2x7x22x16xf32, #tpu.memory_space<vmem>>, vector<1x1x16x16xf32>
    %2054 = vector.shape_cast %2053 : vector<1x1x16x16xf32> to vector<16x16xf32>
    %c130_1128 = arith.constant 130 : index
    %2055 = memref.load %arg3[%c130_1128] : memref<166xf32, #tpu.memory_space<smem>>
    %2056 = vector.broadcast %2055 : f32 to vector<16x16xf32>
    %2057 = arith.mulf %2056, %2054 : vector<16x16xf32>
    %2058 = arith.addf %2052, %2057 : vector<16x16xf32>
    %c1_1129 = arith.constant 1 : index
    %c6_1130 = arith.constant 6 : index
    %c2_1131 = arith.constant 2 : index
    %c0_1132 = arith.constant 0 : index
    %2059 = vector.load %arg6[%c1_1129, %c6_1130, %c2_1131, %c0_1132] : memref<2x7x22x16xf32, #tpu.memory_space<vmem>>, vector<1x1x16x16xf32>
    %2060 = vector.shape_cast %2059 : vector<1x1x16x16xf32> to vector<16x16xf32>
    %c137_1133 = arith.constant 137 : index
    %2061 = memref.load %arg3[%c137_1133] : memref<166xf32, #tpu.memory_space<smem>>
    %2062 = vector.broadcast %2061 : f32 to vector<16x16xf32>
    %2063 = arith.mulf %2062, %2060 : vector<16x16xf32>
    %2064 = arith.addf %2058, %2063 : vector<16x16xf32>
    %c1_1134 = arith.constant 1 : index
    %c6_1135 = arith.constant 6 : index
    %c3_1136 = arith.constant 3 : index
    %c0_1137 = arith.constant 0 : index
    %2065 = vector.load %arg6[%c1_1134, %c6_1135, %c3_1136, %c0_1137] : memref<2x7x22x16xf32, #tpu.memory_space<vmem>>, vector<1x1x16x16xf32>
    %2066 = vector.shape_cast %2065 : vector<1x1x16x16xf32> to vector<16x16xf32>
    %c144_1138 = arith.constant 144 : index
    %2067 = memref.load %arg3[%c144_1138] : memref<166xf32, #tpu.memory_space<smem>>
    %2068 = vector.broadcast %2067 : f32 to vector<16x16xf32>
    %2069 = arith.mulf %2068, %2066 : vector<16x16xf32>
    %2070 = arith.addf %2064, %2069 : vector<16x16xf32>
    %c1_1139 = arith.constant 1 : index
    %c6_1140 = arith.constant 6 : index
    %c4_1141 = arith.constant 4 : index
    %c0_1142 = arith.constant 0 : index
    %2071 = vector.load %arg6[%c1_1139, %c6_1140, %c4_1141, %c0_1142] : memref<2x7x22x16xf32, #tpu.memory_space<vmem>>, vector<1x1x16x16xf32>
    %2072 = vector.shape_cast %2071 : vector<1x1x16x16xf32> to vector<16x16xf32>
    %c151_1143 = arith.constant 151 : index
    %2073 = memref.load %arg3[%c151_1143] : memref<166xf32, #tpu.memory_space<smem>>
    %2074 = vector.broadcast %2073 : f32 to vector<16x16xf32>
    %2075 = arith.mulf %2074, %2072 : vector<16x16xf32>
    %2076 = arith.addf %2070, %2075 : vector<16x16xf32>
    %c1_1144 = arith.constant 1 : index
    %c6_1145 = arith.constant 6 : index
    %c5_1146 = arith.constant 5 : index
    %c0_1147 = arith.constant 0 : index
    %2077 = vector.load %arg6[%c1_1144, %c6_1145, %c5_1146, %c0_1147] : memref<2x7x22x16xf32, #tpu.memory_space<vmem>>, vector<1x1x16x16xf32>
    %2078 = vector.shape_cast %2077 : vector<1x1x16x16xf32> to vector<16x16xf32>
    %c158_1148 = arith.constant 158 : index
    %2079 = memref.load %arg3[%c158_1148] : memref<166xf32, #tpu.memory_space<smem>>
    %2080 = vector.broadcast %2079 : f32 to vector<16x16xf32>
    %2081 = arith.mulf %2080, %2078 : vector<16x16xf32>
    %2082 = arith.addf %2076, %2081 : vector<16x16xf32>
    %c1_1149 = arith.constant 1 : index
    %c6_1150 = arith.constant 6 : index
    %c6_1151 = arith.constant 6 : index
    %c0_1152 = arith.constant 0 : index
    %2083 = vector.load %arg6[%c1_1149, %c6_1150, %c6_1151, %c0_1152] : memref<2x7x22x16xf32, #tpu.memory_space<vmem>>, vector<1x1x16x16xf32>
    %2084 = vector.shape_cast %2083 : vector<1x1x16x16xf32> to vector<16x16xf32>
    %c165_1153 = arith.constant 165 : index
    %2085 = memref.load %arg3[%c165_1153] : memref<166xf32, #tpu.memory_space<smem>>
    %2086 = vector.broadcast %2085 : f32 to vector<16x16xf32>
    %2087 = arith.mulf %2086, %2084 : vector<16x16xf32>
    %2088 = arith.addf %2082, %2087 : vector<16x16xf32>
    %c3_1154 = arith.constant 3 : index
    %2089 = memref.load %arg4[%c3_1154] : memref<7xf32, #tpu.memory_space<smem>>
    %cst_1155 = arith.constant 0.000000e+00 : f32
    %2090 = vector.broadcast %cst_1155 : f32 to vector<16x16xf32>
    %2091 = arith.maximumf %1968, %2090 : vector<16x16xf32>
    %2092 = vector.broadcast %2089 : f32 to vector<16x16xf32>
    %2093 = arith.mulf %2092, %2091 : vector<16x16xf32>
    %c4_1156 = arith.constant 4 : index
    %2094 = memref.load %arg4[%c4_1156] : memref<7xf32, #tpu.memory_space<smem>>
    %cst_1157 = arith.constant 0.000000e+00 : f32
    %2095 = vector.broadcast %cst_1157 : f32 to vector<16x16xf32>
    %2096 = arith.maximumf %2040, %2095 : vector<16x16xf32>
    %2097 = vector.broadcast %2094 : f32 to vector<16x16xf32>
    %2098 = arith.mulf %2097, %2096 : vector<16x16xf32>
    %2099 = arith.addf %2093, %2098 : vector<16x16xf32>
    %c5_1158 = arith.constant 5 : index
    %2100 = memref.load %arg4[%c5_1158] : memref<7xf32, #tpu.memory_space<smem>>
    %cst_1159 = arith.constant 0.000000e+00 : f32
    %2101 = vector.broadcast %cst_1159 : f32 to vector<16x16xf32>
    %2102 = arith.maximumf %2088, %2101 : vector<16x16xf32>
    %2103 = vector.broadcast %2100 : f32 to vector<16x16xf32>
    %2104 = arith.mulf %2103, %2102 : vector<16x16xf32>
    %2105 = arith.addf %2099, %2104 : vector<16x16xf32>
    %c6_1160 = arith.constant 6 : index
    %2106 = memref.load %arg4[%c6_1160] : memref<7xf32, #tpu.memory_space<smem>>
    %2107 = vector.broadcast %2106 : f32 to vector<16x16xf32>
    %2108 = arith.addf %2105, %2107 : vector<16x16xf32>
    %2109 = arith.negf %2108 : vector<16x16xf32>
    %2110 = math.exp %2109 : vector<16x16xf32>
    %cst_1161 = arith.constant 1.000000e+00 : f32
    %2111 = vector.broadcast %cst_1161 : f32 to vector<16x16xf32>
    %2112 = arith.addf %2111, %2110 : vector<16x16xf32>
    %2113 = arith.divf %2111, %2112 : vector<16x16xf32>
    %2114 = vector.extract_strided_slice %2113 {offsets = [0, 0], sizes = [1, 16], strides = [1, 1]} : vector<16x16xf32> to vector<1x16xf32>
    %2115 = vector.extract_strided_slice %2113 {offsets = [1, 0], sizes = [1, 16], strides = [1, 1]} : vector<16x16xf32> to vector<1x16xf32>
    %2116 = vector.extract_strided_slice %2113 {offsets = [2, 0], sizes = [1, 16], strides = [1, 1]} : vector<16x16xf32> to vector<1x16xf32>
    %2117 = vector.extract_strided_slice %2113 {offsets = [3, 0], sizes = [1, 16], strides = [1, 1]} : vector<16x16xf32> to vector<1x16xf32>
    %2118 = vector.extract_strided_slice %2113 {offsets = [4, 0], sizes = [1, 16], strides = [1, 1]} : vector<16x16xf32> to vector<1x16xf32>
    %2119 = vector.extract_strided_slice %2113 {offsets = [5, 0], sizes = [1, 16], strides = [1, 1]} : vector<16x16xf32> to vector<1x16xf32>
    %2120 = vector.extract_strided_slice %2113 {offsets = [6, 0], sizes = [1, 16], strides = [1, 1]} : vector<16x16xf32> to vector<1x16xf32>
    %2121 = vector.extract_strided_slice %2113 {offsets = [7, 0], sizes = [1, 16], strides = [1, 1]} : vector<16x16xf32> to vector<1x16xf32>
    %2122 = vector.extract_strided_slice %2113 {offsets = [8, 0], sizes = [1, 16], strides = [1, 1]} : vector<16x16xf32> to vector<1x16xf32>
    %2123 = vector.extract_strided_slice %2113 {offsets = [9, 0], sizes = [1, 16], strides = [1, 1]} : vector<16x16xf32> to vector<1x16xf32>
    %2124 = vector.extract_strided_slice %2113 {offsets = [10, 0], sizes = [1, 16], strides = [1, 1]} : vector<16x16xf32> to vector<1x16xf32>
    %2125 = vector.extract_strided_slice %2113 {offsets = [11, 0], sizes = [1, 16], strides = [1, 1]} : vector<16x16xf32> to vector<1x16xf32>
    %2126 = vector.extract_strided_slice %2113 {offsets = [12, 0], sizes = [1, 16], strides = [1, 1]} : vector<16x16xf32> to vector<1x16xf32>
    %2127 = vector.extract_strided_slice %2113 {offsets = [13, 0], sizes = [1, 16], strides = [1, 1]} : vector<16x16xf32> to vector<1x16xf32>
    %2128 = vector.extract_strided_slice %2113 {offsets = [14, 0], sizes = [1, 16], strides = [1, 1]} : vector<16x16xf32> to vector<1x16xf32>
    %2129 = vector.extract_strided_slice %2113 {offsets = [15, 0], sizes = [1, 16], strides = [1, 1]} : vector<16x16xf32> to vector<1x16xf32>
    %2130 = tpu.concatenate %2114, %2115, %2116, %2117, %2118, %2119, %2120, %2121, %2122, %2123, %2124, %2125, %2126, %2127, %2128, %2129 in 1 : vector<1x16xf32>, vector<1x16xf32>, vector<1x16xf32>, vector<1x16xf32>, vector<1x16xf32>, vector<1x16xf32>, vector<1x16xf32>, vector<1x16xf32>, vector<1x16xf32>, vector<1x16xf32>, vector<1x16xf32>, vector<1x16xf32>, vector<1x16xf32>, vector<1x16xf32>, vector<1x16xf32>, vector<1x16xf32> -> vector<1x256xf32>
    %c1_1162 = arith.constant 1 : index
    %c0_1163 = arith.constant 0 : index
    %c0_1164 = arith.constant 0 : index
    %2131 = vector.load %arg5[%c1_1162, %c0_1163, %c0_1164] : memref<2x32x256xf32, #tpu.memory_space<vmem>>, vector<1x32x256xf32>
    %2132 = vector.shape_cast %2131 : vector<1x32x256xf32> to vector<32x256xf32>
    %2133 = vector.broadcast %2130 : vector<1x256xf32> to vector<32x256xf32>
    %2134 = arith.mulf %2132, %2133 : vector<32x256xf32>
    %c1_1165 = arith.constant 1 : index
    %c0_1166 = arith.constant 0 : index
    %c0_1167 = arith.constant 0 : index
    %2135 = vector.load %arg5[%c1_1165, %c0_1166, %c0_1167] : memref<2x32x256xf32, #tpu.memory_space<vmem>>, vector<1x32x256xf32>
    %2136 = vector.shape_cast %2135 : vector<1x32x256xf32> to vector<32x256xf32>
    %2137 = vector.shape_cast %2134 : vector<32x256xf32> to vector<1x32x256xf32>
    tpu.vector_store %arg5[%c1_1165, %c0_1166, %c0_1167], %2137 {strides = array<i32>} : memref<2x32x256xf32, #tpu.memory_space<vmem>>, vector<1x32x256xf32>,
    return
  }
}

</mosaic_0001>

<llo_original>
// kernel: mulfcam_pallas.1
$region0: #{mulfcam_pallas.1}
  #allocation0 [shape = 'u32[]', space=smem, size = 0x4, offset = 0x4, fixed_abs, tag = 'smem constant byte address 0x4 - core index']
  #allocation1 [shape = 'u32[144,128]{1,0:T(1,128)}', space=vmem, size = 0x12000, scoped, tag = 'internal scratch']
  #allocation2 [shape = 'f32[2,7,22,16]{3,2,1,0:T(8,128)}', space=vmem, size = 0x2a000, scoped, tag = 'scratch operand']
  %s0 = inlined_call_operand.vmem [shape: f32[2,32,256], index: 0, kind: input, shape index: {}]
  %s1 = inlined_call_operand.vmem [shape: f32[32,2], index: 1, kind: input, shape index: {}]
  %s2 = inlined_call_operand.vmem [shape: f32[32,2], index: 2, kind: input, shape index: {}]
  %s3 = inlined_call_operand.vmem [shape: f32[166], index: 3, kind: input, shape index: {}]
  %s4 = inlined_call_operand.vmem [shape: f32[7], index: 4, kind: input, shape index: {}]
  %s5 = inlined_call_operand.vmem [shape: f32[2,32,256], index: 5, kind: output, shape index: {}]
  %s6 = sld [smem:[#allocation0]]
  $region38: #{mulfcam_pallas.1} parent=0
    _
  %s8 = ssub.s32 1, %s6
  %s9 = scalar_select 0, %s8, %s6
  $region1: #{mulfcam_pallas.1} parent=0
    #allocation3 [shape = 'u8[1024]{0}', space=smem, size = 0x400, scoped, tag = 'input window, operand 3, single buffered']
    #allocation4 [shape = 's32[1]{0}', space=sflag, size = 0x4, scoped, tag = 'scoped memory for mulfcam_pallas.1']
    #allocation5 [shape = 'u8[512]{0}', space=smem, size = 0x200, scoped, tag = 'input window, operand 4, single buffered']
    #allocation6 [shape = 's32[1]{0}', space=sflag, size = 0x4, scoped, tag = 'scoped memory for mulfcam_pallas.1']
    %10 = vsyncpa [#allocation4], 0
    %11 = vsyncpa [#allocation6], 0
    // Predicated region
    $region2: #{mulfcam_pallas.1} parent=1 // pred_check
      _
    $region3: #{mulfcam_pallas.1} parent=1 // pred_check_branch
      %13 = sbr.rel (0) target = $region5
    $region4: #{mulfcam_pallas.1} parent=1 // pred_region
      _
    $region5: #{mulfcam_pallas.1} parent=1 // pred_fallthru
      _
    // Predicated region
    $region6: #{mulfcam_pallas.1} parent=1 // pred_check
      _
    $region7: #{mulfcam_pallas.1} parent=1 // pred_check_branch
      %15 = sbr.rel (0) target = $region9
    $region8: #{mulfcam_pallas.1} parent=1 // pred_region
      _
    $region9: #{mulfcam_pallas.1} parent=1 // pred_fallthru
      _
    // Predicated region
    $region10: #{mulfcam_pallas.1} parent=1 // pred_check
      _
    $region11: #{mulfcam_pallas.1} parent=1 // pred_check_branch
      %17 = sbr.rel (0) target = $region13
    $region12: #{mulfcam_pallas.1} parent=1 // pred_region
      _
    $region13: #{mulfcam_pallas.1} parent=1 // pred_fallthru
      _
    // Predicated region
    $region14: #{mulfcam_pallas.1} parent=1 // pred_check
      _
    $region15: #{mulfcam_pallas.1} parent=1 // pred_check_branch
      %19 = sbr.rel (0) target = $region17
    $region16: #{mulfcam_pallas.1} parent=1 // pred_region
      %s21 = ssub.s32 32, 32
      %22 = vsyncadd [#allocation4], %s21
      %s24 = sshll.u32 %s3, 4
      %s25 = int_to_ptr.vmem [resolvable:$true] %s24
      %27 = dma.vmem_to_smem %s25, 32, [#allocation3], [#allocation4]
    $region17: #{mulfcam_pallas.1} parent=1 // pred_fallthru
      _
    // Predicated region
    $region18: #{mulfcam_pallas.1} parent=1 // pred_check
      _
    $region19: #{mulfcam_pallas.1} parent=1 // pred_check_branch
      %29 = sbr.rel (0) target = $region21
    $region20: #{mulfcam_pallas.1} parent=1 // pred_region
      %s31 = ssub.s32 16, 16
      %32 = vsyncadd [#allocation6], %s31
      %s34 = sshll.u32 %s4, 4
      %s35 = int_to_ptr.vmem [resolvable:$true] %s34
      %37 = dma.vmem_to_smem %s35, 16, [#allocation5], [#allocation6]
    $region21: #{mulfcam_pallas.1} parent=1 // pred_fallthru
      _
    // Predicated region
    $region22: #{mulfcam_pallas.1} parent=1 // pred_check
      _
    $region23: #{mulfcam_pallas.1} parent=1 // pred_check_branch
      %39 = sbr.rel (0) target = $region25
    $region24: #{mulfcam_pallas.1} parent=1 // pred_region
      %40 = dma.done [#allocation4], 32
    $region25: #{mulfcam_pallas.1} parent=1 // pred_fallthru
      _
    // Predicated region
    $region26: #{mulfcam_pallas.1} parent=1 // pred_check
      _
    $region27: #{mulfcam_pallas.1} parent=1 // pred_check_branch
      %42 = sbr.rel (0) target = $region29
    $region28: #{mulfcam_pallas.1} parent=1 // pred_region
      %43 = dma.done [#allocation6], 16
    $region29: #{mulfcam_pallas.1} parent=1 // pred_fallthru
      _
    %44 = sfence
    %vm45 = vcmask 130048
    %46 = vst.msk [vmem:[#allocation2] sm:$0xff] %vm45, 0.0
    %47 = vst.msk [vmem:[#allocation2 + $0x8] sm:$0xff] %vm45, 0.0
    %vm48 = vcmask 128000
    %49 = vst.msk [vmem:[#allocation2 + $0x10] sm:$0x3f] %vm48, 0.0
    %50 = vst.msk [vmem:[#allocation2 + $0x18] sm:$0xff] %vm45, 0.0
    %51 = vst.msk [vmem:[#allocation2 + $0x20] sm:$0xff] %vm45, 0.0
    %52 = vst.msk [vmem:[#allocation2 + $0x28] sm:$0x3f] %vm48, 0.0
    %53 = vst.msk [vmem:[#allocation2 + $0x30] sm:$0xff] %vm45, 0.0
    %54 = vst.msk [vmem:[#allocation2 + $0x38] sm:$0xff] %vm45, 0.0
    %55 = vst.msk [vmem:[#allocation2 + $0x40] sm:$0x3f] %vm48, 0.0
    %56 = vst.msk [vmem:[#allocation2 + $0x48] sm:$0xff] %vm45, 0.0
    %57 = vst.msk [vmem:[#allocation2 + $0x50] sm:$0xff] %vm45, 0.0
    %58 = vst.msk [vmem:[#allocation2 + $0x58] sm:$0x3f] %vm48, 0.0
    %59 = vst.msk [vmem:[#allocation2 + $0x60] sm:$0xff] %vm45, 0.0
    %60 = vst.msk [vmem:[#allocation2 + $0x68] sm:$0xff] %vm45, 0.0
    %61 = vst.msk [vmem:[#allocation2 + $0x70] sm:$0x3f] %vm48, 0.0
    %62 = vst.msk [vmem:[#allocation2 + $0x78] sm:$0xff] %vm45, 0.0
    %63 = vst.msk [vmem:[#allocation2 + $0x80] sm:$0xff] %vm45, 0.0
    %64 = vst.msk [vmem:[#allocation2 + $0x88] sm:$0x3f] %vm48, 0.0
    %65 = vst.msk [vmem:[#allocation2 + $0x90] sm:$0xff] %vm45, 0.0
    %66 = vst.msk [vmem:[#allocation2 + $0x98] sm:$0xff] %vm45, 0.0
    %67 = vst.msk [vmem:[#allocation2 + $0xa0] sm:$0x3f] %vm48, 0.0
    %68 = vst.msk [vmem:[#allocation2 + $0xa8] sm:$0xff] %vm45, 0.0
    %69 = vst.msk [vmem:[#allocation2 + $0xb0] sm:$0xff] %vm45, 0.0
    %70 = vst.msk [vmem:[#allocation2 + $0xb8] sm:$0x3f] %vm48, 0.0
    %71 = vst.msk [vmem:[#allocation2 + $0xc0] sm:$0xff] %vm45, 0.0
    %72 = vst.msk [vmem:[#allocation2 + $0xc8] sm:$0xff] %vm45, 0.0
    %73 = vst.msk [vmem:[#allocation2 + $0xd0] sm:$0x3f] %vm48, 0.0
    %74 = vst.msk [vmem:[#allocation2 + $0xd8] sm:$0xff] %vm45, 0.0
    %75 = vst.msk [vmem:[#allocation2 + $0xe0] sm:$0xff] %vm45, 0.0
    %76 = vst.msk [vmem:[#allocation2 + $0xe8] sm:$0x3f] %vm48, 0.0
    %77 = vst.msk [vmem:[#allocation2 + $0xf0] sm:$0xff] %vm45, 0.0
    %78 = vst.msk [vmem:[#allocation2 + $0xf8] sm:$0xff] %vm45, 0.0
    %79 = vst.msk [vmem:[#allocation2 + $0x100] sm:$0x3f] %vm48, 0.0
    %80 = vst.msk [vmem:[#allocation2 + $0x108] sm:$0xff] %vm45, 0.0
    %81 = vst.msk [vmem:[#allocation2 + $0x110] sm:$0xff] %vm45, 0.0
    %82 = vst.msk [vmem:[#allocation2 + $0x118] sm:$0x3f] %vm48, 0.0
    %83 = vst.msk [vmem:[#allocation2 + $0x120] sm:$0xff] %vm45, 0.0
    %84 = vst.msk [vmem:[#allocation2 + $0x128] sm:$0xff] %vm45, 0.0
    %85 = vst.msk [vmem:[#allocation2 + $0x130] sm:$0x3f] %vm48, 0.0
    %86 = vst.msk [vmem:[#allocation2 + $0x138] sm:$0xff] %vm45, 0.0
    %87 = vst.msk [vmem:[#allocation2 + $0x140] sm:$0xff] %vm45, 0.0
    %88 = vst.msk [vmem:[#allocation2 + $0x148] sm:$0x3f] %vm48, 0.0
    %v89 = vld [vmem:[%s0] sm:$0xff]
    %v90 = vld [vmem:[%s0 + $0x8] sm:$0xff]
    %v91 = vld [vmem:[%s0 + $0x10] sm:$0xff]
    %v92 = vld [vmem:[%s0 + $0x18] sm:$0xff]
    %v93 = vld [vmem:[%s0 + $0x20] sm:$0xff]
    %v94 = vld [vmem:[%s0 + $0x28] sm:$0xff]
    %v95 = vld [vmem:[%s0 + $0x30] sm:$0xff]
    %v96 = vld [vmem:[%s0 + $0x38] sm:$0xff]
    %v97 = vadd.f32 %v89, %v90
    %98 = vadd.xlane.f32.xlu0 %v97
    %v99 = vpop.xlane.xlu0 %98
    %v100 = vadd.f32 %v91, %v92
    %101 = vadd.xlane.f32.xlu0 %v100
    %v102 = vpop.xlane.xlu0 %101
    %v103 = vadd.f32 %v93, %v94
    %104 = vadd.xlane.f32.xlu0 %v103
    %v105 = vpop.xlane.xlu0 %104
    %v106 = vadd.f32 %v95, %v96
    %107 = vadd.xlane.f32.xlu0 %v106
    %v108 = vpop.xlane.xlu0 %107
    %v109 = vrcp.pop 256.0
    %v110 = vmul.f32 %v99, %v109
    %v111 = vmul.f32 %v102, %v109
    %v112 = vmul.f32 %v105, %v109
    %v113 = vmul.f32 %v108, %v109
    %v114 = vld [vmem:[%s1] sm:$0xff]
    %v115 = vld [vmem:[%s1 + $0x8] sm:$0xff]
    %v116 = vld [vmem:[%s1 + $0x10] sm:$0xff]
    %v117 = vld [vmem:[%s1 + $0x18] sm:$0xff]
    %v118 = vmul.f32 %v114, %v110
    %v119 = vmul.f32 %v115, %v111
    %v120 = vmul.f32 %v116, %v112
    %v121 = vmul.f32 %v117, %v113
    %vm122 = vcmask 15360
    %v123 = vsel %vm122, %v118, 0.0
    %v124 = vsel %vm122, %v119, 0.0
    %v125 = vadd.f32 %v123, %v124
    %v126 = vsel %vm122, %v120, 0.0
    %v127 = vadd.f32 %v125, %v126
    %v128 = vsel %vm122, %v121, 0.0
    %v129 = vadd.f32 %v127, %v128
    %v130 = vrot.slane %v129, 4
    %v131 = vadd.f32 %v129, %v130
    %v132 = vrot.slane %v131, 2
    %v133 = vadd.f32 %v131, %v132
    %v134 = vrot.slane %v133, 1
    %v135 = vadd.f32 %v133, %v134
    %v136 = vmax.f32 %v135, 0.0
    %v137 = vld [vmem:[%s2] sm:$0xff]
    %v138 = vld [vmem:[%s2 + $0x8] sm:$0xff]
    %v139 = vld [vmem:[%s2 + $0x10] sm:$0xff]
    %v140 = vld [vmem:[%s2 + $0x18] sm:$0xff]
    %v141 = vmul.f32 %v137, %v136
    %v142 = vmul.f32 %v138, %v136
    %v143 = vmul.f32 %v139, %v136
    %v144 = vmul.f32 %v140, %v136
    %v145 = vsel %vm122, %v141, 0.0
    %146 = vadd.xlane.f32.xlu0 %v145
    %v147 = vpop.xlane.xlu0 %146
    %v148 = vsel %vm122, %v142, 0.0
    %149 = vadd.xlane.f32.xlu0 %v148
    %v150 = vpop.xlane.xlu0 %149
    %v151 = vsel %vm122, %v143, 0.0
    %152 = vadd.xlane.f32.xlu0 %v151
    %v153 = vpop.xlane.xlu0 %152
    %v154 = vsel %vm122, %v144, 0.0
    %155 = vadd.xlane.f32.xlu0 %v154
    %v156 = vpop.xlane.xlu0 %155
    %v157 = vadd.f32 %v147, %v147
    %v158 = vadd.f32 %v150, %v150
    %v159 = vadd.f32 %v153, %v153
    %v160 = vadd.f32 %v156, %v156
    %v161 = vxor.u32 %v157, 2147483648
    %v162 = vxor.u32 %v158, 2147483648
    %v163 = vxor.u32 %v159, 2147483648
    %v164 = vxor.u32 %v160, 2147483648
    %v165 = vmul.f32 %v161, 1.442695
    %v166 = vpow.pop %v165
    %v167 = vmul.f32 %v162, 1.442695
    %v168 = vpow.pop %v167
    %v169 = vmul.f32 %v163, 1.442695
    %v170 = vpow.pop %v169
    %v171 = vmul.f32 %v164, 1.442695
    %v172 = vpow.pop %v171
    %v173 = vadd.f32 %v166, 1.0
    %v174 = vadd.f32 %v168, 1.0
    %v175 = vadd.f32 %v170, 1.0
    %v176 = vadd.f32 %v172, 1.0
    %v177 = vrcp.pop %v173
    %v178 = vmul.f32 1.0, %v177
    %v179 = vrcp.pop %v174
    %v180 = vmul.f32 1.0, %v179
    %v181 = vrcp.pop %v175
    %v182 = vmul.f32 1.0, %v181
    %v183 = vrcp.pop %v176
    %v184 = vmul.f32 1.0, %v183
    %v185 = vmul.f32 %v89, %v178
    %v186 = vmul.f32 %v90, %v178
    %v187 = vmul.f32 %v91, %v180
    %v188 = vmul.f32 %v92, %v180
    %v189 = vmul.f32 %v93, %v182
    %v190 = vmul.f32 %v94, %v182
    %v191 = vmul.f32 %v95, %v184
    %v192 = vmul.f32 %v96, %v184
    %193 = vst [vmem:[%s5] sm:$0xff] %v185
    %194 = vst [vmem:[%s5 + $0x8] sm:$0xff] %v186
    %195 = vst [vmem:[%s5 + $0x10] sm:$0xff] %v187
    %196 = vst [vmem:[%s5 + $0x18] sm:$0xff] %v188
    %197 = vst [vmem:[%s5 + $0x20] sm:$0xff] %v189
    %198 = vst [vmem:[%s5 + $0x28] sm:$0xff] %v190
    %199 = vst [vmem:[%s5 + $0x30] sm:$0xff] %v191
    %200 = vst [vmem:[%s5 + $0x38] sm:$0xff] %v192
    %v201 = vadd.f32 %v185, %v187
    %v202 = vadd.f32 %v201, %v189
    %v203 = vadd.f32 %v202, %v191
    %v204 = vrot.slane %v203, 4
    %v205 = vadd.f32 %v203, %v204
    %v206 = vrot.slane %v205, 2
    %v207 = vadd.f32 %v205, %v206
    %v208 = vrot.slane %v207, 1
    %v209 = vadd.f32 %v207, %v208
    %v210 = vadd.f32 %v186, %v188
    %v211 = vadd.f32 %v210, %v190
    %v212 = vadd.f32 %v211, %v192
    %v213 = vrot.slane %v212, 4
    %v214 = vadd.f32 %v212, %v213
    %v215 = vrot.slane %v214, 2
    %v216 = vadd.f32 %v214, %v215
    %v217 = vrot.slane %v216, 1
    %v218 = vadd.f32 %v216, %v217
    %v219 = vrcp.pop 32.0
    %v220 = vmul.f32 %v209, %v219
    %v221 = vmul.f32 %v218, %v219
    %v222 = vmax.f32 %v185, %v189
    %v223 = vmax.f32 %v187, %v191
    %v224 = vmax.f32 %v222, %v223
    %v225 = vrot.slane %v224, 4
    %v226 = vmax.f32 %v224, %v225
    %v227 = vrot.slane %v226, 2
    %v228 = vmax.f32 %v226, %v227
    %v229 = vrot.slane %v228, 1
    %v230 = vmax.f32 %v228, %v229
    %v231 = vmax.f32 %v186, %v190
    %v232 = vmax.f32 %v188, %v192
    %v233 = vmax.f32 %v231, %v232
    %v234 = vrot.slane %v233, 4
    %v235 = vmax.f32 %v233, %v234
    %v236 = vrot.slane %v235, 2
    %v237 = vmax.f32 %v235, %v236
    %v238 = vrot.slane %v237, 1
    %v239 = vmax.f32 %v237, %v238
    %241 = vrot.lane.b32.xlu0 %v220, 112
    %v242 = vpop.permute.xlu0 %241
    %244 = vrot.lane.b32.xlu0 %v220, 96
    %v245 = vpop.permute.xlu0 %244
    %247 = vrot.lane.b32.xlu0 %v220, 80
    %v248 = vpop.permute.xlu0 %247
    %250 = vrot.lane.b32.xlu0 %v220, 64
    %v251 = vpop.permute.xlu0 %250
    %253 = vrot.lane.b32.xlu0 %v220, 48
    %v254 = vpop.permute.xlu0 %253
    %256 = vrot.lane.b32.xlu0 %v220, 32
    %v257 = vpop.permute.xlu0 %256
    %259 = vrot.lane.b32.xlu0 %v220, 16
    %v260 = vpop.permute.xlu0 %259
    %263 = vrot.lane.b32.xlu0 %v221, 112
    %v264 = vpop.permute.xlu0 %263
    %266 = vrot.lane.b32.xlu0 %v221, 96
    %v267 = vpop.permute.xlu0 %266
    %269 = vrot.lane.b32.xlu0 %v221, 80
    %v270 = vpop.permute.xlu0 %269
    %272 = vrot.lane.b32.xlu0 %v221, 64
    %v273 = vpop.permute.xlu0 %272
    %275 = vrot.lane.b32.xlu0 %v221, 48
    %v276 = vpop.permute.xlu0 %275
    %278 = vrot.lane.b32.xlu0 %v221, 32
    %v279 = vpop.permute.xlu0 %278
    %281 = vrot.lane.b32.xlu0 %v221, 16
    %v282 = vpop.permute.xlu0 %281
    %vm284 = vcmask 1040384
    %v285 = vsel %vm284, %v220, %v242
    %vm286 = vcmask 1041408
    %v287 = vsel %vm286, %v285, %v245
    %vm288 = vcmask 1042432
    %v289 = vsel %vm288, %v287, %v248
    %vm290 = vcmask 1043456
    %v291 = vsel %vm290, %v289, %v251
    %vm292 = vcmask 1044480
    %v293 = vsel %vm292, %v291, %v254
    %vm294 = vcmask 1045504
    %v295 = vsel %vm294, %v293, %v257
    %vm296 = vcmask 1046528
    %v297 = vsel %vm296, %v295, %v260
    %v298 = vsel %vm284, %v221, %v264
    %v299 = vsel %vm286, %v298, %v267
    %v300 = vsel %vm288, %v299, %v270
    %v301 = vsel %vm290, %v300, %v273
    %v302 = vsel %vm292, %v301, %v276
    %v303 = vsel %vm294, %v302, %v279
    %v304 = vsel %vm296, %v303, %v282
    %306 = vrot.lane.b32.xlu0 %v230, 112
    %v307 = vpop.permute.xlu0 %306
    %309 = vrot.lane.b32.xlu0 %v230, 96
    %v310 = vpop.permute.xlu0 %309
    %312 = vrot.lane.b32.xlu0 %v230, 80
    %v313 = vpop.permute.xlu0 %312
    %315 = vrot.lane.b32.xlu0 %v230, 64
    %v316 = vpop.permute.xlu0 %315
    %318 = vrot.lane.b32.xlu0 %v230, 48
    %v319 = vpop.permute.xlu0 %318
    %321 = vrot.lane.b32.xlu0 %v230, 32
    %v322 = vpop.permute.xlu0 %321
    %324 = vrot.lane.b32.xlu0 %v230, 16
    %v325 = vpop.permute.xlu0 %324
    %328 = vrot.lane.b32.xlu0 %v239, 112
    %v329 = vpop.permute.xlu0 %328
    %331 = vrot.lane.b32.xlu0 %v239, 96
    %v332 = vpop.permute.xlu0 %331
    %334 = vrot.lane.b32.xlu0 %v239, 80
    %v335 = vpop.permute.xlu0 %334
    %337 = vrot.lane.b32.xlu0 %v239, 64
    %v338 = vpop.permute.xlu0 %337
    %340 = vrot.lane.b32.xlu0 %v239, 48
    %v341 = vpop.permute.xlu0 %340
    %343 = vrot.lane.b32.xlu0 %v239, 32
    %v344 = vpop.permute.xlu0 %343
    %346 = vrot.lane.b32.xlu0 %v239, 16
    %v347 = vpop.permute.xlu0 %346
    %v349 = vsel %vm284, %v230, %v307
    %v350 = vsel %vm286, %v349, %v310
    %v351 = vsel %vm288, %v350, %v313
    %v352 = vsel %vm290, %v351, %v316
    %v353 = vsel %vm292, %v352, %v319
    %v354 = vsel %vm294, %v353, %v322
    %v355 = vsel %vm296, %v354, %v325
    %v356 = vsel %vm284, %v239, %v329
    %v357 = vsel %vm286, %v356, %v332
    %v358 = vsel %vm288, %v357, %v335
    %v359 = vsel %vm290, %v358, %v338
    %v360 = vsel %vm292, %v359, %v341
    %v361 = vsel %vm294, %v360, %v344
    %v362 = vsel %vm296, %v361, %v347
    %365 = vrot.lane.b32.xlu0 %v297, 3
    %v366 = vpop.permute.xlu0 %365
    %367 = vrot.lane.b32.xlu0 %v304, 3
    %v368 = vpop.permute.xlu0 %367
    %vm371 = vcmask 23552
    %v372 = vsel %vm371, 0.0, %v366
    %v373 = vsel %vm371, 0.0, %v368
    %374 = vst.msk [vmem:[#allocation2 + $0x3] sm:$0xff] %vm45, %v372
    %375 = vst.msk [vmem:[#allocation2 + $0xb] sm:$0xff] %vm45, %v373
    %376 = vrot.lane.b32.xlu0 %v297, 2
    %v377 = vpop.permute.xlu0 %376
    %378 = vrot.lane.b32.xlu0 %v304, 2
    %v379 = vpop.permute.xlu0 %378
    %v382 = vsel %vm122, 0.0, %v377
    %v383 = vsel %vm122, 0.0, %v379
    %s384 = scalar_lea.vmem [#allocation2], 24
    %385 = vst.msk [vmem:[%s384 + $0x3] sm:$0xff] %vm45, %v382
    %386 = vst.msk [vmem:[%s384 + $0xb] sm:$0xff] %vm45, %v383
    %387 = vrot.lane.b32.xlu0 %v297, 1
    %v388 = vpop.permute.xlu0 %387
    %389 = vrot.lane.b32.xlu0 %v304, 1
    %v390 = vpop.permute.xlu0 %389
    %vm393 = vcmask 7168
    %v394 = vsel %vm393, 0.0, %v388
    %v395 = vsel %vm393, 0.0, %v390
    %s396 = scalar_lea.vmem [#allocation2], 48
    %397 = vst.msk [vmem:[%s396 + $0x3] sm:$0xff] %vm45, %v394
    %398 = vst.msk [vmem:[%s396 + $0xb] sm:$0xff] %vm45, %v395
    %s399 = scalar_lea.vmem [#allocation2], 72
    %400 = vst.msk [vmem:[%s399 + $0x3] sm:$0xff] %vm45, %v297
    %401 = vst.msk [vmem:[%s399 + $0xb] sm:$0xff] %vm45, %v304
    %402 = vrot.lane.b32.xlu0 %v297, 127
    %v403 = vpop.permute.xlu0 %402
    %404 = vrot.lane.b32.xlu0 %v304, 127
    %v405 = vpop.permute.xlu0 %404
    %vm408 = vcmask 121856
    %v409 = vsel %vm408, %v403, 0.0
    %v410 = vsel %vm408, %v405, 0.0
    %s411 = scalar_lea.vmem [#allocation2], 96
    %412 = vst.msk [vmem:[%s411 + $0x3] sm:$0xff] %vm45, %v409
    %413 = vst.msk [vmem:[%s411 + $0xb] sm:$0xff] %vm45, %v410
    %414 = vrot.lane.b32.xlu0 %v297, 126
    %v415 = vpop.permute.xlu0 %414
    %416 = vrot.lane.b32.xlu0 %v304, 126
    %v417 = vpop.permute.xlu0 %416
    %vm420 = vcmask 113664
    %v421 = vsel %vm420, %v415, 0.0
    %v422 = vsel %vm420, %v417, 0.0
    %s423 = scalar_lea.vmem [#allocation2], 120
    %424 = vst.msk [vmem:[%s423 + $0x3] sm:$0xff] %vm45, %v421
    %425 = vst.msk [vmem:[%s423 + $0xb] sm:$0xff] %vm45, %v422
    %426 = vrot.lane.b32.xlu0 %v297, 125
    %v427 = vpop.permute.xlu0 %426
    %428 = vrot.lane.b32.xlu0 %v304, 125
    %v429 = vpop.permute.xlu0 %428
    %vm432 = vcmask 105472
    %v433 = vsel %vm432, %v427, 0.0
    %v434 = vsel %vm432, %v429, 0.0
    %s435 = scalar_lea.vmem [#allocation2], 144
    %436 = vst.msk [vmem:[%s435 + $0x3] sm:$0xff] %vm45, %v433
    %437 = vst.msk [vmem:[%s435 + $0xb] sm:$0xff] %vm45, %v434
    %440 = vrot.lane.b32.xlu0 %v355, 3
    %v441 = vpop.permute.xlu0 %440
    %442 = vrot.lane.b32.xlu0 %v362, 3
    %v443 = vpop.permute.xlu0 %442
    %v446 = vsel %vm371, 0.0, %v441
    %v447 = vsel %vm371, 0.0, %v443
    %s448 = scalar_lea.vmem [#allocation2], 168
    %449 = vst.msk [vmem:[%s448 + $0x3] sm:$0xff] %vm45, %v446
    %450 = vst.msk [vmem:[%s448 + $0xb] sm:$0xff] %vm45, %v447
    %451 = vrot.lane.b32.xlu0 %v355, 2
    %v452 = vpop.permute.xlu0 %451
    %453 = vrot.lane.b32.xlu0 %v362, 2
    %v454 = vpop.permute.xlu0 %453
    %v457 = vsel %vm122, 0.0, %v452
    %v458 = vsel %vm122, 0.0, %v454
    %s459 = scalar_lea.vmem [#allocation2], 192
    %460 = vst.msk [vmem:[%s459 + $0x3] sm:$0xff] %vm45, %v457
    %461 = vst.msk [vmem:[%s459 + $0xb] sm:$0xff] %vm45, %v458
    %462 = vrot.lane.b32.xlu0 %v355, 1
    %v463 = vpop.permute.xlu0 %462
    %464 = vrot.lane.b32.xlu0 %v362, 1
    %v465 = vpop.permute.xlu0 %464
    %v468 = vsel %vm393, 0.0, %v463
    %v469 = vsel %vm393, 0.0, %v465
    %s470 = scalar_lea.vmem [#allocation2], 216
    %471 = vst.msk [vmem:[%s470 + $0x3] sm:$0xff] %vm45, %v468
    %472 = vst.msk [vmem:[%s470 + $0xb] sm:$0xff] %vm45, %v469
    %s473 = scalar_lea.vmem [#allocation2], 240
    %474 = vst.msk [vmem:[%s473 + $0x3] sm:$0xff] %vm45, %v355
    %475 = vst.msk [vmem:[%s473 + $0xb] sm:$0xff] %vm45, %v362
    %476 = vrot.lane.b32.xlu0 %v355, 127
    %v477 = vpop.permute.xlu0 %476
    %478 = vrot.lane.b32.xlu0 %v362, 127
    %v479 = vpop.permute.xlu0 %478
    %v482 = vsel %vm408, %v477, 0.0
    %v483 = vsel %vm408, %v479, 0.0
    %s484 = scalar_lea.vmem [#allocation2], 264
    %485 = vst.msk [vmem:[%s484 + $0x3] sm:$0xff] %vm45, %v482
    %486 = vst.msk [vmem:[%s484 + $0xb] sm:$0xff] %vm45, %v483
    %487 = vrot.lane.b32.xlu0 %v355, 126
    %v488 = vpop.permute.xlu0 %487
    %489 = vrot.lane.b32.xlu0 %v362, 126
    %v490 = vpop.permute.xlu0 %489
    %v493 = vsel %vm420, %v488, 0.0
    %v494 = vsel %vm420, %v490, 0.0
    %s495 = scalar_lea.vmem [#allocation2], 288
    %496 = vst.msk [vmem:[%s495 + $0x3] sm:$0xff] %vm45, %v493
    %497 = vst.msk [vmem:[%s495 + $0xb] sm:$0xff] %vm45, %v494
    %498 = vrot.lane.b32.xlu0 %v355, 125
    %v499 = vpop.permute.xlu0 %498
    %500 = vrot.lane.b32.xlu0 %v362, 125
    %v501 = vpop.permute.xlu0 %500
    %v504 = vsel %vm432, %v499, 0.0
    %v505 = vsel %vm432, %v501, 0.0
    %s506 = scalar_lea.vmem [#allocation2], 312
    %507 = vst.msk [vmem:[%s506 + $0x3] sm:$0xff] %vm45, %v504
    %508 = vst.msk [vmem:[%s506 + $0xb] sm:$0xff] %vm45, %v505
    %s509 = sld [smem:[#allocation5]]
    %v510 = vstv %s509
    %v511 = vadd.f32 %v510, 0.0
    %s512 = sld [smem:[#allocation5 + $0x1]]
    %v513 = vstv %s512
    %v514 = vadd.f32 %v513, 0.0
    %s515 = sld [smem:[#allocation5 + $0x2]]
    %v516 = vstv %s515
    %v517 = vadd.f32 %v516, 0.0
    %v518 = vld [vmem:[#allocation2] sm:$0xff]
    %v519 = vld [vmem:[#allocation2 + $0x8] sm:$0xff]
    %s520 = sld [smem:[#allocation3 + $0x44]]
    %v521 = vstv %s520
    %v522 = vmul.f32 %v521, %v518
    %v523 = vmul.f32 %v521, %v519
    %v524 = vadd.f32 %v517, %v522
    %v525 = vadd.f32 %v517, %v523
    %v526 = vld [vmem:[#allocation2 + $0x1] sm:$0xff]
    %v527 = vld [vmem:[#allocation2 + $0x9] sm:$0xff]
    %s528 = sld [smem:[#allocation3 + $0x4b]]
    %v529 = vstv %s528
    %v530 = vmul.f32 %v529, %v526
    %v531 = vmul.f32 %v529, %v527
    %v532 = vadd.f32 %v524, %v530
    %v533 = vadd.f32 %v525, %v531
    %v534 = vld [vmem:[#allocation2 + $0x2] sm:$0xff]
    %v535 = vld [vmem:[#allocation2 + $0xa] sm:$0xff]
    %s536 = sld [smem:[#allocation3 + $0x52]]
    %v537 = vstv %s536
    %v538 = vmul.f32 %v537, %v534
    %v539 = vmul.f32 %v537, %v535
    %v540 = vadd.f32 %v532, %v538
    %v541 = vadd.f32 %v533, %v539
    %v542 = vld [vmem:[#allocation2 + $0x3] sm:$0xff]
    %v543 = vld [vmem:[#allocation2 + $0xb] sm:$0xff]
    %s544 = sld [smem:[#allocation3 + $0x59]]
    %v545 = vstv %s544
    %v546 = vmul.f32 %v545, %v542
    %v547 = vmul.f32 %v545, %v543
    %v548 = vadd.f32 %v540, %v546
    %v549 = vadd.f32 %v541, %v547
    %v550 = vld [vmem:[#allocation2 + $0x4] sm:$0xff]
    %v551 = vld [vmem:[#allocation2 + $0xc] sm:$0xff]
    %s552 = sld [smem:[#allocation3 + $0x60]]
    %v553 = vstv %s552
    %v554 = vmul.f32 %v553, %v550
    %v555 = vmul.f32 %v553, %v551
    %v556 = vadd.f32 %v548, %v554
    %v557 = vadd.f32 %v549, %v555
    %v558 = vld [vmem:[#allocation2 + $0x5] sm:$0xff]
    %v559 = vld [vmem:[#allocation2 + $0xd] sm:$0xff]
    %s560 = sld [smem:[#allocation3 + $0x67]]
    %v561 = vstv %s560
    %v562 = vmul.f32 %v561, %v558
    %v563 = vmul.f32 %v561, %v559
    %v564 = vadd.f32 %v556, %v562
    %v565 = vadd.f32 %v557, %v563
    %v566 = vld [vmem:[#allocation2 + $0x6] sm:$0xff]
    %v567 = vld [vmem:[#allocation2 + $0xe] sm:$0xff]
    %s568 = sld [smem:[#allocation3 + $0x6e]]
    %v569 = vstv %s568
    %v570 = vmul.f32 %v569, %v566
    %v571 = vmul.f32 %v569, %v567
    %v572 = vadd.f32 %v564, %v570
    %v573 = vadd.f32 %v565, %v571
    %v574 = vld [vmem:[%s384] sm:$0xff]
    %v575 = vld [vmem:[%s384 + $0x8] sm:$0xff]
    %s576 = sld [smem:[#allocation3 + $0x45]]
    %v577 = vstv %s576
    %v578 = vmul.f32 %v577, %v574
    %v579 = vmul.f32 %v577, %v575
    %v580 = vadd.f32 %v572, %v578
    %v581 = vadd.f32 %v573, %v579
    %v582 = vld [vmem:[%s384 + $0x1] sm:$0xff]
    %v583 = vld [vmem:[%s384 + $0x9] sm:$0xff]
    %s584 = sld [smem:[#allocation3 + $0x4c]]
    %v585 = vstv %s584
    %v586 = vmul.f32 %v585, %v582
    %v587 = vmul.f32 %v585, %v583
    %v588 = vadd.f32 %v580, %v586
    %v589 = vadd.f32 %v581, %v587
    %s590 = sld [smem:[#allocation3 + $0x12]]
    %v591 = vstv %s590
    %v592 = vmul.f32 %v591, %v582
    %v593 = vmul.f32 %v591, %v583
    %v594 = vadd.f32 %v514, %v592
    %v595 = vadd.f32 %v514, %v593
    %v596 = vld [vmem:[%s384 + $0x2] sm:$0xff]
    %v597 = vld [vmem:[%s384 + $0xa] sm:$0xff]
    %s598 = sld [smem:[#allocation3 + $0x53]]
    %v599 = vstv %s598
    %v600 = vmul.f32 %v599, %v596
    %v601 = vmul.f32 %v599, %v597
    %v602 = vadd.f32 %v588, %v600
    %v603 = vadd.f32 %v589, %v601
    %s604 = sld [smem:[#allocation3 + $0x17]]
    %v605 = vstv %s604
    %v606 = vmul.f32 %v605, %v596
    %v607 = vmul.f32 %v605, %v597
    %v608 = vadd.f32 %v594, %v606
    %v609 = vadd.f32 %v595, %v607
    %v610 = vld [vmem:[%s384 + $0x3] sm:$0xff]
    %v611 = vld [vmem:[%s384 + $0xb] sm:$0xff]
    %s612 = sld [smem:[#allocation3 + $0x5a]]
    %v613 = vstv %s612
    %v614 = vmul.f32 %v613, %v610
    %v615 = vmul.f32 %v613, %v611
    %v616 = vadd.f32 %v602, %v614
    %v617 = vadd.f32 %v603, %v615
    %s618 = sld [smem:[#allocation3 + $0x1c]]
    %v619 = vstv %s618
    %v620 = vmul.f32 %v619, %v610
    %v621 = vmul.f32 %v619, %v611
    %v622 = vadd.f32 %v608, %v620
    %v623 = vadd.f32 %v609, %v621
    %v624 = vld [vmem:[%s384 + $0x4] sm:$0xff]
    %v625 = vld [vmem:[%s384 + $0xc] sm:$0xff]
    %s626 = sld [smem:[#allocation3 + $0x61]]
    %v627 = vstv %s626
    %v628 = vmul.f32 %v627, %v624
    %v629 = vmul.f32 %v627, %v625
    %v630 = vadd.f32 %v616, %v628
    %v631 = vadd.f32 %v617, %v629
    %s632 = sld [smem:[#allocation3 + $0x21]]
    %v633 = vstv %s632
    %v634 = vmul.f32 %v633, %v624
    %v635 = vmul.f32 %v633, %v625
    %v636 = vadd.f32 %v622, %v634
    %v637 = vadd.f32 %v623, %v635
    %v638 = vld [vmem:[%s384 + $0x5] sm:$0xff]
    %v639 = vld [vmem:[%s384 + $0xd] sm:$0xff]
    %s640 = sld [smem:[#allocation3 + $0x68]]
    %v641 = vstv %s640
    %v642 = vmul.f32 %v641, %v638
    %v643 = vmul.f32 %v641, %v639
    %v644 = vadd.f32 %v630, %v642
    %v645 = vadd.f32 %v631, %v643
    %s646 = sld [smem:[#allocation3 + $0x26]]
    %v647 = vstv %s646
    %v648 = vmul.f32 %v647, %v638
    %v649 = vmul.f32 %v647, %v639
    %v650 = vadd.f32 %v636, %v648
    %v651 = vadd.f32 %v637, %v649
    %v652 = vld [vmem:[%s384 + $0x6] sm:$0xff]
    %v653 = vld [vmem:[%s384 + $0xe] sm:$0xff]
    %s654 = sld [smem:[#allocation3 + $0x6f]]
    %v655 = vstv %s654
    %v656 = vmul.f32 %v655, %v652
    %v657 = vmul.f32 %v655, %v653
    %v658 = vadd.f32 %v644, %v656
    %v659 = vadd.f32 %v645, %v657
    %v660 = vld [vmem:[%s396] sm:$0xff]
    %v661 = vld [vmem:[%s396 + $0x8] sm:$0xff]
    %s662 = sld [smem:[#allocation3 + $0x46]]
    %v663 = vstv %s662
    %v664 = vmul.f32 %v663, %v660
    %v665 = vmul.f32 %v663, %v661
    %v666 = vadd.f32 %v658, %v664
    %v667 = vadd.f32 %v659, %v665
    %v668 = vld [vmem:[%s396 + $0x1] sm:$0xff]
    %v669 = vld [vmem:[%s396 + $0x9] sm:$0xff]
    %s670 = sld [smem:[#allocation3 + $0x4d]]
    %v671 = vstv %s670
    %v672 = vmul.f32 %v671, %v668
    %v673 = vmul.f32 %v671, %v669
    %v674 = vadd.f32 %v666, %v672
    %v675 = vadd.f32 %v667, %v673
    %s676 = sld [smem:[#allocation3 + $0x13]]
    %v677 = vstv %s676
    %v678 = vmul.f32 %v677, %v668
    %v679 = vmul.f32 %v677, %v669
    %v680 = vadd.f32 %v650, %v678
    %v681 = vadd.f32 %v651, %v679
    %v682 = vld [vmem:[%s396 + $0x2] sm:$0xff]
    %v683 = vld [vmem:[%s396 + $0xa] sm:$0xff]
    %s684 = sld [smem:[#allocation3 + $0x54]]
    %v685 = vstv %s684
    %v686 = vmul.f32 %v685, %v682
    %v687 = vmul.f32 %v685, %v683
    %v688 = vadd.f32 %v674, %v686
    %v689 = vadd.f32 %v675, %v687
    %s690 = sld [smem:[#allocation3 + $0x18]]
    %v691 = vstv %s690
    %v692 = vmul.f32 %v691, %v682
    %v693 = vmul.f32 %v691, %v683
    %v694 = vadd.f32 %v680, %v692
    %v695 = vadd.f32 %v681, %v693
    %s696 = sld [smem:[#allocation3]]
    %v697 = vstv %s696
    %v698 = vmul.f32 %v697, %v682
    %v699 = vmul.f32 %v697, %v683
    %v700 = vadd.f32 %v511, %v698
    %v701 = vadd.f32 %v511, %v699
    %v702 = vld [vmem:[%s396 + $0x3] sm:$0xff]
    %v703 = vld [vmem:[%s396 + $0xb] sm:$0xff]
    %s704 = sld [smem:[#allocation3 + $0x5b]]
    %v705 = vstv %s704
    %v706 = vmul.f32 %v705, %v702
    %v707 = vmul.f32 %v705, %v703
    %v708 = vadd.f32 %v688, %v706
    %v709 = vadd.f32 %v689, %v707
    %s710 = sld [smem:[#allocation3 + $0x1d]]
    %v711 = vstv %s710
    %v712 = vmul.f32 %v711, %v702
    %v713 = vmul.f32 %v711, %v703
    %v714 = vadd.f32 %v694, %v712
    %v715 = vadd.f32 %v695, %v713
    %s716 = sld [smem:[#allocation3 + $0x3]]
    %v717 = vstv %s716
    %v718 = vmul.f32 %v717, %v702
    %v719 = vmul.f32 %v717, %v703
    %v720 = vadd.f32 %v700, %v718
    %v721 = vadd.f32 %v701, %v719
    %v722 = vld [vmem:[%s396 + $0x4] sm:$0xff]
    %v723 = vld [vmem:[%s396 + $0xc] sm:$0xff]
    %s724 = sld [smem:[#allocation3 + $0x62]]
    %v725 = vstv %s724
    %v726 = vmul.f32 %v725, %v722
    %v727 = vmul.f32 %v725, %v723
    %v728 = vadd.f32 %v708, %v726
    %v729 = vadd.f32 %v709, %v727
    %s730 = sld [smem:[#allocation3 + $0x22]]
    %v731 = vstv %s730
    %v732 = vmul.f32 %v731, %v722
    %v733 = vmul.f32 %v731, %v723
    %v734 = vadd.f32 %v714, %v732
    %v735 = vadd.f32 %v715, %v733
    %s736 = sld [smem:[#allocation3 + $0x6]]
    %v737 = vstv %s736
    %v738 = vmul.f32 %v737, %v722
    %v739 = vmul.f32 %v737, %v723
    %v740 = vadd.f32 %v720, %v738
    %v741 = vadd.f32 %v721, %v739
    %v742 = vld [vmem:[%s396 + $0x5] sm:$0xff]
    %v743 = vld [vmem:[%s396 + $0xd] sm:$0xff]
    %s744 = sld [smem:[#allocation3 + $0x69]]
    %v745 = vstv %s744
    %v746 = vmul.f32 %v745, %v742
    %v747 = vmul.f32 %v745, %v743
    %v748 = vadd.f32 %v728, %v746
    %v749 = vadd.f32 %v729, %v747
    %s750 = sld [smem:[#allocation3 + $0x27]]
    %v751 = vstv %s750
    %v752 = vmul.f32 %v751, %v742
    %v753 = vmul.f32 %v751, %v743
    %v754 = vadd.f32 %v734, %v752
    %v755 = vadd.f32 %v735, %v753
    %v756 = vld [vmem:[%s396 + $0x6] sm:$0xff]
    %v757 = vld [vmem:[%s396 + $0xe] sm:$0xff]
    %s758 = sld [smem:[#allocation3 + $0x70]]
    %v759 = vstv %s758
    %v760 = vmul.f32 %v759, %v756
    %v761 = vmul.f32 %v759, %v757
    %v762 = vadd.f32 %v748, %v760
    %v763 = vadd.f32 %v749, %v761
    %v764 = vld [vmem:[%s399] sm:$0xff]
    %v765 = vld [vmem:[%s399 + $0x8] sm:$0xff]
    %s766 = sld [smem:[#allocation3 + $0x47]]
    %v767 = vstv %s766
    %v768 = vmul.f32 %v767, %v764
    %v769 = vmul.f32 %v767, %v765
    %v770 = vadd.f32 %v762, %v768
    %v771 = vadd.f32 %v763, %v769
    %v772 = vld [vmem:[%s399 + $0x1] sm:$0xff]
    %v773 = vld [vmem:[%s399 + $0x9] sm:$0xff]
    %s774 = sld [smem:[#allocation3 + $0x4e]]
    %v775 = vstv %s774
    %v776 = vmul.f32 %v775, %v772
    %v777 = vmul.f32 %v775, %v773
    %v778 = vadd.f32 %v770, %v776
    %v779 = vadd.f32 %v771, %v777
    %s780 = sld [smem:[#allocation3 + $0x14]]
    %v781 = vstv %s780
    %v782 = vmul.f32 %v781, %v772
    %v783 = vmul.f32 %v781, %v773
    %v784 = vadd.f32 %v754, %v782
    %v785 = vadd.f32 %v755, %v783
    %v786 = vld [vmem:[%s399 + $0x2] sm:$0xff]
    %v787 = vld [vmem:[%s399 + $0xa] sm:$0xff]
    %s788 = sld [smem:[#allocation3 + $0x55]]
    %v789 = vstv %s788
    %v790 = vmul.f32 %v789, %v786
    %v791 = vmul.f32 %v789, %v787
    %v792 = vadd.f32 %v778, %v790
    %v793 = vadd.f32 %v779, %v791
    %s794 = sld [smem:[#allocation3 + $0x19]]
    %v795 = vstv %s794
    %v796 = vmul.f32 %v795, %v786
    %v797 = vmul.f32 %v795, %v787
    %v798 = vadd.f32 %v784, %v796
    %v799 = vadd.f32 %v785, %v797
    %s800 = sld [smem:[#allocation3 + $0x1]]
    %v801 = vstv %s800
    %v802 = vmul.f32 %v801, %v786
    %v803 = vmul.f32 %v801, %v787
    %v804 = vadd.f32 %v740, %v802
    %v805 = vadd.f32 %v741, %v803
    %v806 = vld [vmem:[%s399 + $0x3] sm:$0xff]
    %v807 = vld [vmem:[%s399 + $0xb] sm:$0xff]
    %s808 = sld [smem:[#allocation3 + $0x5c]]
    %v809 = vstv %s808
    %v810 = vmul.f32 %v809, %v806
    %v811 = vmul.f32 %v809, %v807
    %v812 = vadd.f32 %v792, %v810
    %v813 = vadd.f32 %v793, %v811
    %s814 = sld [smem:[#allocation3 + $0x1e]]
    %v815 = vstv %s814
    %v816 = vmul.f32 %v815, %v806
    %v817 = vmul.f32 %v815, %v807
    %v818 = vadd.f32 %v798, %v816
    %v819 = vadd.f32 %v799, %v817
    %s820 = sld [smem:[#allocation3 + $0x4]]
    %v821 = vstv %s820
    %v822 = vmul.f32 %v821, %v806
    %v823 = vmul.f32 %v821, %v807
    %v824 = vadd.f32 %v804, %v822
    %v825 = vadd.f32 %v805, %v823
    %v826 = vld [vmem:[%s399 + $0x4] sm:$0xff]
    %v827 = vld [vmem:[%s399 + $0xc] sm:$0xff]
    %s828 = sld [smem:[#allocation3 + $0x63]]
    %v829 = vstv %s828
    %v830 = vmul.f32 %v829, %v826
    %v831 = vmul.f32 %v829, %v827
    %v832 = vadd.f32 %v812, %v830
    %v833 = vadd.f32 %v813, %v831
    %s834 = sld [smem:[#allocation3 + $0x23]]
    %v835 = vstv %s834
    %v836 = vmul.f32 %v835, %v826
    %v837 = vmul.f32 %v835, %v827
    %v838 = vadd.f32 %v818, %v836
    %v839 = vadd.f32 %v819, %v837
    %s840 = sld [smem:[#allocation3 + $0x7]]
    %v841 = vstv %s840
    %v842 = vmul.f32 %v841, %v826
    %v843 = vmul.f32 %v841, %v827
    %v844 = vadd.f32 %v824, %v842
    %v845 = vadd.f32 %v825, %v843
    %v846 = vld [vmem:[%s399 + $0x5] sm:$0xff]
    %v847 = vld [vmem:[%s399 + $0xd] sm:$0xff]
    %s848 = sld [smem:[#allocation3 + $0x6a]]
    %v849 = vstv %s848
    %v850 = vmul.f32 %v849, %v846
    %v851 = vmul.f32 %v849, %v847
    %v852 = vadd.f32 %v832, %v850
    %v853 = vadd.f32 %v833, %v851
    %s854 = sld [smem:[#allocation3 + $0x28]]
    %v855 = vstv %s854
    %v856 = vmul.f32 %v855, %v846
    %v857 = vmul.f32 %v855, %v847
    %v858 = vadd.f32 %v838, %v856
    %v859 = vadd.f32 %v839, %v857
    %v860 = vld [vmem:[%s399 + $0x6] sm:$0xff]
    %v861 = vld [vmem:[%s399 + $0xe] sm:$0xff]
    %s862 = sld [smem:[#allocation3 + $0x71]]
    %v863 = vstv %s862
    %v864 = vmul.f32 %v863, %v860
    %v865 = vmul.f32 %v863, %v861
    %v866 = vadd.f32 %v852, %v864
    %v867 = vadd.f32 %v853, %v865
    %v868 = vld [vmem:[%s411] sm:$0xff]
    %v869 = vld [vmem:[%s411 + $0x8] sm:$0xff]
    %s870 = sld [smem:[#allocation3 + $0x48]]
    %v871 = vstv %s870
    %v872 = vmul.f32 %v871, %v868
    %v873 = vmul.f32 %v871, %v869
    %v874 = vadd.f32 %v866, %v872
    %v875 = vadd.f32 %v867, %v873
    %v876 = vld [vmem:[%s411 + $0x1] sm:$0xff]
    %v877 = vld [vmem:[%s411 + $0x9] sm:$0xff]
    %s878 = sld [smem:[#allocation3 + $0x4f]]
    %v879 = vstv %s878
    %v880 = vmul.f32 %v879, %v876
    %v881 = vmul.f32 %v879, %v877
    %v882 = vadd.f32 %v874, %v880
    %v883 = vadd.f32 %v875, %v881
    %s884 = sld [smem:[#allocation3 + $0x15]]
    %v885 = vstv %s884
    %v886 = vmul.f32 %v885, %v876
    %v887 = vmul.f32 %v885, %v877
    %v888 = vadd.f32 %v858, %v886
    %v889 = vadd.f32 %v859, %v887
    %v890 = vld [vmem:[%s411 + $0x2] sm:$0xff]
    %v891 = vld [vmem:[%s411 + $0xa] sm:$0xff]
    %s892 = sld [smem:[#allocation3 + $0x56]]
    %v893 = vstv %s892
    %v894 = vmul.f32 %v893, %v890
    %v895 = vmul.f32 %v893, %v891
    %v896 = vadd.f32 %v882, %v894
    %v897 = vadd.f32 %v883, %v895
    %s898 = sld [smem:[#allocation3 + $0x1a]]
    %v899 = vstv %s898
    %v900 = vmul.f32 %v899, %v890
    %v901 = vmul.f32 %v899, %v891
    %v902 = vadd.f32 %v888, %v900
    %v903 = vadd.f32 %v889, %v901
    %s904 = sld [smem:[#allocation3 + $0x2]]
    %v905 = vstv %s904
    %v906 = vmul.f32 %v905, %v890
    %v907 = vmul.f32 %v905, %v891
    %v908 = vadd.f32 %v844, %v906
    %v909 = vadd.f32 %v845, %v907
    %v910 = vld [vmem:[%s411 + $0x3] sm:$0xff]
    %v911 = vld [vmem:[%s411 + $0xb] sm:$0xff]
    %s912 = sld [smem:[#allocation3 + $0x5d]]
    %v913 = vstv %s912
    %v914 = vmul.f32 %v913, %v910
    %v915 = vmul.f32 %v913, %v911
    %v916 = vadd.f32 %v896, %v914
    %v917 = vadd.f32 %v897, %v915
    %s918 = sld [smem:[#allocation3 + $0x1f]]
    %v919 = vstv %s918
    %v920 = vmul.f32 %v919, %v910
    %v921 = vmul.f32 %v919, %v911
    %v922 = vadd.f32 %v902, %v920
    %v923 = vadd.f32 %v903, %v921
    %s924 = sld [smem:[#allocation3 + $0x5]]
    %v925 = vstv %s924
    %v926 = vmul.f32 %v925, %v910
    %v927 = vmul.f32 %v925, %v911
    %v928 = vadd.f32 %v908, %v926
    %v929 = vadd.f32 %v909, %v927
    %v930 = vld [vmem:[%s411 + $0x4] sm:$0xff]
    %v931 = vld [vmem:[%s411 + $0xc] sm:$0xff]
    %s932 = sld [smem:[#allocation3 + $0x64]]
    %v933 = vstv %s932
    %v934 = vmul.f32 %v933, %v930
    %v935 = vmul.f32 %v933, %v931
    %v936 = vadd.f32 %v916, %v934
    %v937 = vadd.f32 %v917, %v935
    %s938 = sld [smem:[#allocation3 + $0x24]]
    %v939 = vstv %s938
    %v940 = vmul.f32 %v939, %v930
    %v941 = vmul.f32 %v939, %v931
    %v942 = vadd.f32 %v922, %v940
    %v943 = vadd.f32 %v923, %v941
    %s944 = sld [smem:[#allocation3 + $0x8]]
    %v945 = vstv %s944
    %v946 = vmul.f32 %v945, %v930
    %v947 = vmul.f32 %v945, %v931
    %v948 = vadd.f32 %v928, %v946
    %v949 = vadd.f32 %v929, %v947
    %v950 = vld [vmem:[%s411 + $0x5] sm:$0xff]
    %v951 = vld [vmem:[%s411 + $0xd] sm:$0xff]
    %s952 = sld [smem:[#allocation3 + $0x6b]]
    %v953 = vstv %s952
    %v954 = vmul.f32 %v953, %v950
    %v955 = vmul.f32 %v953, %v951
    %v956 = vadd.f32 %v936, %v954
    %v957 = vadd.f32 %v937, %v955
    %s958 = sld [smem:[#allocation3 + $0x29]]
    %v959 = vstv %s958
    %v960 = vmul.f32 %v959, %v950
    %v961 = vmul.f32 %v959, %v951
    %v962 = vadd.f32 %v942, %v960
    %v963 = vadd.f32 %v943, %v961
    %v964 = vld [vmem:[%s411 + $0x6] sm:$0xff]
    %v965 = vld [vmem:[%s411 + $0xe] sm:$0xff]
    %s966 = sld [smem:[#allocation3 + $0x72]]
    %v967 = vstv %s966
    %v968 = vmul.f32 %v967, %v964
    %v969 = vmul.f32 %v967, %v965
    %v970 = vadd.f32 %v956, %v968
    %v971 = vadd.f32 %v957, %v969
    %v972 = vld [vmem:[%s423] sm:$0xff]
    %v973 = vld [vmem:[%s423 + $0x8] sm:$0xff]
    %s974 = sld [smem:[#allocation3 + $0x49]]
    %v975 = vstv %s974
    %v976 = vmul.f32 %v975, %v972
    %v977 = vmul.f32 %v975, %v973
    %v978 = vadd.f32 %v970, %v976
    %v979 = vadd.f32 %v971, %v977
    %v980 = vld [vmem:[%s423 + $0x1] sm:$0xff]
    %v981 = vld [vmem:[%s423 + $0x9] sm:$0xff]
    %s982 = sld [smem:[#allocation3 + $0x50]]
    %v983 = vstv %s982
    %v984 = vmul.f32 %v983, %v980
    %v985 = vmul.f32 %v983, %v981
    %v986 = vadd.f32 %v978, %v984
    %v987 = vadd.f32 %v979, %v985
    %s988 = sld [smem:[#allocation3 + $0x16]]
    %v989 = vstv %s988
    %v990 = vmul.f32 %v989, %v980
    %v991 = vmul.f32 %v989, %v981
    %v992 = vadd.f32 %v962, %v990
    %v993 = vadd.f32 %v963, %v991
    %v994 = vld [vmem:[%s423 + $0x2] sm:$0xff]
    %v995 = vld [vmem:[%s423 + $0xa] sm:$0xff]
    %s996 = sld [smem:[#allocation3 + $0x57]]
    %v997 = vstv %s996
    %v998 = vmul.f32 %v997, %v994
    %v999 = vmul.f32 %v997, %v995
    %v1000 = vadd.f32 %v986, %v998
    %v1001 = vadd.f32 %v987, %v999
    %s1002 = sld [smem:[#allocation3 + $0x1b]]
    %v1003 = vstv %s1002
    %v1004 = vmul.f32 %v1003, %v994
    %v1005 = vmul.f32 %v1003, %v995
    %v1006 = vadd.f32 %v992, %v1004
    %v1007 = vadd.f32 %v993, %v1005
    %v1008 = vld [vmem:[%s423 + $0x3] sm:$0xff]
    %v1009 = vld [vmem:[%s423 + $0xb] sm:$0xff]
    %s1010 = sld [smem:[#allocation3 + $0x5e]]
    %v1011 = vstv %s1010
    %v1012 = vmul.f32 %v1011, %v1008
    %v1013 = vmul.f32 %v1011, %v1009
    %v1014 = vadd.f32 %v1000, %v1012
    %v1015 = vadd.f32 %v1001, %v1013
    %s1016 = sld [smem:[#allocation3 + $0x20]]
    %v1017 = vstv %s1016
    %v1018 = vmul.f32 %v1017, %v1008
    %v1019 = vmul.f32 %v1017, %v1009
    %v1020 = vadd.f32 %v1006, %v1018
    %v1021 = vadd.f32 %v1007, %v1019
    %v1022 = vld [vmem:[%s423 + $0x4] sm:$0xff]
    %v1023 = vld [vmem:[%s423 + $0xc] sm:$0xff]
    %s1024 = sld [smem:[#allocation3 + $0x65]]
    %v1025 = vstv %s1024
    %v1026 = vmul.f32 %v1025, %v1022
    %v1027 = vmul.f32 %v1025, %v1023
    %v1028 = vadd.f32 %v1014, %v1026
    %v1029 = vadd.f32 %v1015, %v1027
    %s1030 = sld [smem:[#allocation3 + $0x25]]
    %v1031 = vstv %s1030
    %v1032 = vmul.f32 %v1031, %v1022
    %v1033 = vmul.f32 %v1031, %v1023
    %v1034 = vadd.f32 %v1020, %v1032
    %v1035 = vadd.f32 %v1021, %v1033
    %v1036 = vld [vmem:[%s423 + $0x5] sm:$0xff]
    %v1037 = vld [vmem:[%s423 + $0xd] sm:$0xff]
    %s1038 = sld [smem:[#allocation3 + $0x6c]]
    %v1039 = vstv %s1038
    %v1040 = vmul.f32 %v1039, %v1036
    %v1041 = vmul.f32 %v1039, %v1037
    %v1042 = vadd.f32 %v1028, %v1040
    %v1043 = vadd.f32 %v1029, %v1041
    %s1044 = sld [smem:[#allocation3 + $0x2a]]
    %v1045 = vstv %s1044
    %v1046 = vmul.f32 %v1045, %v1036
    %v1047 = vmul.f32 %v1045, %v1037
    %v1048 = vadd.f32 %v1034, %v1046
    %v1049 = vadd.f32 %v1035, %v1047
    %v1050 = vld [vmem:[%s423 + $0x6] sm:$0xff]
    %v1051 = vld [vmem:[%s423 + $0xe] sm:$0xff]
    %s1052 = sld [smem:[#allocation3 + $0x73]]
    %v1053 = vstv %s1052
    %v1054 = vmul.f32 %v1053, %v1050
    %v1055 = vmul.f32 %v1053, %v1051
    %v1056 = vadd.f32 %v1042, %v1054
    %v1057 = vadd.f32 %v1043, %v1055
    %v1058 = vld [vmem:[%s435] sm:$0xff]
    %v1059 = vld [vmem:[%s435 + $0x8] sm:$0xff]
    %s1060 = sld [smem:[#allocation3 + $0x4a]]
    %v1061 = vstv %s1060
    %v1062 = vmul.f32 %v1061, %v1058
    %v1063 = vmul.f32 %v1061, %v1059
    %v1064 = vadd.f32 %v1056, %v1062
    %v1065 = vadd.f32 %v1057, %v1063
    %v1066 = vld [vmem:[%s435 + $0x1] sm:$0xff]
    %v1067 = vld [vmem:[%s435 + $0x9] sm:$0xff]
    %s1068 = sld [smem:[#allocation3 + $0x51]]
    %v1069 = vstv %s1068
    %v1070 = vmul.f32 %v1069, %v1066
    %v1071 = vmul.f32 %v1069, %v1067
    %v1072 = vadd.f32 %v1064, %v1070
    %v1073 = vadd.f32 %v1065, %v1071
    %v1074 = vld [vmem:[%s435 + $0x2] sm:$0xff]
    %v1075 = vld [vmem:[%s435 + $0xa] sm:$0xff]
    %s1076 = sld [smem:[#allocation3 + $0x58]]
    %v1077 = vstv %s1076
    %v1078 = vmul.f32 %v1077, %v1074
    %v1079 = vmul.f32 %v1077, %v1075
    %v1080 = vadd.f32 %v1072, %v1078
    %v1081 = vadd.f32 %v1073, %v1079
    %v1082 = vld [vmem:[%s435 + $0x3] sm:$0xff]
    %v1083 = vld [vmem:[%s435 + $0xb] sm:$0xff]
    %s1084 = sld [smem:[#allocation3 + $0x5f]]
    %v1085 = vstv %s1084
    %v1086 = vmul.f32 %v1085, %v1082
    %v1087 = vmul.f32 %v1085, %v1083
    %v1088 = vadd.f32 %v1080, %v1086
    %v1089 = vadd.f32 %v1081, %v1087
    %v1090 = vld [vmem:[%s435 + $0x4] sm:$0xff]
    %v1091 = vld [vmem:[%s435 + $0xc] sm:$0xff]
    %s1092 = sld [smem:[#allocation3 + $0x66]]
    %v1093 = vstv %s1092
    %v1094 = vmul.f32 %v1093, %v1090
    %v1095 = vmul.f32 %v1093, %v1091
    %v1096 = vadd.f32 %v1088, %v1094
    %v1097 = vadd.f32 %v1089, %v1095
    %v1098 = vld [vmem:[%s435 + $0x5] sm:$0xff]
    %v1099 = vld [vmem:[%s435 + $0xd] sm:$0xff]
    %s1100 = sld [smem:[#allocation3 + $0x6d]]
    %v1101 = vstv %s1100
    %v1102 = vmul.f32 %v1101, %v1098
    %v1103 = vmul.f32 %v1101, %v1099
    %v1104 = vadd.f32 %v1096, %v1102
    %v1105 = vadd.f32 %v1097, %v1103
    %v1106 = vld [vmem:[%s435 + $0x6] sm:$0xff]
    %v1107 = vld [vmem:[%s435 + $0xe] sm:$0xff]
    %s1108 = sld [smem:[#allocation3 + $0x74]]
    %v1109 = vstv %s1108
    %v1110 = vmul.f32 %v1109, %v1106
    %v1111 = vmul.f32 %v1109, %v1107
    %v1112 = vadd.f32 %v1104, %v1110
    %v1113 = vadd.f32 %v1105, %v1111
    %v1114 = vld [vmem:[%s448] sm:$0xff]
    %v1115 = vld [vmem:[%s448 + $0x8] sm:$0xff]
    %s1116 = sld [smem:[#allocation3 + $0x75]]
    %v1117 = vstv %s1116
    %v1118 = vmul.f32 %v1117, %v1114
    %v1119 = vmul.f32 %v1117, %v1115
    %v1120 = vadd.f32 %v1112, %v1118
    %v1121 = vadd.f32 %v1113, %v1119
    %v1122 = vld [vmem:[%s448 + $0x1] sm:$0xff]
    %v1123 = vld [vmem:[%s448 + $0x9] sm:$0xff]
    %s1124 = sld [smem:[#allocation3 + $0x7c]]
    %v1125 = vstv %s1124
    %v1126 = vmul.f32 %v1125, %v1122
    %v1127 = vmul.f32 %v1125, %v1123
    %v1128 = vadd.f32 %v1120, %v1126
    %v1129 = vadd.f32 %v1121, %v1127
    %v1130 = vld [vmem:[%s448 + $0x2] sm:$0xff]
    %v1131 = vld [vmem:[%s448 + $0xa] sm:$0xff]
    %s1132 = sld [smem:[#allocation3 + $0x83]]
    %v1133 = vstv %s1132
    %v1134 = vmul.f32 %v1133, %v1130
    %v1135 = vmul.f32 %v1133, %v1131
    %v1136 = vadd.f32 %v1128, %v1134
    %v1137 = vadd.f32 %v1129, %v1135
    %v1138 = vld [vmem:[%s448 + $0x3] sm:$0xff]
    %v1139 = vld [vmem:[%s448 + $0xb] sm:$0xff]
    %s1140 = sld [smem:[#allocation3 + $0x8a]]
    %v1141 = vstv %s1140
    %v1142 = vmul.f32 %v1141, %v1138
    %v1143 = vmul.f32 %v1141, %v1139
    %v1144 = vadd.f32 %v1136, %v1142
    %v1145 = vadd.f32 %v1137, %v1143
    %v1146 = vld [vmem:[%s448 + $0x4] sm:$0xff]
    %v1147 = vld [vmem:[%s448 + $0xc] sm:$0xff]
    %s1148 = sld [smem:[#allocation3 + $0x91]]
    %v1149 = vstv %s1148
    %v1150 = vmul.f32 %v1149, %v1146
    %v1151 = vmul.f32 %v1149, %v1147
    %v1152 = vadd.f32 %v1144, %v1150
    %v1153 = vadd.f32 %v1145, %v1151
    %v1154 = vld [vmem:[%s448 + $0x5] sm:$0xff]
    %v1155 = vld [vmem:[%s448 + $0xd] sm:$0xff]
    %s1156 = sld [smem:[#allocation3 + $0x98]]
    %v1157 = vstv %s1156
    %v1158 = vmul.f32 %v1157, %v1154
    %v1159 = vmul.f32 %v1157, %v1155
    %v1160 = vadd.f32 %v1152, %v1158
    %v1161 = vadd.f32 %v1153, %v1159
    %v1162 = vld [vmem:[%s448 + $0x6] sm:$0xff]
    %v1163 = vld [vmem:[%s448 + $0xe] sm:$0xff]
    %s1164 = sld [smem:[#allocation3 + $0x9f]]
    %v1165 = vstv %s1164
    %v1166 = vmul.f32 %v1165, %v1162
    %v1167 = vmul.f32 %v1165, %v1163
    %v1168 = vadd.f32 %v1160, %v1166
    %v1169 = vadd.f32 %v1161, %v1167
    %v1170 = vld [vmem:[%s459] sm:$0xff]
    %v1171 = vld [vmem:[%s459 + $0x8] sm:$0xff]
    %s1172 = sld [smem:[#allocation3 + $0x76]]
    %v1173 = vstv %s1172
    %v1174 = vmul.f32 %v1173, %v1170
    %v1175 = vmul.f32 %v1173, %v1171
    %v1176 = vadd.f32 %v1168, %v1174
    %v1177 = vadd.f32 %v1169, %v1175
    %v1178 = vld [vmem:[%s459 + $0x1] sm:$0xff]
    %v1179 = vld [vmem:[%s459 + $0x9] sm:$0xff]
    %s1180 = sld [smem:[#allocation3 + $0x7d]]
    %v1181 = vstv %s1180
    %v1182 = vmul.f32 %v1181, %v1178
    %v1183 = vmul.f32 %v1181, %v1179
    %v1184 = vadd.f32 %v1176, %v1182
    %v1185 = vadd.f32 %v1177, %v1183
    %s1186 = sld [smem:[#allocation3 + $0x2b]]
    %v1187 = vstv %s1186
    %v1188 = vmul.f32 %v1187, %v1178
    %v1189 = vmul.f32 %v1187, %v1179
    %v1190 = vadd.f32 %v1048, %v1188
    %v1191 = vadd.f32 %v1049, %v1189
    %v1192 = vld [vmem:[%s459 + $0x2] sm:$0xff]
    %v1193 = vld [vmem:[%s459 + $0xa] sm:$0xff]
    %s1194 = sld [smem:[#allocation3 + $0x84]]
    %v1195 = vstv %s1194
    %v1196 = vmul.f32 %v1195, %v1192
    %v1197 = vmul.f32 %v1195, %v1193
    %v1198 = vadd.f32 %v1184, %v1196
    %v1199 = vadd.f32 %v1185, %v1197
    %s1200 = sld [smem:[#allocation3 + $0x30]]
    %v1201 = vstv %s1200
    %v1202 = vmul.f32 %v1201, %v1192
    %v1203 = vmul.f32 %v1201, %v1193
    %v1204 = vadd.f32 %v1190, %v1202
    %v1205 = vadd.f32 %v1191, %v1203
    %v1206 = vld [vmem:[%s459 + $0x3] sm:$0xff]
    %v1207 = vld [vmem:[%s459 + $0xb] sm:$0xff]
    %s1208 = sld [smem:[#allocation3 + $0x8b]]
    %v1209 = vstv %s1208
    %v1210 = vmul.f32 %v1209, %v1206
    %v1211 = vmul.f32 %v1209, %v1207
    %v1212 = vadd.f32 %v1198, %v1210
    %v1213 = vadd.f32 %v1199, %v1211
    %s1214 = sld [smem:[#allocation3 + $0x35]]
    %v1215 = vstv %s1214
    %v1216 = vmul.f32 %v1215, %v1206
    %v1217 = vmul.f32 %v1215, %v1207
    %v1218 = vadd.f32 %v1204, %v1216
    %v1219 = vadd.f32 %v1205, %v1217
    %v1220 = vld [vmem:[%s459 + $0x4] sm:$0xff]
    %v1221 = vld [vmem:[%s459 + $0xc] sm:$0xff]
    %s1222 = sld [smem:[#allocation3 + $0x92]]
    %v1223 = vstv %s1222
    %v1224 = vmul.f32 %v1223, %v1220
    %v1225 = vmul.f32 %v1223, %v1221
    %v1226 = vadd.f32 %v1212, %v1224
    %v1227 = vadd.f32 %v1213, %v1225
    %s1228 = sld [smem:[#allocation3 + $0x3a]]
    %v1229 = vstv %s1228
    %v1230 = vmul.f32 %v1229, %v1220
    %v1231 = vmul.f32 %v1229, %v1221
    %v1232 = vadd.f32 %v1218, %v1230
    %v1233 = vadd.f32 %v1219, %v1231
    %v1234 = vld [vmem:[%s459 + $0x5] sm:$0xff]
    %v1235 = vld [vmem:[%s459 + $0xd] sm:$0xff]
    %s1236 = sld [smem:[#allocation3 + $0x99]]
    %v1237 = vstv %s1236
    %v1238 = vmul.f32 %v1237, %v1234
    %v1239 = vmul.f32 %v1237, %v1235
    %v1240 = vadd.f32 %v1226, %v1238
    %v1241 = vadd.f32 %v1227, %v1239
    %s1242 = sld [smem:[#allocation3 + $0x3f]]
    %v1243 = vstv %s1242
    %v1244 = vmul.f32 %v1243, %v1234
    %v1245 = vmul.f32 %v1243, %v1235
    %v1246 = vadd.f32 %v1232, %v1244
    %v1247 = vadd.f32 %v1233, %v1245
    %v1248 = vld [vmem:[%s459 + $0x6] sm:$0xff]
    %v1249 = vld [vmem:[%s459 + $0xe] sm:$0xff]
    %s1250 = sld [smem:[#allocation3 + $0xa0]]
    %v1251 = vstv %s1250
    %v1252 = vmul.f32 %v1251, %v1248
    %v1253 = vmul.f32 %v1251, %v1249
    %v1254 = vadd.f32 %v1240, %v1252
    %v1255 = vadd.f32 %v1241, %v1253
    %v1256 = vld [vmem:[%s470] sm:$0xff]
    %v1257 = vld [vmem:[%s470 + $0x8] sm:$0xff]
    %s1258 = sld [smem:[#allocation3 + $0x77]]
    %v1259 = vstv %s1258
    %v1260 = vmul.f32 %v1259, %v1256
    %v1261 = vmul.f32 %v1259, %v1257
    %v1262 = vadd.f32 %v1254, %v1260
    %v1263 = vadd.f32 %v1255, %v1261
    %v1264 = vld [vmem:[%s470 + $0x1] sm:$0xff]
    %v1265 = vld [vmem:[%s470 + $0x9] sm:$0xff]
    %s1266 = sld [smem:[#allocation3 + $0x7e]]
    %v1267 = vstv %s1266
    %v1268 = vmul.f32 %v1267, %v1264
    %v1269 = vmul.f32 %v1267, %v1265
    %v1270 = vadd.f32 %v1262, %v1268
    %v1271 = vadd.f32 %v1263, %v1269
    %s1272 = sld [smem:[#allocation3 + $0x2c]]
    %v1273 = vstv %s1272
    %v1274 = vmul.f32 %v1273, %v1264
    %v1275 = vmul.f32 %v1273, %v1265
    %v1276 = vadd.f32 %v1246, %v1274
    %v1277 = vadd.f32 %v1247, %v1275
    %v1278 = vld [vmem:[%s470 + $0x2] sm:$0xff]
    %v1279 = vld [vmem:[%s470 + $0xa] sm:$0xff]
    %s1280 = sld [smem:[#allocation3 + $0x85]]
    %v1281 = vstv %s1280
    %v1282 = vmul.f32 %v1281, %v1278
    %v1283 = vmul.f32 %v1281, %v1279
    %v1284 = vadd.f32 %v1270, %v1282
    %v1285 = vadd.f32 %v1271, %v1283
    %s1286 = sld [smem:[#allocation3 + $0x31]]
    %v1287 = vstv %s1286
    %v1288 = vmul.f32 %v1287, %v1278
    %v1289 = vmul.f32 %v1287, %v1279
    %v1290 = vadd.f32 %v1276, %v1288
    %v1291 = vadd.f32 %v1277, %v1289
    %s1292 = sld [smem:[#allocation3 + $0x9]]
    %v1293 = vstv %s1292
    %v1294 = vmul.f32 %v1293, %v1278
    %v1295 = vmul.f32 %v1293, %v1279
    %v1296 = vadd.f32 %v948, %v1294
    %v1297 = vadd.f32 %v949, %v1295
    %v1298 = vld [vmem:[%s470 + $0x3] sm:$0xff]
    %v1299 = vld [vmem:[%s470 + $0xb] sm:$0xff]
    %s1300 = sld [smem:[#allocation3 + $0x8c]]
    %v1301 = vstv %s1300
    %v1302 = vmul.f32 %v1301, %v1298
    %v1303 = vmul.f32 %v1301, %v1299
    %v1304 = vadd.f32 %v1284, %v1302
    %v1305 = vadd.f32 %v1285, %v1303
    %s1306 = sld [smem:[#allocation3 + $0x36]]
    %v1307 = vstv %s1306
    %v1308 = vmul.f32 %v1307, %v1298
    %v1309 = vmul.f32 %v1307, %v1299
    %v1310 = vadd.f32 %v1290, %v1308
    %v1311 = vadd.f32 %v1291, %v1309
    %s1312 = sld [smem:[#allocation3 + $0xc]]
    %v1313 = vstv %s1312
    %v1314 = vmul.f32 %v1313, %v1298
    %v1315 = vmul.f32 %v1313, %v1299
    %v1316 = vadd.f32 %v1296, %v1314
    %v1317 = vadd.f32 %v1297, %v1315
    %v1318 = vld [vmem:[%s470 + $0x4] sm:$0xff]
    %v1319 = vld [vmem:[%s470 + $0xc] sm:$0xff]
    %s1320 = sld [smem:[#allocation3 + $0x93]]
    %v1321 = vstv %s1320
    %v1322 = vmul.f32 %v1321, %v1318
    %v1323 = vmul.f32 %v1321, %v1319
    %v1324 = vadd.f32 %v1304, %v1322
    %v1325 = vadd.f32 %v1305, %v1323
    %s1326 = sld [smem:[#allocation3 + $0x3b]]
    %v1327 = vstv %s1326
    %v1328 = vmul.f32 %v1327, %v1318
    %v1329 = vmul.f32 %v1327, %v1319
    %v1330 = vadd.f32 %v1310, %v1328
    %v1331 = vadd.f32 %v1311, %v1329
    %s1332 = sld [smem:[#allocation3 + $0xf]]
    %v1333 = vstv %s1332
    %v1334 = vmul.f32 %v1333, %v1318
    %v1335 = vmul.f32 %v1333, %v1319
    %v1336 = vadd.f32 %v1316, %v1334
    %v1337 = vadd.f32 %v1317, %v1335
    %v1338 = vld [vmem:[%s470 + $0x5] sm:$0xff]
    %v1339 = vld [vmem:[%s470 + $0xd] sm:$0xff]
    %s1340 = sld [smem:[#allocation3 + $0x9a]]
    %v1341 = vstv %s1340
    %v1342 = vmul.f32 %v1341, %v1338
    %v1343 = vmul.f32 %v1341, %v1339
    %v1344 = vadd.f32 %v1324, %v1342
    %v1345 = vadd.f32 %v1325, %v1343
    %s1346 = sld [smem:[#allocation3 + $0x40]]
    %v1347 = vstv %s1346
    %v1348 = vmul.f32 %v1347, %v1338
    %v1349 = vmul.f32 %v1347, %v1339
    %v1350 = vadd.f32 %v1330, %v1348
    %v1351 = vadd.f32 %v1331, %v1349
    %v1352 = vld [vmem:[%s470 + $0x6] sm:$0xff]
    %v1353 = vld [vmem:[%s470 + $0xe] sm:$0xff]
    %s1354 = sld [smem:[#allocation3 + $0xa1]]
    %v1355 = vstv %s1354
    %v1356 = vmul.f32 %v1355, %v1352
    %v1357 = vmul.f32 %v1355, %v1353
    %v1358 = vadd.f32 %v1344, %v1356
    %v1359 = vadd.f32 %v1345, %v1357
    %v1360 = vld [vmem:[%s473] sm:$0xff]
    %v1361 = vld [vmem:[%s473 + $0x8] sm:$0xff]
    %s1362 = sld [smem:[#allocation3 + $0x78]]
    %v1363 = vstv %s1362
    %v1364 = vmul.f32 %v1363, %v1360
    %v1365 = vmul.f32 %v1363, %v1361
    %v1366 = vadd.f32 %v1358, %v1364
    %v1367 = vadd.f32 %v1359, %v1365
    %v1368 = vld [vmem:[%s473 + $0x1] sm:$0xff]
    %v1369 = vld [vmem:[%s473 + $0x9] sm:$0xff]
    %s1370 = sld [smem:[#allocation3 + $0x7f]]
    %v1371 = vstv %s1370
    %v1372 = vmul.f32 %v1371, %v1368
    %v1373 = vmul.f32 %v1371, %v1369
    %v1374 = vadd.f32 %v1366, %v1372
    %v1375 = vadd.f32 %v1367, %v1373
    %s1376 = sld [smem:[#allocation3 + $0x2d]]
    %v1377 = vstv %s1376
    %v1378 = vmul.f32 %v1377, %v1368
    %v1379 = vmul.f32 %v1377, %v1369
    %v1380 = vadd.f32 %v1350, %v1378
    %v1381 = vadd.f32 %v1351, %v1379
    %v1382 = vld [vmem:[%s473 + $0x2] sm:$0xff]
    %v1383 = vld [vmem:[%s473 + $0xa] sm:$0xff]
    %s1384 = sld [smem:[#allocation3 + $0x86]]
    %v1385 = vstv %s1384
    %v1386 = vmul.f32 %v1385, %v1382
    %v1387 = vmul.f32 %v1385, %v1383
    %v1388 = vadd.f32 %v1374, %v1386
    %v1389 = vadd.f32 %v1375, %v1387
    %s1390 = sld [smem:[#allocation3 + $0x32]]
    %v1391 = vstv %s1390
    %v1392 = vmul.f32 %v1391, %v1382
    %v1393 = vmul.f32 %v1391, %v1383
    %v1394 = vadd.f32 %v1380, %v1392
    %v1395 = vadd.f32 %v1381, %v1393
    %s1396 = sld [smem:[#allocation3 + $0xa]]
    %v1397 = vstv %s1396
    %v1398 = vmul.f32 %v1397, %v1382
    %v1399 = vmul.f32 %v1397, %v1383
    %v1400 = vadd.f32 %v1336, %v1398
    %v1401 = vadd.f32 %v1337, %v1399
    %v1402 = vld [vmem:[%s473 + $0x3] sm:$0xff]
    %v1403 = vld [vmem:[%s473 + $0xb] sm:$0xff]
    %s1404 = sld [smem:[#allocation3 + $0x8d]]
    %v1405 = vstv %s1404
    %v1406 = vmul.f32 %v1405, %v1402
    %v1407 = vmul.f32 %v1405, %v1403
    %v1408 = vadd.f32 %v1388, %v1406
    %v1409 = vadd.f32 %v1389, %v1407
    %s1410 = sld [smem:[#allocation3 + $0x37]]
    %v1411 = vstv %s1410
    %v1412 = vmul.f32 %v1411, %v1402
    %v1413 = vmul.f32 %v1411, %v1403
    %v1414 = vadd.f32 %v1394, %v1412
    %v1415 = vadd.f32 %v1395, %v1413
    %s1416 = sld [smem:[#allocation3 + $0xd]]
    %v1417 = vstv %s1416
    %v1418 = vmul.f32 %v1417, %v1402
    %v1419 = vmul.f32 %v1417, %v1403
    %v1420 = vadd.f32 %v1400, %v1418
    %v1421 = vadd.f32 %v1401, %v1419
    %v1422 = vld [vmem:[%s473 + $0x4] sm:$0xff]
    %v1423 = vld [vmem:[%s473 + $0xc] sm:$0xff]
    %s1424 = sld [smem:[#allocation3 + $0x94]]
    %v1425 = vstv %s1424
    %v1426 = vmul.f32 %v1425, %v1422
    %v1427 = vmul.f32 %v1425, %v1423
    %v1428 = vadd.f32 %v1408, %v1426
    %v1429 = vadd.f32 %v1409, %v1427
    %s1430 = sld [smem:[#allocation3 + $0x3c]]
    %v1431 = vstv %s1430
    %v1432 = vmul.f32 %v1431, %v1422
    %v1433 = vmul.f32 %v1431, %v1423
    %v1434 = vadd.f32 %v1414, %v1432
    %v1435 = vadd.f32 %v1415, %v1433
    %s1436 = sld [smem:[#allocation3 + $0x10]]
    %v1437 = vstv %s1436
    %v1438 = vmul.f32 %v1437, %v1422
    %v1439 = vmul.f32 %v1437, %v1423
    %v1440 = vadd.f32 %v1420, %v1438
    %v1441 = vadd.f32 %v1421, %v1439
    %v1442 = vld [vmem:[%s473 + $0x5] sm:$0xff]
    %v1443 = vld [vmem:[%s473 + $0xd] sm:$0xff]
    %s1444 = sld [smem:[#allocation3 + $0x9b]]
    %v1445 = vstv %s1444
    %v1446 = vmul.f32 %v1445, %v1442
    %v1447 = vmul.f32 %v1445, %v1443
    %v1448 = vadd.f32 %v1428, %v1446
    %v1449 = vadd.f32 %v1429, %v1447
    %s1450 = sld [smem:[#allocation3 + $0x41]]
    %v1451 = vstv %s1450
    %v1452 = vmul.f32 %v1451, %v1442
    %v1453 = vmul.f32 %v1451, %v1443
    %v1454 = vadd.f32 %v1434, %v1452
    %v1455 = vadd.f32 %v1435, %v1453
    %v1456 = vld [vmem:[%s473 + $0x6] sm:$0xff]
    %v1457 = vld [vmem:[%s473 + $0xe] sm:$0xff]
    %s1458 = sld [smem:[#allocation3 + $0xa2]]
    %v1459 = vstv %s1458
    %v1460 = vmul.f32 %v1459, %v1456
    %v1461 = vmul.f32 %v1459, %v1457
    %v1462 = vadd.f32 %v1448, %v1460
    %v1463 = vadd.f32 %v1449, %v1461
    %v1464 = vld [vmem:[%s484] sm:$0xff]
    %v1465 = vld [vmem:[%s484 + $0x8] sm:$0xff]
    %s1466 = sld [smem:[#allocation3 + $0x79]]
    %v1467 = vstv %s1466
    %v1468 = vmul.f32 %v1467, %v1464
    %v1469 = vmul.f32 %v1467, %v1465
    %v1470 = vadd.f32 %v1462, %v1468
    %v1471 = vadd.f32 %v1463, %v1469
    %v1472 = vld [vmem:[%s484 + $0x1] sm:$0xff]
    %v1473 = vld [vmem:[%s484 + $0x9] sm:$0xff]
    %s1474 = sld [smem:[#allocation3 + $0x80]]
    %v1475 = vstv %s1474
    %v1476 = vmul.f32 %v1475, %v1472
    %v1477 = vmul.f32 %v1475, %v1473
    %v1478 = vadd.f32 %v1470, %v1476
    %v1479 = vadd.f32 %v1471, %v1477
    %s1480 = sld [smem:[#allocation3 + $0x2e]]
    %v1481 = vstv %s1480
    %v1482 = vmul.f32 %v1481, %v1472
    %v1483 = vmul.f32 %v1481, %v1473
    %v1484 = vadd.f32 %v1454, %v1482
    %v1485 = vadd.f32 %v1455, %v1483
    %v1486 = vld [vmem:[%s484 + $0x2] sm:$0xff]
    %v1487 = vld [vmem:[%s484 + $0xa] sm:$0xff]
    %s1488 = sld [smem:[#allocation3 + $0x87]]
    %v1489 = vstv %s1488
    %v1490 = vmul.f32 %v1489, %v1486
    %v1491 = vmul.f32 %v1489, %v1487
    %v1492 = vadd.f32 %v1478, %v1490
    %v1493 = vadd.f32 %v1479, %v1491
    %s1494 = sld [smem:[#allocation3 + $0x33]]
    %v1495 = vstv %s1494
    %v1496 = vmul.f32 %v1495, %v1486
    %v1497 = vmul.f32 %v1495, %v1487
    %v1498 = vadd.f32 %v1484, %v1496
    %v1499 = vadd.f32 %v1485, %v1497
    %s1500 = sld [smem:[#allocation3 + $0xb]]
    %v1501 = vstv %s1500
    %v1502 = vmul.f32 %v1501, %v1486
    %v1503 = vmul.f32 %v1501, %v1487
    %v1504 = vadd.f32 %v1440, %v1502
    %v1505 = vadd.f32 %v1441, %v1503
    %v1506 = vld [vmem:[%s484 + $0x3] sm:$0xff]
    %v1507 = vld [vmem:[%s484 + $0xb] sm:$0xff]
    %s1508 = sld [smem:[#allocation3 + $0x8e]]
    %v1509 = vstv %s1508
    %v1510 = vmul.f32 %v1509, %v1506
    %v1511 = vmul.f32 %v1509, %v1507
    %v1512 = vadd.f32 %v1492, %v1510
    %v1513 = vadd.f32 %v1493, %v1511
    %s1514 = sld [smem:[#allocation3 + $0x38]]
    %v1515 = vstv %s1514
    %v1516 = vmul.f32 %v1515, %v1506
    %v1517 = vmul.f32 %v1515, %v1507
    %v1518 = vadd.f32 %v1498, %v1516
    %v1519 = vadd.f32 %v1499, %v1517
    %s1520 = sld [smem:[#allocation3 + $0xe]]
    %v1521 = vstv %s1520
    %v1522 = vmul.f32 %v1521, %v1506
    %v1523 = vmul.f32 %v1521, %v1507
    %v1524 = vadd.f32 %v1504, %v1522
    %v1525 = vadd.f32 %v1505, %v1523
    %v1526 = vld [vmem:[%s484 + $0x4] sm:$0xff]
    %v1527 = vld [vmem:[%s484 + $0xc] sm:$0xff]
    %s1528 = sld [smem:[#allocation3 + $0x95]]
    %v1529 = vstv %s1528
    %v1530 = vmul.f32 %v1529, %v1526
    %v1531 = vmul.f32 %v1529, %v1527
    %v1532 = vadd.f32 %v1512, %v1530
    %v1533 = vadd.f32 %v1513, %v1531
    %s1534 = sld [smem:[#allocation3 + $0x3d]]
    %v1535 = vstv %s1534
    %v1536 = vmul.f32 %v1535, %v1526
    %v1537 = vmul.f32 %v1535, %v1527
    %v1538 = vadd.f32 %v1518, %v1536
    %v1539 = vadd.f32 %v1519, %v1537
    %s1540 = sld [smem:[#allocation3 + $0x11]]
    %v1541 = vstv %s1540
    %v1542 = vmul.f32 %v1541, %v1526
    %v1543 = vmul.f32 %v1541, %v1527
    %v1544 = vadd.f32 %v1524, %v1542
    %v1545 = vadd.f32 %v1525, %v1543
    %v1546 = vld [vmem:[%s484 + $0x5] sm:$0xff]
    %v1547 = vld [vmem:[%s484 + $0xd] sm:$0xff]
    %s1548 = sld [smem:[#allocation3 + $0x9c]]
    %v1549 = vstv %s1548
    %v1550 = vmul.f32 %v1549, %v1546
    %v1551 = vmul.f32 %v1549, %v1547
    %v1552 = vadd.f32 %v1532, %v1550
    %v1553 = vadd.f32 %v1533, %v1551
    %s1554 = sld [smem:[#allocation3 + $0x42]]
    %v1555 = vstv %s1554
    %v1556 = vmul.f32 %v1555, %v1546
    %v1557 = vmul.f32 %v1555, %v1547
    %v1558 = vadd.f32 %v1538, %v1556
    %v1559 = vadd.f32 %v1539, %v1557
    %v1560 = vld [vmem:[%s484 + $0x6] sm:$0xff]
    %v1561 = vld [vmem:[%s484 + $0xe] sm:$0xff]
    %s1562 = sld [smem:[#allocation3 + $0xa3]]
    %v1563 = vstv %s1562
    %v1564 = vmul.f32 %v1563, %v1560
    %v1565 = vmul.f32 %v1563, %v1561
    %v1566 = vadd.f32 %v1552, %v1564
    %v1567 = vadd.f32 %v1553, %v1565
    %v1568 = vld [vmem:[%s495] sm:$0xff]
    %v1569 = vld [vmem:[%s495 + $0x8] sm:$0xff]
    %s1570 = sld [smem:[#allocation3 + $0x7a]]
    %v1571 = vstv %s1570
    %v1572 = vmul.f32 %v1571, %v1568
    %v1573 = vmul.f32 %v1571, %v1569
    %v1574 = vadd.f32 %v1566, %v1572
    %v1575 = vadd.f32 %v1567, %v1573
    %v1576 = vld [vmem:[%s495 + $0x1] sm:$0xff]
    %v1577 = vld [vmem:[%s495 + $0x9] sm:$0xff]
    %s1578 = sld [smem:[#allocation3 + $0x81]]
    %v1579 = vstv %s1578
    %v1580 = vmul.f32 %v1579, %v1576
    %v1581 = vmul.f32 %v1579, %v1577
    %v1582 = vadd.f32 %v1574, %v1580
    %v1583 = vadd.f32 %v1575, %v1581
    %s1584 = sld [smem:[#allocation3 + $0x2f]]
    %v1585 = vstv %s1584
    %v1586 = vmul.f32 %v1585, %v1576
    %v1587 = vmul.f32 %v1585, %v1577
    %v1588 = vadd.f32 %v1558, %v1586
    %v1589 = vadd.f32 %v1559, %v1587
    %v1590 = vld [vmem:[%s495 + $0x2] sm:$0xff]
    %v1591 = vld [vmem:[%s495 + $0xa] sm:$0xff]
    %s1592 = sld [smem:[#allocation3 + $0x88]]
    %v1593 = vstv %s1592
    %v1594 = vmul.f32 %v1593, %v1590
    %v1595 = vmul.f32 %v1593, %v1591
    %v1596 = vadd.f32 %v1582, %v1594
    %v1597 = vadd.f32 %v1583, %v1595
    %s1598 = sld [smem:[#allocation3 + $0x34]]
    %v1599 = vstv %s1598
    %v1600 = vmul.f32 %v1599, %v1590
    %v1601 = vmul.f32 %v1599, %v1591
    %v1602 = vadd.f32 %v1588, %v1600
    %v1603 = vadd.f32 %v1589, %v1601
    %v1604 = vld [vmem:[%s495 + $0x3] sm:$0xff]
    %v1605 = vld [vmem:[%s495 + $0xb] sm:$0xff]
    %s1606 = sld [smem:[#allocation3 + $0x8f]]
    %v1607 = vstv %s1606
    %v1608 = vmul.f32 %v1607, %v1604
    %v1609 = vmul.f32 %v1607, %v1605
    %v1610 = vadd.f32 %v1596, %v1608
    %v1611 = vadd.f32 %v1597, %v1609
    %s1612 = sld [smem:[#allocation3 + $0x39]]
    %v1613 = vstv %s1612
    %v1614 = vmul.f32 %v1613, %v1604
    %v1615 = vmul.f32 %v1613, %v1605
    %v1616 = vadd.f32 %v1602, %v1614
    %v1617 = vadd.f32 %v1603, %v1615
    %v1618 = vld [vmem:[%s495 + $0x4] sm:$0xff]
    %v1619 = vld [vmem:[%s495 + $0xc] sm:$0xff]
    %s1620 = sld [smem:[#allocation3 + $0x96]]
    %v1621 = vstv %s1620
    %v1622 = vmul.f32 %v1621, %v1618
    %v1623 = vmul.f32 %v1621, %v1619
    %v1624 = vadd.f32 %v1610, %v1622
    %v1625 = vadd.f32 %v1611, %v1623
    %s1626 = sld [smem:[#allocation3 + $0x3e]]
    %v1627 = vstv %s1626
    %v1628 = vmul.f32 %v1627, %v1618
    %v1629 = vmul.f32 %v1627, %v1619
    %v1630 = vadd.f32 %v1616, %v1628
    %v1631 = vadd.f32 %v1617, %v1629
    %v1632 = vld [vmem:[%s495 + $0x5] sm:$0xff]
    %v1633 = vld [vmem:[%s495 + $0xd] sm:$0xff]
    %s1634 = sld [smem:[#allocation3 + $0x9d]]
    %v1635 = vstv %s1634
    %v1636 = vmul.f32 %v1635, %v1632
    %v1637 = vmul.f32 %v1635, %v1633
    %v1638 = vadd.f32 %v1624, %v1636
    %v1639 = vadd.f32 %v1625, %v1637
    %s1640 = sld [smem:[#allocation3 + $0x43]]
    %v1641 = vstv %s1640
    %v1642 = vmul.f32 %v1641, %v1632
    %v1643 = vmul.f32 %v1641, %v1633
    %v1644 = vadd.f32 %v1630, %v1642
    %v1645 = vadd.f32 %v1631, %v1643
    %v1646 = vld [vmem:[%s495 + $0x6] sm:$0xff]
    %v1647 = vld [vmem:[%s495 + $0xe] sm:$0xff]
    %s1648 = sld [smem:[#allocation3 + $0xa4]]
    %v1649 = vstv %s1648
    %v1650 = vmul.f32 %v1649, %v1646
    %v1651 = vmul.f32 %v1649, %v1647
    %v1652 = vadd.f32 %v1638, %v1650
    %v1653 = vadd.f32 %v1639, %v1651
    %v1654 = vld [vmem:[%s506] sm:$0xff]
    %v1655 = vld [vmem:[%s506 + $0x8] sm:$0xff]
    %s1656 = sld [smem:[#allocation3 + $0x7b]]
    %v1657 = vstv %s1656
    %v1658 = vmul.f32 %v1657, %v1654
    %v1659 = vmul.f32 %v1657, %v1655
    %v1660 = vadd.f32 %v1652, %v1658
    %v1661 = vadd.f32 %v1653, %v1659
    %v1662 = vld [vmem:[%s506 + $0x1] sm:$0xff]
    %v1663 = vld [vmem:[%s506 + $0x9] sm:$0xff]
    %s1664 = sld [smem:[#allocation3 + $0x82]]
    %v1665 = vstv %s1664
    %v1666 = vmul.f32 %v1665, %v1662
    %v1667 = vmul.f32 %v1665, %v1663
    %v1668 = vadd.f32 %v1660, %v1666
    %v1669 = vadd.f32 %v1661, %v1667
    %v1670 = vld [vmem:[%s506 + $0x2] sm:$0xff]
    %v1671 = vld [vmem:[%s506 + $0xa] sm:$0xff]
    %s1672 = sld [smem:[#allocation3 + $0x89]]
    %v1673 = vstv %s1672
    %v1674 = vmul.f32 %v1673, %v1670
    %v1675 = vmul.f32 %v1673, %v1671
    %v1676 = vadd.f32 %v1668, %v1674
    %v1677 = vadd.f32 %v1669, %v1675
    %v1678 = vld [vmem:[%s506 + $0x3] sm:$0xff]
    %v1679 = vld [vmem:[%s506 + $0xb] sm:$0xff]
    %s1680 = sld [smem:[#allocation3 + $0x90]]
    %v1681 = vstv %s1680
    %v1682 = vmul.f32 %v1681, %v1678
    %v1683 = vmul.f32 %v1681, %v1679
    %v1684 = vadd.f32 %v1676, %v1682
    %v1685 = vadd.f32 %v1677, %v1683
    %v1686 = vld [vmem:[%s506 + $0x4] sm:$0xff]
    %v1687 = vld [vmem:[%s506 + $0xc] sm:$0xff]
    %s1688 = sld [smem:[#allocation3 + $0x97]]
    %v1689 = vstv %s1688
    %v1690 = vmul.f32 %v1689, %v1686
    %v1691 = vmul.f32 %v1689, %v1687
    %v1692 = vadd.f32 %v1684, %v1690
    %v1693 = vadd.f32 %v1685, %v1691
    %v1694 = vld [vmem:[%s506 + $0x5] sm:$0xff]
    %v1695 = vld [vmem:[%s506 + $0xd] sm:$0xff]
    %s1696 = sld [smem:[#allocation3 + $0x9e]]
    %v1697 = vstv %s1696
    %v1698 = vmul.f32 %v1697, %v1694
    %v1699 = vmul.f32 %v1697, %v1695
    %v1700 = vadd.f32 %v1692, %v1698
    %v1701 = vadd.f32 %v1693, %v1699
    %v1702 = vld [vmem:[%s506 + $0x6] sm:$0xff]
    %v1703 = vld [vmem:[%s506 + $0xe] sm:$0xff]
    %s1704 = sld [smem:[#allocation3 + $0xa5]]
    %v1705 = vstv %s1704
    %v1706 = vmul.f32 %v1705, %v1702
    %v1707 = vmul.f32 %v1705, %v1703
    %v1708 = vadd.f32 %v1700, %v1706
    %v1709 = vadd.f32 %v1701, %v1707
    %s1710 = sld [smem:[#allocation5 + $0x3]]
    %v1711 = vmax.f32 %v1544, 0.0
    %v1712 = vmax.f32 %v1545, 0.0
    %v1713 = vstv %s1710
    %v1714 = vmul.f32 %v1713, %v1711
    %v1715 = vmul.f32 %v1713, %v1712
    %s1716 = sld [smem:[#allocation5 + $0x4]]
    %v1717 = vmax.f32 %v1644, 0.0
    %v1718 = vmax.f32 %v1645, 0.0
    %v1719 = vstv %s1716
    %v1720 = vmul.f32 %v1719, %v1717
    %v1721 = vmul.f32 %v1719, %v1718
    %v1722 = vadd.f32 %v1714, %v1720
    %v1723 = vadd.f32 %v1715, %v1721
    %s1724 = sld [smem:[#allocation5 + $0x5]]
    %v1725 = vmax.f32 %v1708, 0.0
    %v1726 = vmax.f32 %v1709, 0.0
    %v1727 = vstv %s1724
    %v1728 = vmul.f32 %v1727, %v1725
    %v1729 = vmul.f32 %v1727, %v1726
    %v1730 = vadd.f32 %v1722, %v1728
    %v1731 = vadd.f32 %v1723, %v1729
    %s1732 = sld [smem:[#allocation5 + $0x6]]
    %v1733 = vstv %s1732
    %v1734 = vadd.f32 %v1730, %v1733
    %v1735 = vadd.f32 %v1731, %v1733
    %v1736 = vxor.u32 %v1734, 2147483648
    %v1737 = vxor.u32 %v1735, 2147483648
    %v1738 = vmul.f32 %v1736, 1.442695
    %v1739 = vpow.pop %v1738
    %v1740 = vmul.f32 %v1737, 1.442695
    %v1741 = vpow.pop %v1740
    %v1742 = vadd.f32 %v1739, 1.0
    %v1743 = vadd.f32 %v1741, 1.0
    %v1744 = vrcp.pop %v1742
    %v1745 = vmul.f32 1.0, %v1744
    %v1746 = vrcp.pop %v1743
    %v1747 = vmul.f32 1.0, %v1746
    %v1749 = vrot.slane %v1745, 1
    %1750 = vrot.lane.b32.xlu0 %v1749, 16
    %v1751 = vpop.permute.xlu0 %1750
    %v1753 = vrot.slane %v1745, 2
    %1754 = vrot.lane.b32.xlu0 %v1753, 32
    %v1755 = vpop.permute.xlu0 %1754
    %v1757 = vrot.slane %v1745, 3
    %1758 = vrot.lane.b32.xlu0 %v1757, 48
    %v1759 = vpop.permute.xlu0 %1758
    %v1761 = vrot.slane %v1745, 4
    %1762 = vrot.lane.b32.xlu0 %v1761, 64
    %v1763 = vpop.permute.xlu0 %1762
    %v1765 = vrot.slane %v1745, 5
    %1766 = vrot.lane.b32.xlu0 %v1765, 80
    %v1767 = vpop.permute.xlu0 %1766
    %v1769 = vrot.slane %v1745, 6
    %1770 = vrot.lane.b32.xlu0 %v1769, 96
    %v1771 = vpop.permute.xlu0 %1770
    %v1773 = vrot.slane %v1745, 7
    %1774 = vrot.lane.b32.xlu0 %v1773, 112
    %v1775 = vpop.permute.xlu0 %1774
    %v1778 = vrot.slane %v1747, 1
    %1779 = vrot.lane.b32.xlu0 %v1778, 16
    %v1780 = vpop.permute.xlu0 %1779
    %v1782 = vrot.slane %v1747, 2
    %1783 = vrot.lane.b32.xlu0 %v1782, 32
    %v1784 = vpop.permute.xlu0 %1783
    %v1786 = vrot.slane %v1747, 3
    %1787 = vrot.lane.b32.xlu0 %v1786, 48
    %v1788 = vpop.permute.xlu0 %1787
    %v1790 = vrot.slane %v1747, 4
    %1791 = vrot.lane.b32.xlu0 %v1790, 64
    %v1792 = vpop.permute.xlu0 %1791
    %v1794 = vrot.slane %v1747, 5
    %1795 = vrot.lane.b32.xlu0 %v1794, 80
    %v1796 = vpop.permute.xlu0 %1795
    %v1798 = vrot.slane %v1747, 6
    %1799 = vrot.lane.b32.xlu0 %v1798, 96
    %v1800 = vpop.permute.xlu0 %1799
    %v1802 = vrot.slane %v1747, 7
    %1803 = vrot.lane.b32.xlu0 %v1802, 112
    %v1804 = vpop.permute.xlu0 %1803
    %v1806 = vsel %vm45, %v1745, %v1751
    %vm1807 = vcmask 261120
    %v1808 = vsel %vm1807, %v1806, %v1755
    %vm1809 = vcmask 392192
    %v1810 = vsel %vm1809, %v1808, %v1759
    %vm1811 = vcmask 523264
    %v1812 = vsel %vm1811, %v1810, %v1763
    %vm1813 = vcmask 654336
    %v1814 = vsel %vm1813, %v1812, %v1767
    %vm1815 = vcmask 785408
    %v1816 = vsel %vm1815, %v1814, %v1771
    %vm1817 = vcmask 916480
    %v1818 = vsel %vm1817, %v1816, %v1775
    %v1819 = vsel %vm45, %v1747, %v1780
    %v1820 = vsel %vm1807, %v1819, %v1784
    %v1821 = vsel %vm1809, %v1820, %v1788
    %v1822 = vsel %vm1811, %v1821, %v1792
    %v1823 = vsel %vm1813, %v1822, %v1796
    %v1824 = vsel %vm1815, %v1823, %v1800
    %v1825 = vsel %vm1817, %v1824, %v1804
    %v1826 = vld [vmem:[%s5] sm:$0xff]
    %v1827 = vld [vmem:[%s5 + $0x8] sm:$0xff]
    %v1828 = vld [vmem:[%s5 + $0x10] sm:$0xff]
    %v1829 = vld [vmem:[%s5 + $0x18] sm:$0xff]
    %v1830 = vld [vmem:[%s5 + $0x20] sm:$0xff]
    %v1831 = vld [vmem:[%s5 + $0x28] sm:$0xff]
    %v1832 = vld [vmem:[%s5 + $0x30] sm:$0xff]
    %v1833 = vld [vmem:[%s5 + $0x38] sm:$0xff]
    %v1834 = vlaneseq
    %v1835 = vshrl.u32 %v1834, 7
    %v1836 = vsub.s32 0, %v1835
    %v1837 = vrot.slane %v1818, %v1836
    %v1838 = vlaneseq
    %v1839 = vshrl.u32 %v1838, 7
    %v1840 = vsub.s32 0, %v1839
    %v1841 = vrot.slane %v1825, %v1840
    %v1842 = vmul.f32 %v1826, %v1837
    %v1843 = vmul.f32 %v1827, %v1841
    %v1844 = vmul.f32 %v1828, %v1837
    %v1845 = vmul.f32 %v1829, %v1841
    %v1846 = vmul.f32 %v1830, %v1837
    %v1847 = vmul.f32 %v1831, %v1841
    %v1848 = vmul.f32 %v1832, %v1837
    %v1849 = vmul.f32 %v1833, %v1841
    %1850 = vst [vmem:[%s5] sm:$0xff] %v1842
    %1851 = vst [vmem:[%s5 + $0x8] sm:$0xff] %v1843
    %1852 = vst [vmem:[%s5 + $0x10] sm:$0xff] %v1844
    %1853 = vst [vmem:[%s5 + $0x18] sm:$0xff] %v1845
    %1854 = vst [vmem:[%s5 + $0x20] sm:$0xff] %v1846
    %1855 = vst [vmem:[%s5 + $0x28] sm:$0xff] %v1847
    %1856 = vst [vmem:[%s5 + $0x30] sm:$0xff] %v1848
    %1857 = vst [vmem:[%s5 + $0x38] sm:$0xff] %v1849
    %s1858 = scalar_lea.vmem %s0, 64
    %v1859 = vld [vmem:[%s1858] sm:$0xff]
    %v1860 = vld [vmem:[%s1858 + $0x8] sm:$0xff]
    %v1861 = vld [vmem:[%s1858 + $0x10] sm:$0xff]
    %v1862 = vld [vmem:[%s1858 + $0x18] sm:$0xff]
    %v1863 = vld [vmem:[%s1858 + $0x20] sm:$0xff]
    %v1864 = vld [vmem:[%s1858 + $0x28] sm:$0xff]
    %v1865 = vld [vmem:[%s1858 + $0x30] sm:$0xff]
    %v1866 = vld [vmem:[%s1858 + $0x38] sm:$0xff]
    %v1867 = vadd.f32 %v1859, %v1860
    %1868 = vadd.xlane.f32.xlu0 %v1867
    %v1869 = vpop.xlane.xlu0 %1868
    %v1870 = vadd.f32 %v1861, %v1862
    %1871 = vadd.xlane.f32.xlu0 %v1870
    %v1872 = vpop.xlane.xlu0 %1871
    %v1873 = vadd.f32 %v1863, %v1864
    %1874 = vadd.xlane.f32.xlu0 %v1873
    %v1875 = vpop.xlane.xlu0 %1874
    %v1876 = vadd.f32 %v1865, %v1866
    %1877 = vadd.xlane.f32.xlu0 %v1876
    %v1878 = vpop.xlane.xlu0 %1877
    %v1879 = vmul.f32 %v1869, %v109
    %v1880 = vmul.f32 %v1872, %v109
    %v1881 = vmul.f32 %v1875, %v109
    %v1882 = vmul.f32 %v1878, %v109
    %v1883 = vld [vmem:[%s1] sm:$0xff]
    %v1884 = vld [vmem:[%s1 + $0x8] sm:$0xff]
    %v1885 = vld [vmem:[%s1 + $0x10] sm:$0xff]
    %v1886 = vld [vmem:[%s1 + $0x18] sm:$0xff]
    %v1887 = vmul.f32 %v1883, %v1879
    %v1888 = vmul.f32 %v1884, %v1880
    %v1889 = vmul.f32 %v1885, %v1881
    %v1890 = vmul.f32 %v1886, %v1882
    %v1891 = vsel %vm122, %v1887, 0.0
    %v1892 = vsel %vm122, %v1888, 0.0
    %v1893 = vadd.f32 %v1891, %v1892
    %v1894 = vsel %vm122, %v1889, 0.0
    %v1895 = vadd.f32 %v1893, %v1894
    %v1896 = vsel %vm122, %v1890, 0.0
    %v1897 = vadd.f32 %v1895, %v1896
    %v1898 = vrot.slane %v1897, 4
    %v1899 = vadd.f32 %v1897, %v1898
    %v1900 = vrot.slane %v1899, 2
    %v1901 = vadd.f32 %v1899, %v1900
    %v1902 = vrot.slane %v1901, 1
    %v1903 = vadd.f32 %v1901, %v1902
    %v1904 = vmax.f32 %v1903, 0.0
    %v1905 = vld [vmem:[%s2] sm:$0xff]
    %v1906 = vld [vmem:[%s2 + $0x8] sm:$0xff]
    %v1907 = vld [vmem:[%s2 + $0x10] sm:$0xff]
    %v1908 = vld [vmem:[%s2 + $0x18] sm:$0xff]
    %v1909 = vmul.f32 %v1905, %v1904
    %v1910 = vmul.f32 %v1906, %v1904
    %v1911 = vmul.f32 %v1907, %v1904
    %v1912 = vmul.f32 %v1908, %v1904
    %v1913 = vsel %vm122, %v1909, 0.0
    %1914 = vadd.xlane.f32.xlu0 %v1913
    %v1915 = vpop.xlane.xlu0 %1914
    %v1916 = vsel %vm122, %v1910, 0.0
    %1917 = vadd.xlane.f32.xlu0 %v1916
    %v1918 = vpop.xlane.xlu0 %1917
    %v1919 = vsel %vm122, %v1911, 0.0
    %1920 = vadd.xlane.f32.xlu0 %v1919
    %v1921 = vpop.xlane.xlu0 %1920
    %v1922 = vsel %vm122, %v1912, 0.0
    %1923 = vadd.xlane.f32.xlu0 %v1922
    %v1924 = vpop.xlane.xlu0 %1923
    %v1925 = vadd.f32 %v1915, %v1915
    %v1926 = vadd.f32 %v1918, %v1918
    %v1927 = vadd.f32 %v1921, %v1921
    %v1928 = vadd.f32 %v1924, %v1924
    %v1929 = vxor.u32 %v1925, 2147483648
    %v1930 = vxor.u32 %v1926, 2147483648
    %v1931 = vxor.u32 %v1927, 2147483648
    %v1932 = vxor.u32 %v1928, 2147483648
    %v1933 = vmul.f32 %v1929, 1.442695
    %v1934 = vpow.pop %v1933
    %v1935 = vmul.f32 %v1930, 1.442695
    %v1936 = vpow.pop %v1935
    %v1937 = vmul.f32 %v1931, 1.442695
    %v1938 = vpow.pop %v1937
    %v1939 = vmul.f32 %v1932, 1.442695
    %v1940 = vpow.pop %v1939
    %v1941 = vadd.f32 %v1934, 1.0
    %v1942 = vadd.f32 %v1936, 1.0
    %v1943 = vadd.f32 %v1938, 1.0
    %v1944 = vadd.f32 %v1940, 1.0
    %v1945 = vrcp.pop %v1941
    %v1946 = vmul.f32 1.0, %v1945
    %v1947 = vrcp.pop %v1942
    %v1948 = vmul.f32 1.0, %v1947
    %v1949 = vrcp.pop %v1943
    %v1950 = vmul.f32 1.0, %v1949
    %v1951 = vrcp.pop %v1944
    %v1952 = vmul.f32 1.0, %v1951
    %v1953 = vmul.f32 %v1859, %v1946
    %v1954 = vmul.f32 %v1860, %v1946
    %v1955 = vmul.f32 %v1861, %v1948
    %v1956 = vmul.f32 %v1862, %v1948
    %v1957 = vmul.f32 %v1863, %v1950
    %v1958 = vmul.f32 %v1864, %v1950
    %v1959 = vmul.f32 %v1865, %v1952
    %v1960 = vmul.f32 %v1866, %v1952
    %s1961 = scalar_lea.vmem %s5, 64
    %1962 = vst [vmem:[%s1961] sm:$0xff] %v1953
    %1963 = vst [vmem:[%s1961 + $0x8] sm:$0xff] %v1954
    %1964 = vst [vmem:[%s1961 + $0x10] sm:$0xff] %v1955
    %1965 = vst [vmem:[%s1961 + $0x18] sm:$0xff] %v1956
    %1966 = vst [vmem:[%s1961 + $0x20] sm:$0xff] %v1957
    %1967 = vst [vmem:[%s1961 + $0x28] sm:$0xff] %v1958
    %1968 = vst [vmem:[%s1961 + $0x30] sm:$0xff] %v1959
    %1969 = vst [vmem:[%s1961 + $0x38] sm:$0xff] %v1960
    %v1970 = vadd.f32 %v1953, %v1955
    %v1971 = vadd.f32 %v1970, %v1957
    %v1972 = vadd.f32 %v1971, %v1959
    %v1973 = vrot.slane %v1972, 4
    %v1974 = vadd.f32 %v1972, %v1973
    %v1975 = vrot.slane %v1974, 2
    %v1976 = vadd.f32 %v1974, %v1975
    %v1977 = vrot.slane %v1976, 1
    %v1978 = vadd.f32 %v1976, %v1977
    %v1979 = vadd.f32 %v1954, %v1956
    %v1980 = vadd.f32 %v1979, %v1958
    %v1981 = vadd.f32 %v1980, %v1960
    %v1982 = vrot.slane %v1981, 4
    %v1983 = vadd.f32 %v1981, %v1982
    %v1984 = vrot.slane %v1983, 2
    %v1985 = vadd.f32 %v1983, %v1984
    %v1986 = vrot.slane %v1985, 1
    %v1987 = vadd.f32 %v1985, %v1986
    %v1988 = vmul.f32 %v1978, %v219
    %v1989 = vmul.f32 %v1987, %v219
    %v1990 = vmax.f32 %v1953, %v1957
    %v1991 = vmax.f32 %v1955, %v1959
    %v1992 = vmax.f32 %v1990, %v1991
    %v1993 = vrot.slane %v1992, 4
    %v1994 = vmax.f32 %v1992, %v1993
    %v1995 = vrot.slane %v1994, 2
    %v1996 = vmax.f32 %v1994, %v1995
    %v1997 = vrot.slane %v1996, 1
    %v1998 = vmax.f32 %v1996, %v1997
    %v1999 = vmax.f32 %v1954, %v1958
    %v2000 = vmax.f32 %v1956, %v1960
    %v2001 = vmax.f32 %v1999, %v2000
    %v2002 = vrot.slane %v2001, 4
    %v2003 = vmax.f32 %v2001, %v2002
    %v2004 = vrot.slane %v2003, 2
    %v2005 = vmax.f32 %v2003, %v2004
    %v2006 = vrot.slane %v2005, 1
    %v2007 = vmax.f32 %v2005, %v2006
    %2009 = vrot.lane.b32.xlu0 %v1988, 112
    %v2010 = vpop.permute.xlu0 %2009
    %2012 = vrot.lane.b32.xlu0 %v1988, 96
    %v2013 = vpop.permute.xlu0 %2012
    %2015 = vrot.lane.b32.xlu0 %v1988, 80
    %v2016 = vpop.permute.xlu0 %2015
    %2018 = vrot.lane.b32.xlu0 %v1988, 64
    %v2019 = vpop.permute.xlu0 %2018
    %2021 = vrot.lane.b32.xlu0 %v1988, 48
    %v2022 = vpop.permute.xlu0 %2021
    %2024 = vrot.lane.b32.xlu0 %v1988, 32
    %v2025 = vpop.permute.xlu0 %2024
    %2027 = vrot.lane.b32.xlu0 %v1988, 16
    %v2028 = vpop.permute.xlu0 %2027
    %2031 = vrot.lane.b32.xlu0 %v1989, 112
    %v2032 = vpop.permute.xlu0 %2031
    %2034 = vrot.lane.b32.xlu0 %v1989, 96
    %v2035 = vpop.permute.xlu0 %2034
    %2037 = vrot.lane.b32.xlu0 %v1989, 80
    %v2038 = vpop.permute.xlu0 %2037
    %2040 = vrot.lane.b32.xlu0 %v1989, 64
    %v2041 = vpop.permute.xlu0 %2040
    %2043 = vrot.lane.b32.xlu0 %v1989, 48
    %v2044 = vpop.permute.xlu0 %2043
    %2046 = vrot.lane.b32.xlu0 %v1989, 32
    %v2047 = vpop.permute.xlu0 %2046
    %2049 = vrot.lane.b32.xlu0 %v1989, 16
    %v2050 = vpop.permute.xlu0 %2049
    %v2052 = vsel %vm284, %v1988, %v2010
    %v2053 = vsel %vm286, %v2052, %v2013
    %v2054 = vsel %vm288, %v2053, %v2016
    %v2055 = vsel %vm290, %v2054, %v2019
    %v2056 = vsel %vm292, %v2055, %v2022
    %v2057 = vsel %vm294, %v2056, %v2025
    %v2058 = vsel %vm296, %v2057, %v2028
    %v2059 = vsel %vm284, %v1989, %v2032
    %v2060 = vsel %vm286, %v2059, %v2035
    %v2061 = vsel %vm288, %v2060, %v2038
    %v2062 = vsel %vm290, %v2061, %v2041
    %v2063 = vsel %vm292, %v2062, %v2044
    %v2064 = vsel %vm294, %v2063, %v2047
    %v2065 = vsel %vm296, %v2064, %v2050
    %2067 = vrot.lane.b32.xlu0 %v1998, 112
    %v2068 = vpop.permute.xlu0 %2067
    %2070 = vrot.lane.b32.xlu0 %v1998, 96
    %v2071 = vpop.permute.xlu0 %2070
    %2073 = vrot.lane.b32.xlu0 %v1998, 80
    %v2074 = vpop.permute.xlu0 %2073
    %2076 = vrot.lane.b32.xlu0 %v1998, 64
    %v2077 = vpop.permute.xlu0 %2076
    %2079 = vrot.lane.b32.xlu0 %v1998, 48
    %v2080 = vpop.permute.xlu0 %2079
    %2082 = vrot.lane.b32.xlu0 %v1998, 32
    %v2083 = vpop.permute.xlu0 %2082
    %2085 = vrot.lane.b32.xlu0 %v1998, 16
    %v2086 = vpop.permute.xlu0 %2085
    %2089 = vrot.lane.b32.xlu0 %v2007, 112
    %v2090 = vpop.permute.xlu0 %2089
    %2092 = vrot.lane.b32.xlu0 %v2007, 96
    %v2093 = vpop.permute.xlu0 %2092
    %2095 = vrot.lane.b32.xlu0 %v2007, 80
    %v2096 = vpop.permute.xlu0 %2095
    %2098 = vrot.lane.b32.xlu0 %v2007, 64
    %v2099 = vpop.permute.xlu0 %2098
    %2101 = vrot.lane.b32.xlu0 %v2007, 48
    %v2102 = vpop.permute.xlu0 %2101
    %2104 = vrot.lane.b32.xlu0 %v2007, 32
    %v2105 = vpop.permute.xlu0 %2104
    %2107 = vrot.lane.b32.xlu0 %v2007, 16
    %v2108 = vpop.permute.xlu0 %2107
    %v2110 = vsel %vm284, %v1998, %v2068
    %v2111 = vsel %vm286, %v2110, %v2071
    %v2112 = vsel %vm288, %v2111, %v2074
    %v2113 = vsel %vm290, %v2112, %v2077
    %v2114 = vsel %vm292, %v2113, %v2080
    %v2115 = vsel %vm294, %v2114, %v2083
    %v2116 = vsel %vm296, %v2115, %v2086
    %v2117 = vsel %vm284, %v2007, %v2090
    %v2118 = vsel %vm286, %v2117, %v2093
    %v2119 = vsel %vm288, %v2118, %v2096
    %v2120 = vsel %vm290, %v2119, %v2099
    %v2121 = vsel %vm292, %v2120, %v2102
    %v2122 = vsel %vm294, %v2121, %v2105
    %v2123 = vsel %vm296, %v2122, %v2108
    %2126 = vrot.lane.b32.xlu0 %v2058, 3
    %v2127 = vpop.permute.xlu0 %2126
    %2128 = vrot.lane.b32.xlu0 %v2065, 3
    %v2129 = vpop.permute.xlu0 %2128
    %v2132 = vsel %vm371, 0.0, %v2127
    %v2133 = vsel %vm371, 0.0, %v2129
    %2134 = vst.msk [vmem:[#allocation2 + $0x3] sm:$0xff] %vm45, %v2132
    %2135 = vst.msk [vmem:[#allocation2 + $0xb] sm:$0xff] %vm45, %v2133
    %2136 = vrot.lane.b32.xlu0 %v2058, 2
    %v2137 = vpop.permute.xlu0 %2136
    %2138 = vrot.lane.b32.xlu0 %v2065, 2
    %v2139 = vpop.permute.xlu0 %2138
    %v2142 = vsel %vm122, 0.0, %v2137
    %v2143 = vsel %vm122, 0.0, %v2139
    %2144 = vst.msk [vmem:[%s384 + $0x3] sm:$0xff] %vm45, %v2142
    %2145 = vst.msk [vmem:[%s384 + $0xb] sm:$0xff] %vm45, %v2143
    %2146 = vrot.lane.b32.xlu0 %v2058, 1
    %v2147 = vpop.permute.xlu0 %2146
    %2148 = vrot.lane.b32.xlu0 %v2065, 1
    %v2149 = vpop.permute.xlu0 %2148
    %v2152 = vsel %vm393, 0.0, %v2147
    %v2153 = vsel %vm393, 0.0, %v2149
    %2154 = vst.msk [vmem:[%s396 + $0x3] sm:$0xff] %vm45, %v2152
    %2155 = vst.msk [vmem:[%s396 + $0xb] sm:$0xff] %vm45, %v2153
    %2156 = vst.msk [vmem:[%s399 + $0x3] sm:$0xff] %vm45, %v2058
    %2157 = vst.msk [vmem:[%s399 + $0xb] sm:$0xff] %vm45, %v2065
    %2158 = vrot.lane.b32.xlu0 %v2058, 127
    %v2159 = vpop.permute.xlu0 %2158
    %2160 = vrot.lane.b32.xlu0 %v2065, 127
    %v2161 = vpop.permute.xlu0 %2160
    %v2164 = vsel %vm408, %v2159, 0.0
    %v2165 = vsel %vm408, %v2161, 0.0
    %2166 = vst.msk [vmem:[%s411 + $0x3] sm:$0xff] %vm45, %v2164
    %2167 = vst.msk [vmem:[%s411 + $0xb] sm:$0xff] %vm45, %v2165
    %2168 = vrot.lane.b32.xlu0 %v2058, 126
    %v2169 = vpop.permute.xlu0 %2168
    %2170 = vrot.lane.b32.xlu0 %v2065, 126
    %v2171 = vpop.permute.xlu0 %2170
    %v2174 = vsel %vm420, %v2169, 0.0
    %v2175 = vsel %vm420, %v2171, 0.0
    %2176 = vst.msk [vmem:[%s423 + $0x3] sm:$0xff] %vm45, %v2174
    %2177 = vst.msk [vmem:[%s423 + $0xb] sm:$0xff] %vm45, %v2175
    %2178 = vrot.lane.b32.xlu0 %v2058, 125
    %v2179 = vpop.permute.xlu0 %2178
    %2180 = vrot.lane.b32.xlu0 %v2065, 125
    %v2181 = vpop.permute.xlu0 %2180
    %v2184 = vsel %vm432, %v2179, 0.0
    %v2185 = vsel %vm432, %v2181, 0.0
    %2186 = vst.msk [vmem:[%s435 + $0x3] sm:$0xff] %vm45, %v2184
    %2187 = vst.msk [vmem:[%s435 + $0xb] sm:$0xff] %vm45, %v2185
    %2190 = vrot.lane.b32.xlu0 %v2116, 3
    %v2191 = vpop.permute.xlu0 %2190
    %2192 = vrot.lane.b32.xlu0 %v2123, 3
    %v2193 = vpop.permute.xlu0 %2192
    %v2196 = vsel %vm371, 0.0, %v2191
    %v2197 = vsel %vm371, 0.0, %v2193
    %2198 = vst.msk [vmem:[%s448 + $0x3] sm:$0xff] %vm45, %v2196
    %2199 = vst.msk [vmem:[%s448 + $0xb] sm:$0xff] %vm45, %v2197
    %2200 = vrot.lane.b32.xlu0 %v2116, 2
    %v2201 = vpop.permute.xlu0 %2200
    %2202 = vrot.lane.b32.xlu0 %v2123, 2
    %v2203 = vpop.permute.xlu0 %2202
    %v2206 = vsel %vm122, 0.0, %v2201
    %v2207 = vsel %vm122, 0.0, %v2203
    %2208 = vst.msk [vmem:[%s459 + $0x3] sm:$0xff] %vm45, %v2206
    %2209 = vst.msk [vmem:[%s459 + $0xb] sm:$0xff] %vm45, %v2207
    %2210 = vrot.lane.b32.xlu0 %v2116, 1
    %v2211 = vpop.permute.xlu0 %2210
    %2212 = vrot.lane.b32.xlu0 %v2123, 1
    %v2213 = vpop.permute.xlu0 %2212
    %v2216 = vsel %vm393, 0.0, %v2211
    %v2217 = vsel %vm393, 0.0, %v2213
    %2218 = vst.msk [vmem:[%s470 + $0x3] sm:$0xff] %vm45, %v2216
    %2219 = vst.msk [vmem:[%s470 + $0xb] sm:$0xff] %vm45, %v2217
    %2220 = vst.msk [vmem:[%s473 + $0x3] sm:$0xff] %vm45, %v2116
    %2221 = vst.msk [vmem:[%s473 + $0xb] sm:$0xff] %vm45, %v2123
    %2222 = vrot.lane.b32.xlu0 %v2116, 127
    %v2223 = vpop.permute.xlu0 %2222
    %2224 = vrot.lane.b32.xlu0 %v2123, 127
    %v2225 = vpop.permute.xlu0 %2224
    %v2228 = vsel %vm408, %v2223, 0.0
    %v2229 = vsel %vm408, %v2225, 0.0
    %2230 = vst.msk [vmem:[%s484 + $0x3] sm:$0xff] %vm45, %v2228
    %2231 = vst.msk [vmem:[%s484 + $0xb] sm:$0xff] %vm45, %v2229
    %2232 = vrot.lane.b32.xlu0 %v2116, 126
    %v2233 = vpop.permute.xlu0 %2232
    %2234 = vrot.lane.b32.xlu0 %v2123, 126
    %v2235 = vpop.permute.xlu0 %2234
    %v2238 = vsel %vm420, %v2233, 0.0
    %v2239 = vsel %vm420, %v2235, 0.0
    %2240 = vst.msk [vmem:[%s495 + $0x3] sm:$0xff] %vm45, %v2238
    %2241 = vst.msk [vmem:[%s495 + $0xb] sm:$0xff] %vm45, %v2239
    %2242 = vrot.lane.b32.xlu0 %v2116, 125
    %v2243 = vpop.permute.xlu0 %2242
    %2244 = vrot.lane.b32.xlu0 %v2123, 125
    %v2245 = vpop.permute.xlu0 %2244
    %v2248 = vsel %vm432, %v2243, 0.0
    %v2249 = vsel %vm432, %v2245, 0.0
    %2250 = vst.msk [vmem:[%s506 + $0x3] sm:$0xff] %vm45, %v2248
    %2251 = vst.msk [vmem:[%s506 + $0xb] sm:$0xff] %vm45, %v2249
    %s2252 = sld [smem:[#allocation5]]
    %v2253 = vstv %s2252
    %v2254 = vadd.f32 %v2253, 0.0
    %s2255 = sld [smem:[#allocation5 + $0x1]]
    %v2256 = vstv %s2255
    %v2257 = vadd.f32 %v2256, 0.0
    %s2258 = sld [smem:[#allocation5 + $0x2]]
    %v2259 = vstv %s2258
    %v2260 = vadd.f32 %v2259, 0.0
    %v2261 = vld [vmem:[#allocation2] sm:$0xff]
    %v2262 = vld [vmem:[#allocation2 + $0x8] sm:$0xff]
    %s2263 = sld [smem:[#allocation3 + $0x44]]
    %v2264 = vstv %s2263
    %v2265 = vmul.f32 %v2264, %v2261
    %v2266 = vmul.f32 %v2264, %v2262
    %v2267 = vadd.f32 %v2260, %v2265
    %v2268 = vadd.f32 %v2260, %v2266
    %v2269 = vld [vmem:[#allocation2 + $0x1] sm:$0xff]
    %v2270 = vld [vmem:[#allocation2 + $0x9] sm:$0xff]
    %s2271 = sld [smem:[#allocation3 + $0x4b]]
    %v2272 = vstv %s2271
    %v2273 = vmul.f32 %v2272, %v2269
    %v2274 = vmul.f32 %v2272, %v2270
    %v2275 = vadd.f32 %v2267, %v2273
    %v2276 = vadd.f32 %v2268, %v2274
    %v2277 = vld [vmem:[#allocation2 + $0x2] sm:$0xff]
    %v2278 = vld [vmem:[#allocation2 + $0xa] sm:$0xff]
    %s2279 = sld [smem:[#allocation3 + $0x52]]
    %v2280 = vstv %s2279
    %v2281 = vmul.f32 %v2280, %v2277
    %v2282 = vmul.f32 %v2280, %v2278
    %v2283 = vadd.f32 %v2275, %v2281
    %v2284 = vadd.f32 %v2276, %v2282
    %v2285 = vld [vmem:[#allocation2 + $0x3] sm:$0xff]
    %v2286 = vld [vmem:[#allocation2 + $0xb] sm:$0xff]
    %s2287 = sld [smem:[#allocation3 + $0x59]]
    %v2288 = vstv %s2287
    %v2289 = vmul.f32 %v2288, %v2285
    %v2290 = vmul.f32 %v2288, %v2286
    %v2291 = vadd.f32 %v2283, %v2289
    %v2292 = vadd.f32 %v2284, %v2290
    %v2293 = vld [vmem:[#allocation2 + $0x4] sm:$0xff]
    %v2294 = vld [vmem:[#allocation2 + $0xc] sm:$0xff]
    %s2295 = sld [smem:[#allocation3 + $0x60]]
    %v2296 = vstv %s2295
    %v2297 = vmul.f32 %v2296, %v2293
    %v2298 = vmul.f32 %v2296, %v2294
    %v2299 = vadd.f32 %v2291, %v2297
    %v2300 = vadd.f32 %v2292, %v2298
    %v2301 = vld [vmem:[#allocation2 + $0x5] sm:$0xff]
    %v2302 = vld [vmem:[#allocation2 + $0xd] sm:$0xff]
    %s2303 = sld [smem:[#allocation3 + $0x67]]
    %v2304 = vstv %s2303
    %v2305 = vmul.f32 %v2304, %v2301
    %v2306 = vmul.f32 %v2304, %v2302
    %v2307 = vadd.f32 %v2299, %v2305
    %v2308 = vadd.f32 %v2300, %v2306
    %v2309 = vld [vmem:[#allocation2 + $0x6] sm:$0xff]
    %v2310 = vld [vmem:[#allocation2 + $0xe] sm:$0xff]
    %s2311 = sld [smem:[#allocation3 + $0x6e]]
    %v2312 = vstv %s2311
    %v2313 = vmul.f32 %v2312, %v2309
    %v2314 = vmul.f32 %v2312, %v2310
    %v2315 = vadd.f32 %v2307, %v2313
    %v2316 = vadd.f32 %v2308, %v2314
    %v2317 = vld [vmem:[%s384] sm:$0xff]
    %v2318 = vld [vmem:[%s384 + $0x8] sm:$0xff]
    %s2319 = sld [smem:[#allocation3 + $0x45]]
    %v2320 = vstv %s2319
    %v2321 = vmul.f32 %v2320, %v2317
    %v2322 = vmul.f32 %v2320, %v2318
    %v2323 = vadd.f32 %v2315, %v2321
    %v2324 = vadd.f32 %v2316, %v2322
    %v2325 = vld [vmem:[%s384 + $0x1] sm:$0xff]
    %v2326 = vld [vmem:[%s384 + $0x9] sm:$0xff]
    %s2327 = sld [smem:[#allocation3 + $0x4c]]
    %v2328 = vstv %s2327
    %v2329 = vmul.f32 %v2328, %v2325
    %v2330 = vmul.f32 %v2328, %v2326
    %v2331 = vadd.f32 %v2323, %v2329
    %v2332 = vadd.f32 %v2324, %v2330
    %s2333 = sld [smem:[#allocation3 + $0x12]]
    %v2334 = vstv %s2333
    %v2335 = vmul.f32 %v2334, %v2325
    %v2336 = vmul.f32 %v2334, %v2326
    %v2337 = vadd.f32 %v2257, %v2335
    %v2338 = vadd.f32 %v2257, %v2336
    %v2339 = vld [vmem:[%s384 + $0x2] sm:$0xff]
    %v2340 = vld [vmem:[%s384 + $0xa] sm:$0xff]
    %s2341 = sld [smem:[#allocation3 + $0x53]]
    %v2342 = vstv %s2341
    %v2343 = vmul.f32 %v2342, %v2339
    %v2344 = vmul.f32 %v2342, %v2340
    %v2345 = vadd.f32 %v2331, %v2343
    %v2346 = vadd.f32 %v2332, %v2344
    %s2347 = sld [smem:[#allocation3 + $0x17]]
    %v2348 = vstv %s2347
    %v2349 = vmul.f32 %v2348, %v2339
    %v2350 = vmul.f32 %v2348, %v2340
    %v2351 = vadd.f32 %v2337, %v2349
    %v2352 = vadd.f32 %v2338, %v2350
    %v2353 = vld [vmem:[%s384 + $0x3] sm:$0xff]
    %v2354 = vld [vmem:[%s384 + $0xb] sm:$0xff]
    %s2355 = sld [smem:[#allocation3 + $0x5a]]
    %v2356 = vstv %s2355
    %v2357 = vmul.f32 %v2356, %v2353
    %v2358 = vmul.f32 %v2356, %v2354
    %v2359 = vadd.f32 %v2345, %v2357
    %v2360 = vadd.f32 %v2346, %v2358
    %s2361 = sld [smem:[#allocation3 + $0x1c]]
    %v2362 = vstv %s2361
    %v2363 = vmul.f32 %v2362, %v2353
    %v2364 = vmul.f32 %v2362, %v2354
    %v2365 = vadd.f32 %v2351, %v2363
    %v2366 = vadd.f32 %v2352, %v2364
    %v2367 = vld [vmem:[%s384 + $0x4] sm:$0xff]
    %v2368 = vld [vmem:[%s384 + $0xc] sm:$0xff]
    %s2369 = sld [smem:[#allocation3 + $0x61]]
    %v2370 = vstv %s2369
    %v2371 = vmul.f32 %v2370, %v2367
    %v2372 = vmul.f32 %v2370, %v2368
    %v2373 = vadd.f32 %v2359, %v2371
    %v2374 = vadd.f32 %v2360, %v2372
    %s2375 = sld [smem:[#allocation3 + $0x21]]
    %v2376 = vstv %s2375
    %v2377 = vmul.f32 %v2376, %v2367
    %v2378 = vmul.f32 %v2376, %v2368
    %v2379 = vadd.f32 %v2365, %v2377
    %v2380 = vadd.f32 %v2366, %v2378
    %v2381 = vld [vmem:[%s384 + $0x5] sm:$0xff]
    %v2382 = vld [vmem:[%s384 + $0xd] sm:$0xff]
    %s2383 = sld [smem:[#allocation3 + $0x68]]
    %v2384 = vstv %s2383
    %v2385 = vmul.f32 %v2384, %v2381
    %v2386 = vmul.f32 %v2384, %v2382
    %v2387 = vadd.f32 %v2373, %v2385
    %v2388 = vadd.f32 %v2374, %v2386
    %s2389 = sld [smem:[#allocation3 + $0x26]]
    %v2390 = vstv %s2389
    %v2391 = vmul.f32 %v2390, %v2381
    %v2392 = vmul.f32 %v2390, %v2382
    %v2393 = vadd.f32 %v2379, %v2391
    %v2394 = vadd.f32 %v2380, %v2392
    %v2395 = vld [vmem:[%s384 + $0x6] sm:$0xff]
    %v2396 = vld [vmem:[%s384 + $0xe] sm:$0xff]
    %s2397 = sld [smem:[#allocation3 + $0x6f]]
    %v2398 = vstv %s2397
    %v2399 = vmul.f32 %v2398, %v2395
    %v2400 = vmul.f32 %v2398, %v2396
    %v2401 = vadd.f32 %v2387, %v2399
    %v2402 = vadd.f32 %v2388, %v2400
    %v2403 = vld [vmem:[%s396] sm:$0xff]
    %v2404 = vld [vmem:[%s396 + $0x8] sm:$0xff]
    %s2405 = sld [smem:[#allocation3 + $0x46]]
    %v2406 = vstv %s2405
    %v2407 = vmul.f32 %v2406, %v2403
    %v2408 = vmul.f32 %v2406, %v2404
    %v2409 = vadd.f32 %v2401, %v2407
    %v2410 = vadd.f32 %v2402, %v2408
    %v2411 = vld [vmem:[%s396 + $0x1] sm:$0xff]
    %v2412 = vld [vmem:[%s396 + $0x9] sm:$0xff]
    %s2413 = sld [smem:[#allocation3 + $0x4d]]
    %v2414 = vstv %s2413
    %v2415 = vmul.f32 %v2414, %v2411
    %v2416 = vmul.f32 %v2414, %v2412
    %v2417 = vadd.f32 %v2409, %v2415
    %v2418 = vadd.f32 %v2410, %v2416
    %s2419 = sld [smem:[#allocation3 + $0x13]]
    %v2420 = vstv %s2419
    %v2421 = vmul.f32 %v2420, %v2411
    %v2422 = vmul.f32 %v2420, %v2412
    %v2423 = vadd.f32 %v2393, %v2421
    %v2424 = vadd.f32 %v2394, %v2422
    %v2425 = vld [vmem:[%s396 + $0x2] sm:$0xff]
    %v2426 = vld [vmem:[%s396 + $0xa] sm:$0xff]
    %s2427 = sld [smem:[#allocation3 + $0x54]]
    %v2428 = vstv %s2427
    %v2429 = vmul.f32 %v2428, %v2425
    %v2430 = vmul.f32 %v2428, %v2426
    %v2431 = vadd.f32 %v2417, %v2429
    %v2432 = vadd.f32 %v2418, %v2430
    %s2433 = sld [smem:[#allocation3 + $0x18]]
    %v2434 = vstv %s2433
    %v2435 = vmul.f32 %v2434, %v2425
    %v2436 = vmul.f32 %v2434, %v2426
    %v2437 = vadd.f32 %v2423, %v2435
    %v2438 = vadd.f32 %v2424, %v2436
    %s2439 = sld [smem:[#allocation3]]
    %v2440 = vstv %s2439
    %v2441 = vmul.f32 %v2440, %v2425
    %v2442 = vmul.f32 %v2440, %v2426
    %v2443 = vadd.f32 %v2254, %v2441
    %v2444 = vadd.f32 %v2254, %v2442
    %v2445 = vld [vmem:[%s396 + $0x3] sm:$0xff]
    %v2446 = vld [vmem:[%s396 + $0xb] sm:$0xff]
    %s2447 = sld [smem:[#allocation3 + $0x5b]]
    %v2448 = vstv %s2447
    %v2449 = vmul.f32 %v2448, %v2445
    %v2450 = vmul.f32 %v2448, %v2446
    %v2451 = vadd.f32 %v2431, %v2449
    %v2452 = vadd.f32 %v2432, %v2450
    %s2453 = sld [smem:[#allocation3 + $0x1d]]
    %v2454 = vstv %s2453
    %v2455 = vmul.f32 %v2454, %v2445
    %v2456 = vmul.f32 %v2454, %v2446
    %v2457 = vadd.f32 %v2437, %v2455
    %v2458 = vadd.f32 %v2438, %v2456
    %s2459 = sld [smem:[#allocation3 + $0x3]]
    %v2460 = vstv %s2459
    %v2461 = vmul.f32 %v2460, %v2445
    %v2462 = vmul.f32 %v2460, %v2446
    %v2463 = vadd.f32 %v2443, %v2461
    %v2464 = vadd.f32 %v2444, %v2462
    %v2465 = vld [vmem:[%s396 + $0x4] sm:$0xff]
    %v2466 = vld [vmem:[%s396 + $0xc] sm:$0xff]
    %s2467 = sld [smem:[#allocation3 + $0x62]]
    %v2468 = vstv %s2467
    %v2469 = vmul.f32 %v2468, %v2465
    %v2470 = vmul.f32 %v2468, %v2466
    %v2471 = vadd.f32 %v2451, %v2469
    %v2472 = vadd.f32 %v2452, %v2470
    %s2473 = sld [smem:[#allocation3 + $0x22]]
    %v2474 = vstv %s2473
    %v2475 = vmul.f32 %v2474, %v2465
    %v2476 = vmul.f32 %v2474, %v2466
    %v2477 = vadd.f32 %v2457, %v2475
    %v2478 = vadd.f32 %v2458, %v2476
    %s2479 = sld [smem:[#allocation3 + $0x6]]
    %v2480 = vstv %s2479
    %v2481 = vmul.f32 %v2480, %v2465
    %v2482 = vmul.f32 %v2480, %v2466
    %v2483 = vadd.f32 %v2463, %v2481
    %v2484 = vadd.f32 %v2464, %v2482
    %v2485 = vld [vmem:[%s396 + $0x5] sm:$0xff]
    %v2486 = vld [vmem:[%s396 + $0xd] sm:$0xff]
    %s2487 = sld [smem:[#allocation3 + $0x69]]
    %v2488 = vstv %s2487
    %v2489 = vmul.f32 %v2488, %v2485
    %v2490 = vmul.f32 %v2488, %v2486
    %v2491 = vadd.f32 %v2471, %v2489
    %v2492 = vadd.f32 %v2472, %v2490
    %s2493 = sld [smem:[#allocation3 + $0x27]]
    %v2494 = vstv %s2493
    %v2495 = vmul.f32 %v2494, %v2485
    %v2496 = vmul.f32 %v2494, %v2486
    %v2497 = vadd.f32 %v2477, %v2495
    %v2498 = vadd.f32 %v2478, %v2496
    %v2499 = vld [vmem:[%s396 + $0x6] sm:$0xff]
    %v2500 = vld [vmem:[%s396 + $0xe] sm:$0xff]
    %s2501 = sld [smem:[#allocation3 + $0x70]]
    %v2502 = vstv %s2501
    %v2503 = vmul.f32 %v2502, %v2499
    %v2504 = vmul.f32 %v2502, %v2500
    %v2505 = vadd.f32 %v2491, %v2503
    %v2506 = vadd.f32 %v2492, %v2504
    %v2507 = vld [vmem:[%s399] sm:$0xff]
    %v2508 = vld [vmem:[%s399 + $0x8] sm:$0xff]
    %s2509 = sld [smem:[#allocation3 + $0x47]]
    %v2510 = vstv %s2509
    %v2511 = vmul.f32 %v2510, %v2507
    %v2512 = vmul.f32 %v2510, %v2508
    %v2513 = vadd.f32 %v2505, %v2511
    %v2514 = vadd.f32 %v2506, %v2512
    %v2515 = vld [vmem:[%s399 + $0x1] sm:$0xff]
    %v2516 = vld [vmem:[%s399 + $0x9] sm:$0xff]
    %s2517 = sld [smem:[#allocation3 + $0x4e]]
    %v2518 = vstv %s2517
    %v2519 = vmul.f32 %v2518, %v2515
    %v2520 = vmul.f32 %v2518, %v2516
    %v2521 = vadd.f32 %v2513, %v2519
    %v2522 = vadd.f32 %v2514, %v2520
    %s2523 = sld [smem:[#allocation3 + $0x14]]
    %v2524 = vstv %s2523
    %v2525 = vmul.f32 %v2524, %v2515
    %v2526 = vmul.f32 %v2524, %v2516
    %v2527 = vadd.f32 %v2497, %v2525
    %v2528 = vadd.f32 %v2498, %v2526
    %v2529 = vld [vmem:[%s399 + $0x2] sm:$0xff]
    %v2530 = vld [vmem:[%s399 + $0xa] sm:$0xff]
    %s2531 = sld [smem:[#allocation3 + $0x55]]
    %v2532 = vstv %s2531
    %v2533 = vmul.f32 %v2532, %v2529
    %v2534 = vmul.f32 %v2532, %v2530
    %v2535 = vadd.f32 %v2521, %v2533
    %v2536 = vadd.f32 %v2522, %v2534
    %s2537 = sld [smem:[#allocation3 + $0x19]]
    %v2538 = vstv %s2537
    %v2539 = vmul.f32 %v2538, %v2529
    %v2540 = vmul.f32 %v2538, %v2530
    %v2541 = vadd.f32 %v2527, %v2539
    %v2542 = vadd.f32 %v2528, %v2540
    %s2543 = sld [smem:[#allocation3 + $0x1]]
    %v2544 = vstv %s2543
    %v2545 = vmul.f32 %v2544, %v2529
    %v2546 = vmul.f32 %v2544, %v2530
    %v2547 = vadd.f32 %v2483, %v2545
    %v2548 = vadd.f32 %v2484, %v2546
    %v2549 = vld [vmem:[%s399 + $0x3] sm:$0xff]
    %v2550 = vld [vmem:[%s399 + $0xb] sm:$0xff]
    %s2551 = sld [smem:[#allocation3 + $0x5c]]
    %v2552 = vstv %s2551
    %v2553 = vmul.f32 %v2552, %v2549
    %v2554 = vmul.f32 %v2552, %v2550
    %v2555 = vadd.f32 %v2535, %v2553
    %v2556 = vadd.f32 %v2536, %v2554
    %s2557 = sld [smem:[#allocation3 + $0x1e]]
    %v2558 = vstv %s2557
    %v2559 = vmul.f32 %v2558, %v2549
    %v2560 = vmul.f32 %v2558, %v2550
    %v2561 = vadd.f32 %v2541, %v2559
    %v2562 = vadd.f32 %v2542, %v2560
    %s2563 = sld [smem:[#allocation3 + $0x4]]
    %v2564 = vstv %s2563
    %v2565 = vmul.f32 %v2564, %v2549
    %v2566 = vmul.f32 %v2564, %v2550
    %v2567 = vadd.f32 %v2547, %v2565
    %v2568 = vadd.f32 %v2548, %v2566
    %v2569 = vld [vmem:[%s399 + $0x4] sm:$0xff]
    %v2570 = vld [vmem:[%s399 + $0xc] sm:$0xff]
    %s2571 = sld [smem:[#allocation3 + $0x63]]
    %v2572 = vstv %s2571
    %v2573 = vmul.f32 %v2572, %v2569
    %v2574 = vmul.f32 %v2572, %v2570
    %v2575 = vadd.f32 %v2555, %v2573
    %v2576 = vadd.f32 %v2556, %v2574
    %s2577 = sld [smem:[#allocation3 + $0x23]]
    %v2578 = vstv %s2577
    %v2579 = vmul.f32 %v2578, %v2569
    %v2580 = vmul.f32 %v2578, %v2570
    %v2581 = vadd.f32 %v2561, %v2579
    %v2582 = vadd.f32 %v2562, %v2580
    %s2583 = sld [smem:[#allocation3 + $0x7]]
    %v2584 = vstv %s2583
    %v2585 = vmul.f32 %v2584, %v2569
    %v2586 = vmul.f32 %v2584, %v2570
    %v2587 = vadd.f32 %v2567, %v2585
    %v2588 = vadd.f32 %v2568, %v2586
    %v2589 = vld [vmem:[%s399 + $0x5] sm:$0xff]
    %v2590 = vld [vmem:[%s399 + $0xd] sm:$0xff]
    %s2591 = sld [smem:[#allocation3 + $0x6a]]
    %v2592 = vstv %s2591
    %v2593 = vmul.f32 %v2592, %v2589
    %v2594 = vmul.f32 %v2592, %v2590
    %v2595 = vadd.f32 %v2575, %v2593
    %v2596 = vadd.f32 %v2576, %v2594
    %s2597 = sld [smem:[#allocation3 + $0x28]]
    %v2598 = vstv %s2597
    %v2599 = vmul.f32 %v2598, %v2589
    %v2600 = vmul.f32 %v2598, %v2590
    %v2601 = vadd.f32 %v2581, %v2599
    %v2602 = vadd.f32 %v2582, %v2600
    %v2603 = vld [vmem:[%s399 + $0x6] sm:$0xff]
    %v2604 = vld [vmem:[%s399 + $0xe] sm:$0xff]
    %s2605 = sld [smem:[#allocation3 + $0x71]]
    %v2606 = vstv %s2605
    %v2607 = vmul.f32 %v2606, %v2603
    %v2608 = vmul.f32 %v2606, %v2604
    %v2609 = vadd.f32 %v2595, %v2607
    %v2610 = vadd.f32 %v2596, %v2608
    %v2611 = vld [vmem:[%s411] sm:$0xff]
    %v2612 = vld [vmem:[%s411 + $0x8] sm:$0xff]
    %s2613 = sld [smem:[#allocation3 + $0x48]]
    %v2614 = vstv %s2613
    %v2615 = vmul.f32 %v2614, %v2611
    %v2616 = vmul.f32 %v2614, %v2612
    %v2617 = vadd.f32 %v2609, %v2615
    %v2618 = vadd.f32 %v2610, %v2616
    %v2619 = vld [vmem:[%s411 + $0x1] sm:$0xff]
    %v2620 = vld [vmem:[%s411 + $0x9] sm:$0xff]
    %s2621 = sld [smem:[#allocation3 + $0x4f]]
    %v2622 = vstv %s2621
    %v2623 = vmul.f32 %v2622, %v2619
    %v2624 = vmul.f32 %v2622, %v2620
    %v2625 = vadd.f32 %v2617, %v2623
    %v2626 = vadd.f32 %v2618, %v2624
    %s2627 = sld [smem:[#allocation3 + $0x15]]
    %v2628 = vstv %s2627
    %v2629 = vmul.f32 %v2628, %v2619
    %v2630 = vmul.f32 %v2628, %v2620
    %v2631 = vadd.f32 %v2601, %v2629
    %v2632 = vadd.f32 %v2602, %v2630
    %v2633 = vld [vmem:[%s411 + $0x2] sm:$0xff]
    %v2634 = vld [vmem:[%s411 + $0xa] sm:$0xff]
    %s2635 = sld [smem:[#allocation3 + $0x56]]
    %v2636 = vstv %s2635
    %v2637 = vmul.f32 %v2636, %v2633
    %v2638 = vmul.f32 %v2636, %v2634
    %v2639 = vadd.f32 %v2625, %v2637
    %v2640 = vadd.f32 %v2626, %v2638
    %s2641 = sld [smem:[#allocation3 + $0x1a]]
    %v2642 = vstv %s2641
    %v2643 = vmul.f32 %v2642, %v2633
    %v2644 = vmul.f32 %v2642, %v2634
    %v2645 = vadd.f32 %v2631, %v2643
    %v2646 = vadd.f32 %v2632, %v2644
    %s2647 = sld [smem:[#allocation3 + $0x2]]
    %v2648 = vstv %s2647
    %v2649 = vmul.f32 %v2648, %v2633
    %v2650 = vmul.f32 %v2648, %v2634
    %v2651 = vadd.f32 %v2587, %v2649
    %v2652 = vadd.f32 %v2588, %v2650
    %v2653 = vld [vmem:[%s411 + $0x3] sm:$0xff]
    %v2654 = vld [vmem:[%s411 + $0xb] sm:$0xff]
    %s2655 = sld [smem:[#allocation3 + $0x5d]]
    %v2656 = vstv %s2655
    %v2657 = vmul.f32 %v2656, %v2653
    %v2658 = vmul.f32 %v2656, %v2654
    %v2659 = vadd.f32 %v2639, %v2657
    %v2660 = vadd.f32 %v2640, %v2658
    %s2661 = sld [smem:[#allocation3 + $0x1f]]
    %v2662 = vstv %s2661
    %v2663 = vmul.f32 %v2662, %v2653
    %v2664 = vmul.f32 %v2662, %v2654
    %v2665 = vadd.f32 %v2645, %v2663
    %v2666 = vadd.f32 %v2646, %v2664
    %s2667 = sld [smem:[#allocation3 + $0x5]]
    %v2668 = vstv %s2667
    %v2669 = vmul.f32 %v2668, %v2653
    %v2670 = vmul.f32 %v2668, %v2654
    %v2671 = vadd.f32 %v2651, %v2669
    %v2672 = vadd.f32 %v2652, %v2670
    %v2673 = vld [vmem:[%s411 + $0x4] sm:$0xff]
    %v2674 = vld [vmem:[%s411 + $0xc] sm:$0xff]
    %s2675 = sld [smem:[#allocation3 + $0x64]]
    %v2676 = vstv %s2675
    %v2677 = vmul.f32 %v2676, %v2673
    %v2678 = vmul.f32 %v2676, %v2674
    %v2679 = vadd.f32 %v2659, %v2677
    %v2680 = vadd.f32 %v2660, %v2678
    %s2681 = sld [smem:[#allocation3 + $0x24]]
    %v2682 = vstv %s2681
    %v2683 = vmul.f32 %v2682, %v2673
    %v2684 = vmul.f32 %v2682, %v2674
    %v2685 = vadd.f32 %v2665, %v2683
    %v2686 = vadd.f32 %v2666, %v2684
    %s2687 = sld [smem:[#allocation3 + $0x8]]
    %v2688 = vstv %s2687
    %v2689 = vmul.f32 %v2688, %v2673
    %v2690 = vmul.f32 %v2688, %v2674
    %v2691 = vadd.f32 %v2671, %v2689
    %v2692 = vadd.f32 %v2672, %v2690
    %v2693 = vld [vmem:[%s411 + $0x5] sm:$0xff]
    %v2694 = vld [vmem:[%s411 + $0xd] sm:$0xff]
    %s2695 = sld [smem:[#allocation3 + $0x6b]]
    %v2696 = vstv %s2695
    %v2697 = vmul.f32 %v2696, %v2693
    %v2698 = vmul.f32 %v2696, %v2694
    %v2699 = vadd.f32 %v2679, %v2697
    %v2700 = vadd.f32 %v2680, %v2698
    %s2701 = sld [smem:[#allocation3 + $0x29]]
    %v2702 = vstv %s2701
    %v2703 = vmul.f32 %v2702, %v2693
    %v2704 = vmul.f32 %v2702, %v2694
    %v2705 = vadd.f32 %v2685, %v2703
    %v2706 = vadd.f32 %v2686, %v2704
    %v2707 = vld [vmem:[%s411 + $0x6] sm:$0xff]
    %v2708 = vld [vmem:[%s411 + $0xe] sm:$0xff]
    %s2709 = sld [smem:[#allocation3 + $0x72]]
    %v2710 = vstv %s2709
    %v2711 = vmul.f32 %v2710, %v2707
    %v2712 = vmul.f32 %v2710, %v2708
    %v2713 = vadd.f32 %v2699, %v2711
    %v2714 = vadd.f32 %v2700, %v2712
    %v2715 = vld [vmem:[%s423] sm:$0xff]
    %v2716 = vld [vmem:[%s423 + $0x8] sm:$0xff]
    %s2717 = sld [smem:[#allocation3 + $0x49]]
    %v2718 = vstv %s2717
    %v2719 = vmul.f32 %v2718, %v2715
    %v2720 = vmul.f32 %v2718, %v2716
    %v2721 = vadd.f32 %v2713, %v2719
    %v2722 = vadd.f32 %v2714, %v2720
    %v2723 = vld [vmem:[%s423 + $0x1] sm:$0xff]
    %v2724 = vld [vmem:[%s423 + $0x9] sm:$0xff]
    %s2725 = sld [smem:[#allocation3 + $0x50]]
    %v2726 = vstv %s2725
    %v2727 = vmul.f32 %v2726, %v2723
    %v2728 = vmul.f32 %v2726, %v2724
    %v2729 = vadd.f32 %v2721, %v2727
    %v2730 = vadd.f32 %v2722, %v2728
    %s2731 = sld [smem:[#allocation3 + $0x16]]
    %v2732 = vstv %s2731
    %v2733 = vmul.f32 %v2732, %v2723
    %v2734 = vmul.f32 %v2732, %v2724
    %v2735 = vadd.f32 %v2705, %v2733
    %v2736 = vadd.f32 %v2706, %v2734
    %v2737 = vld [vmem:[%s423 + $0x2] sm:$0xff]
    %v2738 = vld [vmem:[%s423 + $0xa] sm:$0xff]
    %s2739 = sld [smem:[#allocation3 + $0x57]]
    %v2740 = vstv %s2739
    %v2741 = vmul.f32 %v2740, %v2737
    %v2742 = vmul.f32 %v2740, %v2738
    %v2743 = vadd.f32 %v2729, %v2741
    %v2744 = vadd.f32 %v2730, %v2742
    %s2745 = sld [smem:[#allocation3 + $0x1b]]
    %v2746 = vstv %s2745
    %v2747 = vmul.f32 %v2746, %v2737
    %v2748 = vmul.f32 %v2746, %v2738
    %v2749 = vadd.f32 %v2735, %v2747
    %v2750 = vadd.f32 %v2736, %v2748
    %v2751 = vld [vmem:[%s423 + $0x3] sm:$0xff]
    %v2752 = vld [vmem:[%s423 + $0xb] sm:$0xff]
    %s2753 = sld [smem:[#allocation3 + $0x5e]]
    %v2754 = vstv %s2753
    %v2755 = vmul.f32 %v2754, %v2751
    %v2756 = vmul.f32 %v2754, %v2752
    %v2757 = vadd.f32 %v2743, %v2755
    %v2758 = vadd.f32 %v2744, %v2756
    %s2759 = sld [smem:[#allocation3 + $0x20]]
    %v2760 = vstv %s2759
    %v2761 = vmul.f32 %v2760, %v2751
    %v2762 = vmul.f32 %v2760, %v2752
    %v2763 = vadd.f32 %v2749, %v2761
    %v2764 = vadd.f32 %v2750, %v2762
    %v2765 = vld [vmem:[%s423 + $0x4] sm:$0xff]
    %v2766 = vld [vmem:[%s423 + $0xc] sm:$0xff]
    %s2767 = sld [smem:[#allocation3 + $0x65]]
    %v2768 = vstv %s2767
    %v2769 = vmul.f32 %v2768, %v2765
    %v2770 = vmul.f32 %v2768, %v2766
    %v2771 = vadd.f32 %v2757, %v2769
    %v2772 = vadd.f32 %v2758, %v2770
    %s2773 = sld [smem:[#allocation3 + $0x25]]
    %v2774 = vstv %s2773
    %v2775 = vmul.f32 %v2774, %v2765
    %v2776 = vmul.f32 %v2774, %v2766
    %v2777 = vadd.f32 %v2763, %v2775
    %v2778 = vadd.f32 %v2764, %v2776
    %v2779 = vld [vmem:[%s423 + $0x5] sm:$0xff]
    %v2780 = vld [vmem:[%s423 + $0xd] sm:$0xff]
    %s2781 = sld [smem:[#allocation3 + $0x6c]]
    %v2782 = vstv %s2781
    %v2783 = vmul.f32 %v2782, %v2779
    %v2784 = vmul.f32 %v2782, %v2780
    %v2785 = vadd.f32 %v2771, %v2783
    %v2786 = vadd.f32 %v2772, %v2784
    %s2787 = sld [smem:[#allocation3 + $0x2a]]
    %v2788 = vstv %s2787
    %v2789 = vmul.f32 %v2788, %v2779
    %v2790 = vmul.f32 %v2788, %v2780
    %v2791 = vadd.f32 %v2777, %v2789
    %v2792 = vadd.f32 %v2778, %v2790
    %v2793 = vld [vmem:[%s423 + $0x6] sm:$0xff]
    %v2794 = vld [vmem:[%s423 + $0xe] sm:$0xff]
    %s2795 = sld [smem:[#allocation3 + $0x73]]
    %v2796 = vstv %s2795
    %v2797 = vmul.f32 %v2796, %v2793
    %v2798 = vmul.f32 %v2796, %v2794
    %v2799 = vadd.f32 %v2785, %v2797
    %v2800 = vadd.f32 %v2786, %v2798
    %v2801 = vld [vmem:[%s435] sm:$0xff]
    %v2802 = vld [vmem:[%s435 + $0x8] sm:$0xff]
    %s2803 = sld [smem:[#allocation3 + $0x4a]]
    %v2804 = vstv %s2803
    %v2805 = vmul.f32 %v2804, %v2801
    %v2806 = vmul.f32 %v2804, %v2802
    %v2807 = vadd.f32 %v2799, %v2805
    %v2808 = vadd.f32 %v2800, %v2806
    %v2809 = vld [vmem:[%s435 + $0x1] sm:$0xff]
    %v2810 = vld [vmem:[%s435 + $0x9] sm:$0xff]
    %s2811 = sld [smem:[#allocation3 + $0x51]]
    %v2812 = vstv %s2811
    %v2813 = vmul.f32 %v2812, %v2809
    %v2814 = vmul.f32 %v2812, %v2810
    %v2815 = vadd.f32 %v2807, %v2813
    %v2816 = vadd.f32 %v2808, %v2814
    %v2817 = vld [vmem:[%s435 + $0x2] sm:$0xff]
    %v2818 = vld [vmem:[%s435 + $0xa] sm:$0xff]
    %s2819 = sld [smem:[#allocation3 + $0x58]]
    %v2820 = vstv %s2819
    %v2821 = vmul.f32 %v2820, %v2817
    %v2822 = vmul.f32 %v2820, %v2818
    %v2823 = vadd.f32 %v2815, %v2821
    %v2824 = vadd.f32 %v2816, %v2822
    %v2825 = vld [vmem:[%s435 + $0x3] sm:$0xff]
    %v2826 = vld [vmem:[%s435 + $0xb] sm:$0xff]
    %s2827 = sld [smem:[#allocation3 + $0x5f]]
    %v2828 = vstv %s2827
    %v2829 = vmul.f32 %v2828, %v2825
    %v2830 = vmul.f32 %v2828, %v2826
    %v2831 = vadd.f32 %v2823, %v2829
    %v2832 = vadd.f32 %v2824, %v2830
    %v2833 = vld [vmem:[%s435 + $0x4] sm:$0xff]
    %v2834 = vld [vmem:[%s435 + $0xc] sm:$0xff]
    %s2835 = sld [smem:[#allocation3 + $0x66]]
    %v2836 = vstv %s2835
    %v2837 = vmul.f32 %v2836, %v2833
    %v2838 = vmul.f32 %v2836, %v2834
    %v2839 = vadd.f32 %v2831, %v2837
    %v2840 = vadd.f32 %v2832, %v2838
    %v2841 = vld [vmem:[%s435 + $0x5] sm:$0xff]
    %v2842 = vld [vmem:[%s435 + $0xd] sm:$0xff]
    %s2843 = sld [smem:[#allocation3 + $0x6d]]
    %v2844 = vstv %s2843
    %v2845 = vmul.f32 %v2844, %v2841
    %v2846 = vmul.f32 %v2844, %v2842
    %v2847 = vadd.f32 %v2839, %v2845
    %v2848 = vadd.f32 %v2840, %v2846
    %v2849 = vld [vmem:[%s435 + $0x6] sm:$0xff]
    %v2850 = vld [vmem:[%s435 + $0xe] sm:$0xff]
    %s2851 = sld [smem:[#allocation3 + $0x74]]
    %v2852 = vstv %s2851
    %v2853 = vmul.f32 %v2852, %v2849
    %v2854 = vmul.f32 %v2852, %v2850
    %v2855 = vadd.f32 %v2847, %v2853
    %v2856 = vadd.f32 %v2848, %v2854
    %v2857 = vld [vmem:[%s448] sm:$0xff]
    %v2858 = vld [vmem:[%s448 + $0x8] sm:$0xff]
    %s2859 = sld [smem:[#allocation3 + $0x75]]
    %v2860 = vstv %s2859
    %v2861 = vmul.f32 %v2860, %v2857
    %v2862 = vmul.f32 %v2860, %v2858
    %v2863 = vadd.f32 %v2855, %v2861
    %v2864 = vadd.f32 %v2856, %v2862
    %v2865 = vld [vmem:[%s448 + $0x1] sm:$0xff]
    %v2866 = vld [vmem:[%s448 + $0x9] sm:$0xff]
    %s2867 = sld [smem:[#allocation3 + $0x7c]]
    %v2868 = vstv %s2867
    %v2869 = vmul.f32 %v2868, %v2865
    %v2870 = vmul.f32 %v2868, %v2866
    %v2871 = vadd.f32 %v2863, %v2869
    %v2872 = vadd.f32 %v2864, %v2870
    %v2873 = vld [vmem:[%s448 + $0x2] sm:$0xff]
    %v2874 = vld [vmem:[%s448 + $0xa] sm:$0xff]
    %s2875 = sld [smem:[#allocation3 + $0x83]]
    %v2876 = vstv %s2875
    %v2877 = vmul.f32 %v2876, %v2873
    %v2878 = vmul.f32 %v2876, %v2874
    %v2879 = vadd.f32 %v2871, %v2877
    %v2880 = vadd.f32 %v2872, %v2878
    %v2881 = vld [vmem:[%s448 + $0x3] sm:$0xff]
    %v2882 = vld [vmem:[%s448 + $0xb] sm:$0xff]
    %s2883 = sld [smem:[#allocation3 + $0x8a]]
    %v2884 = vstv %s2883
    %v2885 = vmul.f32 %v2884, %v2881
    %v2886 = vmul.f32 %v2884, %v2882
    %v2887 = vadd.f32 %v2879, %v2885
    %v2888 = vadd.f32 %v2880, %v2886
    %v2889 = vld [vmem:[%s448 + $0x4] sm:$0xff]
    %v2890 = vld [vmem:[%s448 + $0xc] sm:$0xff]
    %s2891 = sld [smem:[#allocation3 + $0x91]]
    %v2892 = vstv %s2891
    %v2893 = vmul.f32 %v2892, %v2889
    %v2894 = vmul.f32 %v2892, %v2890
    %v2895 = vadd.f32 %v2887, %v2893
    %v2896 = vadd.f32 %v2888, %v2894
    %v2897 = vld [vmem:[%s448 + $0x5] sm:$0xff]
    %v2898 = vld [vmem:[%s448 + $0xd] sm:$0xff]
    %s2899 = sld [smem:[#allocation3 + $0x98]]
    %v2900 = vstv %s2899
    %v2901 = vmul.f32 %v2900, %v2897
    %v2902 = vmul.f32 %v2900, %v2898
    %v2903 = vadd.f32 %v2895, %v2901
    %v2904 = vadd.f32 %v2896, %v2902
    %v2905 = vld [vmem:[%s448 + $0x6] sm:$0xff]
    %v2906 = vld [vmem:[%s448 + $0xe] sm:$0xff]
    %s2907 = sld [smem:[#allocation3 + $0x9f]]
    %v2908 = vstv %s2907
    %v2909 = vmul.f32 %v2908, %v2905
    %v2910 = vmul.f32 %v2908, %v2906
    %v2911 = vadd.f32 %v2903, %v2909
    %v2912 = vadd.f32 %v2904, %v2910
    %v2913 = vld [vmem:[%s459] sm:$0xff]
    %v2914 = vld [vmem:[%s459 + $0x8] sm:$0xff]
    %s2915 = sld [smem:[#allocation3 + $0x76]]
    %v2916 = vstv %s2915
    %v2917 = vmul.f32 %v2916, %v2913
    %v2918 = vmul.f32 %v2916, %v2914
    %v2919 = vadd.f32 %v2911, %v2917
    %v2920 = vadd.f32 %v2912, %v2918
    %v2921 = vld [vmem:[%s459 + $0x1] sm:$0xff]
    %v2922 = vld [vmem:[%s459 + $0x9] sm:$0xff]
    %s2923 = sld [smem:[#allocation3 + $0x7d]]
    %v2924 = vstv %s2923
    %v2925 = vmul.f32 %v2924, %v2921
    %v2926 = vmul.f32 %v2924, %v2922
    %v2927 = vadd.f32 %v2919, %v2925
    %v2928 = vadd.f32 %v2920, %v2926
    %s2929 = sld [smem:[#allocation3 + $0x2b]]
    %v2930 = vstv %s2929
    %v2931 = vmul.f32 %v2930, %v2921
    %v2932 = vmul.f32 %v2930, %v2922
    %v2933 = vadd.f32 %v2791, %v2931
    %v2934 = vadd.f32 %v2792, %v2932
    %v2935 = vld [vmem:[%s459 + $0x2] sm:$0xff]
    %v2936 = vld [vmem:[%s459 + $0xa] sm:$0xff]
    %s2937 = sld [smem:[#allocation3 + $0x84]]
    %v2938 = vstv %s2937
    %v2939 = vmul.f32 %v2938, %v2935
    %v2940 = vmul.f32 %v2938, %v2936
    %v2941 = vadd.f32 %v2927, %v2939
    %v2942 = vadd.f32 %v2928, %v2940
    %s2943 = sld [smem:[#allocation3 + $0x30]]
    %v2944 = vstv %s2943
    %v2945 = vmul.f32 %v2944, %v2935
    %v2946 = vmul.f32 %v2944, %v2936
    %v2947 = vadd.f32 %v2933, %v2945
    %v2948 = vadd.f32 %v2934, %v2946
    %v2949 = vld [vmem:[%s459 + $0x3] sm:$0xff]
    %v2950 = vld [vmem:[%s459 + $0xb] sm:$0xff]
    %s2951 = sld [smem:[#allocation3 + $0x8b]]
    %v2952 = vstv %s2951
    %v2953 = vmul.f32 %v2952, %v2949
    %v2954 = vmul.f32 %v2952, %v2950
    %v2955 = vadd.f32 %v2941, %v2953
    %v2956 = vadd.f32 %v2942, %v2954
    %s2957 = sld [smem:[#allocation3 + $0x35]]
    %v2958 = vstv %s2957
    %v2959 = vmul.f32 %v2958, %v2949
    %v2960 = vmul.f32 %v2958, %v2950
    %v2961 = vadd.f32 %v2947, %v2959
    %v2962 = vadd.f32 %v2948, %v2960
    %v2963 = vld [vmem:[%s459 + $0x4] sm:$0xff]
    %v2964 = vld [vmem:[%s459 + $0xc] sm:$0xff]
    %s2965 = sld [smem:[#allocation3 + $0x92]]
    %v2966 = vstv %s2965
    %v2967 = vmul.f32 %v2966, %v2963
    %v2968 = vmul.f32 %v2966, %v2964
    %v2969 = vadd.f32 %v2955, %v2967
    %v2970 = vadd.f32 %v2956, %v2968
    %s2971 = sld [smem:[#allocation3 + $0x3a]]
    %v2972 = vstv %s2971
    %v2973 = vmul.f32 %v2972, %v2963
    %v2974 = vmul.f32 %v2972, %v2964
    %v2975 = vadd.f32 %v2961, %v2973
    %v2976 = vadd.f32 %v2962, %v2974
    %v2977 = vld [vmem:[%s459 + $0x5] sm:$0xff]
    %v2978 = vld [vmem:[%s459 + $0xd] sm:$0xff]
    %s2979 = sld [smem:[#allocation3 + $0x99]]
    %v2980 = vstv %s2979
    %v2981 = vmul.f32 %v2980, %v2977
    %v2982 = vmul.f32 %v2980, %v2978
    %v2983 = vadd.f32 %v2969, %v2981
    %v2984 = vadd.f32 %v2970, %v2982
    %s2985 = sld [smem:[#allocation3 + $0x3f]]
    %v2986 = vstv %s2985
    %v2987 = vmul.f32 %v2986, %v2977
    %v2988 = vmul.f32 %v2986, %v2978
    %v2989 = vadd.f32 %v2975, %v2987
    %v2990 = vadd.f32 %v2976, %v2988
    %v2991 = vld [vmem:[%s459 + $0x6] sm:$0xff]
    %v2992 = vld [vmem:[%s459 + $0xe] sm:$0xff]
    %s2993 = sld [smem:[#allocation3 + $0xa0]]
    %v2994 = vstv %s2993
    %v2995 = vmul.f32 %v2994, %v2991
    %v2996 = vmul.f32 %v2994, %v2992
    %v2997 = vadd.f32 %v2983, %v2995
    %v2998 = vadd.f32 %v2984, %v2996
    %v2999 = vld [vmem:[%s470] sm:$0xff]
    %v3000 = vld [vmem:[%s470 + $0x8] sm:$0xff]
    %s3001 = sld [smem:[#allocation3 + $0x77]]
    %v3002 = vstv %s3001
    %v3003 = vmul.f32 %v3002, %v2999
    %v3004 = vmul.f32 %v3002, %v3000
    %v3005 = vadd.f32 %v2997, %v3003
    %v3006 = vadd.f32 %v2998, %v3004
    %v3007 = vld [vmem:[%s470 + $0x1] sm:$0xff]
    %v3008 = vld [vmem:[%s470 + $0x9] sm:$0xff]
    %s3009 = sld [smem:[#allocation3 + $0x7e]]
    %v3010 = vstv %s3009
    %v3011 = vmul.f32 %v3010, %v3007
    %v3012 = vmul.f32 %v3010, %v3008
    %v3013 = vadd.f32 %v3005, %v3011
    %v3014 = vadd.f32 %v3006, %v3012
    %s3015 = sld [smem:[#allocation3 + $0x2c]]
    %v3016 = vstv %s3015
    %v3017 = vmul.f32 %v3016, %v3007
    %v3018 = vmul.f32 %v3016, %v3008
    %v3019 = vadd.f32 %v2989, %v3017
    %v3020 = vadd.f32 %v2990, %v3018
    %v3021 = vld [vmem:[%s470 + $0x2] sm:$0xff]
    %v3022 = vld [vmem:[%s470 + $0xa] sm:$0xff]
    %s3023 = sld [smem:[#allocation3 + $0x85]]
    %v3024 = vstv %s3023
    %v3025 = vmul.f32 %v3024, %v3021
    %v3026 = vmul.f32 %v3024, %v3022
    %v3027 = vadd.f32 %v3013, %v3025
    %v3028 = vadd.f32 %v3014, %v3026
    %s3029 = sld [smem:[#allocation3 + $0x31]]
    %v3030 = vstv %s3029
    %v3031 = vmul.f32 %v3030, %v3021
    %v3032 = vmul.f32 %v3030, %v3022
    %v3033 = vadd.f32 %v3019, %v3031
    %v3034 = vadd.f32 %v3020, %v3032
    %s3035 = sld [smem:[#allocation3 + $0x9]]
    %v3036 = vstv %s3035
    %v3037 = vmul.f32 %v3036, %v3021
    %v3038 = vmul.f32 %v3036, %v3022
    %v3039 = vadd.f32 %v2691, %v3037
    %v3040 = vadd.f32 %v2692, %v3038
    %v3041 = vld [vmem:[%s470 + $0x3] sm:$0xff]
    %v3042 = vld [vmem:[%s470 + $0xb] sm:$0xff]
    %s3043 = sld [smem:[#allocation3 + $0x8c]]
    %v3044 = vstv %s3043
    %v3045 = vmul.f32 %v3044, %v3041
    %v3046 = vmul.f32 %v3044, %v3042
    %v3047 = vadd.f32 %v3027, %v3045
    %v3048 = vadd.f32 %v3028, %v3046
    %s3049 = sld [smem:[#allocation3 + $0x36]]
    %v3050 = vstv %s3049
    %v3051 = vmul.f32 %v3050, %v3041
    %v3052 = vmul.f32 %v3050, %v3042
    %v3053 = vadd.f32 %v3033, %v3051
    %v3054 = vadd.f32 %v3034, %v3052
    %s3055 = sld [smem:[#allocation3 + $0xc]]
    %v3056 = vstv %s3055
    %v3057 = vmul.f32 %v3056, %v3041
    %v3058 = vmul.f32 %v3056, %v3042
    %v3059 = vadd.f32 %v3039, %v3057
    %v3060 = vadd.f32 %v3040, %v3058
    %v3061 = vld [vmem:[%s470 + $0x4] sm:$0xff]
    %v3062 = vld [vmem:[%s470 + $0xc] sm:$0xff]
    %s3063 = sld [smem:[#allocation3 + $0x93]]
    %v3064 = vstv %s3063
    %v3065 = vmul.f32 %v3064, %v3061
    %v3066 = vmul.f32 %v3064, %v3062
    %v3067 = vadd.f32 %v3047, %v3065
    %v3068 = vadd.f32 %v3048, %v3066
    %s3069 = sld [smem:[#allocation3 + $0x3b]]
    %v3070 = vstv %s3069
    %v3071 = vmul.f32 %v3070, %v3061
    %v3072 = vmul.f32 %v3070, %v3062
    %v3073 = vadd.f32 %v3053, %v3071
    %v3074 = vadd.f32 %v3054, %v3072
    %s3075 = sld [smem:[#allocation3 + $0xf]]
    %v3076 = vstv %s3075
    %v3077 = vmul.f32 %v3076, %v3061
    %v3078 = vmul.f32 %v3076, %v3062
    %v3079 = vadd.f32 %v3059, %v3077
    %v3080 = vadd.f32 %v3060, %v3078
    %v3081 = vld [vmem:[%s470 + $0x5] sm:$0xff]
    %v3082 = vld [vmem:[%s470 + $0xd] sm:$0xff]
    %s3083 = sld [smem:[#allocation3 + $0x9a]]
    %v3084 = vstv %s3083
    %v3085 = vmul.f32 %v3084, %v3081
    %v3086 = vmul.f32 %v3084, %v3082
    %v3087 = vadd.f32 %v3067, %v3085
    %v3088 = vadd.f32 %v3068, %v3086
    %s3089 = sld [smem:[#allocation3 + $0x40]]
    %v3090 = vstv %s3089
    %v3091 = vmul.f32 %v3090, %v3081
    %v3092 = vmul.f32 %v3090, %v3082
    %v3093 = vadd.f32 %v3073, %v3091
    %v3094 = vadd.f32 %v3074, %v3092
    %v3095 = vld [vmem:[%s470 + $0x6] sm:$0xff]
    %v3096 = vld [vmem:[%s470 + $0xe] sm:$0xff]
    %s3097 = sld [smem:[#allocation3 + $0xa1]]
    %v3098 = vstv %s3097
    %v3099 = vmul.f32 %v3098, %v3095
    %v3100 = vmul.f32 %v3098, %v3096
    %v3101 = vadd.f32 %v3087, %v3099
    %v3102 = vadd.f32 %v3088, %v3100
    %v3103 = vld [vmem:[%s473] sm:$0xff]
    %v3104 = vld [vmem:[%s473 + $0x8] sm:$0xff]
    %s3105 = sld [smem:[#allocation3 + $0x78]]
    %v3106 = vstv %s3105
    %v3107 = vmul.f32 %v3106, %v3103
    %v3108 = vmul.f32 %v3106, %v3104
    %v3109 = vadd.f32 %v3101, %v3107
    %v3110 = vadd.f32 %v3102, %v3108
    %v3111 = vld [vmem:[%s473 + $0x1] sm:$0xff]
    %v3112 = vld [vmem:[%s473 + $0x9] sm:$0xff]
    %s3113 = sld [smem:[#allocation3 + $0x7f]]
    %v3114 = vstv %s3113
    %v3115 = vmul.f32 %v3114, %v3111
    %v3116 = vmul.f32 %v3114, %v3112
    %v3117 = vadd.f32 %v3109, %v3115
    %v3118 = vadd.f32 %v3110, %v3116
    %s3119 = sld [smem:[#allocation3 + $0x2d]]
    %v3120 = vstv %s3119
    %v3121 = vmul.f32 %v3120, %v3111
    %v3122 = vmul.f32 %v3120, %v3112
    %v3123 = vadd.f32 %v3093, %v3121
    %v3124 = vadd.f32 %v3094, %v3122
    %v3125 = vld [vmem:[%s473 + $0x2] sm:$0xff]
    %v3126 = vld [vmem:[%s473 + $0xa] sm:$0xff]
    %s3127 = sld [smem:[#allocation3 + $0x86]]
    %v3128 = vstv %s3127
    %v3129 = vmul.f32 %v3128, %v3125
    %v3130 = vmul.f32 %v3128, %v3126
    %v3131 = vadd.f32 %v3117, %v3129
    %v3132 = vadd.f32 %v3118, %v3130
    %s3133 = sld [smem:[#allocation3 + $0x32]]
    %v3134 = vstv %s3133
    %v3135 = vmul.f32 %v3134, %v3125
    %v3136 = vmul.f32 %v3134, %v3126
    %v3137 = vadd.f32 %v3123, %v3135
    %v3138 = vadd.f32 %v3124, %v3136
    %s3139 = sld [smem:[#allocation3 + $0xa]]
    %v3140 = vstv %s3139
    %v3141 = vmul.f32 %v3140, %v3125
    %v3142 = vmul.f32 %v3140, %v3126
    %v3143 = vadd.f32 %v3079, %v3141
    %v3144 = vadd.f32 %v3080, %v3142
    %v3145 = vld [vmem:[%s473 + $0x3] sm:$0xff]
    %v3146 = vld [vmem:[%s473 + $0xb] sm:$0xff]
    %s3147 = sld [smem:[#allocation3 + $0x8d]]
    %v3148 = vstv %s3147
    %v3149 = vmul.f32 %v3148, %v3145
    %v3150 = vmul.f32 %v3148, %v3146
    %v3151 = vadd.f32 %v3131, %v3149
    %v3152 = vadd.f32 %v3132, %v3150
    %s3153 = sld [smem:[#allocation3 + $0x37]]
    %v3154 = vstv %s3153
    %v3155 = vmul.f32 %v3154, %v3145
    %v3156 = vmul.f32 %v3154, %v3146
    %v3157 = vadd.f32 %v3137, %v3155
    %v3158 = vadd.f32 %v3138, %v3156
    %s3159 = sld [smem:[#allocation3 + $0xd]]
    %v3160 = vstv %s3159
    %v3161 = vmul.f32 %v3160, %v3145
    %v3162 = vmul.f32 %v3160, %v3146
    %v3163 = vadd.f32 %v3143, %v3161
    %v3164 = vadd.f32 %v3144, %v3162
    %v3165 = vld [vmem:[%s473 + $0x4] sm:$0xff]
    %v3166 = vld [vmem:[%s473 + $0xc] sm:$0xff]
    %s3167 = sld [smem:[#allocation3 + $0x94]]
    %v3168 = vstv %s3167
    %v3169 = vmul.f32 %v3168, %v3165
    %v3170 = vmul.f32 %v3168, %v3166
    %v3171 = vadd.f32 %v3151, %v3169
    %v3172 = vadd.f32 %v3152, %v3170
    %s3173 = sld [smem:[#allocation3 + $0x3c]]
    %v3174 = vstv %s3173
    %v3175 = vmul.f32 %v3174, %v3165
    %v3176 = vmul.f32 %v3174, %v3166
    %v3177 = vadd.f32 %v3157, %v3175
    %v3178 = vadd.f32 %v3158, %v3176
    %s3179 = sld [smem:[#allocation3 + $0x10]]
    %v3180 = vstv %s3179
    %v3181 = vmul.f32 %v3180, %v3165
    %v3182 = vmul.f32 %v3180, %v3166
    %v3183 = vadd.f32 %v3163, %v3181
    %v3184 = vadd.f32 %v3164, %v3182
    %v3185 = vld [vmem:[%s473 + $0x5] sm:$0xff]
    %v3186 = vld [vmem:[%s473 + $0xd] sm:$0xff]
    %s3187 = sld [smem:[#allocation3 + $0x9b]]
    %v3188 = vstv %s3187
    %v3189 = vmul.f32 %v3188, %v3185
    %v3190 = vmul.f32 %v3188, %v3186
    %v3191 = vadd.f32 %v3171, %v3189
    %v3192 = vadd.f32 %v3172, %v3190
    %s3193 = sld [smem:[#allocation3 + $0x41]]
    %v3194 = vstv %s3193
    %v3195 = vmul.f32 %v3194, %v3185
    %v3196 = vmul.f32 %v3194, %v3186
    %v3197 = vadd.f32 %v3177, %v3195
    %v3198 = vadd.f32 %v3178, %v3196
    %v3199 = vld [vmem:[%s473 + $0x6] sm:$0xff]
    %v3200 = vld [vmem:[%s473 + $0xe] sm:$0xff]
    %s3201 = sld [smem:[#allocation3 + $0xa2]]
    %v3202 = vstv %s3201
    %v3203 = vmul.f32 %v3202, %v3199
    %v3204 = vmul.f32 %v3202, %v3200
    %v3205 = vadd.f32 %v3191, %v3203
    %v3206 = vadd.f32 %v3192, %v3204
    %v3207 = vld [vmem:[%s484] sm:$0xff]
    %v3208 = vld [vmem:[%s484 + $0x8] sm:$0xff]
    %s3209 = sld [smem:[#allocation3 + $0x79]]
    %v3210 = vstv %s3209
    %v3211 = vmul.f32 %v3210, %v3207
    %v3212 = vmul.f32 %v3210, %v3208
    %v3213 = vadd.f32 %v3205, %v3211
    %v3214 = vadd.f32 %v3206, %v3212
    %v3215 = vld [vmem:[%s484 + $0x1] sm:$0xff]
    %v3216 = vld [vmem:[%s484 + $0x9] sm:$0xff]
    %s3217 = sld [smem:[#allocation3 + $0x80]]
    %v3218 = vstv %s3217
    %v3219 = vmul.f32 %v3218, %v3215
    %v3220 = vmul.f32 %v3218, %v3216
    %v3221 = vadd.f32 %v3213, %v3219
    %v3222 = vadd.f32 %v3214, %v3220
    %s3223 = sld [smem:[#allocation3 + $0x2e]]
    %v3224 = vstv %s3223
    %v3225 = vmul.f32 %v3224, %v3215
    %v3226 = vmul.f32 %v3224, %v3216
    %v3227 = vadd.f32 %v3197, %v3225
    %v3228 = vadd.f32 %v3198, %v3226
    %v3229 = vld [vmem:[%s484 + $0x2] sm:$0xff]
    %v3230 = vld [vmem:[%s484 + $0xa] sm:$0xff]
    %s3231 = sld [smem:[#allocation3 + $0x87]]
    %v3232 = vstv %s3231
    %v3233 = vmul.f32 %v3232, %v3229
    %v3234 = vmul.f32 %v3232, %v3230
    %v3235 = vadd.f32 %v3221, %v3233
    %v3236 = vadd.f32 %v3222, %v3234
    %s3237 = sld [smem:[#allocation3 + $0x33]]
    %v3238 = vstv %s3237
    %v3239 = vmul.f32 %v3238, %v3229
    %v3240 = vmul.f32 %v3238, %v3230
    %v3241 = vadd.f32 %v3227, %v3239
    %v3242 = vadd.f32 %v3228, %v3240
    %s3243 = sld [smem:[#allocation3 + $0xb]]
    %v3244 = vstv %s3243
    %v3245 = vmul.f32 %v3244, %v3229
    %v3246 = vmul.f32 %v3244, %v3230
    %v3247 = vadd.f32 %v3183, %v3245
    %v3248 = vadd.f32 %v3184, %v3246
    %v3249 = vld [vmem:[%s484 + $0x3] sm:$0xff]
    %v3250 = vld [vmem:[%s484 + $0xb] sm:$0xff]
    %s3251 = sld [smem:[#allocation3 + $0x8e]]
    %v3252 = vstv %s3251
    %v3253 = vmul.f32 %v3252, %v3249
    %v3254 = vmul.f32 %v3252, %v3250
    %v3255 = vadd.f32 %v3235, %v3253
    %v3256 = vadd.f32 %v3236, %v3254
    %s3257 = sld [smem:[#allocation3 + $0x38]]
    %v3258 = vstv %s3257
    %v3259 = vmul.f32 %v3258, %v3249
    %v3260 = vmul.f32 %v3258, %v3250
    %v3261 = vadd.f32 %v3241, %v3259
    %v3262 = vadd.f32 %v3242, %v3260
    %s3263 = sld [smem:[#allocation3 + $0xe]]
    %v3264 = vstv %s3263
    %v3265 = vmul.f32 %v3264, %v3249
    %v3266 = vmul.f32 %v3264, %v3250
    %v3267 = vadd.f32 %v3247, %v3265
    %v3268 = vadd.f32 %v3248, %v3266
    %v3269 = vld [vmem:[%s484 + $0x4] sm:$0xff]
    %v3270 = vld [vmem:[%s484 + $0xc] sm:$0xff]
    %s3271 = sld [smem:[#allocation3 + $0x95]]
    %v3272 = vstv %s3271
    %v3273 = vmul.f32 %v3272, %v3269
    %v3274 = vmul.f32 %v3272, %v3270
    %v3275 = vadd.f32 %v3255, %v3273
    %v3276 = vadd.f32 %v3256, %v3274
    %s3277 = sld [smem:[#allocation3 + $0x3d]]
    %v3278 = vstv %s3277
    %v3279 = vmul.f32 %v3278, %v3269
    %v3280 = vmul.f32 %v3278, %v3270
    %v3281 = vadd.f32 %v3261, %v3279
    %v3282 = vadd.f32 %v3262, %v3280
    %s3283 = sld [smem:[#allocation3 + $0x11]]
    %v3284 = vstv %s3283
    %v3285 = vmul.f32 %v3284, %v3269
    %v3286 = vmul.f32 %v3284, %v3270
    %v3287 = vadd.f32 %v3267, %v3285
    %v3288 = vadd.f32 %v3268, %v3286
    %v3289 = vld [vmem:[%s484 + $0x5] sm:$0xff]
    %v3290 = vld [vmem:[%s484 + $0xd] sm:$0xff]
    %s3291 = sld [smem:[#allocation3 + $0x9c]]
    %v3292 = vstv %s3291
    %v3293 = vmul.f32 %v3292, %v3289
    %v3294 = vmul.f32 %v3292, %v3290
    %v3295 = vadd.f32 %v3275, %v3293
    %v3296 = vadd.f32 %v3276, %v3294
    %s3297 = sld [smem:[#allocation3 + $0x42]]
    %v3298 = vstv %s3297
    %v3299 = vmul.f32 %v3298, %v3289
    %v3300 = vmul.f32 %v3298, %v3290
    %v3301 = vadd.f32 %v3281, %v3299
    %v3302 = vadd.f32 %v3282, %v3300
    %v3303 = vld [vmem:[%s484 + $0x6] sm:$0xff]
    %v3304 = vld [vmem:[%s484 + $0xe] sm:$0xff]
    %s3305 = sld [smem:[#allocation3 + $0xa3]]
    %v3306 = vstv %s3305
    %v3307 = vmul.f32 %v3306, %v3303
    %v3308 = vmul.f32 %v3306, %v3304
    %v3309 = vadd.f32 %v3295, %v3307
    %v3310 = vadd.f32 %v3296, %v3308
    %v3311 = vld [vmem:[%s495] sm:$0xff]
    %v3312 = vld [vmem:[%s495 + $0x8] sm:$0xff]
    %s3313 = sld [smem:[#allocation3 + $0x7a]]
    %v3314 = vstv %s3313
    %v3315 = vmul.f32 %v3314, %v3311
    %v3316 = vmul.f32 %v3314, %v3312
    %v3317 = vadd.f32 %v3309, %v3315
    %v3318 = vadd.f32 %v3310, %v3316
    %v3319 = vld [vmem:[%s495 + $0x1] sm:$0xff]
    %v3320 = vld [vmem:[%s495 + $0x9] sm:$0xff]
    %s3321 = sld [smem:[#allocation3 + $0x81]]
    %v3322 = vstv %s3321
    %v3323 = vmul.f32 %v3322, %v3319
    %v3324 = vmul.f32 %v3322, %v3320
    %v3325 = vadd.f32 %v3317, %v3323
    %v3326 = vadd.f32 %v3318, %v3324
    %s3327 = sld [smem:[#allocation3 + $0x2f]]
    %v3328 = vstv %s3327
    %v3329 = vmul.f32 %v3328, %v3319
    %v3330 = vmul.f32 %v3328, %v3320
    %v3331 = vadd.f32 %v3301, %v3329
    %v3332 = vadd.f32 %v3302, %v3330
    %v3333 = vld [vmem:[%s495 + $0x2] sm:$0xff]
    %v3334 = vld [vmem:[%s495 + $0xa] sm:$0xff]
    %s3335 = sld [smem:[#allocation3 + $0x88]]
    %v3336 = vstv %s3335
    %v3337 = vmul.f32 %v3336, %v3333
    %v3338 = vmul.f32 %v3336, %v3334
    %v3339 = vadd.f32 %v3325, %v3337
    %v3340 = vadd.f32 %v3326, %v3338
    %s3341 = sld [smem:[#allocation3 + $0x34]]
    %v3342 = vstv %s3341
    %v3343 = vmul.f32 %v3342, %v3333
    %v3344 = vmul.f32 %v3342, %v3334
    %v3345 = vadd.f32 %v3331, %v3343
    %v3346 = vadd.f32 %v3332, %v3344
    %v3347 = vld [vmem:[%s495 + $0x3] sm:$0xff]
    %v3348 = vld [vmem:[%s495 + $0xb] sm:$0xff]
    %s3349 = sld [smem:[#allocation3 + $0x8f]]
    %v3350 = vstv %s3349
    %v3351 = vmul.f32 %v3350, %v3347
    %v3352 = vmul.f32 %v3350, %v3348
    %v3353 = vadd.f32 %v3339, %v3351
    %v3354 = vadd.f32 %v3340, %v3352
    %s3355 = sld [smem:[#allocation3 + $0x39]]
    %v3356 = vstv %s3355
    %v3357 = vmul.f32 %v3356, %v3347
    %v3358 = vmul.f32 %v3356, %v3348
    %v3359 = vadd.f32 %v3345, %v3357
    %v3360 = vadd.f32 %v3346, %v3358
    %v3361 = vld [vmem:[%s495 + $0x4] sm:$0xff]
    %v3362 = vld [vmem:[%s495 + $0xc] sm:$0xff]
    %s3363 = sld [smem:[#allocation3 + $0x96]]
    %v3364 = vstv %s3363
    %v3365 = vmul.f32 %v3364, %v3361
    %v3366 = vmul.f32 %v3364, %v3362
    %v3367 = vadd.f32 %v3353, %v3365
    %v3368 = vadd.f32 %v3354, %v3366
    %s3369 = sld [smem:[#allocation3 + $0x3e]]
    %v3370 = vstv %s3369
    %v3371 = vmul.f32 %v3370, %v3361
    %v3372 = vmul.f32 %v3370, %v3362
    %v3373 = vadd.f32 %v3359, %v3371
    %v3374 = vadd.f32 %v3360, %v3372
    %v3375 = vld [vmem:[%s495 + $0x5] sm:$0xff]
    %v3376 = vld [vmem:[%s495 + $0xd] sm:$0xff]
    %s3377 = sld [smem:[#allocation3 + $0x9d]]
    %v3378 = vstv %s3377
    %v3379 = vmul.f32 %v3378, %v3375
    %v3380 = vmul.f32 %v3378, %v3376
    %v3381 = vadd.f32 %v3367, %v3379
    %v3382 = vadd.f32 %v3368, %v3380
    %s3383 = sld [smem:[#allocation3 + $0x43]]
    %v3384 = vstv %s3383
    %v3385 = vmul.f32 %v3384, %v3375
    %v3386 = vmul.f32 %v3384, %v3376
    %v3387 = vadd.f32 %v3373, %v3385
    %v3388 = vadd.f32 %v3374, %v3386
    %v3389 = vld [vmem:[%s495 + $0x6] sm:$0xff]
    %v3390 = vld [vmem:[%s495 + $0xe] sm:$0xff]
    %s3391 = sld [smem:[#allocation3 + $0xa4]]
    %v3392 = vstv %s3391
    %v3393 = vmul.f32 %v3392, %v3389
    %v3394 = vmul.f32 %v3392, %v3390
    %v3395 = vadd.f32 %v3381, %v3393
    %v3396 = vadd.f32 %v3382, %v3394
    %v3397 = vld [vmem:[%s506] sm:$0xff]
    %v3398 = vld [vmem:[%s506 + $0x8] sm:$0xff]
    %s3399 = sld [smem:[#allocation3 + $0x7b]]
    %v3400 = vstv %s3399
    %v3401 = vmul.f32 %v3400, %v3397
    %v3402 = vmul.f32 %v3400, %v3398
    %v3403 = vadd.f32 %v3395, %v3401
    %v3404 = vadd.f32 %v3396, %v3402
    %v3405 = vld [vmem:[%s506 + $0x1] sm:$0xff]
    %v3406 = vld [vmem:[%s506 + $0x9] sm:$0xff]
    %s3407 = sld [smem:[#allocation3 + $0x82]]
    %v3408 = vstv %s3407
    %v3409 = vmul.f32 %v3408, %v3405
    %v3410 = vmul.f32 %v3408, %v3406
    %v3411 = vadd.f32 %v3403, %v3409
    %v3412 = vadd.f32 %v3404, %v3410
    %v3413 = vld [vmem:[%s506 + $0x2] sm:$0xff]
    %v3414 = vld [vmem:[%s506 + $0xa] sm:$0xff]
    %s3415 = sld [smem:[#allocation3 + $0x89]]
    %v3416 = vstv %s3415
    %v3417 = vmul.f32 %v3416, %v3413
    %v3418 = vmul.f32 %v3416, %v3414
    %v3419 = vadd.f32 %v3411, %v3417
    %v3420 = vadd.f32 %v3412, %v3418
    %v3421 = vld [vmem:[%s506 + $0x3] sm:$0xff]
    %v3422 = vld [vmem:[%s506 + $0xb] sm:$0xff]
    %s3423 = sld [smem:[#allocation3 + $0x90]]
    %v3424 = vstv %s3423
    %v3425 = vmul.f32 %v3424, %v3421
    %v3426 = vmul.f32 %v3424, %v3422
    %v3427 = vadd.f32 %v3419, %v3425
    %v3428 = vadd.f32 %v3420, %v3426
    %v3429 = vld [vmem:[%s506 + $0x4] sm:$0xff]
    %v3430 = vld [vmem:[%s506 + $0xc] sm:$0xff]
    %s3431 = sld [smem:[#allocation3 + $0x97]]
    %v3432 = vstv %s3431
    %v3433 = vmul.f32 %v3432, %v3429
    %v3434 = vmul.f32 %v3432, %v3430
    %v3435 = vadd.f32 %v3427, %v3433
    %v3436 = vadd.f32 %v3428, %v3434
    %v3437 = vld [vmem:[%s506 + $0x5] sm:$0xff]
    %v3438 = vld [vmem:[%s506 + $0xd] sm:$0xff]
    %s3439 = sld [smem:[#allocation3 + $0x9e]]
    %v3440 = vstv %s3439
    %v3441 = vmul.f32 %v3440, %v3437
    %v3442 = vmul.f32 %v3440, %v3438
    %v3443 = vadd.f32 %v3435, %v3441
    %v3444 = vadd.f32 %v3436, %v3442
    %v3445 = vld [vmem:[%s506 + $0x6] sm:$0xff]
    %v3446 = vld [vmem:[%s506 + $0xe] sm:$0xff]
    %s3447 = sld [smem:[#allocation3 + $0xa5]]
    %v3448 = vstv %s3447
    %v3449 = vmul.f32 %v3448, %v3445
    %v3450 = vmul.f32 %v3448, %v3446
    %v3451 = vadd.f32 %v3443, %v3449
    %v3452 = vadd.f32 %v3444, %v3450
    %s3453 = sld [smem:[#allocation5 + $0x3]]
    %v3454 = vmax.f32 %v3287, 0.0
    %v3455 = vmax.f32 %v3288, 0.0
    %v3456 = vstv %s3453
    %v3457 = vmul.f32 %v3456, %v3454
    %v3458 = vmul.f32 %v3456, %v3455
    %s3459 = sld [smem:[#allocation5 + $0x4]]
    %v3460 = vmax.f32 %v3387, 0.0
    %v3461 = vmax.f32 %v3388, 0.0
    %v3462 = vstv %s3459
    %v3463 = vmul.f32 %v3462, %v3460
    %v3464 = vmul.f32 %v3462, %v3461
    %v3465 = vadd.f32 %v3457, %v3463
    %v3466 = vadd.f32 %v3458, %v3464
    %s3467 = sld [smem:[#allocation5 + $0x5]]
    %v3468 = vmax.f32 %v3451, 0.0
    %v3469 = vmax.f32 %v3452, 0.0
    %v3470 = vstv %s3467
    %v3471 = vmul.f32 %v3470, %v3468
    %v3472 = vmul.f32 %v3470, %v3469
    %v3473 = vadd.f32 %v3465, %v3471
    %v3474 = vadd.f32 %v3466, %v3472
    %s3475 = sld [smem:[#allocation5 + $0x6]]
    %v3476 = vstv %s3475
    %v3477 = vadd.f32 %v3473, %v3476
    %v3478 = vadd.f32 %v3474, %v3476
    %v3479 = vxor.u32 %v3477, 2147483648
    %v3480 = vxor.u32 %v3478, 2147483648
    %v3481 = vmul.f32 %v3479, 1.442695
    %v3482 = vpow.pop %v3481
    %v3483 = vmul.f32 %v3480, 1.442695
    %v3484 = vpow.pop %v3483
    %v3485 = vadd.f32 %v3482, 1.0
    %v3486 = vadd.f32 %v3484, 1.0
    %v3487 = vrcp.pop %v3485
    %v3488 = vmul.f32 1.0, %v3487
    %v3489 = vrcp.pop %v3486
    %v3490 = vmul.f32 1.0, %v3489
    %v3492 = vrot.slane %v3488, 1
    %3493 = vrot.lane.b32.xlu0 %v3492, 16
    %v3494 = vpop.permute.xlu0 %3493
    %v3496 = vrot.slane %v3488, 2
    %3497 = vrot.lane.b32.xlu0 %v3496, 32
    %v3498 = vpop.permute.xlu0 %3497
    %v3500 = vrot.slane %v3488, 3
    %3501 = vrot.lane.b32.xlu0 %v3500, 48
    %v3502 = vpop.permute.xlu0 %3501
    %v3504 = vrot.slane %v3488, 4
    %3505 = vrot.lane.b32.xlu0 %v3504, 64
    %v3506 = vpop.permute.xlu0 %3505
    %v3508 = vrot.slane %v3488, 5
    %3509 = vrot.lane.b32.xlu0 %v3508, 80
    %v3510 = vpop.permute.xlu0 %3509
    %v3512 = vrot.slane %v3488, 6
    %3513 = vrot.lane.b32.xlu0 %v3512, 96
    %v3514 = vpop.permute.xlu0 %3513
    %v3516 = vrot.slane %v3488, 7
    %3517 = vrot.lane.b32.xlu0 %v3516, 112
    %v3518 = vpop.permute.xlu0 %3517
    %v3521 = vrot.slane %v3490, 1
    %3522 = vrot.lane.b32.xlu0 %v3521, 16
    %v3523 = vpop.permute.xlu0 %3522
    %v3525 = vrot.slane %v3490, 2
    %3526 = vrot.lane.b32.xlu0 %v3525, 32
    %v3527 = vpop.permute.xlu0 %3526
    %v3529 = vrot.slane %v3490, 3
    %3530 = vrot.lane.b32.xlu0 %v3529, 48
    %v3531 = vpop.permute.xlu0 %3530
    %v3533 = vrot.slane %v3490, 4
    %3534 = vrot.lane.b32.xlu0 %v3533, 64
    %v3535 = vpop.permute.xlu0 %3534
    %v3537 = vrot.slane %v3490, 5
    %3538 = vrot.lane.b32.xlu0 %v3537, 80
    %v3539 = vpop.permute.xlu0 %3538
    %v3541 = vrot.slane %v3490, 6
    %3542 = vrot.lane.b32.xlu0 %v3541, 96
    %v3543 = vpop.permute.xlu0 %3542
    %v3545 = vrot.slane %v3490, 7
    %3546 = vrot.lane.b32.xlu0 %v3545, 112
    %v3547 = vpop.permute.xlu0 %3546
    %v3549 = vsel %vm45, %v3488, %v3494
    %v3550 = vsel %vm1807, %v3549, %v3498
    %v3551 = vsel %vm1809, %v3550, %v3502
    %v3552 = vsel %vm1811, %v3551, %v3506
    %v3553 = vsel %vm1813, %v3552, %v3510
    %v3554 = vsel %vm1815, %v3553, %v3514
    %v3555 = vsel %vm1817, %v3554, %v3518
    %v3556 = vsel %vm45, %v3490, %v3523
    %v3557 = vsel %vm1807, %v3556, %v3527
    %v3558 = vsel %vm1809, %v3557, %v3531
    %v3559 = vsel %vm1811, %v3558, %v3535
    %v3560 = vsel %vm1813, %v3559, %v3539
    %v3561 = vsel %vm1815, %v3560, %v3543
    %v3562 = vsel %vm1817, %v3561, %v3547
    %v3563 = vld [vmem:[%s1961] sm:$0xff]
    %v3564 = vld [vmem:[%s1961 + $0x8] sm:$0xff]
    %v3565 = vld [vmem:[%s1961 + $0x10] sm:$0xff]
    %v3566 = vld [vmem:[%s1961 + $0x18] sm:$0xff]
    %v3567 = vld [vmem:[%s1961 + $0x20] sm:$0xff]
    %v3568 = vld [vmem:[%s1961 + $0x28] sm:$0xff]
    %v3569 = vld [vmem:[%s1961 + $0x30] sm:$0xff]
    %v3570 = vld [vmem:[%s1961 + $0x38] sm:$0xff]
    %v3571 = vlaneseq
    %v3572 = vshrl.u32 %v3571, 7
    %v3573 = vsub.s32 0, %v3572
    %v3574 = vrot.slane %v3555, %v3573
    %v3575 = vlaneseq
    %v3576 = vshrl.u32 %v3575, 7
    %v3577 = vsub.s32 0, %v3576
    %v3578 = vrot.slane %v3562, %v3577
    %v3579 = vmul.f32 %v3563, %v3574
    %v3580 = vmul.f32 %v3564, %v3578
    %v3581 = vmul.f32 %v3565, %v3574
    %v3582 = vmul.f32 %v3566, %v3578
    %v3583 = vmul.f32 %v3567, %v3574
    %v3584 = vmul.f32 %v3568, %v3578
    %v3585 = vmul.f32 %v3569, %v3574
    %v3586 = vmul.f32 %v3570, %v3578
    %3587 = vst [vmem:[%s1961] sm:$0xff] %v3579
    %3588 = vst [vmem:[%s1961 + $0x8] sm:$0xff] %v3580
    %3589 = vst [vmem:[%s1961 + $0x10] sm:$0xff] %v3581
    %3590 = vst [vmem:[%s1961 + $0x18] sm:$0xff] %v3582
    %3591 = vst [vmem:[%s1961 + $0x20] sm:$0xff] %v3583
    %3592 = vst [vmem:[%s1961 + $0x28] sm:$0xff] %v3584
    %3593 = vst [vmem:[%s1961 + $0x30] sm:$0xff] %v3585
    %3594 = vst [vmem:[%s1961 + $0x38] sm:$0xff] %v3586
    // Predicated region
    $region30: #{mulfcam_pallas.1} parent=1 // pred_check
      _
    $region31: #{mulfcam_pallas.1} parent=1 // pred_check_branch
      %3596 = sbr.rel (0) target = $region33
    $region32: #{mulfcam_pallas.1} parent=1 // pred_region
      _
    $region33: #{mulfcam_pallas.1} parent=1 // pred_fallthru
      _
    // Predicated region
    $region34: #{mulfcam_pallas.1} parent=1 // pred_check
      _
    $region35: #{mulfcam_pallas.1} parent=1 // pred_check_branch
      %3598 = sbr.rel (0) target = $region37
    $region36: #{mulfcam_pallas.1} parent=1 // pred_region
      _
    $region37: #{mulfcam_pallas.1} parent=1 // pred_fallthru
      _
    %3599 = vsyncpa [#allocation4], 1
    %3600 = vsyncpa [#allocation6], 1

</llo_original>
